<compile_context>
chip_gen: v6e
topology: v6e:2x2x1
jax: 0.10.0
libtpu: 0.0.40
codegen_flags: <defaults>
</compile_context>

<pallas_src>
import jax
import jax.numpy as jnp
from jax.experimental import pallas as pl
from jax.experimental.pallas import tpu as pltpu

_EPS = 1e-5


# ----------------------------------------------------------------------------
# Fused whole-network kernel (one grid step == one sample)
# ----------------------------------------------------------------------------
def _fused_kernel(patches_ref, wc1, sc1, bc1,
                  r1w1, r1s1, r1b1, r1w2, r1s2, r1b2, r1w3, r1s3, r1b3, r1wsc,
                  r2w1, r2s1, r2b1, r2w2, r2s2, r2b2, r2w3, r2s3, r2b3,
                  r3w1, r3s1, r3b1, r3w2, r3s2, r3b2, r3w3, r3s3, r3b3, r3wsc,
                  fc1w, hscale, hshift, fc2w, fc2b,
                  o_ref):
    f32 = jnp.float32

    def conv3x3_slab(h, H, W):
        """h: (H*W, C) rows (h, w) -> (H*W, 9C) zero-padded tap slab."""
        M, C = h.shape
        hr = h.reshape(H, W, C)
        zrow = jnp.zeros((1, W, C), f32)
        hv = jnp.concatenate([zrow, hr, zrow], axis=0)            # (H+2, W, C)
        zcol = jnp.zeros((H + 2, 1, C), f32)
        hp = jnp.concatenate([zcol, hv, zcol], axis=1)            # (H+2, W+2, C)
        taps = [hp[kh:kh + H, kw:kw + W, :].reshape(M, C)
                for kh in range(3) for kw in range(3)]
        return jnp.concatenate(taps, axis=-1)                     # (M, 9C)

    def res_block(x, H, W, w1, s1, b1, w2, s2, b2, w3, s3, b3, wsc):
        # 1x1 conv + BN + ReLU
        h = jnp.dot(x, w1[...], preferred_element_type=f32)
        h = jnp.maximum(h * s1[...] + b1[...], 0.0)
        # 3x3 conv (pad=1) + BN + ReLU — single big-K MXU matmul
        g = jnp.dot(conv3x3_slab(h, H, W), w2[...], preferred_element_type=f32)
        g = jnp.maximum(g * s2[...] + b2[...], 0.0)
        # 1x1 conv + BN, shortcut (1x1 conv or identity), residual add, ReLU
        z = jnp.dot(g, w3[...], preferred_element_type=f32) * s3[...] + b3[...]
        sc = x if wsc is None else jnp.dot(x, wsc[...], preferred_element_type=f32)
        return jnp.maximum(z + sc, 0.0)

    def pool2x2(z, H, W):
        """z: (H*W, C) rows (h, w) -> ((H/2)*(W/2), C) 2x2 max-pooled."""
        C = z.shape[-1]
        zw = z.reshape(H * (W // 2), 2, C)
        zw = jnp.maximum(zw[:, 0, :], zw[:, 1, :])                # pool width
        zh = zw.reshape(H // 2, 2, (W // 2), C)
        zh = jnp.maximum(zh[:, 0, :, :], zh[:, 1, :, :])          # pool height
        return zh.reshape((H // 2) * (W // 2), C)

    # conv1 (7x7, Cin=1) + BN + ReLU as one (1024, 49) @ (49, 64) matmul on the
    # pool-ordered im2col slab; the first 2x2 max-pool is then an elementwise
    # max of the 4 contiguous parity slabs (rows ordered (parity, h2, w2)).
    p = patches_ref[0]                                            # (1024, 49)
    y = jnp.dot(p, wc1[...], preferred_element_type=f32)
    y = jnp.maximum(y * sc1[...] + bc1[...], 0.0)                 # (1024, 64)
    x1 = jnp.maximum(jnp.maximum(y[0:256], y[256:512]),
                     jnp.maximum(y[512:768], y[768:1024]))        # (256, 64) 16x16

    # residual blocks, each followed by its fused 2x2 max-pool
    a1 = res_block(x1, 16, 16, r1w1, r1s1, r1b1, r1w2, r1s2, r1b2,
                   r1w3, r1s3, r1b3, r1wsc)                       # (256, 128)
    x2 = pool2x2(a1, 16, 16)                                      # (64, 128)  8x8
    a2 = res_block(x2, 8, 8, r2w1, r2s1, r2b1, r2w2, r2s2, r2b2,
                   r2w3, r2s3, r2b3, None)                        # (64, 128)
    x3 = pool2x2(a2, 8, 8)                                        # (16, 128)  4x4
    a3 = res_block(x3, 4, 4, r3w1, r3s1, r3b1, r3w2, r3s2, r3b2,
                   r3w3, r3s3, r3b3, r3wsc)                       # (16, 64)
    x4 = pool2x2(a3, 4, 4)                                        # (4, 64)    2x2

    # head: global avg pool -> fc1 (+bias, BN1d folded) -> ReLU -> fc2 -> log_softmax
    feat = (x4[0:1] + x4[1:2] + x4[2:3] + x4[3:4]) * 0.25         # (1, 64)
    h = jnp.dot(feat, fc1w[...], preferred_element_type=f32)
    h = jnp.maximum(h * hscale[...] + hshift[...], 0.0)
    # TODO(synk): Dropout(0.5) is the identity here (inference semantics).
    logits = jnp.dot(h, fc2w[...], preferred_element_type=f32) + fc2b[...]
    zc = logits - jnp.max(logits, axis=1, keepdims=True)
    logp = zc - jnp.log(jnp.sum(jnp.exp(zc), axis=1, keepdims=True))
    o_ref[...] = logp.reshape(1, 1, 10)


def _fixed_spec(shape):
    """Whole-array VMEM block, same block for every grid step (fetched once)."""
    nd = len(shape)

    def imap(b):
        return (0,) * nd

    return pl.BlockSpec(shape, imap)


# ----------------------------------------------------------------------------
# Wrapper: builds the pool-ordered conv1 im2col slab and launches ONE kernel
# ----------------------------------------------------------------------------
def resnet_block3_forward(x_nchw, params):
    B, _, H, W = x_nchw.shape
    assert (H, W) == (36, 36)

    # conv1 im2col (Cin=1, 7x7, pad=1 -> 32x32), rows ordered per-sample by
    # (pool parity q = 2*ph+pw, h2, w2) so the first max-pool is free in-kernel.
    xp = jnp.pad(x_nchw[:, 0], ((0, 0), (1, 1), (1, 1)))              # (B, 38, 38)
    taps = [xp[:, kh:kh + 32, kw:kw + 32] for kh in range(7) for kw in range(7)]
    pat = jnp.stack(taps, axis=-1)                                     # (B, 32, 32, 49)
    pat = pat.reshape(B, 16, 2, 16, 2, 49).transpose(0, 2, 4, 1, 3, 5)
    patches = pat.reshape(B, 1024, 49)

    p = params

    def rb_args(q, cin, cout, has_sc):
        a = [q['w1'].reshape(cin, cin),
             q['bn1'][0].reshape(1, cin), q['bn1'][1].reshape(1, cin),
             q['w2'].reshape(9 * cin, cin),
             q['bn2'][0].reshape(1, cin), q['bn2'][1].reshape(1, cin),
             q['w3'].reshape(cin, cout),
             q['bn3'][0].reshape(1, cout), q['bn3'][1].reshape(1, cout)]
        if has_sc:
            a.append(q['wsc'].reshape(cin, cout))
        return a

    weight_args = ([p['conv1_w'].reshape(49, 64),
                    p['bn1'][0].reshape(1, 64), p['bn1'][1].reshape(1, 64)]
                   + rb_args(p['rb1'], 64, 128, True)
                   + rb_args(p['rb2'], 128, 128, False)
                   + rb_args(p['rb3'], 128, 64, True)
                   + [p['fc1_w'], p['head_scale'], p['head_shift'],
                      p['fc2_w'], p['fc2_b']])

    in_specs = ([pl.BlockSpec((1, 1024, 49), lambda b: (b, 0, 0))]
                + [_fixed_spec(a.shape) for a in weight_args])

    out = pl.pallas_call(
        _fused_kernel,
        out_shape=jax.ShapeDtypeStruct((B, 1, 10), jnp.float32),
        grid=(B,),
        in_specs=in_specs,
        out_specs=pl.BlockSpec((1, 1, 10), lambda b: (b, 0, 0)),
        compiler_params=pltpu.CompilerParams(
            dimension_semantics=("parallel",),
            vmem_limit_bytes=32 * 1024 * 1024),
    )(patches, *weight_args)
    return out.reshape(B, 10)


# ----------------------------------------------------------------------------
# Parameters (deterministic synthetic init; conv weights in HWIO layout)
# ----------------------------------------------------------------------------
def make_params(key):
    keys = iter(jax.random.split(key, 64))

    def conv_w(kh, kw, cin, cout):
        return 0.05 * jax.random.normal(next(keys), (kh, kw, cin, cout), jnp.float32)

    def bn(c):
        gamma = 1.0 + 0.1 * jax.random.normal(next(keys), (c,), jnp.float32)
        beta = 0.1 * jax.random.normal(next(keys), (c,), jnp.float32)
        mean = 0.1 * jax.random.normal(next(keys), (c,), jnp.float32)
        var = 1.0 + 0.1 * jax.random.uniform(next(keys), (c,), jnp.float32)
        scale = gamma / jnp.sqrt(var + _EPS)
        return scale, beta - mean * scale

    def res_block(cin, cout):
        q = {'w1': conv_w(1, 1, cin, cin), 'bn1': bn(cin),
             'w2': conv_w(3, 3, cin, cin), 'bn2': bn(cin),
             'w3': conv_w(1, 1, cin, cout), 'bn3': bn(cout)}
        if cin != cout:
            q['wsc'] = conv_w(1, 1, cin, cout)   # PyTorch shortcut conv has no BN
        return q

    params = {'conv1_w': conv_w(7, 7, 1, 64), 'bn1': bn(64),
              'rb1': res_block(64, 128),
              'rb2': res_block(128, 128),
              'rb3': res_block(128, 64)}

    fc1_w = 0.05 * jax.random.normal(next(keys), (64, 32), jnp.float32)   # (in, out)
    fc1_b = 0.05 * jax.random.normal(next(keys), (32,), jnp.float32)
    s1, sh1 = bn(32)   # BatchNorm1d(32): bn(fc1(x)) = (x@W)*s1 + (b*s1 + sh1)
    params['fc1_w'] = fc1_w
    params['head_scale'] = s1.reshape(1, 32)
    params['head_shift'] = (fc1_b * s1 + sh1).reshape(1, 32)
    params['fc2_w'] = 0.05 * jax.random.normal(next(keys), (32, 10), jnp.float32)
    params['fc2_b'] = (0.05 * jax.random.normal(next(keys), (10,), jnp.float32)
                       ).reshape(1, 10)
    return params


if __name__ == "__main__":
    key = jax.random.PRNGKey(0)
    pkey, xkey = jax.random.split(key)
    params = make_params(pkey)
    x = jax.random.normal(xkey, (2, 1, 36, 36), jnp.float32)      # NCHW like PyTorch

    fwd = jax.jit(lambda inp: resnet_block3_forward(inp, params))
    out = fwd(x)
    jax.block_until_ready(out)

    assert out.shape == (2, 10), out.shape
    # log_softmax consistency: probabilities sum to 1
    assert bool(jnp.allclose(jnp.sum(jnp.exp(out), axis=1), 1.0, atol=1e-3))
    print("KERNEL_OK")
</pallas_src>

<mosaic_0001>
module attributes {stable_mosaic.version = 11 : i64} {
  func.func @_fused_kernel(%arg0: i32, %arg1: memref<1x1024x49xf32, #tpu.memory_space<vmem>>, %arg2: memref<49x64xf32, #tpu.memory_space<vmem>>, %arg3: memref<1x64xf32, #tpu.memory_space<vmem>>, %arg4: memref<1x64xf32, #tpu.memory_space<vmem>>, %arg5: memref<64x64xf32, #tpu.memory_space<vmem>>, %arg6: memref<1x64xf32, #tpu.memory_space<vmem>>, %arg7: memref<1x64xf32, #tpu.memory_space<vmem>>, %arg8: memref<576x64xf32, #tpu.memory_space<vmem>>, %arg9: memref<1x64xf32, #tpu.memory_space<vmem>>, %arg10: memref<1x64xf32, #tpu.memory_space<vmem>>, %arg11: memref<64x128xf32, #tpu.memory_space<vmem>>, %arg12: memref<1x128xf32, #tpu.memory_space<vmem>>, %arg13: memref<1x128xf32, #tpu.memory_space<vmem>>, %arg14: memref<64x128xf32, #tpu.memory_space<vmem>>, %arg15: memref<128x128xf32, #tpu.memory_space<vmem>>, %arg16: memref<1x128xf32, #tpu.memory_space<vmem>>, %arg17: memref<1x128xf32, #tpu.memory_space<vmem>>, %arg18: memref<1152x128xf32, #tpu.memory_space<vmem>>, %arg19: memref<1x128xf32, #tpu.memory_space<vmem>>, %arg20: memref<1x128xf32, #tpu.memory_space<vmem>>, %arg21: memref<128x128xf32, #tpu.memory_space<vmem>>, %arg22: memref<1x128xf32, #tpu.memory_space<vmem>>, %arg23: memref<1x128xf32, #tpu.memory_space<vmem>>, %arg24: memref<128x128xf32, #tpu.memory_space<vmem>>, %arg25: memref<1x128xf32, #tpu.memory_space<vmem>>, %arg26: memref<1x128xf32, #tpu.memory_space<vmem>>, %arg27: memref<1152x128xf32, #tpu.memory_space<vmem>>, %arg28: memref<1x128xf32, #tpu.memory_space<vmem>>, %arg29: memref<1x128xf32, #tpu.memory_space<vmem>>, %arg30: memref<128x64xf32, #tpu.memory_space<vmem>>, %arg31: memref<1x64xf32, #tpu.memory_space<vmem>>, %arg32: memref<1x64xf32, #tpu.memory_space<vmem>>, %arg33: memref<128x64xf32, #tpu.memory_space<vmem>>, %arg34: memref<64x32xf32, #tpu.memory_space<vmem>>, %arg35: memref<1x32xf32, #tpu.memory_space<vmem>>, %arg36: memref<1x32xf32, #tpu.memory_space<vmem>>, %arg37: memref<32x10xf32, #tpu.memory_space<vmem>>, %arg38: memref<1x10xf32, #tpu.memory_space<vmem>>, %arg39: memref<1x1x10xf32, #tpu.memory_space<vmem>>) attributes {dimension_semantics = [#tpu.dimension_semantics<parallel>], iteration_bounds = array<i64: 2>, scalar_prefetch = 0 : i64, scratch_operands = 0 : i64, tpu.core_type = #tpu.core_type<tc>, window_params = [{transform_indices = @transform_0, window_bounds = array<i64: 1, 1024, 49>}, {pipeline_mode = #tpu.pipeline_mode<synchronous>, transform_indices = @transform_1, window_bounds = array<i64: 49, 64>}, {pipeline_mode = #tpu.pipeline_mode<synchronous>, transform_indices = @transform_2, window_bounds = array<i64: 1, 64>}, {pipeline_mode = #tpu.pipeline_mode<synchronous>, transform_indices = @transform_3, window_bounds = array<i64: 1, 64>}, {pipeline_mode = #tpu.pipeline_mode<synchronous>, transform_indices = @transform_4, window_bounds = array<i64: 64, 64>}, {pipeline_mode = #tpu.pipeline_mode<synchronous>, transform_indices = @transform_5, window_bounds = array<i64: 1, 64>}, {pipeline_mode = #tpu.pipeline_mode<synchronous>, transform_indices = @transform_6, window_bounds = array<i64: 1, 64>}, {pipeline_mode = #tpu.pipeline_mode<synchronous>, transform_indices = @transform_7, window_bounds = array<i64: 576, 64>}, {pipeline_mode = #tpu.pipeline_mode<synchronous>, transform_indices = @transform_8, window_bounds = array<i64: 1, 64>}, {pipeline_mode = #tpu.pipeline_mode<synchronous>, transform_indices = @transform_9, window_bounds = array<i64: 1, 64>}, {pipeline_mode = #tpu.pipeline_mode<synchronous>, transform_indices = @transform_10, window_bounds = array<i64: 64, 128>}, {pipeline_mode = #tpu.pipeline_mode<synchronous>, transform_indices = @transform_11, window_bounds = array<i64: 1, 128>}, {pipeline_mode = #tpu.pipeline_mode<synchronous>, transform_indices = @transform_12, window_bounds = array<i64: 1, 128>}, {pipeline_mode = #tpu.pipeline_mode<synchronous>, transform_indices = @transform_13, window_bounds = array<i64: 64, 128>}, {pipeline_mode = #tpu.pipeline_mode<synchronous>, transform_indices = @transform_14, window_bounds = array<i64: 128, 128>}, {pipeline_mode = #tpu.pipeline_mode<synchronous>, transform_indices = @transform_15, window_bounds = array<i64: 1, 128>}, {pipeline_mode = #tpu.pipeline_mode<synchronous>, transform_indices = @transform_16, window_bounds = array<i64: 1, 128>}, {pipeline_mode = #tpu.pipeline_mode<synchronous>, transform_indices = @transform_17, window_bounds = array<i64: 1152, 128>}, {pipeline_mode = #tpu.pipeline_mode<synchronous>, transform_indices = @transform_18, window_bounds = array<i64: 1, 128>}, {pipeline_mode = #tpu.pipeline_mode<synchronous>, transform_indices = @transform_19, window_bounds = array<i64: 1, 128>}, {pipeline_mode = #tpu.pipeline_mode<synchronous>, transform_indices = @transform_20, window_bounds = array<i64: 128, 128>}, {pipeline_mode = #tpu.pipeline_mode<synchronous>, transform_indices = @transform_21, window_bounds = array<i64: 1, 128>}, {pipeline_mode = #tpu.pipeline_mode<synchronous>, transform_indices = @transform_22, window_bounds = array<i64: 1, 128>}, {pipeline_mode = #tpu.pipeline_mode<synchronous>, transform_indices = @transform_23, window_bounds = array<i64: 128, 128>}, {pipeline_mode = #tpu.pipeline_mode<synchronous>, transform_indices = @transform_24, window_bounds = array<i64: 1, 128>}, {pipeline_mode = #tpu.pipeline_mode<synchronous>, transform_indices = @transform_25, window_bounds = array<i64: 1, 128>}, {pipeline_mode = #tpu.pipeline_mode<synchronous>, transform_indices = @transform_26, window_bounds = array<i64: 1152, 128>}, {pipeline_mode = #tpu.pipeline_mode<synchronous>, transform_indices = @transform_27, window_bounds = array<i64: 1, 128>}, {pipeline_mode = #tpu.pipeline_mode<synchronous>, transform_indices = @transform_28, window_bounds = array<i64: 1, 128>}, {pipeline_mode = #tpu.pipeline_mode<synchronous>, transform_indices = @transform_29, window_bounds = array<i64: 128, 64>}, {pipeline_mode = #tpu.pipeline_mode<synchronous>, transform_indices = @transform_30, window_bounds = array<i64: 1, 64>}, {pipeline_mode = #tpu.pipeline_mode<synchronous>, transform_indices = @transform_31, window_bounds = array<i64: 1, 64>}, {pipeline_mode = #tpu.pipeline_mode<synchronous>, transform_indices = @transform_32, window_bounds = array<i64: 128, 64>}, {pipeline_mode = #tpu.pipeline_mode<synchronous>, transform_indices = @transform_33, window_bounds = array<i64: 64, 32>}, {pipeline_mode = #tpu.pipeline_mode<synchronous>, transform_indices = @transform_34, window_bounds = array<i64: 1, 32>}, {pipeline_mode = #tpu.pipeline_mode<synchronous>, transform_indices = @transform_35, window_bounds = array<i64: 1, 32>}, {pipeline_mode = #tpu.pipeline_mode<synchronous>, transform_indices = @transform_36, window_bounds = array<i64: 32, 10>}, {pipeline_mode = #tpu.pipeline_mode<synchronous>, transform_indices = @transform_37, window_bounds = array<i64: 1, 10>}, {transform_indices = @transform_38, window_bounds = array<i64: 1, 1, 10>}]} {
    %c0 = arith.constant 0 : index
    %c0_0 = arith.constant 0 : index
    %c0_1 = arith.constant 0 : index
    %0 = vector.load %arg1[%c0, %c0_0, %c0_1] : memref<1x1024x49xf32, #tpu.memory_space<vmem>>, vector<1x1024x49xf32>
    %1 = vector.shape_cast %0 : vector<1x1024x49xf32> to vector<1024x49xf32>
    %c0_2 = arith.constant 0 : index
    %c0_3 = arith.constant 0 : index
    %2 = vector.load %arg2[%c0_2, %c0_3] : memref<49x64xf32, #tpu.memory_space<vmem>>, vector<49x64xf32>
    %cst = arith.constant dense<0.000000e+00> : vector<1024x64xf32>
    %3 = tpu.matmul %1, %2, %cst {dimension_numbers = #tpu.dot_dimension_numbers<[1], [0], [0], [1], [0, 0, 1, 1], [], []>} : vector<1024x49xf32>, vector<49x64xf32>, vector<1024x64xf32> -> vector<1024x64xf32>
    %c0_4 = arith.constant 0 : index
    %c0_5 = arith.constant 0 : index
    %4 = vector.load %arg3[%c0_4, %c0_5] : memref<1x64xf32, #tpu.memory_space<vmem>>, vector<1x64xf32>
    %5 = vector.broadcast %4 : vector<1x64xf32> to vector<1024x64xf32>
    %6 = arith.mulf %3, %5 : vector<1024x64xf32>
    %c0_6 = arith.constant 0 : index
    %c0_7 = arith.constant 0 : index
    %7 = vector.load %arg4[%c0_6, %c0_7] : memref<1x64xf32, #tpu.memory_space<vmem>>, vector<1x64xf32>
    %8 = vector.broadcast %7 : vector<1x64xf32> to vector<1024x64xf32>
    %9 = arith.addf %6, %8 : vector<1024x64xf32>
    %cst_8 = arith.constant 0.000000e+00 : f32
    %10 = vector.broadcast %cst_8 : f32 to vector<1024x64xf32>
    %11 = arith.maximumf %9, %10 : vector<1024x64xf32>
    %12 = vector.extract_strided_slice %11 {offsets = [0, 0], sizes = [256, 64], strides = [1, 1]} : vector<1024x64xf32> to vector<256x64xf32>
    %13 = vector.extract_strided_slice %11 {offsets = [256, 0], sizes = [256, 64], strides = [1, 1]} : vector<1024x64xf32> to vector<256x64xf32>
    %14 = arith.maximumf %12, %13 : vector<256x64xf32>
    %15 = vector.extract_strided_slice %11 {offsets = [512, 0], sizes = [256, 64], strides = [1, 1]} : vector<1024x64xf32> to vector<256x64xf32>
    %16 = vector.extract_strided_slice %11 {offsets = [768, 0], sizes = [256, 64], strides = [1, 1]} : vector<1024x64xf32> to vector<256x64xf32>
    %17 = arith.maximumf %15, %16 : vector<256x64xf32>
    %18 = arith.maximumf %14, %17 : vector<256x64xf32>
    %c0_9 = arith.constant 0 : index
    %c0_10 = arith.constant 0 : index
    %19 = vector.load %arg5[%c0_9, %c0_10] : memref<64x64xf32, #tpu.memory_space<vmem>>, vector<64x64xf32>
    %cst_11 = arith.constant dense<0.000000e+00> : vector<256x64xf32>
    %20 = tpu.matmul %18, %19, %cst_11 {dimension_numbers = #tpu.dot_dimension_numbers<[1], [0], [0], [1], [0, 0, 1, 1], [], []>} : vector<256x64xf32>, vector<64x64xf32>, vector<256x64xf32> -> vector<256x64xf32>
    %c0_12 = arith.constant 0 : index
    %c0_13 = arith.constant 0 : index
    %21 = vector.load %arg6[%c0_12, %c0_13] : memref<1x64xf32, #tpu.memory_space<vmem>>, vector<1x64xf32>
    %22 = vector.broadcast %21 : vector<1x64xf32> to vector<256x64xf32>
    %23 = arith.mulf %20, %22 : vector<256x64xf32>
    %c0_14 = arith.constant 0 : index
    %c0_15 = arith.constant 0 : index
    %24 = vector.load %arg7[%c0_14, %c0_15] : memref<1x64xf32, #tpu.memory_space<vmem>>, vector<1x64xf32>
    %25 = vector.broadcast %24 : vector<1x64xf32> to vector<256x64xf32>
    %26 = arith.addf %23, %25 : vector<256x64xf32>
    %cst_16 = arith.constant 0.000000e+00 : f32
    %27 = vector.broadcast %cst_16 : f32 to vector<256x64xf32>
    %28 = arith.maximumf %26, %27 : vector<256x64xf32>
    %29 = vector.shape_cast %28 : vector<256x64xf32> to vector<16x16x64xf32>
    %cst_17 = arith.constant 0.000000e+00 : f32
    %30 = vector.broadcast %cst_17 : f32 to vector<1x16x64xf32>
    %31 = tpu.concatenate %30, %29, %30 in 0 : vector<1x16x64xf32>, vector<16x16x64xf32>, vector<1x16x64xf32> -> vector<18x16x64xf32>
    %cst_18 = arith.constant 0.000000e+00 : f32
    %32 = vector.broadcast %cst_18 : f32 to vector<18x1x64xf32>
    %33 = tpu.concatenate %32, %31, %32 in 1 : vector<18x1x64xf32>, vector<18x16x64xf32>, vector<18x1x64xf32> -> vector<18x18x64xf32>
    %34 = vector.extract_strided_slice %33 {offsets = [0, 0, 0], sizes = [16, 16, 64], strides = [1, 1, 1]} : vector<18x18x64xf32> to vector<16x16x64xf32>
    %35 = vector.shape_cast %34 : vector<16x16x64xf32> to vector<256x64xf32>
    %36 = vector.extract_strided_slice %33 {offsets = [0, 1, 0], sizes = [16, 16, 64], strides = [1, 1, 1]} : vector<18x18x64xf32> to vector<16x16x64xf32>
    %37 = vector.shape_cast %36 : vector<16x16x64xf32> to vector<256x64xf32>
    %38 = vector.extract_strided_slice %33 {offsets = [0, 2, 0], sizes = [16, 16, 64], strides = [1, 1, 1]} : vector<18x18x64xf32> to vector<16x16x64xf32>
    %39 = vector.shape_cast %38 : vector<16x16x64xf32> to vector<256x64xf32>
    %40 = vector.extract_strided_slice %33 {offsets = [1, 0, 0], sizes = [16, 16, 64], strides = [1, 1, 1]} : vector<18x18x64xf32> to vector<16x16x64xf32>
    %41 = vector.shape_cast %40 : vector<16x16x64xf32> to vector<256x64xf32>
    %42 = vector.extract_strided_slice %33 {offsets = [1, 1, 0], sizes = [16, 16, 64], strides = [1, 1, 1]} : vector<18x18x64xf32> to vector<16x16x64xf32>
    %43 = vector.shape_cast %42 : vector<16x16x64xf32> to vector<256x64xf32>
    %44 = vector.extract_strided_slice %33 {offsets = [1, 2, 0], sizes = [16, 16, 64], strides = [1, 1, 1]} : vector<18x18x64xf32> to vector<16x16x64xf32>
    %45 = vector.shape_cast %44 : vector<16x16x64xf32> to vector<256x64xf32>
    %46 = vector.extract_strided_slice %33 {offsets = [2, 0, 0], sizes = [16, 16, 64], strides = [1, 1, 1]} : vector<18x18x64xf32> to vector<16x16x64xf32>
    %47 = vector.shape_cast %46 : vector<16x16x64xf32> to vector<256x64xf32>
    %48 = vector.extract_strided_slice %33 {offsets = [2, 1, 0], sizes = [16, 16, 64], strides = [1, 1, 1]} : vector<18x18x64xf32> to vector<16x16x64xf32>
    %49 = vector.shape_cast %48 : vector<16x16x64xf32> to vector<256x64xf32>
    %50 = vector.extract_strided_slice %33 {offsets = [2, 2, 0], sizes = [16, 16, 64], strides = [1, 1, 1]} : vector<18x18x64xf32> to vector<16x16x64xf32>
    %51 = vector.shape_cast %50 : vector<16x16x64xf32> to vector<256x64xf32>
    %52 = tpu.concatenate %35, %37, %39, %41, %43, %45, %47, %49, %51 in 1 : vector<256x64xf32>, vector<256x64xf32>, vector<256x64xf32>, vector<256x64xf32>, vector<256x64xf32>, vector<256x64xf32>, vector<256x64xf32>, vector<256x64xf32>, vector<256x64xf32> -> vector<256x576xf32>
    %c0_19 = arith.constant 0 : index
    %c0_20 = arith.constant 0 : index
    %53 = vector.load %arg8[%c0_19, %c0_20] : memref<576x64xf32, #tpu.memory_space<vmem>>, vector<576x64xf32>
    %cst_21 = arith.constant dense<0.000000e+00> : vector<256x64xf32>
    %54 = tpu.matmul %52, %53, %cst_21 {dimension_numbers = #tpu.dot_dimension_numbers<[1], [0], [0], [1], [0, 0, 1, 1], [], []>} : vector<256x576xf32>, vector<576x64xf32>, vector<256x64xf32> -> vector<256x64xf32>
    %c0_22 = arith.constant 0 : index
    %c0_23 = arith.constant 0 : index
    %55 = vector.load %arg9[%c0_22, %c0_23] : memref<1x64xf32, #tpu.memory_space<vmem>>, vector<1x64xf32>
    %56 = vector.broadcast %55 : vector<1x64xf32> to vector<256x64xf32>
    %57 = arith.mulf %54, %56 : vector<256x64xf32>
    %c0_24 = arith.constant 0 : index
    %c0_25 = arith.constant 0 : index
    %58 = vector.load %arg10[%c0_24, %c0_25] : memref<1x64xf32, #tpu.memory_space<vmem>>, vector<1x64xf32>
    %59 = vector.broadcast %58 : vector<1x64xf32> to vector<256x64xf32>
    %60 = arith.addf %57, %59 : vector<256x64xf32>
    %cst_26 = arith.constant 0.000000e+00 : f32
    %61 = vector.broadcast %cst_26 : f32 to vector<256x64xf32>
    %62 = arith.maximumf %60, %61 : vector<256x64xf32>
    %c0_27 = arith.constant 0 : index
    %c0_28 = arith.constant 0 : index
    %63 = vector.load %arg11[%c0_27, %c0_28] : memref<64x128xf32, #tpu.memory_space<vmem>>, vector<64x128xf32>
    %cst_29 = arith.constant dense<0.000000e+00> : vector<256x128xf32>
    %64 = tpu.matmul %62, %63, %cst_29 {dimension_numbers = #tpu.dot_dimension_numbers<[1], [0], [0], [1], [0, 0, 1, 1], [], []>} : vector<256x64xf32>, vector<64x128xf32>, vector<256x128xf32> -> vector<256x128xf32>
    %c0_30 = arith.constant 0 : index
    %c0_31 = arith.constant 0 : index
    %65 = vector.load %arg12[%c0_30, %c0_31] : memref<1x128xf32, #tpu.memory_space<vmem>>, vector<1x128xf32>
    %66 = vector.broadcast %65 : vector<1x128xf32> to vector<256x128xf32>
    %67 = arith.mulf %64, %66 : vector<256x128xf32>
    %c0_32 = arith.constant 0 : index
    %c0_33 = arith.constant 0 : index
    %68 = vector.load %arg13[%c0_32, %c0_33] : memref<1x128xf32, #tpu.memory_space<vmem>>, vector<1x128xf32>
    %69 = vector.broadcast %68 : vector<1x128xf32> to vector<256x128xf32>
    %70 = arith.addf %67, %69 : vector<256x128xf32>
    %c0_34 = arith.constant 0 : index
    %c0_35 = arith.constant 0 : index
    %71 = vector.load %arg14[%c0_34, %c0_35] : memref<64x128xf32, #tpu.memory_space<vmem>>, vector<64x128xf32>
    %cst_36 = arith.constant dense<0.000000e+00> : vector<256x128xf32>
    %72 = tpu.matmul %18, %71, %cst_36 {dimension_numbers = #tpu.dot_dimension_numbers<[1], [0], [0], [1], [0, 0, 1, 1], [], []>} : vector<256x64xf32>, vector<64x128xf32>, vector<256x128xf32> -> vector<256x128xf32>
    %73 = arith.addf %70, %72 : vector<256x128xf32>
    %cst_37 = arith.constant 0.000000e+00 : f32
    %74 = vector.broadcast %cst_37 : f32 to vector<256x128xf32>
    %75 = arith.maximumf %73, %74 : vector<256x128xf32>
    %76 = vector.shape_cast %75 : vector<256x128xf32> to vector<128x2x128xf32>
    %77 = vector.extract_strided_slice %76 {offsets = [0, 0, 0], sizes = [128, 1, 128], strides = [1, 1, 1]} : vector<128x2x128xf32> to vector<128x1x128xf32>
    %78 = vector.shape_cast %77 : vector<128x1x128xf32> to vector<128x128xf32>
    %79 = vector.extract_strided_slice %76 {offsets = [0, 1, 0], sizes = [128, 1, 128], strides = [1, 1, 1]} : vector<128x2x128xf32> to vector<128x1x128xf32>
    %80 = vector.shape_cast %79 : vector<128x1x128xf32> to vector<128x128xf32>
    %81 = arith.maximumf %78, %80 : vector<128x128xf32>
    %82 = vector.shape_cast %81 : vector<128x128xf32> to vector<8x2x8x128xf32>
    %83 = vector.extract_strided_slice %82 {offsets = [0, 0, 0, 0], sizes = [8, 1, 8, 128], strides = [1, 1, 1, 1]} : vector<8x2x8x128xf32> to vector<8x1x8x128xf32>
    %84 = vector.shape_cast %83 : vector<8x1x8x128xf32> to vector<8x8x128xf32>
    %85 = vector.extract_strided_slice %82 {offsets = [0, 1, 0, 0], sizes = [8, 1, 8, 128], strides = [1, 1, 1, 1]} : vector<8x2x8x128xf32> to vector<8x1x8x128xf32>
    %86 = vector.shape_cast %85 : vector<8x1x8x128xf32> to vector<8x8x128xf32>
    %87 = arith.maximumf %84, %86 : vector<8x8x128xf32>
    %88 = vector.shape_cast %87 : vector<8x8x128xf32> to vector<64x128xf32>
    %c0_38 = arith.constant 0 : index
    %c0_39 = arith.constant 0 : index
    %89 = vector.load %arg15[%c0_38, %c0_39] : memref<128x128xf32, #tpu.memory_space<vmem>>, vector<128x128xf32>
    %cst_40 = arith.constant dense<0.000000e+00> : vector<64x128xf32>
    %90 = tpu.matmul %88, %89, %cst_40 {dimension_numbers = #tpu.dot_dimension_numbers<[1], [0], [0], [1], [0, 0, 1, 1], [], []>} : vector<64x128xf32>, vector<128x128xf32>, vector<64x128xf32> -> vector<64x128xf32>
    %c0_41 = arith.constant 0 : index
    %c0_42 = arith.constant 0 : index
    %91 = vector.load %arg16[%c0_41, %c0_42] : memref<1x128xf32, #tpu.memory_space<vmem>>, vector<1x128xf32>
    %92 = vector.broadcast %91 : vector<1x128xf32> to vector<64x128xf32>
    %93 = arith.mulf %90, %92 : vector<64x128xf32>
    %c0_43 = arith.constant 0 : index
    %c0_44 = arith.constant 0 : index
    %94 = vector.load %arg17[%c0_43, %c0_44] : memref<1x128xf32, #tpu.memory_space<vmem>>, vector<1x128xf32>
    %95 = vector.broadcast %94 : vector<1x128xf32> to vector<64x128xf32>
    %96 = arith.addf %93, %95 : vector<64x128xf32>
    %cst_45 = arith.constant 0.000000e+00 : f32
    %97 = vector.broadcast %cst_45 : f32 to vector<64x128xf32>
    %98 = arith.maximumf %96, %97 : vector<64x128xf32>
    %99 = vector.shape_cast %98 : vector<64x128xf32> to vector<8x8x128xf32>
    %cst_46 = arith.constant 0.000000e+00 : f32
    %100 = vector.broadcast %cst_46 : f32 to vector<1x8x128xf32>
    %101 = tpu.concatenate %100, %99, %100 in 0 : vector<1x8x128xf32>, vector<8x8x128xf32>, vector<1x8x128xf32> -> vector<10x8x128xf32>
    %cst_47 = arith.constant 0.000000e+00 : f32
    %102 = vector.broadcast %cst_47 : f32 to vector<10x1x128xf32>
    %103 = tpu.concatenate %102, %101, %102 in 1 : vector<10x1x128xf32>, vector<10x8x128xf32>, vector<10x1x128xf32> -> vector<10x10x128xf32>
    %104 = vector.extract_strided_slice %103 {offsets = [0, 0, 0], sizes = [8, 8, 128], strides = [1, 1, 1]} : vector<10x10x128xf32> to vector<8x8x128xf32>
    %105 = vector.shape_cast %104 : vector<8x8x128xf32> to vector<64x128xf32>
    %106 = vector.extract_strided_slice %103 {offsets = [0, 1, 0], sizes = [8, 8, 128], strides = [1, 1, 1]} : vector<10x10x128xf32> to vector<8x8x128xf32>
    %107 = vector.shape_cast %106 : vector<8x8x128xf32> to vector<64x128xf32>
    %108 = vector.extract_strided_slice %103 {offsets = [0, 2, 0], sizes = [8, 8, 128], strides = [1, 1, 1]} : vector<10x10x128xf32> to vector<8x8x128xf32>
    %109 = vector.shape_cast %108 : vector<8x8x128xf32> to vector<64x128xf32>
    %110 = vector.extract_strided_slice %103 {offsets = [1, 0, 0], sizes = [8, 8, 128], strides = [1, 1, 1]} : vector<10x10x128xf32> to vector<8x8x128xf32>
    %111 = vector.shape_cast %110 : vector<8x8x128xf32> to vector<64x128xf32>
    %112 = vector.extract_strided_slice %103 {offsets = [1, 1, 0], sizes = [8, 8, 128], strides = [1, 1, 1]} : vector<10x10x128xf32> to vector<8x8x128xf32>
    %113 = vector.shape_cast %112 : vector<8x8x128xf32> to vector<64x128xf32>
    %114 = vector.extract_strided_slice %103 {offsets = [1, 2, 0], sizes = [8, 8, 128], strides = [1, 1, 1]} : vector<10x10x128xf32> to vector<8x8x128xf32>
    %115 = vector.shape_cast %114 : vector<8x8x128xf32> to vector<64x128xf32>
    %116 = vector.extract_strided_slice %103 {offsets = [2, 0, 0], sizes = [8, 8, 128], strides = [1, 1, 1]} : vector<10x10x128xf32> to vector<8x8x128xf32>
    %117 = vector.shape_cast %116 : vector<8x8x128xf32> to vector<64x128xf32>
    %118 = vector.extract_strided_slice %103 {offsets = [2, 1, 0], sizes = [8, 8, 128], strides = [1, 1, 1]} : vector<10x10x128xf32> to vector<8x8x128xf32>
    %119 = vector.shape_cast %118 : vector<8x8x128xf32> to vector<64x128xf32>
    %120 = vector.extract_strided_slice %103 {offsets = [2, 2, 0], sizes = [8, 8, 128], strides = [1, 1, 1]} : vector<10x10x128xf32> to vector<8x8x128xf32>
    %121 = vector.shape_cast %120 : vector<8x8x128xf32> to vector<64x128xf32>
    %122 = tpu.concatenate %105, %107, %109, %111, %113, %115, %117, %119, %121 in 1 : vector<64x128xf32>, vector<64x128xf32>, vector<64x128xf32>, vector<64x128xf32>, vector<64x128xf32>, vector<64x128xf32>, vector<64x128xf32>, vector<64x128xf32>, vector<64x128xf32> -> vector<64x1152xf32>
    %c0_48 = arith.constant 0 : index
    %c0_49 = arith.constant 0 : index
    %123 = vector.load %arg18[%c0_48, %c0_49] : memref<1152x128xf32, #tpu.memory_space<vmem>>, vector<1152x128xf32>
    %cst_50 = arith.constant dense<0.000000e+00> : vector<64x128xf32>
    %124 = tpu.matmul %122, %123, %cst_50 {dimension_numbers = #tpu.dot_dimension_numbers<[1], [0], [0], [1], [0, 0, 1, 1], [], []>} : vector<64x1152xf32>, vector<1152x128xf32>, vector<64x128xf32> -> vector<64x128xf32>
    %c0_51 = arith.constant 0 : index
    %c0_52 = arith.constant 0 : index
    %125 = vector.load %arg19[%c0_51, %c0_52] : memref<1x128xf32, #tpu.memory_space<vmem>>, vector<1x128xf32>
    %126 = vector.broadcast %125 : vector<1x128xf32> to vector<64x128xf32>
    %127 = arith.mulf %124, %126 : vector<64x128xf32>
    %c0_53 = arith.constant 0 : index
    %c0_54 = arith.constant 0 : index
    %128 = vector.load %arg20[%c0_53, %c0_54] : memref<1x128xf32, #tpu.memory_space<vmem>>, vector<1x128xf32>
    %129 = vector.broadcast %128 : vector<1x128xf32> to vector<64x128xf32>
    %130 = arith.addf %127, %129 : vector<64x128xf32>
    %cst_55 = arith.constant 0.000000e+00 : f32
    %131 = vector.broadcast %cst_55 : f32 to vector<64x128xf32>
    %132 = arith.maximumf %130, %131 : vector<64x128xf32>
    %c0_56 = arith.constant 0 : index
    %c0_57 = arith.constant 0 : index
    %133 = vector.load %arg21[%c0_56, %c0_57] : memref<128x128xf32, #tpu.memory_space<vmem>>, vector<128x128xf32>
    %cst_58 = arith.constant dense<0.000000e+00> : vector<64x128xf32>
    %134 = tpu.matmul %132, %133, %cst_58 {dimension_numbers = #tpu.dot_dimension_numbers<[1], [0], [0], [1], [0, 0, 1, 1], [], []>} : vector<64x128xf32>, vector<128x128xf32>, vector<64x128xf32> -> vector<64x128xf32>
    %c0_59 = arith.constant 0 : index
    %c0_60 = arith.constant 0 : index
    %135 = vector.load %arg22[%c0_59, %c0_60] : memref<1x128xf32, #tpu.memory_space<vmem>>, vector<1x128xf32>
    %136 = vector.broadcast %135 : vector<1x128xf32> to vector<64x128xf32>
    %137 = arith.mulf %134, %136 : vector<64x128xf32>
    %c0_61 = arith.constant 0 : index
    %c0_62 = arith.constant 0 : index
    %138 = vector.load %arg23[%c0_61, %c0_62] : memref<1x128xf32, #tpu.memory_space<vmem>>, vector<1x128xf32>
    %139 = vector.broadcast %138 : vector<1x128xf32> to vector<64x128xf32>
    %140 = arith.addf %137, %139 : vector<64x128xf32>
    %141 = arith.addf %140, %88 : vector<64x128xf32>
    %cst_63 = arith.constant 0.000000e+00 : f32
    %142 = vector.broadcast %cst_63 : f32 to vector<64x128xf32>
    %143 = arith.maximumf %141, %142 : vector<64x128xf32>
    %144 = vector.shape_cast %143 : vector<64x128xf32> to vector<32x2x128xf32>
    %145 = vector.extract_strided_slice %144 {offsets = [0, 0, 0], sizes = [32, 1, 128], strides = [1, 1, 1]} : vector<32x2x128xf32> to vector<32x1x128xf32>
    %146 = vector.shape_cast %145 : vector<32x1x128xf32> to vector<32x128xf32>
    %147 = vector.extract_strided_slice %144 {offsets = [0, 1, 0], sizes = [32, 1, 128], strides = [1, 1, 1]} : vector<32x2x128xf32> to vector<32x1x128xf32>
    %148 = vector.shape_cast %147 : vector<32x1x128xf32> to vector<32x128xf32>
    %149 = arith.maximumf %146, %148 : vector<32x128xf32>
    %150 = vector.shape_cast %149 : vector<32x128xf32> to vector<4x2x4x128xf32>
    %151 = vector.extract_strided_slice %150 {offsets = [0, 0, 0, 0], sizes = [4, 1, 4, 128], strides = [1, 1, 1, 1]} : vector<4x2x4x128xf32> to vector<4x1x4x128xf32>
    %152 = vector.shape_cast %151 : vector<4x1x4x128xf32> to vector<4x4x128xf32>
    %153 = vector.extract_strided_slice %150 {offsets = [0, 1, 0, 0], sizes = [4, 1, 4, 128], strides = [1, 1, 1, 1]} : vector<4x2x4x128xf32> to vector<4x1x4x128xf32>
    %154 = vector.shape_cast %153 : vector<4x1x4x128xf32> to vector<4x4x128xf32>
    %155 = arith.maximumf %152, %154 : vector<4x4x128xf32>
    %156 = vector.shape_cast %155 : vector<4x4x128xf32> to vector<16x128xf32>
    %c0_64 = arith.constant 0 : index
    %c0_65 = arith.constant 0 : index
    %157 = vector.load %arg24[%c0_64, %c0_65] : memref<128x128xf32, #tpu.memory_space<vmem>>, vector<128x128xf32>
    %cst_66 = arith.constant dense<0.000000e+00> : vector<16x128xf32>
    %158 = tpu.matmul %156, %157, %cst_66 {dimension_numbers = #tpu.dot_dimension_numbers<[1], [0], [0], [1], [0, 0, 1, 1], [], []>} : vector<16x128xf32>, vector<128x128xf32>, vector<16x128xf32> -> vector<16x128xf32>
    %c0_67 = arith.constant 0 : index
    %c0_68 = arith.constant 0 : index
    %159 = vector.load %arg25[%c0_67, %c0_68] : memref<1x128xf32, #tpu.memory_space<vmem>>, vector<1x128xf32>
    %160 = vector.broadcast %159 : vector<1x128xf32> to vector<16x128xf32>
    %161 = arith.mulf %158, %160 : vector<16x128xf32>
    %c0_69 = arith.constant 0 : index
    %c0_70 = arith.constant 0 : index
    %162 = vector.load %arg26[%c0_69, %c0_70] : memref<1x128xf32, #tpu.memory_space<vmem>>, vector<1x128xf32>
    %163 = vector.broadcast %162 : vector<1x128xf32> to vector<16x128xf32>
    %164 = arith.addf %161, %163 : vector<16x128xf32>
    %cst_71 = arith.constant 0.000000e+00 : f32
    %165 = vector.broadcast %cst_71 : f32 to vector<16x128xf32>
    %166 = arith.maximumf %164, %165 : vector<16x128xf32>
    %167 = vector.shape_cast %166 : vector<16x128xf32> to vector<4x4x128xf32>
    %cst_72 = arith.constant 0.000000e+00 : f32
    %168 = vector.broadcast %cst_72 : f32 to vector<1x4x128xf32>
    %169 = tpu.concatenate %168, %167, %168 in 0 : vector<1x4x128xf32>, vector<4x4x128xf32>, vector<1x4x128xf32> -> vector<6x4x128xf32>
    %cst_73 = arith.constant 0.000000e+00 : f32
    %170 = vector.broadcast %cst_73 : f32 to vector<6x1x128xf32>
    %171 = tpu.concatenate %170, %169, %170 in 1 : vector<6x1x128xf32>, vector<6x4x128xf32>, vector<6x1x128xf32> -> vector<6x6x128xf32>
    %172 = vector.extract_strided_slice %171 {offsets = [0, 0, 0], sizes = [4, 4, 128], strides = [1, 1, 1]} : vector<6x6x128xf32> to vector<4x4x128xf32>
    %173 = vector.shape_cast %172 : vector<4x4x128xf32> to vector<16x128xf32>
    %174 = vector.extract_strided_slice %171 {offsets = [0, 1, 0], sizes = [4, 4, 128], strides = [1, 1, 1]} : vector<6x6x128xf32> to vector<4x4x128xf32>
    %175 = vector.shape_cast %174 : vector<4x4x128xf32> to vector<16x128xf32>
    %176 = vector.extract_strided_slice %171 {offsets = [0, 2, 0], sizes = [4, 4, 128], strides = [1, 1, 1]} : vector<6x6x128xf32> to vector<4x4x128xf32>
    %177 = vector.shape_cast %176 : vector<4x4x128xf32> to vector<16x128xf32>
    %178 = vector.extract_strided_slice %171 {offsets = [1, 0, 0], sizes = [4, 4, 128], strides = [1, 1, 1]} : vector<6x6x128xf32> to vector<4x4x128xf32>
    %179 = vector.shape_cast %178 : vector<4x4x128xf32> to vector<16x128xf32>
    %180 = vector.extract_strided_slice %171 {offsets = [1, 1, 0], sizes = [4, 4, 128], strides = [1, 1, 1]} : vector<6x6x128xf32> to vector<4x4x128xf32>
    %181 = vector.shape_cast %180 : vector<4x4x128xf32> to vector<16x128xf32>
    %182 = vector.extract_strided_slice %171 {offsets = [1, 2, 0], sizes = [4, 4, 128], strides = [1, 1, 1]} : vector<6x6x128xf32> to vector<4x4x128xf32>
    %183 = vector.shape_cast %182 : vector<4x4x128xf32> to vector<16x128xf32>
    %184 = vector.extract_strided_slice %171 {offsets = [2, 0, 0], sizes = [4, 4, 128], strides = [1, 1, 1]} : vector<6x6x128xf32> to vector<4x4x128xf32>
    %185 = vector.shape_cast %184 : vector<4x4x128xf32> to vector<16x128xf32>
    %186 = vector.extract_strided_slice %171 {offsets = [2, 1, 0], sizes = [4, 4, 128], strides = [1, 1, 1]} : vector<6x6x128xf32> to vector<4x4x128xf32>
    %187 = vector.shape_cast %186 : vector<4x4x128xf32> to vector<16x128xf32>
    %188 = vector.extract_strided_slice %171 {offsets = [2, 2, 0], sizes = [4, 4, 128], strides = [1, 1, 1]} : vector<6x6x128xf32> to vector<4x4x128xf32>
    %189 = vector.shape_cast %188 : vector<4x4x128xf32> to vector<16x128xf32>
    %190 = tpu.concatenate %173, %175, %177, %179, %181, %183, %185, %187, %189 in 1 : vector<16x128xf32>, vector<16x128xf32>, vector<16x128xf32>, vector<16x128xf32>, vector<16x128xf32>, vector<16x128xf32>, vector<16x128xf32>, vector<16x128xf32>, vector<16x128xf32> -> vector<16x1152xf32>
    %c0_74 = arith.constant 0 : index
    %c0_75 = arith.constant 0 : index
    %191 = vector.load %arg27[%c0_74, %c0_75] : memref<1152x128xf32, #tpu.memory_space<vmem>>, vector<1152x128xf32>
    %cst_76 = arith.constant dense<0.000000e+00> : vector<16x128xf32>
    %192 = tpu.matmul %190, %191, %cst_76 {dimension_numbers = #tpu.dot_dimension_numbers<[1], [0], [0], [1], [0, 0, 1, 1], [], []>} : vector<16x1152xf32>, vector<1152x128xf32>, vector<16x128xf32> -> vector<16x128xf32>
    %c0_77 = arith.constant 0 : index
    %c0_78 = arith.constant 0 : index
    %193 = vector.load %arg28[%c0_77, %c0_78] : memref<1x128xf32, #tpu.memory_space<vmem>>, vector<1x128xf32>
    %194 = vector.broadcast %193 : vector<1x128xf32> to vector<16x128xf32>
    %195 = arith.mulf %192, %194 : vector<16x128xf32>
    %c0_79 = arith.constant 0 : index
    %c0_80 = arith.constant 0 : index
    %196 = vector.load %arg29[%c0_79, %c0_80] : memref<1x128xf32, #tpu.memory_space<vmem>>, vector<1x128xf32>
    %197 = vector.broadcast %196 : vector<1x128xf32> to vector<16x128xf32>
    %198 = arith.addf %195, %197 : vector<16x128xf32>
    %cst_81 = arith.constant 0.000000e+00 : f32
    %199 = vector.broadcast %cst_81 : f32 to vector<16x128xf32>
    %200 = arith.maximumf %198, %199 : vector<16x128xf32>
    %c0_82 = arith.constant 0 : index
    %c0_83 = arith.constant 0 : index
    %201 = vector.load %arg30[%c0_82, %c0_83] : memref<128x64xf32, #tpu.memory_space<vmem>>, vector<128x64xf32>
    %cst_84 = arith.constant dense<0.000000e+00> : vector<16x64xf32>
    %202 = tpu.matmul %200, %201, %cst_84 {dimension_numbers = #tpu.dot_dimension_numbers<[1], [0], [0], [1], [0, 0, 1, 1], [], []>} : vector<16x128xf32>, vector<128x64xf32>, vector<16x64xf32> -> vector<16x64xf32>
    %c0_85 = arith.constant 0 : index
    %c0_86 = arith.constant 0 : index
    %203 = vector.load %arg31[%c0_85, %c0_86] : memref<1x64xf32, #tpu.memory_space<vmem>>, vector<1x64xf32>
    %204 = vector.broadcast %203 : vector<1x64xf32> to vector<16x64xf32>
    %205 = arith.mulf %202, %204 : vector<16x64xf32>
    %c0_87 = arith.constant 0 : index
    %c0_88 = arith.constant 0 : index
    %206 = vector.load %arg32[%c0_87, %c0_88] : memref<1x64xf32, #tpu.memory_space<vmem>>, vector<1x64xf32>
    %207 = vector.broadcast %206 : vector<1x64xf32> to vector<16x64xf32>
    %208 = arith.addf %205, %207 : vector<16x64xf32>
    %c0_89 = arith.constant 0 : index
    %c0_90 = arith.constant 0 : index
    %209 = vector.load %arg33[%c0_89, %c0_90] : memref<128x64xf32, #tpu.memory_space<vmem>>, vector<128x64xf32>
    %cst_91 = arith.constant dense<0.000000e+00> : vector<16x64xf32>
    %210 = tpu.matmul %156, %209, %cst_91 {dimension_numbers = #tpu.dot_dimension_numbers<[1], [0], [0], [1], [0, 0, 1, 1], [], []>} : vector<16x128xf32>, vector<128x64xf32>, vector<16x64xf32> -> vector<16x64xf32>
    %211 = arith.addf %208, %210 : vector<16x64xf32>
    %cst_92 = arith.constant 0.000000e+00 : f32
    %212 = vector.broadcast %cst_92 : f32 to vector<16x64xf32>
    %213 = arith.maximumf %211, %212 : vector<16x64xf32>
    %214 = vector.shape_cast %213 : vector<16x64xf32> to vector<8x2x64xf32>
    %215 = vector.extract_strided_slice %214 {offsets = [0, 0, 0], sizes = [8, 1, 64], strides = [1, 1, 1]} : vector<8x2x64xf32> to vector<8x1x64xf32>
    %216 = vector.shape_cast %215 : vector<8x1x64xf32> to vector<8x64xf32>
    %217 = vector.extract_strided_slice %214 {offsets = [0, 1, 0], sizes = [8, 1, 64], strides = [1, 1, 1]} : vector<8x2x64xf32> to vector<8x1x64xf32>
    %218 = vector.shape_cast %217 : vector<8x1x64xf32> to vector<8x64xf32>
    %219 = arith.maximumf %216, %218 : vector<8x64xf32>
    %220 = vector.shape_cast %219 : vector<8x64xf32> to vector<2x2x2x64xf32>
    %221 = vector.extract_strided_slice %220 {offsets = [0, 0, 0, 0], sizes = [2, 1, 2, 64], strides = [1, 1, 1, 1]} : vector<2x2x2x64xf32> to vector<2x1x2x64xf32>
    %222 = vector.shape_cast %221 : vector<2x1x2x64xf32> to vector<2x2x64xf32>
    %223 = vector.extract_strided_slice %220 {offsets = [0, 1, 0, 0], sizes = [2, 1, 2, 64], strides = [1, 1, 1, 1]} : vector<2x2x2x64xf32> to vector<2x1x2x64xf32>
    %224 = vector.shape_cast %223 : vector<2x1x2x64xf32> to vector<2x2x64xf32>
    %225 = arith.maximumf %222, %224 : vector<2x2x64xf32>
    %226 = vector.shape_cast %225 : vector<2x2x64xf32> to vector<4x64xf32>
    %227 = vector.extract_strided_slice %226 {offsets = [0, 0], sizes = [1, 64], strides = [1, 1]} : vector<4x64xf32> to vector<1x64xf32>
    %228 = vector.extract_strided_slice %226 {offsets = [1, 0], sizes = [1, 64], strides = [1, 1]} : vector<4x64xf32> to vector<1x64xf32>
    %229 = arith.addf %227, %228 : vector<1x64xf32>
    %230 = vector.extract_strided_slice %226 {offsets = [2, 0], sizes = [1, 64], strides = [1, 1]} : vector<4x64xf32> to vector<1x64xf32>
    %231 = arith.addf %229, %230 : vector<1x64xf32>
    %232 = vector.extract_strided_slice %226 {offsets = [3, 0], sizes = [1, 64], strides = [1, 1]} : vector<4x64xf32> to vector<1x64xf32>
    %233 = arith.addf %231, %232 : vector<1x64xf32>
    %cst_93 = arith.constant 2.500000e-01 : f32
    %234 = vector.broadcast %cst_93 : f32 to vector<1x64xf32>
    %235 = arith.mulf %233, %234 : vector<1x64xf32>
    %c0_94 = arith.constant 0 : index
    %c0_95 = arith.constant 0 : index
    %236 = vector.load %arg34[%c0_94, %c0_95] : memref<64x32xf32, #tpu.memory_space<vmem>>, vector<64x32xf32>
    %cst_96 = arith.constant dense<0.000000e+00> : vector<1x32xf32>
    %237 = tpu.matmul %235, %236, %cst_96 {dimension_numbers = #tpu.dot_dimension_numbers<[1], [0], [0], [1], [0, 0, 1, 1], [], []>} : vector<1x64xf32>, vector<64x32xf32>, vector<1x32xf32> -> vector<1x32xf32>
    %c0_97 = arith.constant 0 : index
    %c0_98 = arith.constant 0 : index
    %238 = vector.load %arg35[%c0_97, %c0_98] : memref<1x32xf32, #tpu.memory_space<vmem>>, vector<1x32xf32>
    %239 = arith.mulf %237, %238 : vector<1x32xf32>
    %c0_99 = arith.constant 0 : index
    %c0_100 = arith.constant 0 : index
    %240 = vector.load %arg36[%c0_99, %c0_100] : memref<1x32xf32, #tpu.memory_space<vmem>>, vector<1x32xf32>
    %241 = arith.addf %239, %240 : vector<1x32xf32>
    %cst_101 = arith.constant 0.000000e+00 : f32
    %242 = vector.broadcast %cst_101 : f32 to vector<1x32xf32>
    %243 = arith.maximumf %241, %242 : vector<1x32xf32>
    %c0_102 = arith.constant 0 : index
    %c0_103 = arith.constant 0 : index
    %244 = vector.load %arg37[%c0_102, %c0_103] : memref<32x10xf32, #tpu.memory_space<vmem>>, vector<32x10xf32>
    %cst_104 = arith.constant dense<0.000000e+00> : vector<1x10xf32>
    %245 = tpu.matmul %243, %244, %cst_104 {dimension_numbers = #tpu.dot_dimension_numbers<[1], [0], [0], [1], [0, 0, 1, 1], [], []>} : vector<1x32xf32>, vector<32x10xf32>, vector<1x10xf32> -> vector<1x10xf32>
    %c0_105 = arith.constant 0 : index
    %c0_106 = arith.constant 0 : index
    %246 = vector.load %arg38[%c0_105, %c0_106] : memref<1x10xf32, #tpu.memory_space<vmem>>, vector<1x10xf32>
    %247 = arith.addf %245, %246 : vector<1x10xf32>
    %cst_107 = arith.constant dense<0xFF800000> : vector<1xf32>
    %248 = vector.multi_reduction <maximumf>, %247, %cst_107 [1] : vector<1x10xf32> to vector<1xf32>
    %249 = vector.shape_cast %248 : vector<1xf32> to vector<1x1xf32>
    %250 = vector.broadcast %249 : vector<1x1xf32> to vector<1x10xf32>
    %251 = arith.subf %247, %250 : vector<1x10xf32>
    %252 = math.exp %251 : vector<1x10xf32>
    %cst_108 = arith.constant dense<0.000000e+00> : vector<1xf32>
    %253 = vector.multi_reduction <add>, %252, %cst_108 [1] : vector<1x10xf32> to vector<1xf32>
    %254 = vector.shape_cast %253 : vector<1xf32> to vector<1x1xf32>
    %255 = math.log %254 : vector<1x1xf32>
    %256 = vector.broadcast %255 : vector<1x1xf32> to vector<1x10xf32>
    %257 = arith.subf %251, %256 : vector<1x10xf32>
    %258 = vector.shape_cast %257 : vector<1x10xf32> to vector<1x1x10xf32>
    %c0_109 = arith.constant 0 : index
    %c0_110 = arith.constant 0 : index
    %c0_111 = arith.constant 0 : index
    %259 = vector.load %arg39[%c0_109, %c0_110, %c0_111] : memref<1x1x10xf32, #tpu.memory_space<vmem>>, vector<1x1x10xf32>
    tpu.vector_store %arg39[%c0_109, %c0_110, %c0_111], %258 {strides = array<i32>} : memref<1x1x10xf32, #tpu.memory_space<vmem>>, vector<1x1x10xf32>,
    return
  }
  func.func @transform_0(%arg0: i32) -> (i32, i32, i32) {
    %c0_i32 = arith.constant 0 : i32
    %c0_i32_0 = arith.constant 0 : i32
    %c0_i32_1 = arith.constant 0 : i32
    return %arg0, %c0_i32, %c0_i32_0 : i32, i32, i32
  }
  func.func @transform_1(%arg0: i32) -> (i32, i32) {
    %c0_i32 = arith.constant 0 : i32
    %c0_i32_0 = arith.constant 0 : i32
    %c0_i32_1 = arith.constant 0 : i32
    return %c0_i32, %c0_i32_0 : i32, i32
  }
  func.func @transform_2(%arg0: i32) -> (i32, i32) {
    %c0_i32 = arith.constant 0 : i32
    %c0_i32_0 = arith.constant 0 : i32
    %c0_i32_1 = arith.constant 0 : i32
    return %c0_i32, %c0_i32_0 : i32, i32
  }
  func.func @transform_3(%arg0: i32) -> (i32, i32) {
    %c0_i32 = arith.constant 0 : i32
    %c0_i32_0 = arith.constant 0 : i32
    %c0_i32_1 = arith.constant 0 : i32
    return %c0_i32, %c0_i32_0 : i32, i32
  }
  func.func @transform_4(%arg0: i32) -> (i32, i32) {
    %c0_i32 = arith.constant 0 : i32
    %c0_i32_0 = arith.constant 0 : i32
    %c0_i32_1 = arith.constant 0 : i32
    return %c0_i32, %c0_i32_0 : i32, i32
  }
  func.func @transform_5(%arg0: i32) -> (i32, i32) {
    %c0_i32 = arith.constant 0 : i32
    %c0_i32_0 = arith.constant 0 : i32
    %c0_i32_1 = arith.constant 0 : i32
    return %c0_i32, %c0_i32_0 : i32, i32
  }
  func.func @transform_6(%arg0: i32) -> (i32, i32) {
    %c0_i32 = arith.constant 0 : i32
    %c0_i32_0 = arith.constant 0 : i32
    %c0_i32_1 = arith.constant 0 : i32
    return %c0_i32, %c0_i32_0 : i32, i32
  }
  func.func @transform_7(%arg0: i32) -> (i32, i32) {
    %c0_i32 = arith.constant 0 : i32
    %c0_i32_0 = arith.constant 0 : i32
    %c0_i32_1 = arith.constant 0 : i32
    return %c0_i32, %c0_i32_0 : i32, i32
  }
  func.func @transform_8(%arg0: i32) -> (i32, i32) {
    %c0_i32 = arith.constant 0 : i32
    %c0_i32_0 = arith.constant 0 : i32
    %c0_i32_1 = arith.constant 0 : i32
    return %c0_i32, %c0_i32_0 : i32, i32
  }
  func.func @transform_9(%arg0: i32) -> (i32, i32) {
    %c0_i32 = arith.constant 0 : i32
    %c0_i32_0 = arith.constant 0 : i32
    %c0_i32_1 = arith.constant 0 : i32
    return %c0_i32, %c0_i32_0 : i32, i32
  }
  func.func @transform_10(%arg0: i32) -> (i32, i32) {
    %c0_i32 = arith.constant 0 : i32
    %c0_i32_0 = arith.constant 0 : i32
    %c0_i32_1 = arith.constant 0 : i32
    return %c0_i32, %c0_i32_0 : i32, i32
  }
  func.func @transform_11(%arg0: i32) -> (i32, i32) {
    %c0_i32 = arith.constant 0 : i32
    %c0_i32_0 = arith.constant 0 : i32
    %c0_i32_1 = arith.constant 0 : i32
    return %c0_i32, %c0_i32_0 : i32, i32
  }
  func.func @transform_12(%arg0: i32) -> (i32, i32) {
    %c0_i32 = arith.constant 0 : i32
    %c0_i32_0 = arith.constant 0 : i32
    %c0_i32_1 = arith.constant 0 : i32
    return %c0_i32, %c0_i32_0 : i32, i32
  }
  func.func @transform_13(%arg0: i32) -> (i32, i32) {
    %c0_i32 = arith.constant 0 : i32
    %c0_i32_0 = arith.constant 0 : i32
    %c0_i32_1 = arith.constant 0 : i32
    return %c0_i32, %c0_i32_0 : i32, i32
  }
  func.func @transform_14(%arg0: i32) -> (i32, i32) {
    %c0_i32 = arith.constant 0 : i32
    %c0_i32_0 = arith.constant 0 : i32
    %c0_i32_1 = arith.constant 0 : i32
    return %c0_i32, %c0_i32_0 : i32, i32
  }
  func.func @transform_15(%arg0: i32) -> (i32, i32) {
    %c0_i32 = arith.constant 0 : i32
    %c0_i32_0 = arith.constant 0 : i32
    %c0_i32_1 = arith.constant 0 : i32
    return %c0_i32, %c0_i32_0 : i32, i32
  }
  func.func @transform_16(%arg0: i32) -> (i32, i32) {
    %c0_i32 = arith.constant 0 : i32
    %c0_i32_0 = arith.constant 0 : i32
    %c0_i32_1 = arith.constant 0 : i32
    return %c0_i32, %c0_i32_0 : i32, i32
  }
  func.func @transform_17(%arg0: i32) -> (i32, i32) {
    %c0_i32 = arith.constant 0 : i32
    %c0_i32_0 = arith.constant 0 : i32
    %c0_i32_1 = arith.constant 0 : i32
    return %c0_i32, %c0_i32_0 : i32, i32
  }
  func.func @transform_18(%arg0: i32) -> (i32, i32) {
    %c0_i32 = arith.constant 0 : i32
    %c0_i32_0 = arith.constant 0 : i32
    %c0_i32_1 = arith.constant 0 : i32
    return %c0_i32, %c0_i32_0 : i32, i32
  }
  func.func @transform_19(%arg0: i32) -> (i32, i32) {
    %c0_i32 = arith.constant 0 : i32
    %c0_i32_0 = arith.constant 0 : i32
    %c0_i32_1 = arith.constant 0 : i32
    return %c0_i32, %c0_i32_0 : i32, i32
  }
  func.func @transform_20(%arg0: i32) -> (i32, i32) {
    %c0_i32 = arith.constant 0 : i32
    %c0_i32_0 = arith.constant 0 : i32
    %c0_i32_1 = arith.constant 0 : i32
    return %c0_i32, %c0_i32_0 : i32, i32
  }
  func.func @transform_21(%arg0: i32) -> (i32, i32) {
    %c0_i32 = arith.constant 0 : i32
    %c0_i32_0 = arith.constant 0 : i32
    %c0_i32_1 = arith.constant 0 : i32
    return %c0_i32, %c0_i32_0 : i32, i32
  }
  func.func @transform_22(%arg0: i32) -> (i32, i32) {
    %c0_i32 = arith.constant 0 : i32
    %c0_i32_0 = arith.constant 0 : i32
    %c0_i32_1 = arith.constant 0 : i32
    return %c0_i32, %c0_i32_0 : i32, i32
  }
  func.func @transform_23(%arg0: i32) -> (i32, i32) {
    %c0_i32 = arith.constant 0 : i32
    %c0_i32_0 = arith.constant 0 : i32
    %c0_i32_1 = arith.constant 0 : i32
    return %c0_i32, %c0_i32_0 : i32, i32
  }
  func.func @transform_24(%arg0: i32) -> (i32, i32) {
    %c0_i32 = arith.constant 0 : i32
    %c0_i32_0 = arith.constant 0 : i32
    %c0_i32_1 = arith.constant 0 : i32
    return %c0_i32, %c0_i32_0 : i32, i32
  }
  func.func @transform_25(%arg0: i32) -> (i32, i32) {
    %c0_i32 = arith.constant 0 : i32
    %c0_i32_0 = arith.constant 0 : i32
    %c0_i32_1 = arith.constant 0 : i32
    return %c0_i32, %c0_i32_0 : i32, i32
  }
  func.func @transform_26(%arg0: i32) -> (i32, i32) {
    %c0_i32 = arith.constant 0 : i32
    %c0_i32_0 = arith.constant 0 : i32
    %c0_i32_1 = arith.constant 0 : i32
    return %c0_i32, %c0_i32_0 : i32, i32
  }
  func.func @transform_27(%arg0: i32) -> (i32, i32) {
    %c0_i32 = arith.constant 0 : i32
    %c0_i32_0 = arith.constant 0 : i32
    %c0_i32_1 = arith.constant 0 : i32
    return %c0_i32, %c0_i32_0 : i32, i32
  }
  func.func @transform_28(%arg0: i32) -> (i32, i32) {
    %c0_i32 = arith.constant 0 : i32
    %c0_i32_0 = arith.constant 0 : i32
    %c0_i32_1 = arith.constant 0 : i32
    return %c0_i32, %c0_i32_0 : i32, i32
  }
  func.func @transform_29(%arg0: i32) -> (i32, i32) {
    %c0_i32 = arith.constant 0 : i32
    %c0_i32_0 = arith.constant 0 : i32
    %c0_i32_1 = arith.constant 0 : i32
    return %c0_i32, %c0_i32_0 : i32, i32
  }
  func.func @transform_30(%arg0: i32) -> (i32, i32) {
    %c0_i32 = arith.constant 0 : i32
    %c0_i32_0 = arith.constant 0 : i32
    %c0_i32_1 = arith.constant 0 : i32
    return %c0_i32, %c0_i32_0 : i32, i32
  }
  func.func @transform_31(%arg0: i32) -> (i32, i32) {
    %c0_i32 = arith.constant 0 : i32
    %c0_i32_0 = arith.constant 0 : i32
    %c0_i32_1 = arith.constant 0 : i32
    return %c0_i32, %c0_i32_0 : i32, i32
  }
  func.func @transform_32(%arg0: i32) -> (i32, i32) {
    %c0_i32 = arith.constant 0 : i32
    %c0_i32_0 = arith.constant 0 : i32
    %c0_i32_1 = arith.constant 0 : i32
    return %c0_i32, %c0_i32_0 : i32, i32
  }
  func.func @transform_33(%arg0: i32) -> (i32, i32) {
    %c0_i32 = arith.constant 0 : i32
    %c0_i32_0 = arith.constant 0 : i32
    %c0_i32_1 = arith.constant 0 : i32
    return %c0_i32, %c0_i32_0 : i32, i32
  }
  func.func @transform_34(%arg0: i32) -> (i32, i32) {
    %c0_i32 = arith.constant 0 : i32
    %c0_i32_0 = arith.constant 0 : i32
    %c0_i32_1 = arith.constant 0 : i32
    return %c0_i32, %c0_i32_0 : i32, i32
  }
  func.func @transform_35(%arg0: i32) -> (i32, i32) {
    %c0_i32 = arith.constant 0 : i32
    %c0_i32_0 = arith.constant 0 : i32
    %c0_i32_1 = arith.constant 0 : i32
    return %c0_i32, %c0_i32_0 : i32, i32
  }
  func.func @transform_36(%arg0: i32) -> (i32, i32) {
    %c0_i32 = arith.constant 0 : i32
    %c0_i32_0 = arith.constant 0 : i32
    %c0_i32_1 = arith.constant 0 : i32
    return %c0_i32, %c0_i32_0 : i32, i32
  }
  func.func @transform_37(%arg0: i32) -> (i32, i32) {
    %c0_i32 = arith.constant 0 : i32
    %c0_i32_0 = arith.constant 0 : i32
    %c0_i32_1 = arith.constant 0 : i32
    return %c0_i32, %c0_i32_0 : i32, i32
  }
  func.func @transform_38(%arg0: i32) -> (i32, i32, i32) {
    %c0_i32 = arith.constant 0 : i32
    %c0_i32_0 = arith.constant 0 : i32
    %c0_i32_1 = arith.constant 0 : i32
    return %arg0, %c0_i32, %c0_i32_0 : i32, i32, i32
  }
}

</mosaic_0001>

<llo_original>
// kernel: _lambda_.1
$region0: #{_lambda_.1}
  #allocation0 [shape = 'u32[]', space=smem, size = 0x4, offset = 0x4, fixed_abs, tag = 'smem constant byte address 0x4 - core index']
  #allocation1 [shape = 'u32[144,128]{1,0:T(1,128)}', space=vmem, size = 0x12000, scoped, tag = 'internal scratch']
  %s0 = inlined_call_operand.smem [shape: u32[39], index: -1, kind: input, shape index: {}]
  %s1 = sld [smem:[%s0]]
  %s2 = scalar_lea.smem %s0, 1
  %s3 = sld [smem:[%s2]]
  %s4 = scalar_lea.smem %s0, 2
  %s5 = sld [smem:[%s4]]
  %s6 = scalar_lea.smem %s0, 3
  %s7 = sld [smem:[%s6]]
  %s8 = scalar_lea.smem %s0, 4
  %s9 = sld [smem:[%s8]]
  %s10 = scalar_lea.smem %s0, 5
  %s11 = sld [smem:[%s10]]
  %s12 = scalar_lea.smem %s0, 6
  %s13 = sld [smem:[%s12]]
  %s14 = scalar_lea.smem %s0, 7
  %s15 = sld [smem:[%s14]]
  %s16 = scalar_lea.smem %s0, 8
  %s17 = sld [smem:[%s16]]
  %s18 = scalar_lea.smem %s0, 9
  %s19 = sld [smem:[%s18]]
  %s20 = scalar_lea.smem %s0, 10
  %s21 = sld [smem:[%s20]]
  %s22 = scalar_lea.smem %s0, 11
  %s23 = sld [smem:[%s22]]
  %s24 = scalar_lea.smem %s0, 12
  %s25 = sld [smem:[%s24]]
  %s26 = scalar_lea.smem %s0, 13
  %s27 = sld [smem:[%s26]]
  %s28 = scalar_lea.smem %s0, 14
  %s29 = sld [smem:[%s28]]
  %s30 = scalar_lea.smem %s0, 15
  %s31 = sld [smem:[%s30]]
  %s32 = scalar_lea.smem %s0, 16
  %s33 = sld [smem:[%s32]]
  %s34 = scalar_lea.smem %s0, 17
  %s35 = sld [smem:[%s34]]
  %s36 = scalar_lea.smem %s0, 18
  %s37 = sld [smem:[%s36]]
  %s38 = scalar_lea.smem %s0, 19
  %s39 = sld [smem:[%s38]]
  %s40 = scalar_lea.smem %s0, 20
  %s41 = sld [smem:[%s40]]
  %s42 = scalar_lea.smem %s0, 21
  %s43 = sld [smem:[%s42]]
  %s44 = scalar_lea.smem %s0, 22
  %s45 = sld [smem:[%s44]]
  %s46 = scalar_lea.smem %s0, 23
  %s47 = sld [smem:[%s46]]
  %s48 = scalar_lea.smem %s0, 24
  %s49 = sld [smem:[%s48]]
  %s50 = scalar_lea.smem %s0, 25
  %s51 = sld [smem:[%s50]]
  %s52 = scalar_lea.smem %s0, 26
  %s53 = sld [smem:[%s52]]
  %s54 = scalar_lea.smem %s0, 27
  %s55 = sld [smem:[%s54]]
  %s56 = scalar_lea.smem %s0, 28
  %s57 = sld [smem:[%s56]]
  %s58 = scalar_lea.smem %s0, 29
  %s59 = sld [smem:[%s58]]
  %s60 = scalar_lea.smem %s0, 30
  %s61 = sld [smem:[%s60]]
  %s62 = scalar_lea.smem %s0, 31
  %s63 = sld [smem:[%s62]]
  %s64 = scalar_lea.smem %s0, 32
  %s65 = sld [smem:[%s64]]
  %s66 = scalar_lea.smem %s0, 33
  %s67 = sld [smem:[%s66]]
  %s68 = scalar_lea.smem %s0, 34
  %s69 = sld [smem:[%s68]]
  %s70 = scalar_lea.smem %s0, 35
  %s71 = sld [smem:[%s70]]
  %s72 = scalar_lea.smem %s0, 36
  %s73 = sld [smem:[%s72]]
  %s74 = scalar_lea.smem %s0, 37
  %s75 = sld [smem:[%s74]]
  %s76 = scalar_lea.smem %s0, 38
  %s77 = sld [smem:[%s76]]
  %s78 = sld [smem:[#allocation0]]
  $region185: #{_lambda_.1} parent=0
    _
  %s80 = ssub.s32 1, %s78
  %s81 = scalar_select 0, %s80, %s78
  $region1: #{_lambda_.1} parent=0
    #allocation2 [shape = 'u8[1024]{0}', space=vmem, size = 0x400, scoped, tag = 'output window, operand 0']
    #allocation3 [shape = 's32[2]{0}', space=sflag, size = 0x8, scoped, tag = 'scoped memory for _lambda_.1']
    %82 = vsyncpa [#allocation3], 0
    %s83 = scalar_lea.sflag [#allocation3], 1
    %84 = vsyncpa %s83, 0
    loop: start=0, step=1, limit=4
    $region2: #{_lambda_.1} parent=1 // loop_pre_header
      _
    $region3: #{_lambda_.1} parent=1 // loop_header
      %s86 = sphi 0, %s90
      %p87 = scmp.ge.s32.totalorder %s86, 4
      %s96 = sphi 0, %s98
      %s99 = sphi 0, %s96
      %s100 = sphi 0, %s99
      %s116 = sphi 0, %s100
      %s120 = sphi 0, %s120
      %s122 = sphi 0, %s120
      %s123 = sphi 0, %s122
      %s137 = sphi 0, %s123
      %s141 = sphi 0, %s141
      %s143 = sphi 0, %s141
      %s144 = sphi 0, %s143
      %s158 = sphi 0, %s144
      %s162 = sphi 0, %s162
      %s164 = sphi 0, %s162
      %s165 = sphi 0, %s164
      %s179 = sphi 0, %s165
      %s183 = sphi 0, %s183
      %s185 = sphi 0, %s183
      %s186 = sphi 0, %s185
      %s200 = sphi 0, %s186
      %s204 = sphi 0, %s204
      %s206 = sphi 0, %s204
      %s207 = sphi 0, %s206
      %s221 = sphi 0, %s207
      %s225 = sphi 0, %s225
      %s227 = sphi 0, %s225
      %s228 = sphi 0, %s227
      %s242 = sphi 0, %s228
      %s246 = sphi 0, %s246
      %s248 = sphi 0, %s246
      %s249 = sphi 0, %s248
      %s263 = sphi 0, %s249
      %s267 = sphi 0, %s267
      %s269 = sphi 0, %s267
      %s270 = sphi 0, %s269
      %s284 = sphi 0, %s270
      %s288 = sphi 0, %s288
      %s290 = sphi 0, %s288
      %s291 = sphi 0, %s290
      %s305 = sphi 0, %s291
      %s309 = sphi 0, %s309
      %s311 = sphi 0, %s309
      %s312 = sphi 0, %s311
      %s326 = sphi 0, %s312
      %s330 = sphi 0, %s330
      %s332 = sphi 0, %s330
      %s333 = sphi 0, %s332
      %s347 = sphi 0, %s333
      %s351 = sphi 0, %s351
      %s353 = sphi 0, %s351
      %s354 = sphi 0, %s353
      %s368 = sphi 0, %s354
      %s372 = sphi 0, %s372
      %s374 = sphi 0, %s372
      %s375 = sphi 0, %s374
      %s389 = sphi 0, %s375
      %s393 = sphi 0, %s393
      %s395 = sphi 0, %s393
      %s396 = sphi 0, %s395
      %s410 = sphi 0, %s396
      %s414 = sphi 0, %s414
      %s416 = sphi 0, %s414
      %s417 = sphi 0, %s416
      %s431 = sphi 0, %s417
      %s435 = sphi 0, %s435
      %s437 = sphi 0, %s435
      %s438 = sphi 0, %s437
      %s452 = sphi 0, %s438
      %s456 = sphi 0, %s456
      %s458 = sphi 0, %s456
      %s459 = sphi 0, %s458
      %s473 = sphi 0, %s459
      %s477 = sphi 0, %s477
      %s479 = sphi 0, %s477
      %s480 = sphi 0, %s479
      %s494 = sphi 0, %s480
      %s498 = sphi 0, %s498
      %s500 = sphi 0, %s498
      %s501 = sphi 0, %s500
      %s515 = sphi 0, %s501
      %s519 = sphi 0, %s519
      %s521 = sphi 0, %s519
      %s522 = sphi 0, %s521
      %s536 = sphi 0, %s522
      %s540 = sphi 0, %s540
      %s542 = sphi 0, %s540
      %s543 = sphi 0, %s542
      %s557 = sphi 0, %s543
      %s561 = sphi 0, %s561
      %s563 = sphi 0, %s561
      %s564 = sphi 0, %s563
      %s578 = sphi 0, %s564
      %s582 = sphi 0, %s582
      %s584 = sphi 0, %s582
      %s585 = sphi 0, %s584
      %s599 = sphi 0, %s585
      %s603 = sphi 0, %s603
      %s605 = sphi 0, %s603
      %s606 = sphi 0, %s605
      %s620 = sphi 0, %s606
      %s624 = sphi 0, %s624
      %s626 = sphi 0, %s624
      %s627 = sphi 0, %s626
      %s641 = sphi 0, %s627
      %s645 = sphi 0, %s645
      %s647 = sphi 0, %s645
      %s648 = sphi 0, %s647
      %s662 = sphi 0, %s648
      %s666 = sphi 0, %s666
      %s668 = sphi 0, %s666
      %s669 = sphi 0, %s668
      %s683 = sphi 0, %s669
      %s687 = sphi 0, %s687
      %s689 = sphi 0, %s687
      %s690 = sphi 0, %s689
      %s704 = sphi 0, %s690
      %s708 = sphi 0, %s708
      %s710 = sphi 0, %s708
      %s711 = sphi 0, %s710
      %s725 = sphi 0, %s711
      %s729 = sphi 0, %s729
      %s731 = sphi 0, %s729
      %s732 = sphi 0, %s731
      %s746 = sphi 0, %s732
      %s750 = sphi 0, %s750
      %s752 = sphi 0, %s750
      %s753 = sphi 0, %s752
      %s767 = sphi 0, %s753
      %s771 = sphi 0, %s771
      %s773 = sphi 0, %s771
      %s774 = sphi 0, %s773
      %s788 = sphi 0, %s774
      %s792 = sphi 0, %s792
      %s794 = sphi 0, %s792
      %s795 = sphi 0, %s794
      %s809 = sphi 0, %s795
      %s813 = sphi 0, %s813
      %s815 = sphi 0, %s813
      %s816 = sphi 0, %s815
      %s830 = sphi 0, %s816
      %s834 = sphi 0, %s834
      %s836 = sphi 0, %s834
      %s837 = sphi 0, %s836
      %s851 = sphi 0, %s837
      %s855 = sphi 0, %s855
      %s857 = sphi 0, %s855
      %s858 = sphi 0, %s857
      %s872 = sphi 0, %s858
      %s876 = sphi 0, %s876
      %s878 = sphi 0, %s876
      %s879 = sphi 0, %s878
      %s893 = sphi 0, %s879
      %s899 = sphi 0, %s901
      %s902 = sphi 0, %s899
      %s903 = sphi 0, %s902
      %s919 = sphi 0, %s903
    $region4: #{_lambda_.1} parent=1 // loop_header_branch
      %89 = sbr.rel (%p87) target = $region8
    $region5: #{_lambda_.1} parent=1 // loop_body
      %s91 = ssub.s32 %s86, 1
      %s92 = ssub.s32 %s86, 2
      %s93 = sadd.s32 %s86, 1
      %s94 = ssub.s32 %s86, %s93
      %p95 = scmp.eq.s32.totalorder %s94, 0
      %s97 = sadd.s32 %s96, 1
      %s98 = scalar_select %p95, %s96, %s97
      %p101 = pneg %p95
      %p102 = scmp.eq.s32.totalorder %s86, 1
      %p103 = por %p101, %p102
      %p104 = scmp.ne.s32.totalorder %s96, %s99
      %p105 = scmp.eq.s32.totalorder %s86, 0
      %p106 = por %p104, %p105
      %p107 = scmp.ne.s32.totalorder %s96, %s99
      %p108 = scmp.eq.s32.totalorder %s91, 1
      %p109 = por %p107, %p108
      %p110 = scmp.ne.s32.totalorder %s99, %s100
      %p111 = scmp.eq.s32.totalorder %s91, 0
      %p112 = por %p110, %p111
      %p113 = scmp.ne.s32.totalorder %s99, %s100
      %p114 = scmp.eq.s32.totalorder %s92, 1
      %p115 = por %p113, %p114
      %p117 = scmp.ne.s32.totalorder %s100, %s116
      %p118 = scmp.eq.s32.totalorder %s92, 0
      %p119 = por %p117, %p118
      %s121 = sadd.s32 %s120, 1
      %p124 = scmp.eq.s32.totalorder %s86, 1
      %p125 = scmp.ne.s32.totalorder %s120, %s122
      %p126 = scmp.eq.s32.totalorder %s86, 0
      %p127 = por %p125, %p126
      %p128 = scmp.ne.s32.totalorder %s120, %s122
      %p129 = scmp.eq.s32.totalorder %s91, 1
      %p130 = por %p128, %p129
      %p131 = scmp.ne.s32.totalorder %s122, %s123
      %p132 = scmp.eq.s32.totalorder %s91, 0
      %p133 = por %p131, %p132
      %p134 = scmp.ne.s32.totalorder %s122, %s123
      %p135 = scmp.eq.s32.totalorder %s92, 1
      %p136 = por %p134, %p135
      %p138 = scmp.ne.s32.totalorder %s123, %s137
      %p139 = scmp.eq.s32.totalorder %s92, 0
      %p140 = por %p138, %p139
      %s142 = sadd.s32 %s141, 1
      %p145 = scmp.eq.s32.totalorder %s86, 1
      %p146 = scmp.ne.s32.totalorder %s141, %s143
      %p147 = scmp.eq.s32.totalorder %s86, 0
      %p148 = por %p146, %p147
      %p149 = scmp.ne.s32.totalorder %s141, %s143
      %p150 = scmp.eq.s32.totalorder %s91, 1
      %p151 = por %p149, %p150
      %p152 = scmp.ne.s32.totalorder %s143, %s144
      %p153 = scmp.eq.s32.totalorder %s91, 0
      %p154 = por %p152, %p153
      %p155 = scmp.ne.s32.totalorder %s143, %s144
      %p156 = scmp.eq.s32.totalorder %s92, 1
      %p157 = por %p155, %p156
      %p159 = scmp.ne.s32.totalorder %s144, %s158
      %p160 = scmp.eq.s32.totalorder %s92, 0
      %p161 = por %p159, %p160
      %s163 = sadd.s32 %s162, 1
      %p166 = scmp.eq.s32.totalorder %s86, 1
      %p167 = scmp.ne.s32.totalorder %s162, %s164
      %p168 = scmp.eq.s32.totalorder %s86, 0
      %p169 = por %p167, %p168
      %p170 = scmp.ne.s32.totalorder %s162, %s164
      %p171 = scmp.eq.s32.totalorder %s91, 1
      %p172 = por %p170, %p171
      %p173 = scmp.ne.s32.totalorder %s164, %s165
      %p174 = scmp.eq.s32.totalorder %s91, 0
      %p175 = por %p173, %p174
      %p176 = scmp.ne.s32.totalorder %s164, %s165
      %p177 = scmp.eq.s32.totalorder %s92, 1
      %p178 = por %p176, %p177
      %p180 = scmp.ne.s32.totalorder %s165, %s179
      %p181 = scmp.eq.s32.totalorder %s92, 0
      %p182 = por %p180, %p181
      %s184 = sadd.s32 %s183, 1
      %p187 = scmp.eq.s32.totalorder %s86, 1
      %p188 = scmp.ne.s32.totalorder %s183, %s185
      %p189 = scmp.eq.s32.totalorder %s86, 0
      %p190 = por %p188, %p189
      %p191 = scmp.ne.s32.totalorder %s183, %s185
      %p192 = scmp.eq.s32.totalorder %s91, 1
      %p193 = por %p191, %p192
      %p194 = scmp.ne.s32.totalorder %s185, %s186
      %p195 = scmp.eq.s32.totalorder %s91, 0
      %p196 = por %p194, %p195
      %p197 = scmp.ne.s32.totalorder %s185, %s186
      %p198 = scmp.eq.s32.totalorder %s92, 1
      %p199 = por %p197, %p198
      %p201 = scmp.ne.s32.totalorder %s186, %s200
      %p202 = scmp.eq.s32.totalorder %s92, 0
      %p203 = por %p201, %p202
      %s205 = sadd.s32 %s204, 1
      %p208 = scmp.eq.s32.totalorder %s86, 1
      %p209 = scmp.ne.s32.totalorder %s204, %s206
      %p210 = scmp.eq.s32.totalorder %s86, 0
      %p211 = por %p209, %p210
      %p212 = scmp.ne.s32.totalorder %s204, %s206
      %p213 = scmp.eq.s32.totalorder %s91, 1
      %p214 = por %p212, %p213
      %p215 = scmp.ne.s32.totalorder %s206, %s207
      %p216 = scmp.eq.s32.totalorder %s91, 0
      %p217 = por %p215, %p216
      %p218 = scmp.ne.s32.totalorder %s206, %s207
      %p219 = scmp.eq.s32.totalorder %s92, 1
      %p220 = por %p218, %p219
      %p222 = scmp.ne.s32.totalorder %s207, %s221
      %p223 = scmp.eq.s32.totalorder %s92, 0
      %p224 = por %p222, %p223
      %s226 = sadd.s32 %s225, 1
      %p229 = scmp.eq.s32.totalorder %s86, 1
      %p230 = scmp.ne.s32.totalorder %s225, %s227
      %p231 = scmp.eq.s32.totalorder %s86, 0
      %p232 = por %p230, %p231
      %p233 = scmp.ne.s32.totalorder %s225, %s227
      %p234 = scmp.eq.s32.totalorder %s91, 1
      %p235 = por %p233, %p234
      %p236 = scmp.ne.s32.totalorder %s227, %s228
      %p237 = scmp.eq.s32.totalorder %s91, 0
      %p238 = por %p236, %p237
      %p239 = scmp.ne.s32.totalorder %s227, %s228
      %p240 = scmp.eq.s32.totalorder %s92, 1
      %p241 = por %p239, %p240
      %p243 = scmp.ne.s32.totalorder %s228, %s242
      %p244 = scmp.eq.s32.totalorder %s92, 0
      %p245 = por %p243, %p244
      %s247 = sadd.s32 %s246, 1
      %p250 = scmp.eq.s32.totalorder %s86, 1
      %p251 = scmp.ne.s32.totalorder %s246, %s248
      %p252 = scmp.eq.s32.totalorder %s86, 0
      %p253 = por %p251, %p252
      %p254 = scmp.ne.s32.totalorder %s246, %s248
      %p255 = scmp.eq.s32.totalorder %s91, 1
      %p256 = por %p254, %p255
      %p257 = scmp.ne.s32.totalorder %s248, %s249
      %p258 = scmp.eq.s32.totalorder %s91, 0
      %p259 = por %p257, %p258
      %p260 = scmp.ne.s32.totalorder %s248, %s249
      %p261 = scmp.eq.s32.totalorder %s92, 1
      %p262 = por %p260, %p261
      %p264 = scmp.ne.s32.totalorder %s249, %s263
      %p265 = scmp.eq.s32.totalorder %s92, 0
      %p266 = por %p264, %p265
      %s268 = sadd.s32 %s267, 1
      %p271 = scmp.eq.s32.totalorder %s86, 1
      %p272 = scmp.ne.s32.totalorder %s267, %s269
      %p273 = scmp.eq.s32.totalorder %s86, 0
      %p274 = por %p272, %p273
      %p275 = scmp.ne.s32.totalorder %s267, %s269
      %p276 = scmp.eq.s32.totalorder %s91, 1
      %p277 = por %p275, %p276
      %p278 = scmp.ne.s32.totalorder %s269, %s270
      %p279 = scmp.eq.s32.totalorder %s91, 0
      %p280 = por %p278, %p279
      %p281 = scmp.ne.s32.totalorder %s269, %s270
      %p282 = scmp.eq.s32.totalorder %s92, 1
      %p283 = por %p281, %p282
      %p285 = scmp.ne.s32.totalorder %s270, %s284
      %p286 = scmp.eq.s32.totalorder %s92, 0
      %p287 = por %p285, %p286
      %s289 = sadd.s32 %s288, 1
      %p292 = scmp.eq.s32.totalorder %s86, 1
      %p293 = scmp.ne.s32.totalorder %s288, %s290
      %p294 = scmp.eq.s32.totalorder %s86, 0
      %p295 = por %p293, %p294
      %p296 = scmp.ne.s32.totalorder %s288, %s290
      %p297 = scmp.eq.s32.totalorder %s91, 1
      %p298 = por %p296, %p297
      %p299 = scmp.ne.s32.totalorder %s290, %s291
      %p300 = scmp.eq.s32.totalorder %s91, 0
      %p301 = por %p299, %p300
      %p302 = scmp.ne.s32.totalorder %s290, %s291
      %p303 = scmp.eq.s32.totalorder %s92, 1
      %p304 = por %p302, %p303
      %p306 = scmp.ne.s32.totalorder %s291, %s305
      %p307 = scmp.eq.s32.totalorder %s92, 0
      %p308 = por %p306, %p307
      %s310 = sadd.s32 %s309, 1
      %p313 = scmp.eq.s32.totalorder %s86, 1
      %p314 = scmp.ne.s32.totalorder %s309, %s311
      %p315 = scmp.eq.s32.totalorder %s86, 0
      %p316 = por %p314, %p315
      %p317 = scmp.ne.s32.totalorder %s309, %s311
      %p318 = scmp.eq.s32.totalorder %s91, 1
      %p319 = por %p317, %p318
      %p320 = scmp.ne.s32.totalorder %s311, %s312
      %p321 = scmp.eq.s32.totalorder %s91, 0
      %p322 = por %p320, %p321
      %p323 = scmp.ne.s32.totalorder %s311, %s312
      %p324 = scmp.eq.s32.totalorder %s92, 1
      %p325 = por %p323, %p324
      %p327 = scmp.ne.s32.totalorder %s312, %s326
      %p328 = scmp.eq.s32.totalorder %s92, 0
      %p329 = por %p327, %p328
      %s331 = sadd.s32 %s330, 1
      %p334 = scmp.eq.s32.totalorder %s86, 1
      %p335 = scmp.ne.s32.totalorder %s330, %s332
      %p336 = scmp.eq.s32.totalorder %s86, 0
      %p337 = por %p335, %p336
      %p338 = scmp.ne.s32.totalorder %s330, %s332
      %p339 = scmp.eq.s32.totalorder %s91, 1
      %p340 = por %p338, %p339
      %p341 = scmp.ne.s32.totalorder %s332, %s333
      %p342 = scmp.eq.s32.totalorder %s91, 0
      %p343 = por %p341, %p342
      %p344 = scmp.ne.s32.totalorder %s332, %s333
      %p345 = scmp.eq.s32.totalorder %s92, 1
      %p346 = por %p344, %p345
      %p348 = scmp.ne.s32.totalorder %s333, %s347
      %p349 = scmp.eq.s32.totalorder %s92, 0
      %p350 = por %p348, %p349
      %s352 = sadd.s32 %s351, 1
      %p355 = scmp.eq.s32.totalorder %s86, 1
      %p356 = scmp.ne.s32.totalorder %s351, %s353
      %p357 = scmp.eq.s32.totalorder %s86, 0
      %p358 = por %p356, %p357
      %p359 = scmp.ne.s32.totalorder %s351, %s353
      %p360 = scmp.eq.s32.totalorder %s91, 1
      %p361 = por %p359, %p360
      %p362 = scmp.ne.s32.totalorder %s353, %s354
      %p363 = scmp.eq.s32.totalorder %s91, 0
      %p364 = por %p362, %p363
      %p365 = scmp.ne.s32.totalorder %s353, %s354
      %p366 = scmp.eq.s32.totalorder %s92, 1
      %p367 = por %p365, %p366
      %p369 = scmp.ne.s32.totalorder %s354, %s368
      %p370 = scmp.eq.s32.totalorder %s92, 0
      %p371 = por %p369, %p370
      %s373 = sadd.s32 %s372, 1
      %p376 = scmp.eq.s32.totalorder %s86, 1
      %p377 = scmp.ne.s32.totalorder %s372, %s374
      %p378 = scmp.eq.s32.totalorder %s86, 0
      %p379 = por %p377, %p378
      %p380 = scmp.ne.s32.totalorder %s372, %s374
      %p381 = scmp.eq.s32.totalorder %s91, 1
      %p382 = por %p380, %p381
      %p383 = scmp.ne.s32.totalorder %s374, %s375
      %p384 = scmp.eq.s32.totalorder %s91, 0
      %p385 = por %p383, %p384
      %p386 = scmp.ne.s32.totalorder %s374, %s375
      %p387 = scmp.eq.s32.totalorder %s92, 1
      %p388 = por %p386, %p387
      %p390 = scmp.ne.s32.totalorder %s375, %s389
      %p391 = scmp.eq.s32.totalorder %s92, 0
      %p392 = por %p390, %p391
      %s394 = sadd.s32 %s393, 1
      %p397 = scmp.eq.s32.totalorder %s86, 1
      %p398 = scmp.ne.s32.totalorder %s393, %s395
      %p399 = scmp.eq.s32.totalorder %s86, 0
      %p400 = por %p398, %p399
      %p401 = scmp.ne.s32.totalorder %s393, %s395
      %p402 = scmp.eq.s32.totalorder %s91, 1
      %p403 = por %p401, %p402
      %p404 = scmp.ne.s32.totalorder %s395, %s396
      %p405 = scmp.eq.s32.totalorder %s91, 0
      %p406 = por %p404, %p405
      %p407 = scmp.ne.s32.totalorder %s395, %s396
      %p408 = scmp.eq.s32.totalorder %s92, 1
      %p409 = por %p407, %p408
      %p411 = scmp.ne.s32.totalorder %s396, %s410
      %p412 = scmp.eq.s32.totalorder %s92, 0
      %p413 = por %p411, %p412
      %s415 = sadd.s32 %s414, 1
      %p418 = scmp.eq.s32.totalorder %s86, 1
      %p419 = scmp.ne.s32.totalorder %s414, %s416
      %p420 = scmp.eq.s32.totalorder %s86, 0
      %p421 = por %p419, %p420
      %p422 = scmp.ne.s32.totalorder %s414, %s416
      %p423 = scmp.eq.s32.totalorder %s91, 1
      %p424 = por %p422, %p423
      %p425 = scmp.ne.s32.totalorder %s416, %s417
      %p426 = scmp.eq.s32.totalorder %s91, 0
      %p427 = por %p425, %p426
      %p428 = scmp.ne.s32.totalorder %s416, %s417
      %p429 = scmp.eq.s32.totalorder %s92, 1
      %p430 = por %p428, %p429
      %p432 = scmp.ne.s32.totalorder %s417, %s431
      %p433 = scmp.eq.s32.totalorder %s92, 0
      %p434 = por %p432, %p433
      %s436 = sadd.s32 %s435, 1
      %p439 = scmp.eq.s32.totalorder %s86, 1
      %p440 = scmp.ne.s32.totalorder %s435, %s437
      %p441 = scmp.eq.s32.totalorder %s86, 0
      %p442 = por %p440, %p441
      %p443 = scmp.ne.s32.totalorder %s435, %s437
      %p444 = scmp.eq.s32.totalorder %s91, 1
      %p445 = por %p443, %p444
      %p446 = scmp.ne.s32.totalorder %s437, %s438
      %p447 = scmp.eq.s32.totalorder %s91, 0
      %p448 = por %p446, %p447
      %p449 = scmp.ne.s32.totalorder %s437, %s438
      %p450 = scmp.eq.s32.totalorder %s92, 1
      %p451 = por %p449, %p450
      %p453 = scmp.ne.s32.totalorder %s438, %s452
      %p454 = scmp.eq.s32.totalorder %s92, 0
      %p455 = por %p453, %p454
      %s457 = sadd.s32 %s456, 1
      %p460 = scmp.eq.s32.totalorder %s86, 1
      %p461 = scmp.ne.s32.totalorder %s456, %s458
      %p462 = scmp.eq.s32.totalorder %s86, 0
      %p463 = por %p461, %p462
      %p464 = scmp.ne.s32.totalorder %s456, %s458
      %p465 = scmp.eq.s32.totalorder %s91, 1
      %p466 = por %p464, %p465
      %p467 = scmp.ne.s32.totalorder %s458, %s459
      %p468 = scmp.eq.s32.totalorder %s91, 0
      %p469 = por %p467, %p468
      %p470 = scmp.ne.s32.totalorder %s458, %s459
      %p471 = scmp.eq.s32.totalorder %s92, 1
      %p472 = por %p470, %p471
      %p474 = scmp.ne.s32.totalorder %s459, %s473
      %p475 = scmp.eq.s32.totalorder %s92, 0
      %p476 = por %p474, %p475
      %s478 = sadd.s32 %s477, 1
      %p481 = scmp.eq.s32.totalorder %s86, 1
      %p482 = scmp.ne.s32.totalorder %s477, %s479
      %p483 = scmp.eq.s32.totalorder %s86, 0
      %p484 = por %p482, %p483
      %p485 = scmp.ne.s32.totalorder %s477, %s479
      %p486 = scmp.eq.s32.totalorder %s91, 1
      %p487 = por %p485, %p486
      %p488 = scmp.ne.s32.totalorder %s479, %s480
      %p489 = scmp.eq.s32.totalorder %s91, 0
      %p490 = por %p488, %p489
      %p491 = scmp.ne.s32.totalorder %s479, %s480
      %p492 = scmp.eq.s32.totalorder %s92, 1
      %p493 = por %p491, %p492
      %p495 = scmp.ne.s32.totalorder %s480, %s494
      %p496 = scmp.eq.s32.totalorder %s92, 0
      %p497 = por %p495, %p496
      %s499 = sadd.s32 %s498, 1
      %p502 = scmp.eq.s32.totalorder %s86, 1
      %p503 = scmp.ne.s32.totalorder %s498, %s500
      %p504 = scmp.eq.s32.totalorder %s86, 0
      %p505 = por %p503, %p504
      %p506 = scmp.ne.s32.totalorder %s498, %s500
      %p507 = scmp.eq.s32.totalorder %s91, 1
      %p508 = por %p506, %p507
      %p509 = scmp.ne.s32.totalorder %s500, %s501
      %p510 = scmp.eq.s32.totalorder %s91, 0
      %p511 = por %p509, %p510
      %p512 = scmp.ne.s32.totalorder %s500, %s501
      %p513 = scmp.eq.s32.totalorder %s92, 1
      %p514 = por %p512, %p513
      %p516 = scmp.ne.s32.totalorder %s501, %s515
      %p517 = scmp.eq.s32.totalorder %s92, 0
      %p518 = por %p516, %p517
      %s520 = sadd.s32 %s519, 1
      %p523 = scmp.eq.s32.totalorder %s86, 1
      %p524 = scmp.ne.s32.totalorder %s519, %s521
      %p525 = scmp.eq.s32.totalorder %s86, 0
      %p526 = por %p524, %p525
      %p527 = scmp.ne.s32.totalorder %s519, %s521
      %p528 = scmp.eq.s32.totalorder %s91, 1
      %p529 = por %p527, %p528
      %p530 = scmp.ne.s32.totalorder %s521, %s522
      %p531 = scmp.eq.s32.totalorder %s91, 0
      %p532 = por %p530, %p531
      %p533 = scmp.ne.s32.totalorder %s521, %s522
      %p534 = scmp.eq.s32.totalorder %s92, 1
      %p535 = por %p533, %p534
      %p537 = scmp.ne.s32.totalorder %s522, %s536
      %p538 = scmp.eq.s32.totalorder %s92, 0
      %p539 = por %p537, %p538
      %s541 = sadd.s32 %s540, 1
      %p544 = scmp.eq.s32.totalorder %s86, 1
      %p545 = scmp.ne.s32.totalorder %s540, %s542
      %p546 = scmp.eq.s32.totalorder %s86, 0
      %p547 = por %p545, %p546
      %p548 = scmp.ne.s32.totalorder %s540, %s542
      %p549 = scmp.eq.s32.totalorder %s91, 1
      %p550 = por %p548, %p549
      %p551 = scmp.ne.s32.totalorder %s542, %s543
      %p552 = scmp.eq.s32.totalorder %s91, 0
      %p553 = por %p551, %p552
      %p554 = scmp.ne.s32.totalorder %s542, %s543
      %p555 = scmp.eq.s32.totalorder %s92, 1
      %p556 = por %p554, %p555
      %p558 = scmp.ne.s32.totalorder %s543, %s557
      %p559 = scmp.eq.s32.totalorder %s92, 0
      %p560 = por %p558, %p559
      %s562 = sadd.s32 %s561, 1
      %p565 = scmp.eq.s32.totalorder %s86, 1
      %p566 = scmp.ne.s32.totalorder %s561, %s563
      %p567 = scmp.eq.s32.totalorder %s86, 0
      %p568 = por %p566, %p567
      %p569 = scmp.ne.s32.totalorder %s561, %s563
      %p570 = scmp.eq.s32.totalorder %s91, 1
      %p571 = por %p569, %p570
      %p572 = scmp.ne.s32.totalorder %s563, %s564
      %p573 = scmp.eq.s32.totalorder %s91, 0
      %p574 = por %p572, %p573
      %p575 = scmp.ne.s32.totalorder %s563, %s564
      %p576 = scmp.eq.s32.totalorder %s92, 1
      %p577 = por %p575, %p576
      %p579 = scmp.ne.s32.totalorder %s564, %s578
      %p580 = scmp.eq.s32.totalorder %s92, 0
      %p581 = por %p579, %p580
      %s583 = sadd.s32 %s582, 1
      %p586 = scmp.eq.s32.totalorder %s86, 1
      %p587 = scmp.ne.s32.totalorder %s582, %s584
      %p588 = scmp.eq.s32.totalorder %s86, 0
      %p589 = por %p587, %p588
      %p590 = scmp.ne.s32.totalorder %s582, %s584
      %p591 = scmp.eq.s32.totalorder %s91, 1
      %p592 = por %p590, %p591
      %p593 = scmp.ne.s32.totalorder %s584, %s585
      %p594 = scmp.eq.s32.totalorder %s91, 0
      %p595 = por %p593, %p594
      %p596 = scmp.ne.s32.totalorder %s584, %s585
      %p597 = scmp.eq.s32.totalorder %s92, 1
      %p598 = por %p596, %p597
      %p600 = scmp.ne.s32.totalorder %s585, %s599
      %p601 = scmp.eq.s32.totalorder %s92, 0
      %p602 = por %p600, %p601
      %s604 = sadd.s32 %s603, 1
      %p607 = scmp.eq.s32.totalorder %s86, 1
      %p608 = scmp.ne.s32.totalorder %s603, %s605
      %p609 = scmp.eq.s32.totalorder %s86, 0
      %p610 = por %p608, %p609
      %p611 = scmp.ne.s32.totalorder %s603, %s605
      %p612 = scmp.eq.s32.totalorder %s91, 1
      %p613 = por %p611, %p612
      %p614 = scmp.ne.s32.totalorder %s605, %s606
      %p615 = scmp.eq.s32.totalorder %s91, 0
      %p616 = por %p614, %p615
      %p617 = scmp.ne.s32.totalorder %s605, %s606
      %p618 = scmp.eq.s32.totalorder %s92, 1
      %p619 = por %p617, %p618
      %p621 = scmp.ne.s32.totalorder %s606, %s620
      %p622 = scmp.eq.s32.totalorder %s92, 0
      %p623 = por %p621, %p622
      %s625 = sadd.s32 %s624, 1
      %p628 = scmp.eq.s32.totalorder %s86, 1
      %p629 = scmp.ne.s32.totalorder %s624, %s626
      %p630 = scmp.eq.s32.totalorder %s86, 0
      %p631 = por %p629, %p630
      %p632 = scmp.ne.s32.totalorder %s624, %s626
      %p633 = scmp.eq.s32.totalorder %s91, 1
      %p634 = por %p632, %p633
      %p635 = scmp.ne.s32.totalorder %s626, %s627
      %p636 = scmp.eq.s32.totalorder %s91, 0
      %p637 = por %p635, %p636
      %p638 = scmp.ne.s32.totalorder %s626, %s627
      %p639 = scmp.eq.s32.totalorder %s92, 1
      %p640 = por %p638, %p639
      %p642 = scmp.ne.s32.totalorder %s627, %s641
      %p643 = scmp.eq.s32.totalorder %s92, 0
      %p644 = por %p642, %p643
      %s646 = sadd.s32 %s645, 1
      %p649 = scmp.eq.s32.totalorder %s86, 1
      %p650 = scmp.ne.s32.totalorder %s645, %s647
      %p651 = scmp.eq.s32.totalorder %s86, 0
      %p652 = por %p650, %p651
      %p653 = scmp.ne.s32.totalorder %s645, %s647
      %p654 = scmp.eq.s32.totalorder %s91, 1
      %p655 = por %p653, %p654
      %p656 = scmp.ne.s32.totalorder %s647, %s648
      %p657 = scmp.eq.s32.totalorder %s91, 0
      %p658 = por %p656, %p657
      %p659 = scmp.ne.s32.totalorder %s647, %s648
      %p660 = scmp.eq.s32.totalorder %s92, 1
      %p661 = por %p659, %p660
      %p663 = scmp.ne.s32.totalorder %s648, %s662
      %p664 = scmp.eq.s32.totalorder %s92, 0
      %p665 = por %p663, %p664
      %s667 = sadd.s32 %s666, 1
      %p670 = scmp.eq.s32.totalorder %s86, 1
      %p671 = scmp.ne.s32.totalorder %s666, %s668
      %p672 = scmp.eq.s32.totalorder %s86, 0
      %p673 = por %p671, %p672
      %p674 = scmp.ne.s32.totalorder %s666, %s668
      %p675 = scmp.eq.s32.totalorder %s91, 1
      %p676 = por %p674, %p675
      %p677 = scmp.ne.s32.totalorder %s668, %s669
      %p678 = scmp.eq.s32.totalorder %s91, 0
      %p679 = por %p677, %p678
      %p680 = scmp.ne.s32.totalorder %s668, %s669
      %p681 = scmp.eq.s32.totalorder %s92, 1
      %p682 = por %p680, %p681
      %p684 = scmp.ne.s32.totalorder %s669, %s683
      %p685 = scmp.eq.s32.totalorder %s92, 0
      %p686 = por %p684, %p685
      %s688 = sadd.s32 %s687, 1
      %p691 = scmp.eq.s32.totalorder %s86, 1
      %p692 = scmp.ne.s32.totalorder %s687, %s689
      %p693 = scmp.eq.s32.totalorder %s86, 0
      %p694 = por %p692, %p693
      %p695 = scmp.ne.s32.totalorder %s687, %s689
      %p696 = scmp.eq.s32.totalorder %s91, 1
      %p697 = por %p695, %p696
      %p698 = scmp.ne.s32.totalorder %s689, %s690
      %p699 = scmp.eq.s32.totalorder %s91, 0
      %p700 = por %p698, %p699
      %p701 = scmp.ne.s32.totalorder %s689, %s690
      %p702 = scmp.eq.s32.totalorder %s92, 1
      %p703 = por %p701, %p702
      %p705 = scmp.ne.s32.totalorder %s690, %s704
      %p706 = scmp.eq.s32.totalorder %s92, 0
      %p707 = por %p705, %p706
      %s709 = sadd.s32 %s708, 1
      %p712 = scmp.eq.s32.totalorder %s86, 1
      %p713 = scmp.ne.s32.totalorder %s708, %s710
      %p714 = scmp.eq.s32.totalorder %s86, 0
      %p715 = por %p713, %p714
      %p716 = scmp.ne.s32.totalorder %s708, %s710
      %p717 = scmp.eq.s32.totalorder %s91, 1
      %p718 = por %p716, %p717
      %p719 = scmp.ne.s32.totalorder %s710, %s711
      %p720 = scmp.eq.s32.totalorder %s91, 0
      %p721 = por %p719, %p720
      %p722 = scmp.ne.s32.totalorder %s710, %s711
      %p723 = scmp.eq.s32.totalorder %s92, 1
      %p724 = por %p722, %p723
      %p726 = scmp.ne.s32.totalorder %s711, %s725
      %p727 = scmp.eq.s32.totalorder %s92, 0
      %p728 = por %p726, %p727
      %s730 = sadd.s32 %s729, 1
      %p733 = scmp.eq.s32.totalorder %s86, 1
      %p734 = scmp.ne.s32.totalorder %s729, %s731
      %p735 = scmp.eq.s32.totalorder %s86, 0
      %p736 = por %p734, %p735
      %p737 = scmp.ne.s32.totalorder %s729, %s731
      %p738 = scmp.eq.s32.totalorder %s91, 1
      %p739 = por %p737, %p738
      %p740 = scmp.ne.s32.totalorder %s731, %s732
      %p741 = scmp.eq.s32.totalorder %s91, 0
      %p742 = por %p740, %p741
      %p743 = scmp.ne.s32.totalorder %s731, %s732
      %p744 = scmp.eq.s32.totalorder %s92, 1
      %p745 = por %p743, %p744
      %p747 = scmp.ne.s32.totalorder %s732, %s746
      %p748 = scmp.eq.s32.totalorder %s92, 0
      %p749 = por %p747, %p748
      %s751 = sadd.s32 %s750, 1
      %p754 = scmp.eq.s32.totalorder %s86, 1
      %p755 = scmp.ne.s32.totalorder %s750, %s752
      %p756 = scmp.eq.s32.totalorder %s86, 0
      %p757 = por %p755, %p756
      %p758 = scmp.ne.s32.totalorder %s750, %s752
      %p759 = scmp.eq.s32.totalorder %s91, 1
      %p760 = por %p758, %p759
      %p761 = scmp.ne.s32.totalorder %s752, %s753
      %p762 = scmp.eq.s32.totalorder %s91, 0
      %p763 = por %p761, %p762
      %p764 = scmp.ne.s32.totalorder %s752, %s753
      %p765 = scmp.eq.s32.totalorder %s92, 1
      %p766 = por %p764, %p765
      %p768 = scmp.ne.s32.totalorder %s753, %s767
      %p769 = scmp.eq.s32.totalorder %s92, 0
      %p770 = por %p768, %p769
      %s772 = sadd.s32 %s771, 1
      %p775 = scmp.eq.s32.totalorder %s86, 1
      %p776 = scmp.ne.s32.totalorder %s771, %s773
      %p777 = scmp.eq.s32.totalorder %s86, 0
      %p778 = por %p776, %p777
      %p779 = scmp.ne.s32.totalorder %s771, %s773
      %p780 = scmp.eq.s32.totalorder %s91, 1
      %p781 = por %p779, %p780
      %p782 = scmp.ne.s32.totalorder %s773, %s774
      %p783 = scmp.eq.s32.totalorder %s91, 0
      %p784 = por %p782, %p783
      %p785 = scmp.ne.s32.totalorder %s773, %s774
      %p786 = scmp.eq.s32.totalorder %s92, 1
      %p787 = por %p785, %p786
      %p789 = scmp.ne.s32.totalorder %s774, %s788
      %p790 = scmp.eq.s32.totalorder %s92, 0
      %p791 = por %p789, %p790
      %s793 = sadd.s32 %s792, 1
      %p796 = scmp.eq.s32.totalorder %s86, 1
      %p797 = scmp.ne.s32.totalorder %s792, %s794
      %p798 = scmp.eq.s32.totalorder %s86, 0
      %p799 = por %p797, %p798
      %p800 = scmp.ne.s32.totalorder %s792, %s794
      %p801 = scmp.eq.s32.totalorder %s91, 1
      %p802 = por %p800, %p801
      %p803 = scmp.ne.s32.totalorder %s794, %s795
      %p804 = scmp.eq.s32.totalorder %s91, 0
      %p805 = por %p803, %p804
      %p806 = scmp.ne.s32.totalorder %s794, %s795
      %p807 = scmp.eq.s32.totalorder %s92, 1
      %p808 = por %p806, %p807
      %p810 = scmp.ne.s32.totalorder %s795, %s809
      %p811 = scmp.eq.s32.totalorder %s92, 0
      %p812 = por %p810, %p811
      %s814 = sadd.s32 %s813, 1
      %p817 = scmp.eq.s32.totalorder %s86, 1
      %p818 = scmp.ne.s32.totalorder %s813, %s815
      %p819 = scmp.eq.s32.totalorder %s86, 0
      %p820 = por %p818, %p819
      %p821 = scmp.ne.s32.totalorder %s813, %s815
      %p822 = scmp.eq.s32.totalorder %s91, 1
      %p823 = por %p821, %p822
      %p824 = scmp.ne.s32.totalorder %s815, %s816
      %p825 = scmp.eq.s32.totalorder %s91, 0
      %p826 = por %p824, %p825
      %p827 = scmp.ne.s32.totalorder %s815, %s816
      %p828 = scmp.eq.s32.totalorder %s92, 1
      %p829 = por %p827, %p828
      %p831 = scmp.ne.s32.totalorder %s816, %s830
      %p832 = scmp.eq.s32.totalorder %s92, 0
      %p833 = por %p831, %p832
      %s835 = sadd.s32 %s834, 1
      %p838 = scmp.eq.s32.totalorder %s86, 1
      %p839 = scmp.ne.s32.totalorder %s834, %s836
      %p840 = scmp.eq.s32.totalorder %s86, 0
      %p841 = por %p839, %p840
      %p842 = scmp.ne.s32.totalorder %s834, %s836
      %p843 = scmp.eq.s32.totalorder %s91, 1
      %p844 = por %p842, %p843
      %p845 = scmp.ne.s32.totalorder %s836, %s837
      %p846 = scmp.eq.s32.totalorder %s91, 0
      %p847 = por %p845, %p846
      %p848 = scmp.ne.s32.totalorder %s836, %s837
      %p849 = scmp.eq.s32.totalorder %s92, 1
      %p850 = por %p848, %p849
      %p852 = scmp.ne.s32.totalorder %s837, %s851
      %p853 = scmp.eq.s32.totalorder %s92, 0
      %p854 = por %p852, %p853
      %s856 = sadd.s32 %s855, 1
      %p859 = scmp.eq.s32.totalorder %s86, 1
      %p860 = scmp.ne.s32.totalorder %s855, %s857
      %p861 = scmp.eq.s32.totalorder %s86, 0
      %p862 = por %p860, %p861
      %p863 = scmp.ne.s32.totalorder %s855, %s857
      %p864 = scmp.eq.s32.totalorder %s91, 1
      %p865 = por %p863, %p864
      %p866 = scmp.ne.s32.totalorder %s857, %s858
      %p867 = scmp.eq.s32.totalorder %s91, 0
      %p868 = por %p866, %p867
      %p869 = scmp.ne.s32.totalorder %s857, %s858
      %p870 = scmp.eq.s32.totalorder %s92, 1
      %p871 = por %p869, %p870
      %p873 = scmp.ne.s32.totalorder %s858, %s872
      %p874 = scmp.eq.s32.totalorder %s92, 0
      %p875 = por %p873, %p874
      %s877 = sadd.s32 %s876, 1
      %p880 = scmp.eq.s32.totalorder %s86, 1
      %p881 = scmp.ne.s32.totalorder %s876, %s878
      %p882 = scmp.eq.s32.totalorder %s86, 0
      %p883 = por %p881, %p882
      %p884 = scmp.ne.s32.totalorder %s876, %s878
      %p885 = scmp.eq.s32.totalorder %s91, 1
      %p886 = por %p884, %p885
      %p887 = scmp.ne.s32.totalorder %s878, %s879
      %p888 = scmp.eq.s32.totalorder %s91, 0
      %p889 = por %p887, %p888
      %p890 = scmp.ne.s32.totalorder %s878, %s879
      %p891 = scmp.eq.s32.totalorder %s92, 1
      %p892 = por %p890, %p891
      %p894 = scmp.ne.s32.totalorder %s879, %s893
      %p895 = scmp.eq.s32.totalorder %s92, 0
      %p896 = por %p894, %p895
      %s897 = ssub.s32 %s86, %s93
      %p898 = scmp.eq.s32.totalorder %s897, 0
      %s900 = sadd.s32 %s899, 1
      %s901 = scalar_select %p898, %s899, %s900
      %p904 = pneg %p898
      %p905 = scmp.eq.s32.totalorder %s86, 1
      %p906 = por %p904, %p905
      %p907 = scmp.ne.s32.totalorder %s899, %s902
      %p908 = scmp.eq.s32.totalorder %s86, 0
      %p909 = por %p907, %p908
      %p910 = scmp.ne.s32.totalorder %s899, %s902
      %p911 = scmp.eq.s32.totalorder %s91, 1
      %p912 = por %p910, %p911
      %p913 = scmp.ne.s32.totalorder %s902, %s903
      %p914 = scmp.eq.s32.totalorder %s91, 0
      %p915 = por %p913, %p914
      %p916 = scmp.ne.s32.totalorder %s902, %s903
      %p917 = scmp.eq.s32.totalorder %s92, 1
      %p918 = por %p916, %p917
      %p920 = scmp.ne.s32.totalorder %s903, %s919
      %p921 = scmp.eq.s32.totalorder %s92, 0
      %p922 = por %p920, %p921
      %p923 = scmp.le.s32.totalorder 1, %s86
      %p924 = scmp.lt.s32.totalorder %s86, 3
      %p925 = pnand %p923, %p924
      %p926 = pneg %p925
      // Predicated region
      $region9: #{_lambda_.1} parent=5 // pred_check
        _
      $region10: #{_lambda_.1} parent=5 // pred_check_branch
        %928 = sbr.rel (%p925) target = $region12
      $region11: #{_lambda_.1} parent=5 // pred_region
        %s929 = ssub.s32 %s86, 1
        // Predicated region
        $region13: #{_lambda_.1} parent=11 // pred_check
          %p930 = pneg %p133
        $region14: #{_lambda_.1} parent=11 // pred_check_branch
          %932 = sbr.rel (%p930) target = $region16
        $region15: #{_lambda_.1} parent=11 // pred_region
          _
        $region16: #{_lambda_.1} parent=11 // pred_fallthru
          _
        // Predicated region
        $region17: #{_lambda_.1} parent=11 // pred_check
          %p933 = pneg %p154
        $region18: #{_lambda_.1} parent=11 // pred_check_branch
          %935 = sbr.rel (%p933) target = $region20
        $region19: #{_lambda_.1} parent=11 // pred_region
          _
        $region20: #{_lambda_.1} parent=11 // pred_fallthru
          _
        // Predicated region
        $region21: #{_lambda_.1} parent=11 // pred_check
          %p936 = pneg %p175
        $region22: #{_lambda_.1} parent=11 // pred_check_branch
          %938 = sbr.rel (%p936) target = $region24
        $region23: #{_lambda_.1} parent=11 // pred_region
          _
        $region24: #{_lambda_.1} parent=11 // pred_fallthru
          _
        // Predicated region
        $region25: #{_lambda_.1} parent=11 // pred_check
          %p939 = pneg %p196
        $region26: #{_lambda_.1} parent=11 // pred_check_branch
          %941 = sbr.rel (%p939) target = $region28
        $region27: #{_lambda_.1} parent=11 // pred_region
          _
        $region28: #{_lambda_.1} parent=11 // pred_fallthru
          _
        // Predicated region
        $region29: #{_lambda_.1} parent=11 // pred_check
          %p942 = pneg %p217
        $region30: #{_lambda_.1} parent=11 // pred_check_branch
          %944 = sbr.rel (%p942) target = $region32
        $region31: #{_lambda_.1} parent=11 // pred_region
          _
        $region32: #{_lambda_.1} parent=11 // pred_fallthru
          _
        // Predicated region
        $region33: #{_lambda_.1} parent=11 // pred_check
          %p945 = pneg %p238
        $region34: #{_lambda_.1} parent=11 // pred_check_branch
          %947 = sbr.rel (%p945) target = $region36
        $region35: #{_lambda_.1} parent=11 // pred_region
          _
        $region36: #{_lambda_.1} parent=11 // pred_fallthru
          _
        // Predicated region
        $region37: #{_lambda_.1} parent=11 // pred_check
          %p948 = pneg %p259
        $region38: #{_lambda_.1} parent=11 // pred_check_branch
          %950 = sbr.rel (%p948) target = $region40
        $region39: #{_lambda_.1} parent=11 // pred_region
          _
        $region40: #{_lambda_.1} parent=11 // pred_fallthru
          _
        // Predicated region
        $region41: #{_lambda_.1} parent=11 // pred_check
          %p951 = pneg %p280
        $region42: #{_lambda_.1} parent=11 // pred_check_branch
          %953 = sbr.rel (%p951) target = $region44
        $region43: #{_lambda_.1} parent=11 // pred_region
          _
        $region44: #{_lambda_.1} parent=11 // pred_fallthru
          _
        // Predicated region
        $region45: #{_lambda_.1} parent=11 // pred_check
          %p954 = pneg %p301
        $region46: #{_lambda_.1} parent=11 // pred_check_branch
          %956 = sbr.rel (%p954) target = $region48
        $region47: #{_lambda_.1} parent=11 // pred_region
          _
        $region48: #{_lambda_.1} parent=11 // pred_fallthru
          _
        // Predicated region
        $region49: #{_lambda_.1} parent=11 // pred_check
          %p957 = pneg %p322
        $region50: #{_lambda_.1} parent=11 // pred_check_branch
          %959 = sbr.rel (%p957) target = $region52
        $region51: #{_lambda_.1} parent=11 // pred_region
          _
        $region52: #{_lambda_.1} parent=11 // pred_fallthru
          _
        // Predicated region
        $region53: #{_lambda_.1} parent=11 // pred_check
          %p960 = pneg %p343
        $region54: #{_lambda_.1} parent=11 // pred_check_branch
          %962 = sbr.rel (%p960) target = $region56
        $region55: #{_lambda_.1} parent=11 // pred_region
          _
        $region56: #{_lambda_.1} parent=11 // pred_fallthru
          _
        // Predicated region
        $region57: #{_lambda_.1} parent=11 // pred_check
          %p963 = pneg %p364
        $region58: #{_lambda_.1} parent=11 // pred_check_branch
          %965 = sbr.rel (%p963) target = $region60
        $region59: #{_lambda_.1} parent=11 // pred_region
          _
        $region60: #{_lambda_.1} parent=11 // pred_fallthru
          _
        // Predicated region
        $region61: #{_lambda_.1} parent=11 // pred_check
          %p966 = pneg %p385
        $region62: #{_lambda_.1} parent=11 // pred_check_branch
          %968 = sbr.rel (%p966) target = $region64
        $region63: #{_lambda_.1} parent=11 // pred_region
          _
        $region64: #{_lambda_.1} parent=11 // pred_fallthru
          _
        // Predicated region
        $region65: #{_lambda_.1} parent=11 // pred_check
          %p969 = pneg %p406
        $region66: #{_lambda_.1} parent=11 // pred_check_branch
          %971 = sbr.rel (%p969) target = $region68
        $region67: #{_lambda_.1} parent=11 // pred_region
          _
        $region68: #{_lambda_.1} parent=11 // pred_fallthru
          _
        // Predicated region
        $region69: #{_lambda_.1} parent=11 // pred_check
          %p972 = pneg %p427
        $region70: #{_lambda_.1} parent=11 // pred_check_branch
          %974 = sbr.rel (%p972) target = $region72
        $region71: #{_lambda_.1} parent=11 // pred_region
          _
        $region72: #{_lambda_.1} parent=11 // pred_fallthru
          _
        // Predicated region
        $region73: #{_lambda_.1} parent=11 // pred_check
          %p975 = pneg %p448
        $region74: #{_lambda_.1} parent=11 // pred_check_branch
          %977 = sbr.rel (%p975) target = $region76
        $region75: #{_lambda_.1} parent=11 // pred_region
          _
        $region76: #{_lambda_.1} parent=11 // pred_fallthru
          _
        // Predicated region
        $region77: #{_lambda_.1} parent=11 // pred_check
          %p978 = pneg %p469
        $region78: #{_lambda_.1} parent=11 // pred_check_branch
          %980 = sbr.rel (%p978) target = $region80
        $region79: #{_lambda_.1} parent=11 // pred_region
          _
        $region80: #{_lambda_.1} parent=11 // pred_fallthru
          _
        // Predicated region
        $region81: #{_lambda_.1} parent=11 // pred_check
          %p981 = pneg %p490
        $region82: #{_lambda_.1} parent=11 // pred_check_branch
          %983 = sbr.rel (%p981) target = $region84
        $region83: #{_lambda_.1} parent=11 // pred_region
          _
        $region84: #{_lambda_.1} parent=11 // pred_fallthru
          _
        // Predicated region
        $region85: #{_lambda_.1} parent=11 // pred_check
          %p984 = pneg %p511
        $region86: #{_lambda_.1} parent=11 // pred_check_branch
          %986 = sbr.rel (%p984) target = $region88
        $region87: #{_lambda_.1} parent=11 // pred_region
          _
        $region88: #{_lambda_.1} parent=11 // pred_fallthru
          _
        // Predicated region
        $region89: #{_lambda_.1} parent=11 // pred_check
          %p987 = pneg %p532
        $region90: #{_lambda_.1} parent=11 // pred_check_branch
          %989 = sbr.rel (%p987) target = $region92
        $region91: #{_lambda_.1} parent=11 // pred_region
          _
        $region92: #{_lambda_.1} parent=11 // pred_fallthru
          _
        // Predicated region
        $region93: #{_lambda_.1} parent=11 // pred_check
          %p990 = pneg %p553
        $region94: #{_lambda_.1} parent=11 // pred_check_branch
          %992 = sbr.rel (%p990) target = $region96
        $region95: #{_lambda_.1} parent=11 // pred_region
          _
        $region96: #{_lambda_.1} parent=11 // pred_fallthru
          _
        // Predicated region
        $region97: #{_lambda_.1} parent=11 // pred_check
          %p993 = pneg %p574
        $region98: #{_lambda_.1} parent=11 // pred_check_branch
          %995 = sbr.rel (%p993) target = $region100
        $region99: #{_lambda_.1} parent=11 // pred_region
          _
        $region100: #{_lambda_.1} parent=11 // pred_fallthru
          _
        // Predicated region
        $region101: #{_lambda_.1} parent=11 // pred_check
          %p996 = pneg %p595
        $region102: #{_lambda_.1} parent=11 // pred_check_branch
          %998 = sbr.rel (%p996) target = $region104
        $region103: #{_lambda_.1} parent=11 // pred_region
          _
        $region104: #{_lambda_.1} parent=11 // pred_fallthru
          _
        // Predicated region
        $region105: #{_lambda_.1} parent=11 // pred_check
          %p999 = pneg %p616
        $region106: #{_lambda_.1} parent=11 // pred_check_branch
          %1001 = sbr.rel (%p999) target = $region108
        $region107: #{_lambda_.1} parent=11 // pred_region
          _
        $region108: #{_lambda_.1} parent=11 // pred_fallthru
          _
        // Predicated region
        $region109: #{_lambda_.1} parent=11 // pred_check
          %p1002 = pneg %p637
        $region110: #{_lambda_.1} parent=11 // pred_check_branch
          %1004 = sbr.rel (%p1002) target = $region112
        $region111: #{_lambda_.1} parent=11 // pred_region
          _
        $region112: #{_lambda_.1} parent=11 // pred_fallthru
          _
        // Predicated region
        $region113: #{_lambda_.1} parent=11 // pred_check
          %p1005 = pneg %p658
        $region114: #{_lambda_.1} parent=11 // pred_check_branch
          %1007 = sbr.rel (%p1005) target = $region116
        $region115: #{_lambda_.1} parent=11 // pred_region
          _
        $region116: #{_lambda_.1} parent=11 // pred_fallthru
          _
        // Predicated region
        $region117: #{_lambda_.1} parent=11 // pred_check
          %p1008 = pneg %p679
        $region118: #{_lambda_.1} parent=11 // pred_check_branch
          %1010 = sbr.rel (%p1008) target = $region120
        $region119: #{_lambda_.1} parent=11 // pred_region
          _
        $region120: #{_lambda_.1} parent=11 // pred_fallthru
          _
        // Predicated region
        $region121: #{_lambda_.1} parent=11 // pred_check
          %p1011 = pneg %p700
        $region122: #{_lambda_.1} parent=11 // pred_check_branch
          %1013 = sbr.rel (%p1011) target = $region124
        $region123: #{_lambda_.1} parent=11 // pred_region
          _
        $region124: #{_lambda_.1} parent=11 // pred_fallthru
          _
        // Predicated region
        $region125: #{_lambda_.1} parent=11 // pred_check
          %p1014 = pneg %p721
        $region126: #{_lambda_.1} parent=11 // pred_check_branch
          %1016 = sbr.rel (%p1014) target = $region128
        $region127: #{_lambda_.1} parent=11 // pred_region
          _
        $region128: #{_lambda_.1} parent=11 // pred_fallthru
          _
        // Predicated region
        $region129: #{_lambda_.1} parent=11 // pred_check
          %p1017 = pneg %p742
        $region130: #{_lambda_.1} parent=11 // pred_check_branch
          %1019 = sbr.rel (%p1017) target = $region132
        $region131: #{_lambda_.1} parent=11 // pred_region
          _
        $region132: #{_lambda_.1} parent=11 // pred_fallthru
          _
        // Predicated region
        $region133: #{_lambda_.1} parent=11 // pred_check
          %p1020 = pneg %p763
        $region134: #{_lambda_.1} parent=11 // pred_check_branch
          %1022 = sbr.rel (%p1020) target = $region136
        $region135: #{_lambda_.1} parent=11 // pred_region
          _
        $region136: #{_lambda_.1} parent=11 // pred_fallthru
          _
        // Predicated region
        $region137: #{_lambda_.1} parent=11 // pred_check
          %p1023 = pneg %p784
        $region138: #{_lambda_.1} parent=11 // pred_check_branch
          %1025 = sbr.rel (%p1023) target = $region140
        $region139: #{_lambda_.1} parent=11 // pred_region
          _
        $region140: #{_lambda_.1} parent=11 // pred_fallthru
          _
        // Predicated region
        $region141: #{_lambda_.1} parent=11 // pred_check
          %p1026 = pneg %p805
        $region142: #{_lambda_.1} parent=11 // pred_check_branch
          %1028 = sbr.rel (%p1026) target = $region144
        $region143: #{_lambda_.1} parent=11 // pred_region
          _
        $region144: #{_lambda_.1} parent=11 // pred_fallthru
          _
        // Predicated region
        $region145: #{_lambda_.1} parent=11 // pred_check
          %p1029 = pneg %p826
        $region146: #{_lambda_.1} parent=11 // pred_check_branch
          %1031 = sbr.rel (%p1029) target = $region148
        $region147: #{_lambda_.1} parent=11 // pred_region
          _
        $region148: #{_lambda_.1} parent=11 // pred_fallthru
          _
        // Predicated region
        $region149: #{_lambda_.1} parent=11 // pred_check
          %p1032 = pneg %p847
        $region150: #{_lambda_.1} parent=11 // pred_check_branch
          %1034 = sbr.rel (%p1032) target = $region152
        $region151: #{_lambda_.1} parent=11 // pred_region
          _
        $region152: #{_lambda_.1} parent=11 // pred_fallthru
          _
        // Predicated region
        $region153: #{_lambda_.1} parent=11 // pred_check
          %p1035 = pneg %p868
        $region154: #{_lambda_.1} parent=11 // pred_check_branch
          %1037 = sbr.rel (%p1035) target = $region156
        $region155: #{_lambda_.1} parent=11 // pred_region
          _
        $region156: #{_lambda_.1} parent=11 // pred_fallthru
          _
        // Predicated region
        $region157: #{_lambda_.1} parent=11 // pred_check
          %p1038 = pneg %p889
        $region158: #{_lambda_.1} parent=11 // pred_check_branch
          %1040 = sbr.rel (%p1038) target = $region160
        $region159: #{_lambda_.1} parent=11 // pred_region
          _
        $region160: #{_lambda_.1} parent=11 // pred_fallthru
          _
      $region12: #{_lambda_.1} parent=5 // pred_fallthru
        _
      %p1041 = scmp.lt.s32.totalorder %s86, 2
      // Predicated region
      $region161: #{_lambda_.1} parent=5 // pred_check
        %p1042 = pneg %p1041
      $region162: #{_lambda_.1} parent=5 // pred_check_branch
        %1044 = sbr.rel (%p1042) target = $region164
      $region163: #{_lambda_.1} parent=5 // pred_region
        // Predicated region
        $region165: #{_lambda_.1} parent=163 // pred_check
          %p1045 = pneg %p106
        $region166: #{_lambda_.1} parent=163 // pred_check_branch
          %1047 = sbr.rel (%p1045) target = $region168
        $region167: #{_lambda_.1} parent=163 // pred_region
          %p1048 = scmp.lt.s32.totalorder %s86, 1
          %s1049 = scalar_select %p1048, %s86, 1
          %s1050 = smul.addr %s1049, 128
          %s1051 = smul.addr %s1050, 8
          %s1052 = scalar_lea.vmem %s1, %s1051
        $region168: #{_lambda_.1} parent=163 // pred_fallthru
          _
      $region164: #{_lambda_.1} parent=5 // pred_fallthru
        _
      %p1053 = scmp.le.s32.totalorder 1, %s86
      %p1054 = scmp.lt.s32.totalorder %s86, 3
      %p1055 = pnand %p1053, %p1054
      %p1056 = pneg %p1055
      // Predicated region
      $region169: #{_lambda_.1} parent=5 // pred_check
        _
      $region170: #{_lambda_.1} parent=5 // pred_check_branch
        %1058 = sbr.rel (%p1055) target = $region172
      $region171: #{_lambda_.1} parent=5 // pred_region
        %s1059 = ssub.s32 %s86, 1
        %p1060 = scmp.lt.s32.totalorder %s91, 1
        %s1061 = scalar_select %p1060, %s91, 1
        %s1062 = smul.addr %s1061, 128
        %s1063 = smul.addr %s1062, 8
        %s1064 = scalar_lea.vmem %s1, %s1063
        %p1065 = pneg %p112
        %p1066 = pneg %p109
        %p1067 = pneg %p133
        %p1068 = pneg %p130
        %p1069 = pneg %p154
        %p1070 = pneg %p151
        %p1071 = pneg %p175
        %p1072 = pneg %p172
        %p1073 = pneg %p196
        %p1074 = pneg %p193
        %p1075 = pneg %p217
        %p1076 = pneg %p214
        %p1077 = pneg %p238
        %p1078 = pneg %p235
        %p1079 = pneg %p259
        %p1080 = pneg %p256
        %p1081 = pneg %p280
        %p1082 = pneg %p277
        %p1083 = pneg %p301
        %p1084 = pneg %p298
        %p1085 = pneg %p322
        %p1086 = pneg %p319
        %p1087 = pneg %p343
        %p1088 = pneg %p340
        %p1089 = pneg %p364
        %p1090 = pneg %p361
        %p1091 = pneg %p385
        %p1092 = pneg %p382
        %p1093 = pneg %p406
        %p1094 = pneg %p403
        %p1095 = pneg %p427
        %p1096 = pneg %p424
        %p1097 = pneg %p448
        %p1098 = pneg %p445
        %p1099 = pneg %p469
        %p1100 = pneg %p466
        %p1101 = pneg %p490
        %p1102 = pneg %p487
        %p1103 = pneg %p511
        %p1104 = pneg %p508
        %p1105 = pneg %p532
        %p1106 = pneg %p529
        %p1107 = pneg %p553
        %p1108 = pneg %p550
        %p1109 = pneg %p574
        %p1110 = pneg %p571
        %p1111 = pneg %p595
        %p1112 = pneg %p592
        %p1113 = pneg %p616
        %p1114 = pneg %p613
        %p1115 = pneg %p637
        %p1116 = pneg %p634
        %p1117 = pneg %p658
        %p1118 = pneg %p655
        %p1119 = pneg %p679
        %p1120 = pneg %p676
        %p1121 = pneg %p700
        %p1122 = pneg %p697
        %p1123 = pneg %p721
        %p1124 = pneg %p718
        %p1125 = pneg %p742
        %p1126 = pneg %p739
        %p1127 = pneg %p763
        %p1128 = pneg %p760
        %p1129 = pneg %p784
        %p1130 = pneg %p781
        %p1131 = pneg %p805
        %p1132 = pneg %p802
        %p1133 = pneg %p826
        %p1134 = pneg %p823
        %p1135 = pneg %p847
        %p1136 = pneg %p844
        %p1137 = pneg %p868
        %p1138 = pneg %p865
        %p1139 = pneg %p889
        %p1140 = pneg %p886
        %p1141 = pneg %p915
        %p1142 = pneg %p912
        %s1143 = sand.u32 %s902, 1
        %s1144 = scalar_lea.sflag [#allocation3], %s1143
        %s1145 = sand.u32 %s902, 1
        %s1146 = scalar_lea.vmem [#allocation2], %s1145
        %p1147 = scmp.lt.s32.totalorder %s91, 1
        %s1148 = scalar_select %p1147, %s91, 1
        %s1149 = smul.addr %s1148, 128
        %s1150 = smul.addr %s1149, 8
        %s1151 = scalar_lea.vmem %s1, %s1150
        %v1152 = vld [vmem:[%s1151] sm:$0xff]
        %v1153 = vld [vmem:[%s1151 + $0x8] sm:$0xff]
        %v1154 = vld [vmem:[%s1151 + $0x10] sm:$0xff]
        %v1155 = vld [vmem:[%s1151 + $0x18] sm:$0xff]
        %v1156 = vld [vmem:[%s1151 + $0x20] sm:$0xff]
        %v1157 = vld [vmem:[%s1151 + $0x28] sm:$0xff]
        %v1158 = vld [vmem:[%s1151 + $0x30] sm:$0xff]
        %v1159 = vld [vmem:[%s1151 + $0x38] sm:$0xff]
        %v1160 = vld [vmem:[%s1151 + $0x40] sm:$0xff]
        %v1161 = vld [vmem:[%s1151 + $0x48] sm:$0xff]
        %v1162 = vld [vmem:[%s1151 + $0x50] sm:$0xff]
        %v1163 = vld [vmem:[%s1151 + $0x58] sm:$0xff]
        %v1164 = vld [vmem:[%s1151 + $0x60] sm:$0xff]
        %v1165 = vld [vmem:[%s1151 + $0x68] sm:$0xff]
        %v1166 = vld [vmem:[%s1151 + $0x70] sm:$0xff]
        %v1167 = vld [vmem:[%s1151 + $0x78] sm:$0xff]
        %v1168 = vld [vmem:[%s1151 + $0x80] sm:$0xff]
        %v1169 = vld [vmem:[%s1151 + $0x88] sm:$0xff]
        %v1170 = vld [vmem:[%s1151 + $0x90] sm:$0xff]
        %v1171 = vld [vmem:[%s1151 + $0x98] sm:$0xff]
        %v1172 = vld [vmem:[%s1151 + $0xa0] sm:$0xff]
        %v1173 = vld [vmem:[%s1151 + $0xa8] sm:$0xff]
        %v1174 = vld [vmem:[%s1151 + $0xb0] sm:$0xff]
        %v1175 = vld [vmem:[%s1151 + $0xb8] sm:$0xff]
        %v1176 = vld [vmem:[%s1151 + $0xc0] sm:$0xff]
        %v1177 = vld [vmem:[%s1151 + $0xc8] sm:$0xff]
        %v1178 = vld [vmem:[%s1151 + $0xd0] sm:$0xff]
        %v1179 = vld [vmem:[%s1151 + $0xd8] sm:$0xff]
        %v1180 = vld [vmem:[%s1151 + $0xe0] sm:$0xff]
        %v1181 = vld [vmem:[%s1151 + $0xe8] sm:$0xff]
        %v1182 = vld [vmem:[%s1151 + $0xf0] sm:$0xff]
        %v1183 = vld [vmem:[%s1151 + $0xf8] sm:$0xff]
        %v1184 = vld [vmem:[%s1151 + $0x100] sm:$0xff]
        %v1185 = vld [vmem:[%s1151 + $0x108] sm:$0xff]
        %v1186 = vld [vmem:[%s1151 + $0x110] sm:$0xff]
        %v1187 = vld [vmem:[%s1151 + $0x118] sm:$0xff]
        %v1188 = vld [vmem:[%s1151 + $0x120] sm:$0xff]
        %v1189 = vld [vmem:[%s1151 + $0x128] sm:$0xff]
        %v1190 = vld [vmem:[%s1151 + $0x130] sm:$0xff]
        %v1191 = vld [vmem:[%s1151 + $0x138] sm:$0xff]
        %v1192 = vld [vmem:[%s1151 + $0x140] sm:$0xff]
        %v1193 = vld [vmem:[%s1151 + $0x148] sm:$0xff]
        %v1194 = vld [vmem:[%s1151 + $0x150] sm:$0xff]
        %v1195 = vld [vmem:[%s1151 + $0x158] sm:$0xff]
        %v1196 = vld [vmem:[%s1151 + $0x160] sm:$0xff]
        %v1197 = vld [vmem:[%s1151 + $0x168] sm:$0xff]
        %v1198 = vld [vmem:[%s1151 + $0x170] sm:$0xff]
        %v1199 = vld [vmem:[%s1151 + $0x178] sm:$0xff]
        %v1200 = vld [vmem:[%s1151 + $0x180] sm:$0xff]
        %v1201 = vld [vmem:[%s1151 + $0x188] sm:$0xff]
        %v1202 = vld [vmem:[%s1151 + $0x190] sm:$0xff]
        %v1203 = vld [vmem:[%s1151 + $0x198] sm:$0xff]
        %v1204 = vld [vmem:[%s1151 + $0x1a0] sm:$0xff]
        %v1205 = vld [vmem:[%s1151 + $0x1a8] sm:$0xff]
        %v1206 = vld [vmem:[%s1151 + $0x1b0] sm:$0xff]
        %v1207 = vld [vmem:[%s1151 + $0x1b8] sm:$0xff]
        %v1208 = vld [vmem:[%s1151 + $0x1c0] sm:$0xff]
        %v1209 = vld [vmem:[%s1151 + $0x1c8] sm:$0xff]
        %v1210 = vld [vmem:[%s1151 + $0x1d0] sm:$0xff]
        %v1211 = vld [vmem:[%s1151 + $0x1d8] sm:$0xff]
        %v1212 = vld [vmem:[%s1151 + $0x1e0] sm:$0xff]
        %v1213 = vld [vmem:[%s1151 + $0x1e8] sm:$0xff]
        %v1214 = vld [vmem:[%s1151 + $0x1f0] sm:$0xff]
        %v1215 = vld [vmem:[%s1151 + $0x1f8] sm:$0xff]
        %v1216 = vld [vmem:[%s1151 + $0x200] sm:$0xff]
        %v1217 = vld [vmem:[%s1151 + $0x208] sm:$0xff]
        %v1218 = vld [vmem:[%s1151 + $0x210] sm:$0xff]
        %v1219 = vld [vmem:[%s1151 + $0x218] sm:$0xff]
        %v1220 = vld [vmem:[%s1151 + $0x220] sm:$0xff]
        %v1221 = vld [vmem:[%s1151 + $0x228] sm:$0xff]
        %v1222 = vld [vmem:[%s1151 + $0x230] sm:$0xff]
        %v1223 = vld [vmem:[%s1151 + $0x238] sm:$0xff]
        %v1224 = vld [vmem:[%s1151 + $0x240] sm:$0xff]
        %v1225 = vld [vmem:[%s1151 + $0x248] sm:$0xff]
        %v1226 = vld [vmem:[%s1151 + $0x250] sm:$0xff]
        %v1227 = vld [vmem:[%s1151 + $0x258] sm:$0xff]
        %v1228 = vld [vmem:[%s1151 + $0x260] sm:$0xff]
        %v1229 = vld [vmem:[%s1151 + $0x268] sm:$0xff]
        %v1230 = vld [vmem:[%s1151 + $0x270] sm:$0xff]
        %v1231 = vld [vmem:[%s1151 + $0x278] sm:$0xff]
        %v1232 = vld [vmem:[%s1151 + $0x280] sm:$0xff]
        %v1233 = vld [vmem:[%s1151 + $0x288] sm:$0xff]
        %v1234 = vld [vmem:[%s1151 + $0x290] sm:$0xff]
        %v1235 = vld [vmem:[%s1151 + $0x298] sm:$0xff]
        %v1236 = vld [vmem:[%s1151 + $0x2a0] sm:$0xff]
        %v1237 = vld [vmem:[%s1151 + $0x2a8] sm:$0xff]
        %v1238 = vld [vmem:[%s1151 + $0x2b0] sm:$0xff]
        %v1239 = vld [vmem:[%s1151 + $0x2b8] sm:$0xff]
        %v1240 = vld [vmem:[%s1151 + $0x2c0] sm:$0xff]
        %v1241 = vld [vmem:[%s1151 + $0x2c8] sm:$0xff]
        %v1242 = vld [vmem:[%s1151 + $0x2d0] sm:$0xff]
        %v1243 = vld [vmem:[%s1151 + $0x2d8] sm:$0xff]
        %v1244 = vld [vmem:[%s1151 + $0x2e0] sm:$0xff]
        %v1245 = vld [vmem:[%s1151 + $0x2e8] sm:$0xff]
        %v1246 = vld [vmem:[%s1151 + $0x2f0] sm:$0xff]
        %v1247 = vld [vmem:[%s1151 + $0x2f8] sm:$0xff]
        %v1248 = vld [vmem:[%s1151 + $0x300] sm:$0xff]
        %v1249 = vld [vmem:[%s1151 + $0x308] sm:$0xff]
        %v1250 = vld [vmem:[%s1151 + $0x310] sm:$0xff]
        %v1251 = vld [vmem:[%s1151 + $0x318] sm:$0xff]
        %v1252 = vld [vmem:[%s1151 + $0x320] sm:$0xff]
        %v1253 = vld [vmem:[%s1151 + $0x328] sm:$0xff]
        %v1254 = vld [vmem:[%s1151 + $0x330] sm:$0xff]
        %v1255 = vld [vmem:[%s1151 + $0x338] sm:$0xff]
        %v1256 = vld [vmem:[%s1151 + $0x340] sm:$0xff]
        %v1257 = vld [vmem:[%s1151 + $0x348] sm:$0xff]
        %v1258 = vld [vmem:[%s1151 + $0x350] sm:$0xff]
        %v1259 = vld [vmem:[%s1151 + $0x358] sm:$0xff]
        %v1260 = vld [vmem:[%s1151 + $0x360] sm:$0xff]
        %v1261 = vld [vmem:[%s1151 + $0x368] sm:$0xff]
        %v1262 = vld [vmem:[%s1151 + $0x370] sm:$0xff]
        %v1263 = vld [vmem:[%s1151 + $0x378] sm:$0xff]
        %v1264 = vld [vmem:[%s1151 + $0x380] sm:$0xff]
        %v1265 = vld [vmem:[%s1151 + $0x388] sm:$0xff]
        %v1266 = vld [vmem:[%s1151 + $0x390] sm:$0xff]
        %v1267 = vld [vmem:[%s1151 + $0x398] sm:$0xff]
        %v1268 = vld [vmem:[%s1151 + $0x3a0] sm:$0xff]
        %v1269 = vld [vmem:[%s1151 + $0x3a8] sm:$0xff]
        %v1270 = vld [vmem:[%s1151 + $0x3b0] sm:$0xff]
        %v1271 = vld [vmem:[%s1151 + $0x3b8] sm:$0xff]
        %v1272 = vld [vmem:[%s1151 + $0x3c0] sm:$0xff]
        %v1273 = vld [vmem:[%s1151 + $0x3c8] sm:$0xff]
        %v1274 = vld [vmem:[%s1151 + $0x3d0] sm:$0xff]
        %v1275 = vld [vmem:[%s1151 + $0x3d8] sm:$0xff]
        %v1276 = vld [vmem:[%s1151 + $0x3e0] sm:$0xff]
        %v1277 = vld [vmem:[%s1151 + $0x3e8] sm:$0xff]
        %v1278 = vld [vmem:[%s1151 + $0x3f0] sm:$0xff]
        %v1279 = vld [vmem:[%s1151 + $0x3f8] sm:$0xff]
        %v1280 = vld [vmem:[%s3] sm:$0xff]
        %v1281 = vld [vmem:[%s3 + $0x8] sm:$0xff]
        %v1282 = vld [vmem:[%s3 + $0x10] sm:$0xff]
        %v1283 = vld [vmem:[%s3 + $0x18] sm:$0xff]
        %v1284 = vld [vmem:[%s3 + $0x20] sm:$0xff]
        %v1285 = vld [vmem:[%s3 + $0x28] sm:$0xff]
        %v1286 = vld [vmem:[%s3 + $0x30] sm:$0x1]
        %vm1287 = vcmask 400384
        %v1289 = vsel %vm1287, %v1152, 0
        %v1292 = vsel %vm1287, %v1153, 0
        %v1295 = vsel %vm1287, %v1154, 0
        %v1298 = vsel %vm1287, %v1155, 0
        %v1301 = vsel %vm1287, %v1156, 0
        %v1304 = vsel %vm1287, %v1157, 0
        %v1307 = vsel %vm1287, %v1158, 0
        %v1310 = vsel %vm1287, %v1159, 0
        %v1313 = vsel %vm1287, %v1160, 0
        %v1316 = vsel %vm1287, %v1161, 0
        %v1319 = vsel %vm1287, %v1162, 0
        %v1322 = vsel %vm1287, %v1163, 0
        %v1325 = vsel %vm1287, %v1164, 0
        %v1328 = vsel %vm1287, %v1165, 0
        %v1331 = vsel %vm1287, %v1166, 0
        %v1334 = vsel %vm1287, %v1167, 0
        %v1337 = vsel %vm1287, %v1168, 0
        %v1340 = vsel %vm1287, %v1169, 0
        %v1343 = vsel %vm1287, %v1170, 0
        %v1346 = vsel %vm1287, %v1171, 0
        %v1349 = vsel %vm1287, %v1172, 0
        %v1352 = vsel %vm1287, %v1173, 0
        %v1355 = vsel %vm1287, %v1174, 0
        %v1358 = vsel %vm1287, %v1175, 0
        %v1361 = vsel %vm1287, %v1176, 0
        %v1364 = vsel %vm1287, %v1177, 0
        %v1367 = vsel %vm1287, %v1178, 0
        %v1370 = vsel %vm1287, %v1179, 0
        %v1373 = vsel %vm1287, %v1180, 0
        %v1376 = vsel %vm1287, %v1181, 0
        %v1379 = vsel %vm1287, %v1182, 0
        %v1382 = vsel %vm1287, %v1183, 0
        %v1385 = vsel %vm1287, %v1184, 0
        %v1388 = vsel %vm1287, %v1185, 0
        %v1391 = vsel %vm1287, %v1186, 0
        %v1394 = vsel %vm1287, %v1187, 0
        %v1397 = vsel %vm1287, %v1188, 0
        %v1400 = vsel %vm1287, %v1189, 0
        %v1403 = vsel %vm1287, %v1190, 0
        %v1406 = vsel %vm1287, %v1191, 0
        %v1409 = vsel %vm1287, %v1192, 0
        %v1412 = vsel %vm1287, %v1193, 0
        %v1415 = vsel %vm1287, %v1194, 0
        %v1418 = vsel %vm1287, %v1195, 0
        %v1421 = vsel %vm1287, %v1196, 0
        %v1424 = vsel %vm1287, %v1197, 0
        %v1427 = vsel %vm1287, %v1198, 0
        %v1430 = vsel %vm1287, %v1199, 0
        %v1433 = vsel %vm1287, %v1200, 0
        %v1436 = vsel %vm1287, %v1201, 0
        %v1439 = vsel %vm1287, %v1202, 0
        %v1442 = vsel %vm1287, %v1203, 0
        %v1445 = vsel %vm1287, %v1204, 0
        %v1448 = vsel %vm1287, %v1205, 0
        %v1451 = vsel %vm1287, %v1206, 0
        %v1454 = vsel %vm1287, %v1207, 0
        %v1457 = vsel %vm1287, %v1208, 0
        %v1460 = vsel %vm1287, %v1209, 0
        %v1463 = vsel %vm1287, %v1210, 0
        %v1466 = vsel %vm1287, %v1211, 0
        %v1469 = vsel %vm1287, %v1212, 0
        %v1472 = vsel %vm1287, %v1213, 0
        %v1475 = vsel %vm1287, %v1214, 0
        %v1478 = vsel %vm1287, %v1215, 0
        %v1481 = vsel %vm1287, %v1216, 0
        %v1484 = vsel %vm1287, %v1217, 0
        %v1487 = vsel %vm1287, %v1218, 0
        %v1490 = vsel %vm1287, %v1219, 0
        %v1493 = vsel %vm1287, %v1220, 0
        %v1496 = vsel %vm1287, %v1221, 0
        %v1499 = vsel %vm1287, %v1222, 0
        %v1502 = vsel %vm1287, %v1223, 0
        %v1505 = vsel %vm1287, %v1224, 0
        %v1508 = vsel %vm1287, %v1225, 0
        %v1511 = vsel %vm1287, %v1226, 0
        %v1514 = vsel %vm1287, %v1227, 0
        %v1517 = vsel %vm1287, %v1228, 0
        %v1520 = vsel %vm1287, %v1229, 0
        %v1523 = vsel %vm1287, %v1230, 0
        %v1526 = vsel %vm1287, %v1231, 0
        %v1529 = vsel %vm1287, %v1232, 0
        %v1532 = vsel %vm1287, %v1233, 0
        %v1535 = vsel %vm1287, %v1234, 0
        %v1538 = vsel %vm1287, %v1235, 0
        %v1541 = vsel %vm1287, %v1236, 0
        %v1544 = vsel %vm1287, %v1237, 0
        %v1547 = vsel %vm1287, %v1238, 0
        %v1550 = vsel %vm1287, %v1239, 0
        %v1553 = vsel %vm1287, %v1240, 0
        %v1556 = vsel %vm1287, %v1241, 0
        %v1559 = vsel %vm1287, %v1242, 0
        %v1562 = vsel %vm1287, %v1243, 0
        %v1565 = vsel %vm1287, %v1244, 0
        %v1568 = vsel %vm1287, %v1245, 0
        %v1571 = vsel %vm1287, %v1246, 0
        %v1574 = vsel %vm1287, %v1247, 0
        %v1577 = vsel %vm1287, %v1248, 0
        %v1580 = vsel %vm1287, %v1249, 0
        %v1583 = vsel %vm1287, %v1250, 0
        %v1586 = vsel %vm1287, %v1251, 0
        %v1589 = vsel %vm1287, %v1252, 0
        %v1592 = vsel %vm1287, %v1253, 0
        %v1595 = vsel %vm1287, %v1254, 0
        %v1598 = vsel %vm1287, %v1255, 0
        %v1601 = vsel %vm1287, %v1256, 0
        %v1604 = vsel %vm1287, %v1257, 0
        %v1607 = vsel %vm1287, %v1258, 0
        %v1610 = vsel %vm1287, %v1259, 0
        %v1613 = vsel %vm1287, %v1260, 0
        %v1616 = vsel %vm1287, %v1261, 0
        %v1619 = vsel %vm1287, %v1262, 0
        %v1622 = vsel %vm1287, %v1263, 0
        %v1625 = vsel %vm1287, %v1264, 0
        %v1628 = vsel %vm1287, %v1265, 0
        %v1631 = vsel %vm1287, %v1266, 0
        %v1634 = vsel %vm1287, %v1267, 0
        %v1637 = vsel %vm1287, %v1268, 0
        %v1640 = vsel %vm1287, %v1269, 0
        %v1643 = vsel %vm1287, %v1270, 0
        %v1646 = vsel %vm1287, %v1271, 0
        %v1649 = vsel %vm1287, %v1272, 0
        %v1652 = vsel %vm1287, %v1273, 0
        %v1655 = vsel %vm1287, %v1274, 0
        %v1658 = vsel %vm1287, %v1275, 0
        %v1661 = vsel %vm1287, %v1276, 0
        %v1664 = vsel %vm1287, %v1277, 0
        %v1667 = vsel %vm1287, %v1278, 0
        %v1670 = vsel %vm1287, %v1279, 0
        %vm1672 = vcmask 1040384
        %v1674 = vsel %vm1672, %v1286, 0
        %1676 = vmatprep.subr.mxu0 0.0
        %1677 = vmatpush1.msra.mxu0 0.0
        %1678 = vmatprep.subr.mxu0 0.0
        %1679 = vmatpush1.msra.mxu0 0.0
        %1680 = vmatprep.subr.mxu0 0.0
        %1681 = vmatpush1.msra.mxu0 0.0
        %1682 = vmatprep.subr.mxu0 0.0
        %1683 = vmatpush1.msra.mxu0 0.0
        %1684 = vmatprep.subr.mxu0 0.0
        %1685 = vmatpush1.msra.mxu0 0.0
        %1686 = vmatprep.subr.mxu0 0.0
        %1687 = vmatpush1.msra.mxu0 0.0
        %1688 = vmatprep.subr.mxu0 0.0
        %1689 = vmatpush1.msra.mxu0 0.0
        %1690 = vmatprep.subr.mxu0 0.0
        %1691 = vmatpush1.msra.mxu0 0.0
        %1692 = vmatprep.subr.mxu0 0.0
        %1693 = vmatpush1.msra.mxu0 0.0
        %1694 = vmatprep.subr.mxu0 0.0
        %1695 = vmatpush1.msra.mxu0 %v1674
        %1696 = vmatprep.subr.mxu0 0.0
        %1697 = vmatpush1.msra.mxu0 %v1285
        %1698 = vmatprep.subr.mxu0 0.0
        %1699 = vmatpush1.msra.mxu0 %v1284
        %1700 = vmatprep.subr.mxu0 0.0
        %1701 = vmatpush1.msra.mxu0 %v1283
        %1702 = vmatprep.subr.mxu0 0.0
        %1703 = vmatpush1.msra.mxu0 %v1282
        %1704 = vmatprep.subr.mxu0 0.0
        %1705 = vmatpush1.msra.mxu0 %v1281
        %1706 = vmatprep.subr.mxu0 0.0
        %1707 = vmatpush1.msra.mxu0 %v1280
        %1708 = vmatprep.subr.mxu0 0.0
        %1709 = vmatpush2.msra.mxu0 0.0
        %1710 = vmatprep.subr.mxu0 0.0
        %1711 = vmatpush2.msra.mxu0 0.0
        %1712 = vmatprep.subr.mxu0 0.0
        %1713 = vmatpush2.msra.mxu0 0.0
        %1714 = vmatprep.subr.mxu0 0.0
        %1715 = vmatpush2.msra.mxu0 0.0
        %1716 = vmatprep.subr.mxu0 0.0
        %1717 = vmatpush2.msra.mxu0 0.0
        %1718 = vmatprep.subr.mxu0 0.0
        %1719 = vmatpush2.msra.mxu0 0.0
        %1720 = vmatprep.subr.mxu0 0.0
        %1721 = vmatpush2.msra.mxu0 0.0
        %1722 = vmatprep.subr.mxu0 0.0
        %1723 = vmatpush2.msra.mxu0 0.0
        %1724 = vmatprep.subr.mxu0 0.0
        %1725 = vmatpush2.msra.mxu0 0.0
        %1726 = vmatprep.subr.mxu0 0.0
        %1727 = vmatpush2.msra.mxu0 0.0
        %1728 = vmatprep.subr.mxu0 0.0
        %1729 = vmatpush2.msra.mxu0 0.0
        %1730 = vmatprep.subr.mxu0 0.0
        %1731 = vmatpush2.msra.mxu0 0.0
        %1732 = vmatprep.subr.mxu0 0.0
        %1733 = vmatpush2.msra.mxu0 0.0
        %1734 = vmatprep.subr.mxu0 0.0
        %1735 = vmatpush2.msra.mxu0 0.0
        %1736 = vmatprep.subr.mxu0 0.0
        %1737 = vmatpush2.msra.mxu0 0.0
        %1738 = vmatprep.subr.mxu0 0.0
        %1739 = vmatpush2.msra.mxu0 0.0
        %1740 = vmatprep.mubr.f32.mxu0 0.0
        %1741 = vmatmul.mubr.f32.gmra.mxu0 %v1289
        %v1742 = vpop.f32.mrf.mxu0
        %v1743 = vadd.f32 0.0, %v1742
        %v1744 = vpop.f32.mrf.mxu0
        %1745 = vmatprep.mubr.f32.mxu0 0.0
        %1746 = vmatmul.mubr.f32.gmra.mxu0 %v1292
        %v1747 = vpop.f32.mrf.mxu0
        %v1748 = vadd.f32 0.0, %v1747
        %v1749 = vpop.f32.mrf.mxu0
        %1750 = vmatprep.mubr.f32.mxu0 0.0
        %1751 = vmatmul.mubr.f32.gmra.mxu0 %v1295
        %v1752 = vpop.f32.mrf.mxu0
        %v1753 = vadd.f32 0.0, %v1752
        %v1754 = vpop.f32.mrf.mxu0
        %1755 = vmatprep.mubr.f32.mxu0 0.0
        %1756 = vmatmul.mubr.f32.gmra.mxu0 %v1298
        %v1757 = vpop.f32.mrf.mxu0
        %v1758 = vadd.f32 0.0, %v1757
        %v1759 = vpop.f32.mrf.mxu0
        %1760 = vmatprep.mubr.f32.mxu0 0.0
        %1761 = vmatmul.mubr.f32.gmra.mxu0 %v1301
        %v1762 = vpop.f32.mrf.mxu0
        %v1763 = vadd.f32 0.0, %v1762
        %v1764 = vpop.f32.mrf.mxu0
        %1765 = vmatprep.mubr.f32.mxu0 0.0
        %1766 = vmatmul.mubr.f32.gmra.mxu0 %v1304
        %v1767 = vpop.f32.mrf.mxu0
        %v1768 = vadd.f32 0.0, %v1767
        %v1769 = vpop.f32.mrf.mxu0
        %1770 = vmatprep.mubr.f32.mxu0 0.0
        %1771 = vmatmul.mubr.f32.gmra.mxu0 %v1307
        %v1772 = vpop.f32.mrf.mxu0
        %v1773 = vadd.f32 0.0, %v1772
        %v1774 = vpop.f32.mrf.mxu0
        %1775 = vmatprep.mubr.f32.mxu0 0.0
        %1776 = vmatmul.mubr.f32.gmra.mxu0 %v1310
        %v1777 = vpop.f32.mrf.mxu0
        %v1778 = vadd.f32 0.0, %v1777
        %v1779 = vpop.f32.mrf.mxu0
        %1780 = vmatprep.mubr.f32.mxu0 0.0
        %1781 = vmatmul.mubr.f32.gmra.mxu0 %v1313
        %v1782 = vpop.f32.mrf.mxu0
        %v1783 = vadd.f32 0.0, %v1782
        %v1784 = vpop.f32.mrf.mxu0
        %1785 = vmatprep.mubr.f32.mxu0 0.0
        %1786 = vmatmul.mubr.f32.gmra.mxu0 %v1316
        %v1787 = vpop.f32.mrf.mxu0
        %v1788 = vadd.f32 0.0, %v1787
        %v1789 = vpop.f32.mrf.mxu0
        %1790 = vmatprep.mubr.f32.mxu0 0.0
        %1791 = vmatmul.mubr.f32.gmra.mxu0 %v1319
        %v1792 = vpop.f32.mrf.mxu0
        %v1793 = vadd.f32 0.0, %v1792
        %v1794 = vpop.f32.mrf.mxu0
        %1795 = vmatprep.mubr.f32.mxu0 0.0
        %1796 = vmatmul.mubr.f32.gmra.mxu0 %v1322
        %v1797 = vpop.f32.mrf.mxu0
        %v1798 = vadd.f32 0.0, %v1797
        %v1799 = vpop.f32.mrf.mxu0
        %1800 = vmatprep.mubr.f32.mxu0 0.0
        %1801 = vmatmul.mubr.f32.gmra.mxu0 %v1325
        %v1802 = vpop.f32.mrf.mxu0
        %v1803 = vadd.f32 0.0, %v1802
        %v1804 = vpop.f32.mrf.mxu0
        %1805 = vmatprep.mubr.f32.mxu0 0.0
        %1806 = vmatmul.mubr.f32.gmra.mxu0 %v1328
        %v1807 = vpop.f32.mrf.mxu0
        %v1808 = vadd.f32 0.0, %v1807
        %v1809 = vpop.f32.mrf.mxu0
        %1810 = vmatprep.mubr.f32.mxu0 0.0
        %1811 = vmatmul.mubr.f32.gmra.mxu0 %v1331
        %v1812 = vpop.f32.mrf.mxu0
        %v1813 = vadd.f32 0.0, %v1812
        %v1814 = vpop.f32.mrf.mxu0
        %1815 = vmatprep.mubr.f32.mxu0 0.0
        %1816 = vmatmul.mubr.f32.gmra.mxu0 %v1334
        %v1817 = vpop.f32.mrf.mxu0
        %v1818 = vadd.f32 0.0, %v1817
        %v1819 = vpop.f32.mrf.mxu0
        %1820 = vmatprep.mubr.f32.mxu0 0.0
        %1821 = vmatmul.mubr.f32.gmra.mxu0 %v1337
        %v1822 = vpop.f32.mrf.mxu0
        %v1823 = vadd.f32 0.0, %v1822
        %v1824 = vpop.f32.mrf.mxu0
        %1825 = vmatprep.mubr.f32.mxu0 0.0
        %1826 = vmatmul.mubr.f32.gmra.mxu0 %v1340
        %v1827 = vpop.f32.mrf.mxu0
        %v1828 = vadd.f32 0.0, %v1827
        %v1829 = vpop.f32.mrf.mxu0
        %1830 = vmatprep.mubr.f32.mxu0 0.0
        %1831 = vmatmul.mubr.f32.gmra.mxu0 %v1343
        %v1832 = vpop.f32.mrf.mxu0
        %v1833 = vadd.f32 0.0, %v1832
        %v1834 = vpop.f32.mrf.mxu0
        %1835 = vmatprep.mubr.f32.mxu0 0.0
        %1836 = vmatmul.mubr.f32.gmra.mxu0 %v1346
        %v1837 = vpop.f32.mrf.mxu0
        %v1838 = vadd.f32 0.0, %v1837
        %v1839 = vpop.f32.mrf.mxu0
        %1840 = vmatprep.mubr.f32.mxu0 0.0
        %1841 = vmatmul.mubr.f32.gmra.mxu0 %v1349
        %v1842 = vpop.f32.mrf.mxu0
        %v1843 = vadd.f32 0.0, %v1842
        %v1844 = vpop.f32.mrf.mxu0
        %1845 = vmatprep.mubr.f32.mxu0 0.0
        %1846 = vmatmul.mubr.f32.gmra.mxu0 %v1352
        %v1847 = vpop.f32.mrf.mxu0
        %v1848 = vadd.f32 0.0, %v1847
        %v1849 = vpop.f32.mrf.mxu0
        %1850 = vmatprep.mubr.f32.mxu0 0.0
        %1851 = vmatmul.mubr.f32.gmra.mxu0 %v1355
        %v1852 = vpop.f32.mrf.mxu0
        %v1853 = vadd.f32 0.0, %v1852
        %v1854 = vpop.f32.mrf.mxu0
        %1855 = vmatprep.mubr.f32.mxu0 0.0
        %1856 = vmatmul.mubr.f32.gmra.mxu0 %v1358
        %v1857 = vpop.f32.mrf.mxu0
        %v1858 = vadd.f32 0.0, %v1857
        %v1859 = vpop.f32.mrf.mxu0
        %1860 = vmatprep.mubr.f32.mxu0 0.0
        %1861 = vmatmul.mubr.f32.gmra.mxu0 %v1361
        %v1862 = vpop.f32.mrf.mxu0
        %v1863 = vadd.f32 0.0, %v1862
        %v1864 = vpop.f32.mrf.mxu0
        %1865 = vmatprep.mubr.f32.mxu0 0.0
        %1866 = vmatmul.mubr.f32.gmra.mxu0 %v1364
        %v1867 = vpop.f32.mrf.mxu0
        %v1868 = vadd.f32 0.0, %v1867
        %v1869 = vpop.f32.mrf.mxu0
        %1870 = vmatprep.mubr.f32.mxu0 0.0
        %1871 = vmatmul.mubr.f32.gmra.mxu0 %v1367
        %v1872 = vpop.f32.mrf.mxu0
        %v1873 = vadd.f32 0.0, %v1872
        %v1874 = vpop.f32.mrf.mxu0
        %1875 = vmatprep.mubr.f32.mxu0 0.0
        %1876 = vmatmul.mubr.f32.gmra.mxu0 %v1370
        %v1877 = vpop.f32.mrf.mxu0
        %v1878 = vadd.f32 0.0, %v1877
        %v1879 = vpop.f32.mrf.mxu0
        %1880 = vmatprep.mubr.f32.mxu0 0.0
        %1881 = vmatmul.mubr.f32.gmra.mxu0 %v1373
        %v1882 = vpop.f32.mrf.mxu0
        %v1883 = vadd.f32 0.0, %v1882
        %v1884 = vpop.f32.mrf.mxu0
        %1885 = vmatprep.mubr.f32.mxu0 0.0
        %1886 = vmatmul.mubr.f32.gmra.mxu0 %v1376
        %v1887 = vpop.f32.mrf.mxu0
        %v1888 = vadd.f32 0.0, %v1887
        %v1889 = vpop.f32.mrf.mxu0
        %1890 = vmatprep.mubr.f32.mxu0 0.0
        %1891 = vmatmul.mubr.f32.gmra.mxu0 %v1379
        %v1892 = vpop.f32.mrf.mxu0
        %v1893 = vadd.f32 0.0, %v1892
        %v1894 = vpop.f32.mrf.mxu0
        %1895 = vmatprep.mubr.f32.mxu0 0.0
        %1896 = vmatmul.mubr.f32.gmra.mxu0 %v1382
        %v1897 = vpop.f32.mrf.mxu0
        %v1898 = vadd.f32 0.0, %v1897
        %v1899 = vpop.f32.mrf.mxu0
        %1900 = vmatprep.mubr.f32.mxu0 0.0
        %1901 = vmatmul.mubr.f32.gmra.mxu0 %v1385
        %v1902 = vpop.f32.mrf.mxu0
        %v1903 = vadd.f32 0.0, %v1902
        %v1904 = vpop.f32.mrf.mxu0
        %1905 = vmatprep.mubr.f32.mxu0 0.0
        %1906 = vmatmul.mubr.f32.gmra.mxu0 %v1388
        %v1907 = vpop.f32.mrf.mxu0
        %v1908 = vadd.f32 0.0, %v1907
        %v1909 = vpop.f32.mrf.mxu0
        %1910 = vmatprep.mubr.f32.mxu0 0.0
        %1911 = vmatmul.mubr.f32.gmra.mxu0 %v1391
        %v1912 = vpop.f32.mrf.mxu0
        %v1913 = vadd.f32 0.0, %v1912
        %v1914 = vpop.f32.mrf.mxu0
        %1915 = vmatprep.mubr.f32.mxu0 0.0
        %1916 = vmatmul.mubr.f32.gmra.mxu0 %v1394
        %v1917 = vpop.f32.mrf.mxu0
        %v1918 = vadd.f32 0.0, %v1917
        %v1919 = vpop.f32.mrf.mxu0
        %1920 = vmatprep.mubr.f32.mxu0 0.0
        %1921 = vmatmul.mubr.f32.gmra.mxu0 %v1397
        %v1922 = vpop.f32.mrf.mxu0
        %v1923 = vadd.f32 0.0, %v1922
        %v1924 = vpop.f32.mrf.mxu0
        %1925 = vmatprep.mubr.f32.mxu0 0.0
        %1926 = vmatmul.mubr.f32.gmra.mxu0 %v1400
        %v1927 = vpop.f32.mrf.mxu0
        %v1928 = vadd.f32 0.0, %v1927
        %v1929 = vpop.f32.mrf.mxu0
        %1930 = vmatprep.mubr.f32.mxu0 0.0
        %1931 = vmatmul.mubr.f32.gmra.mxu0 %v1403
        %v1932 = vpop.f32.mrf.mxu0
        %v1933 = vadd.f32 0.0, %v1932
        %v1934 = vpop.f32.mrf.mxu0
        %1935 = vmatprep.mubr.f32.mxu0 0.0
        %1936 = vmatmul.mubr.f32.gmra.mxu0 %v1406
        %v1937 = vpop.f32.mrf.mxu0
        %v1938 = vadd.f32 0.0, %v1937
        %v1939 = vpop.f32.mrf.mxu0
        %1940 = vmatprep.mubr.f32.mxu0 0.0
        %1941 = vmatmul.mubr.f32.gmra.mxu0 %v1409
        %v1942 = vpop.f32.mrf.mxu0
        %v1943 = vadd.f32 0.0, %v1942
        %v1944 = vpop.f32.mrf.mxu0
        %1945 = vmatprep.mubr.f32.mxu0 0.0
        %1946 = vmatmul.mubr.f32.gmra.mxu0 %v1412
        %v1947 = vpop.f32.mrf.mxu0
        %v1948 = vadd.f32 0.0, %v1947
        %v1949 = vpop.f32.mrf.mxu0
        %1950 = vmatprep.mubr.f32.mxu0 0.0
        %1951 = vmatmul.mubr.f32.gmra.mxu0 %v1415
        %v1952 = vpop.f32.mrf.mxu0
        %v1953 = vadd.f32 0.0, %v1952
        %v1954 = vpop.f32.mrf.mxu0
        %1955 = vmatprep.mubr.f32.mxu0 0.0
        %1956 = vmatmul.mubr.f32.gmra.mxu0 %v1418
        %v1957 = vpop.f32.mrf.mxu0
        %v1958 = vadd.f32 0.0, %v1957
        %v1959 = vpop.f32.mrf.mxu0
        %1960 = vmatprep.mubr.f32.mxu0 0.0
        %1961 = vmatmul.mubr.f32.gmra.mxu0 %v1421
        %v1962 = vpop.f32.mrf.mxu0
        %v1963 = vadd.f32 0.0, %v1962
        %v1964 = vpop.f32.mrf.mxu0
        %1965 = vmatprep.mubr.f32.mxu0 0.0
        %1966 = vmatmul.mubr.f32.gmra.mxu0 %v1424
        %v1967 = vpop.f32.mrf.mxu0
        %v1968 = vadd.f32 0.0, %v1967
        %v1969 = vpop.f32.mrf.mxu0
        %1970 = vmatprep.mubr.f32.mxu0 0.0
        %1971 = vmatmul.mubr.f32.gmra.mxu0 %v1427
        %v1972 = vpop.f32.mrf.mxu0
        %v1973 = vadd.f32 0.0, %v1972
        %v1974 = vpop.f32.mrf.mxu0
        %1975 = vmatprep.mubr.f32.mxu0 0.0
        %1976 = vmatmul.mubr.f32.gmra.mxu0 %v1430
        %v1977 = vpop.f32.mrf.mxu0
        %v1978 = vadd.f32 0.0, %v1977
        %v1979 = vpop.f32.mrf.mxu0
        %1980 = vmatprep.mubr.f32.mxu0 0.0
        %1981 = vmatmul.mubr.f32.gmra.mxu0 %v1433
        %v1982 = vpop.f32.mrf.mxu0
        %v1983 = vadd.f32 0.0, %v1982
        %v1984 = vpop.f32.mrf.mxu0
        %1985 = vmatprep.mubr.f32.mxu0 0.0
        %1986 = vmatmul.mubr.f32.gmra.mxu0 %v1436
        %v1987 = vpop.f32.mrf.mxu0
        %v1988 = vadd.f32 0.0, %v1987
        %v1989 = vpop.f32.mrf.mxu0
        %1990 = vmatprep.mubr.f32.mxu0 0.0
        %1991 = vmatmul.mubr.f32.gmra.mxu0 %v1439
        %v1992 = vpop.f32.mrf.mxu0
        %v1993 = vadd.f32 0.0, %v1992
        %v1994 = vpop.f32.mrf.mxu0
        %1995 = vmatprep.mubr.f32.mxu0 0.0
        %1996 = vmatmul.mubr.f32.gmra.mxu0 %v1442
        %v1997 = vpop.f32.mrf.mxu0
        %v1998 = vadd.f32 0.0, %v1997
        %v1999 = vpop.f32.mrf.mxu0
        %2000 = vmatprep.mubr.f32.mxu0 0.0
        %2001 = vmatmul.mubr.f32.gmra.mxu0 %v1445
        %v2002 = vpop.f32.mrf.mxu0
        %v2003 = vadd.f32 0.0, %v2002
        %v2004 = vpop.f32.mrf.mxu0
        %2005 = vmatprep.mubr.f32.mxu0 0.0
        %2006 = vmatmul.mubr.f32.gmra.mxu0 %v1448
        %v2007 = vpop.f32.mrf.mxu0
        %v2008 = vadd.f32 0.0, %v2007
        %v2009 = vpop.f32.mrf.mxu0
        %2010 = vmatprep.mubr.f32.mxu0 0.0
        %2011 = vmatmul.mubr.f32.gmra.mxu0 %v1451
        %v2012 = vpop.f32.mrf.mxu0
        %v2013 = vadd.f32 0.0, %v2012
        %v2014 = vpop.f32.mrf.mxu0
        %2015 = vmatprep.mubr.f32.mxu0 0.0
        %2016 = vmatmul.mubr.f32.gmra.mxu0 %v1454
        %v2017 = vpop.f32.mrf.mxu0
        %v2018 = vadd.f32 0.0, %v2017
        %v2019 = vpop.f32.mrf.mxu0
        %2020 = vmatprep.mubr.f32.mxu0 0.0
        %2021 = vmatmul.mubr.f32.gmra.mxu0 %v1457
        %v2022 = vpop.f32.mrf.mxu0
        %v2023 = vadd.f32 0.0, %v2022
        %v2024 = vpop.f32.mrf.mxu0
        %2025 = vmatprep.mubr.f32.mxu0 0.0
        %2026 = vmatmul.mubr.f32.gmra.mxu0 %v1460
        %v2027 = vpop.f32.mrf.mxu0
        %v2028 = vadd.f32 0.0, %v2027
        %v2029 = vpop.f32.mrf.mxu0
        %2030 = vmatprep.mubr.f32.mxu0 0.0
        %2031 = vmatmul.mubr.f32.gmra.mxu0 %v1463
        %v2032 = vpop.f32.mrf.mxu0
        %v2033 = vadd.f32 0.0, %v2032
        %v2034 = vpop.f32.mrf.mxu0
        %2035 = vmatprep.mubr.f32.mxu0 0.0
        %2036 = vmatmul.mubr.f32.gmra.mxu0 %v1466
        %v2037 = vpop.f32.mrf.mxu0
        %v2038 = vadd.f32 0.0, %v2037
        %v2039 = vpop.f32.mrf.mxu0
        %2040 = vmatprep.mubr.f32.mxu0 0.0
        %2041 = vmatmul.mubr.f32.gmra.mxu0 %v1469
        %v2042 = vpop.f32.mrf.mxu0
        %v2043 = vadd.f32 0.0, %v2042
        %v2044 = vpop.f32.mrf.mxu0
        %2045 = vmatprep.mubr.f32.mxu0 0.0
        %2046 = vmatmul.mubr.f32.gmra.mxu0 %v1472
        %v2047 = vpop.f32.mrf.mxu0
        %v2048 = vadd.f32 0.0, %v2047
        %v2049 = vpop.f32.mrf.mxu0
        %2050 = vmatprep.mubr.f32.mxu0 0.0
        %2051 = vmatmul.mubr.f32.gmra.mxu0 %v1475
        %v2052 = vpop.f32.mrf.mxu0
        %v2053 = vadd.f32 0.0, %v2052
        %v2054 = vpop.f32.mrf.mxu0
        %2055 = vmatprep.mubr.f32.mxu0 0.0
        %2056 = vmatmul.mubr.f32.gmra.mxu0 %v1478
        %v2057 = vpop.f32.mrf.mxu0
        %v2058 = vadd.f32 0.0, %v2057
        %v2059 = vpop.f32.mrf.mxu0
        %2060 = vmatprep.mubr.f32.mxu0 0.0
        %2061 = vmatmul.mubr.f32.gmra.mxu0 %v1481
        %v2062 = vpop.f32.mrf.mxu0
        %v2063 = vadd.f32 0.0, %v2062
        %v2064 = vpop.f32.mrf.mxu0
        %2065 = vmatprep.mubr.f32.mxu0 0.0
        %2066 = vmatmul.mubr.f32.gmra.mxu0 %v1484
        %v2067 = vpop.f32.mrf.mxu0
        %v2068 = vadd.f32 0.0, %v2067
        %v2069 = vpop.f32.mrf.mxu0
        %2070 = vmatprep.mubr.f32.mxu0 0.0
        %2071 = vmatmul.mubr.f32.gmra.mxu0 %v1487
        %v2072 = vpop.f32.mrf.mxu0
        %v2073 = vadd.f32 0.0, %v2072
        %v2074 = vpop.f32.mrf.mxu0
        %2075 = vmatprep.mubr.f32.mxu0 0.0
        %2076 = vmatmul.mubr.f32.gmra.mxu0 %v1490
        %v2077 = vpop.f32.mrf.mxu0
        %v2078 = vadd.f32 0.0, %v2077
        %v2079 = vpop.f32.mrf.mxu0
        %2080 = vmatprep.mubr.f32.mxu0 0.0
        %2081 = vmatmul.mubr.f32.gmra.mxu0 %v1493
        %v2082 = vpop.f32.mrf.mxu0
        %v2083 = vadd.f32 0.0, %v2082
        %v2084 = vpop.f32.mrf.mxu0
        %2085 = vmatprep.mubr.f32.mxu0 0.0
        %2086 = vmatmul.mubr.f32.gmra.mxu0 %v1496
        %v2087 = vpop.f32.mrf.mxu0
        %v2088 = vadd.f32 0.0, %v2087
        %v2089 = vpop.f32.mrf.mxu0
        %2090 = vmatprep.mubr.f32.mxu0 0.0
        %2091 = vmatmul.mubr.f32.gmra.mxu0 %v1499
        %v2092 = vpop.f32.mrf.mxu0
        %v2093 = vadd.f32 0.0, %v2092
        %v2094 = vpop.f32.mrf.mxu0
        %2095 = vmatprep.mubr.f32.mxu0 0.0
        %2096 = vmatmul.mubr.f32.gmra.mxu0 %v1502
        %v2097 = vpop.f32.mrf.mxu0
        %v2098 = vadd.f32 0.0, %v2097
        %v2099 = vpop.f32.mrf.mxu0
        %2100 = vmatprep.mubr.f32.mxu0 0.0
        %2101 = vmatmul.mubr.f32.gmra.mxu0 %v1505
        %v2102 = vpop.f32.mrf.mxu0
        %v2103 = vadd.f32 0.0, %v2102
        %v2104 = vpop.f32.mrf.mxu0
        %2105 = vmatprep.mubr.f32.mxu0 0.0
        %2106 = vmatmul.mubr.f32.gmra.mxu0 %v1508
        %v2107 = vpop.f32.mrf.mxu0
        %v2108 = vadd.f32 0.0, %v2107
        %v2109 = vpop.f32.mrf.mxu0
        %2110 = vmatprep.mubr.f32.mxu0 0.0
        %2111 = vmatmul.mubr.f32.gmra.mxu0 %v1511
        %v2112 = vpop.f32.mrf.mxu0
        %v2113 = vadd.f32 0.0, %v2112
        %v2114 = vpop.f32.mrf.mxu0
        %2115 = vmatprep.mubr.f32.mxu0 0.0
        %2116 = vmatmul.mubr.f32.gmra.mxu0 %v1514
        %v2117 = vpop.f32.mrf.mxu0
        %v2118 = vadd.f32 0.0, %v2117
        %v2119 = vpop.f32.mrf.mxu0
        %2120 = vmatprep.mubr.f32.mxu0 0.0
        %2121 = vmatmul.mubr.f32.gmra.mxu0 %v1517
        %v2122 = vpop.f32.mrf.mxu0
        %v2123 = vadd.f32 0.0, %v2122
        %v2124 = vpop.f32.mrf.mxu0
        %2125 = vmatprep.mubr.f32.mxu0 0.0
        %2126 = vmatmul.mubr.f32.gmra.mxu0 %v1520
        %v2127 = vpop.f32.mrf.mxu0
        %v2128 = vadd.f32 0.0, %v2127
        %v2129 = vpop.f32.mrf.mxu0
        %2130 = vmatprep.mubr.f32.mxu0 0.0
        %2131 = vmatmul.mubr.f32.gmra.mxu0 %v1523
        %v2132 = vpop.f32.mrf.mxu0
        %v2133 = vadd.f32 0.0, %v2132
        %v2134 = vpop.f32.mrf.mxu0
        %2135 = vmatprep.mubr.f32.mxu0 0.0
        %2136 = vmatmul.mubr.f32.gmra.mxu0 %v1526
        %v2137 = vpop.f32.mrf.mxu0
        %v2138 = vadd.f32 0.0, %v2137
        %v2139 = vpop.f32.mrf.mxu0
        %2140 = vmatprep.mubr.f32.mxu0 0.0
        %2141 = vmatmul.mubr.f32.gmra.mxu0 %v1529
        %v2142 = vpop.f32.mrf.mxu0
        %v2143 = vadd.f32 0.0, %v2142
        %v2144 = vpop.f32.mrf.mxu0
        %2145 = vmatprep.mubr.f32.mxu0 0.0
        %2146 = vmatmul.mubr.f32.gmra.mxu0 %v1532
        %v2147 = vpop.f32.mrf.mxu0
        %v2148 = vadd.f32 0.0, %v2147
        %v2149 = vpop.f32.mrf.mxu0
        %2150 = vmatprep.mubr.f32.mxu0 0.0
        %2151 = vmatmul.mubr.f32.gmra.mxu0 %v1535
        %v2152 = vpop.f32.mrf.mxu0
        %v2153 = vadd.f32 0.0, %v2152
        %v2154 = vpop.f32.mrf.mxu0
        %2155 = vmatprep.mubr.f32.mxu0 0.0
        %2156 = vmatmul.mubr.f32.gmra.mxu0 %v1538
        %v2157 = vpop.f32.mrf.mxu0
        %v2158 = vadd.f32 0.0, %v2157
        %v2159 = vpop.f32.mrf.mxu0
        %2160 = vmatprep.mubr.f32.mxu0 0.0
        %2161 = vmatmul.mubr.f32.gmra.mxu0 %v1541
        %v2162 = vpop.f32.mrf.mxu0
        %v2163 = vadd.f32 0.0, %v2162
        %v2164 = vpop.f32.mrf.mxu0
        %2165 = vmatprep.mubr.f32.mxu0 0.0
        %2166 = vmatmul.mubr.f32.gmra.mxu0 %v1544
        %v2167 = vpop.f32.mrf.mxu0
        %v2168 = vadd.f32 0.0, %v2167
        %v2169 = vpop.f32.mrf.mxu0
        %2170 = vmatprep.mubr.f32.mxu0 0.0
        %2171 = vmatmul.mubr.f32.gmra.mxu0 %v1547
        %v2172 = vpop.f32.mrf.mxu0
        %v2173 = vadd.f32 0.0, %v2172
        %v2174 = vpop.f32.mrf.mxu0
        %2175 = vmatprep.mubr.f32.mxu0 0.0
        %2176 = vmatmul.mubr.f32.gmra.mxu0 %v1550
        %v2177 = vpop.f32.mrf.mxu0
        %v2178 = vadd.f32 0.0, %v2177
        %v2179 = vpop.f32.mrf.mxu0
        %2180 = vmatprep.mubr.f32.mxu0 0.0
        %2181 = vmatmul.mubr.f32.gmra.mxu0 %v1553
        %v2182 = vpop.f32.mrf.mxu0
        %v2183 = vadd.f32 0.0, %v2182
        %v2184 = vpop.f32.mrf.mxu0
        %2185 = vmatprep.mubr.f32.mxu0 0.0
        %2186 = vmatmul.mubr.f32.gmra.mxu0 %v1556
        %v2187 = vpop.f32.mrf.mxu0
        %v2188 = vadd.f32 0.0, %v2187
        %v2189 = vpop.f32.mrf.mxu0
        %2190 = vmatprep.mubr.f32.mxu0 0.0
        %2191 = vmatmul.mubr.f32.gmra.mxu0 %v1559
        %v2192 = vpop.f32.mrf.mxu0
        %v2193 = vadd.f32 0.0, %v2192
        %v2194 = vpop.f32.mrf.mxu0
        %2195 = vmatprep.mubr.f32.mxu0 0.0
        %2196 = vmatmul.mubr.f32.gmra.mxu0 %v1562
        %v2197 = vpop.f32.mrf.mxu0
        %v2198 = vadd.f32 0.0, %v2197
        %v2199 = vpop.f32.mrf.mxu0
        %2200 = vmatprep.mubr.f32.mxu0 0.0
        %2201 = vmatmul.mubr.f32.gmra.mxu0 %v1565
        %v2202 = vpop.f32.mrf.mxu0
        %v2203 = vadd.f32 0.0, %v2202
        %v2204 = vpop.f32.mrf.mxu0
        %2205 = vmatprep.mubr.f32.mxu0 0.0
        %2206 = vmatmul.mubr.f32.gmra.mxu0 %v1568
        %v2207 = vpop.f32.mrf.mxu0
        %v2208 = vadd.f32 0.0, %v2207
        %v2209 = vpop.f32.mrf.mxu0
        %2210 = vmatprep.mubr.f32.mxu0 0.0
        %2211 = vmatmul.mubr.f32.gmra.mxu0 %v1571
        %v2212 = vpop.f32.mrf.mxu0
        %v2213 = vadd.f32 0.0, %v2212
        %v2214 = vpop.f32.mrf.mxu0
        %2215 = vmatprep.mubr.f32.mxu0 0.0
        %2216 = vmatmul.mubr.f32.gmra.mxu0 %v1574
        %v2217 = vpop.f32.mrf.mxu0
        %v2218 = vadd.f32 0.0, %v2217
        %v2219 = vpop.f32.mrf.mxu0
        %2220 = vmatprep.mubr.f32.mxu0 0.0
        %2221 = vmatmul.mubr.f32.gmra.mxu0 %v1577
        %v2222 = vpop.f32.mrf.mxu0
        %v2223 = vadd.f32 0.0, %v2222
        %v2224 = vpop.f32.mrf.mxu0
        %2225 = vmatprep.mubr.f32.mxu0 0.0
        %2226 = vmatmul.mubr.f32.gmra.mxu0 %v1580
        %v2227 = vpop.f32.mrf.mxu0
        %v2228 = vadd.f32 0.0, %v2227
        %v2229 = vpop.f32.mrf.mxu0
        %2230 = vmatprep.mubr.f32.mxu0 0.0
        %2231 = vmatmul.mubr.f32.gmra.mxu0 %v1583
        %v2232 = vpop.f32.mrf.mxu0
        %v2233 = vadd.f32 0.0, %v2232
        %v2234 = vpop.f32.mrf.mxu0
        %2235 = vmatprep.mubr.f32.mxu0 0.0
        %2236 = vmatmul.mubr.f32.gmra.mxu0 %v1586
        %v2237 = vpop.f32.mrf.mxu0
        %v2238 = vadd.f32 0.0, %v2237
        %v2239 = vpop.f32.mrf.mxu0
        %2240 = vmatprep.mubr.f32.mxu0 0.0
        %2241 = vmatmul.mubr.f32.gmra.mxu0 %v1589
        %v2242 = vpop.f32.mrf.mxu0
        %v2243 = vadd.f32 0.0, %v2242
        %v2244 = vpop.f32.mrf.mxu0
        %2245 = vmatprep.mubr.f32.mxu0 0.0
        %2246 = vmatmul.mubr.f32.gmra.mxu0 %v1592
        %v2247 = vpop.f32.mrf.mxu0
        %v2248 = vadd.f32 0.0, %v2247
        %v2249 = vpop.f32.mrf.mxu0
        %2250 = vmatprep.mubr.f32.mxu0 0.0
        %2251 = vmatmul.mubr.f32.gmra.mxu0 %v1595
        %v2252 = vpop.f32.mrf.mxu0
        %v2253 = vadd.f32 0.0, %v2252
        %v2254 = vpop.f32.mrf.mxu0
        %2255 = vmatprep.mubr.f32.mxu0 0.0
        %2256 = vmatmul.mubr.f32.gmra.mxu0 %v1598
        %v2257 = vpop.f32.mrf.mxu0
        %v2258 = vadd.f32 0.0, %v2257
        %v2259 = vpop.f32.mrf.mxu0
        %2260 = vmatprep.mubr.f32.mxu0 0.0
        %2261 = vmatmul.mubr.f32.gmra.mxu0 %v1601
        %v2262 = vpop.f32.mrf.mxu0
        %v2263 = vadd.f32 0.0, %v2262
        %v2264 = vpop.f32.mrf.mxu0
        %2265 = vmatprep.mubr.f32.mxu0 0.0
        %2266 = vmatmul.mubr.f32.gmra.mxu0 %v1604
        %v2267 = vpop.f32.mrf.mxu0
        %v2268 = vadd.f32 0.0, %v2267
        %v2269 = vpop.f32.mrf.mxu0
        %2270 = vmatprep.mubr.f32.mxu0 0.0
        %2271 = vmatmul.mubr.f32.gmra.mxu0 %v1607
        %v2272 = vpop.f32.mrf.mxu0
        %v2273 = vadd.f32 0.0, %v2272
        %v2274 = vpop.f32.mrf.mxu0
        %2275 = vmatprep.mubr.f32.mxu0 0.0
        %2276 = vmatmul.mubr.f32.gmra.mxu0 %v1610
        %v2277 = vpop.f32.mrf.mxu0
        %v2278 = vadd.f32 0.0, %v2277
        %v2279 = vpop.f32.mrf.mxu0
        %2280 = vmatprep.mubr.f32.mxu0 0.0
        %2281 = vmatmul.mubr.f32.gmra.mxu0 %v1613
        %v2282 = vpop.f32.mrf.mxu0
        %v2283 = vadd.f32 0.0, %v2282
        %v2284 = vpop.f32.mrf.mxu0
        %2285 = vmatprep.mubr.f32.mxu0 0.0
        %2286 = vmatmul.mubr.f32.gmra.mxu0 %v1616
        %v2287 = vpop.f32.mrf.mxu0
        %v2288 = vadd.f32 0.0, %v2287
        %v2289 = vpop.f32.mrf.mxu0
        %2290 = vmatprep.mubr.f32.mxu0 0.0
        %2291 = vmatmul.mubr.f32.gmra.mxu0 %v1619
        %v2292 = vpop.f32.mrf.mxu0
        %v2293 = vadd.f32 0.0, %v2292
        %v2294 = vpop.f32.mrf.mxu0
        %2295 = vmatprep.mubr.f32.mxu0 0.0
        %2296 = vmatmul.mubr.f32.gmra.mxu0 %v1622
        %v2297 = vpop.f32.mrf.mxu0
        %v2298 = vadd.f32 0.0, %v2297
        %v2299 = vpop.f32.mrf.mxu0
        %2300 = vmatprep.mubr.f32.mxu0 0.0
        %2301 = vmatmul.mubr.f32.gmra.mxu0 %v1625
        %v2302 = vpop.f32.mrf.mxu0
        %v2303 = vadd.f32 0.0, %v2302
        %v2304 = vpop.f32.mrf.mxu0
        %2305 = vmatprep.mubr.f32.mxu0 0.0
        %2306 = vmatmul.mubr.f32.gmra.mxu0 %v1628
        %v2307 = vpop.f32.mrf.mxu0
        %v2308 = vadd.f32 0.0, %v2307
        %v2309 = vpop.f32.mrf.mxu0
        %2310 = vmatprep.mubr.f32.mxu0 0.0
        %2311 = vmatmul.mubr.f32.gmra.mxu0 %v1631
        %v2312 = vpop.f32.mrf.mxu0
        %v2313 = vadd.f32 0.0, %v2312
        %v2314 = vpop.f32.mrf.mxu0
        %2315 = vmatprep.mubr.f32.mxu0 0.0
        %2316 = vmatmul.mubr.f32.gmra.mxu0 %v1634
        %v2317 = vpop.f32.mrf.mxu0
        %v2318 = vadd.f32 0.0, %v2317
        %v2319 = vpop.f32.mrf.mxu0
        %2320 = vmatprep.mubr.f32.mxu0 0.0
        %2321 = vmatmul.mubr.f32.gmra.mxu0 %v1637
        %v2322 = vpop.f32.mrf.mxu0
        %v2323 = vadd.f32 0.0, %v2322
        %v2324 = vpop.f32.mrf.mxu0
        %2325 = vmatprep.mubr.f32.mxu0 0.0
        %2326 = vmatmul.mubr.f32.gmra.mxu0 %v1640
        %v2327 = vpop.f32.mrf.mxu0
        %v2328 = vadd.f32 0.0, %v2327
        %v2329 = vpop.f32.mrf.mxu0
        %2330 = vmatprep.mubr.f32.mxu0 0.0
        %2331 = vmatmul.mubr.f32.gmra.mxu0 %v1643
        %v2332 = vpop.f32.mrf.mxu0
        %v2333 = vadd.f32 0.0, %v2332
        %v2334 = vpop.f32.mrf.mxu0
        %2335 = vmatprep.mubr.f32.mxu0 0.0
        %2336 = vmatmul.mubr.f32.gmra.mxu0 %v1646
        %v2337 = vpop.f32.mrf.mxu0
        %v2338 = vadd.f32 0.0, %v2337
        %v2339 = vpop.f32.mrf.mxu0
        %2340 = vmatprep.mubr.f32.mxu0 0.0
        %2341 = vmatmul.mubr.f32.gmra.mxu0 %v1649
        %v2342 = vpop.f32.mrf.mxu0
        %v2343 = vadd.f32 0.0, %v2342
        %v2344 = vpop.f32.mrf.mxu0
        %2345 = vmatprep.mubr.f32.mxu0 0.0
        %2346 = vmatmul.mubr.f32.gmra.mxu0 %v1652
        %v2347 = vpop.f32.mrf.mxu0
        %v2348 = vadd.f32 0.0, %v2347
        %v2349 = vpop.f32.mrf.mxu0
        %2350 = vmatprep.mubr.f32.mxu0 0.0
        %2351 = vmatmul.mubr.f32.gmra.mxu0 %v1655
        %v2352 = vpop.f32.mrf.mxu0
        %v2353 = vadd.f32 0.0, %v2352
        %v2354 = vpop.f32.mrf.mxu0
        %2355 = vmatprep.mubr.f32.mxu0 0.0
        %2356 = vmatmul.mubr.f32.gmra.mxu0 %v1658
        %v2357 = vpop.f32.mrf.mxu0
        %v2358 = vadd.f32 0.0, %v2357
        %v2359 = vpop.f32.mrf.mxu0
        %2360 = vmatprep.mubr.f32.mxu0 0.0
        %2361 = vmatmul.mubr.f32.gmra.mxu0 %v1661
        %v2362 = vpop.f32.mrf.mxu0
        %v2363 = vadd.f32 0.0, %v2362
        %v2364 = vpop.f32.mrf.mxu0
        %2365 = vmatprep.mubr.f32.mxu0 0.0
        %2366 = vmatmul.mubr.f32.gmra.mxu0 %v1664
        %v2367 = vpop.f32.mrf.mxu0
        %v2368 = vadd.f32 0.0, %v2367
        %v2369 = vpop.f32.mrf.mxu0
        %2370 = vmatprep.mubr.f32.mxu0 0.0
        %2371 = vmatmul.mubr.f32.gmra.mxu0 %v1667
        %v2372 = vpop.f32.mrf.mxu0
        %v2373 = vadd.f32 0.0, %v2372
        %v2374 = vpop.f32.mrf.mxu0
        %2375 = vmatprep.mubr.f32.mxu0 0.0
        %2376 = vmatmul.mubr.f32.gmra.mxu0 %v1670
        %v2377 = vpop.f32.mrf.mxu0
        %v2378 = vadd.f32 0.0, %v2377
        %v2379 = vpop.f32.mrf.mxu0
        %2380 = vdwg.mxu0
        %v2381 = vld [vmem:[%s5] sm:$0x1]
        %v2383 = vlaneseq
        %v2384 = vshrl.u32 %v2383, 7
        %v2385 = vsub.s32 0, %v2384
        %v2386 = vrot.slane %v2381, %v2385
        %v2388 = vmul.f32 %v1743, %v2386
        %v2389 = vmul.f32 %v1748, %v2386
        %v2390 = vmul.f32 %v1753, %v2386
        %v2391 = vmul.f32 %v1758, %v2386
        %v2392 = vmul.f32 %v1763, %v2386
        %v2393 = vmul.f32 %v1768, %v2386
        %v2394 = vmul.f32 %v1773, %v2386
        %v2395 = vmul.f32 %v1778, %v2386
        %v2396 = vmul.f32 %v1783, %v2386
        %v2397 = vmul.f32 %v1788, %v2386
        %v2398 = vmul.f32 %v1793, %v2386
        %v2399 = vmul.f32 %v1798, %v2386
        %v2400 = vmul.f32 %v1803, %v2386
        %v2401 = vmul.f32 %v1808, %v2386
        %v2402 = vmul.f32 %v1813, %v2386
        %v2403 = vmul.f32 %v1818, %v2386
        %v2404 = vmul.f32 %v1823, %v2386
        %v2405 = vmul.f32 %v1828, %v2386
        %v2406 = vmul.f32 %v1833, %v2386
        %v2407 = vmul.f32 %v1838, %v2386
        %v2408 = vmul.f32 %v1843, %v2386
        %v2409 = vmul.f32 %v1848, %v2386
        %v2410 = vmul.f32 %v1853, %v2386
        %v2411 = vmul.f32 %v1858, %v2386
        %v2412 = vmul.f32 %v1863, %v2386
        %v2413 = vmul.f32 %v1868, %v2386
        %v2414 = vmul.f32 %v1873, %v2386
        %v2415 = vmul.f32 %v1878, %v2386
        %v2416 = vmul.f32 %v1883, %v2386
        %v2417 = vmul.f32 %v1888, %v2386
        %v2418 = vmul.f32 %v1893, %v2386
        %v2419 = vmul.f32 %v1898, %v2386
        %v2420 = vmul.f32 %v1903, %v2386
        %v2421 = vmul.f32 %v1908, %v2386
        %v2422 = vmul.f32 %v1913, %v2386
        %v2423 = vmul.f32 %v1918, %v2386
        %v2424 = vmul.f32 %v1923, %v2386
        %v2425 = vmul.f32 %v1928, %v2386
        %v2426 = vmul.f32 %v1933, %v2386
        %v2427 = vmul.f32 %v1938, %v2386
        %v2428 = vmul.f32 %v1943, %v2386
        %v2429 = vmul.f32 %v1948, %v2386
        %v2430 = vmul.f32 %v1953, %v2386
        %v2431 = vmul.f32 %v1958, %v2386
        %v2432 = vmul.f32 %v1963, %v2386
        %v2433 = vmul.f32 %v1968, %v2386
        %v2434 = vmul.f32 %v1973, %v2386
        %v2435 = vmul.f32 %v1978, %v2386
        %v2436 = vmul.f32 %v1983, %v2386
        %v2437 = vmul.f32 %v1988, %v2386
        %v2438 = vmul.f32 %v1993, %v2386
        %v2439 = vmul.f32 %v1998, %v2386
        %v2440 = vmul.f32 %v2003, %v2386
        %v2441 = vmul.f32 %v2008, %v2386
        %v2442 = vmul.f32 %v2013, %v2386
        %v2443 = vmul.f32 %v2018, %v2386
        %v2444 = vmul.f32 %v2023, %v2386
        %v2445 = vmul.f32 %v2028, %v2386
        %v2446 = vmul.f32 %v2033, %v2386
        %v2447 = vmul.f32 %v2038, %v2386
        %v2448 = vmul.f32 %v2043, %v2386
        %v2449 = vmul.f32 %v2048, %v2386
        %v2450 = vmul.f32 %v2053, %v2386
        %v2451 = vmul.f32 %v2058, %v2386
        %v2452 = vmul.f32 %v2063, %v2386
        %v2453 = vmul.f32 %v2068, %v2386
        %v2454 = vmul.f32 %v2073, %v2386
        %v2455 = vmul.f32 %v2078, %v2386
        %v2456 = vmul.f32 %v2083, %v2386
        %v2457 = vmul.f32 %v2088, %v2386
        %v2458 = vmul.f32 %v2093, %v2386
        %v2459 = vmul.f32 %v2098, %v2386
        %v2460 = vmul.f32 %v2103, %v2386
        %v2461 = vmul.f32 %v2108, %v2386
        %v2462 = vmul.f32 %v2113, %v2386
        %v2463 = vmul.f32 %v2118, %v2386
        %v2464 = vmul.f32 %v2123, %v2386
        %v2465 = vmul.f32 %v2128, %v2386
        %v2466 = vmul.f32 %v2133, %v2386
        %v2467 = vmul.f32 %v2138, %v2386
        %v2468 = vmul.f32 %v2143, %v2386
        %v2469 = vmul.f32 %v2148, %v2386
        %v2470 = vmul.f32 %v2153, %v2386
        %v2471 = vmul.f32 %v2158, %v2386
        %v2472 = vmul.f32 %v2163, %v2386
        %v2473 = vmul.f32 %v2168, %v2386
        %v2474 = vmul.f32 %v2173, %v2386
        %v2475 = vmul.f32 %v2178, %v2386
        %v2476 = vmul.f32 %v2183, %v2386
        %v2477 = vmul.f32 %v2188, %v2386
        %v2478 = vmul.f32 %v2193, %v2386
        %v2479 = vmul.f32 %v2198, %v2386
        %v2480 = vmul.f32 %v2203, %v2386
        %v2481 = vmul.f32 %v2208, %v2386
        %v2482 = vmul.f32 %v2213, %v2386
        %v2483 = vmul.f32 %v2218, %v2386
        %v2484 = vmul.f32 %v2223, %v2386
        %v2485 = vmul.f32 %v2228, %v2386
        %v2486 = vmul.f32 %v2233, %v2386
        %v2487 = vmul.f32 %v2238, %v2386
        %v2488 = vmul.f32 %v2243, %v2386
        %v2489 = vmul.f32 %v2248, %v2386
        %v2490 = vmul.f32 %v2253, %v2386
        %v2491 = vmul.f32 %v2258, %v2386
        %v2492 = vmul.f32 %v2263, %v2386
        %v2493 = vmul.f32 %v2268, %v2386
        %v2494 = vmul.f32 %v2273, %v2386
        %v2495 = vmul.f32 %v2278, %v2386
        %v2496 = vmul.f32 %v2283, %v2386
        %v2497 = vmul.f32 %v2288, %v2386
        %v2498 = vmul.f32 %v2293, %v2386
        %v2499 = vmul.f32 %v2298, %v2386
        %v2500 = vmul.f32 %v2303, %v2386
        %v2501 = vmul.f32 %v2308, %v2386
        %v2502 = vmul.f32 %v2313, %v2386
        %v2503 = vmul.f32 %v2318, %v2386
        %v2504 = vmul.f32 %v2323, %v2386
        %v2505 = vmul.f32 %v2328, %v2386
        %v2506 = vmul.f32 %v2333, %v2386
        %v2507 = vmul.f32 %v2338, %v2386
        %v2508 = vmul.f32 %v2343, %v2386
        %v2509 = vmul.f32 %v2348, %v2386
        %v2510 = vmul.f32 %v2353, %v2386
        %v2511 = vmul.f32 %v2358, %v2386
        %v2512 = vmul.f32 %v2363, %v2386
        %v2513 = vmul.f32 %v2368, %v2386
        %v2514 = vmul.f32 %v2373, %v2386
        %v2515 = vmul.f32 %v2378, %v2386
        %v2516 = vld [vmem:[%s7] sm:$0x1]
        %v2518 = vlaneseq
        %v2519 = vshrl.u32 %v2518, 7
        %v2520 = vsub.s32 0, %v2519
        %v2521 = vrot.slane %v2516, %v2520
        %v2523 = vadd.f32 %v2388, %v2521
        %v2524 = vadd.f32 %v2389, %v2521
        %v2525 = vadd.f32 %v2390, %v2521
        %v2526 = vadd.f32 %v2391, %v2521
        %v2527 = vadd.f32 %v2392, %v2521
        %v2528 = vadd.f32 %v2393, %v2521
        %v2529 = vadd.f32 %v2394, %v2521
        %v2530 = vadd.f32 %v2395, %v2521
        %v2531 = vadd.f32 %v2396, %v2521
        %v2532 = vadd.f32 %v2397, %v2521
        %v2533 = vadd.f32 %v2398, %v2521
        %v2534 = vadd.f32 %v2399, %v2521
        %v2535 = vadd.f32 %v2400, %v2521
        %v2536 = vadd.f32 %v2401, %v2521
        %v2537 = vadd.f32 %v2402, %v2521
        %v2538 = vadd.f32 %v2403, %v2521
        %v2539 = vadd.f32 %v2404, %v2521
        %v2540 = vadd.f32 %v2405, %v2521
        %v2541 = vadd.f32 %v2406, %v2521
        %v2542 = vadd.f32 %v2407, %v2521
        %v2543 = vadd.f32 %v2408, %v2521
        %v2544 = vadd.f32 %v2409, %v2521
        %v2545 = vadd.f32 %v2410, %v2521
        %v2546 = vadd.f32 %v2411, %v2521
        %v2547 = vadd.f32 %v2412, %v2521
        %v2548 = vadd.f32 %v2413, %v2521
        %v2549 = vadd.f32 %v2414, %v2521
        %v2550 = vadd.f32 %v2415, %v2521
        %v2551 = vadd.f32 %v2416, %v2521
        %v2552 = vadd.f32 %v2417, %v2521
        %v2553 = vadd.f32 %v2418, %v2521
        %v2554 = vadd.f32 %v2419, %v2521
        %v2555 = vadd.f32 %v2420, %v2521
        %v2556 = vadd.f32 %v2421, %v2521
        %v2557 = vadd.f32 %v2422, %v2521
        %v2558 = vadd.f32 %v2423, %v2521
        %v2559 = vadd.f32 %v2424, %v2521
        %v2560 = vadd.f32 %v2425, %v2521
        %v2561 = vadd.f32 %v2426, %v2521
        %v2562 = vadd.f32 %v2427, %v2521
        %v2563 = vadd.f32 %v2428, %v2521
        %v2564 = vadd.f32 %v2429, %v2521
        %v2565 = vadd.f32 %v2430, %v2521
        %v2566 = vadd.f32 %v2431, %v2521
        %v2567 = vadd.f32 %v2432, %v2521
        %v2568 = vadd.f32 %v2433, %v2521
        %v2569 = vadd.f32 %v2434, %v2521
        %v2570 = vadd.f32 %v2435, %v2521
        %v2571 = vadd.f32 %v2436, %v2521
        %v2572 = vadd.f32 %v2437, %v2521
        %v2573 = vadd.f32 %v2438, %v2521
        %v2574 = vadd.f32 %v2439, %v2521
        %v2575 = vadd.f32 %v2440, %v2521
        %v2576 = vadd.f32 %v2441, %v2521
        %v2577 = vadd.f32 %v2442, %v2521
        %v2578 = vadd.f32 %v2443, %v2521
        %v2579 = vadd.f32 %v2444, %v2521
        %v2580 = vadd.f32 %v2445, %v2521
        %v2581 = vadd.f32 %v2446, %v2521
        %v2582 = vadd.f32 %v2447, %v2521
        %v2583 = vadd.f32 %v2448, %v2521
        %v2584 = vadd.f32 %v2449, %v2521
        %v2585 = vadd.f32 %v2450, %v2521
        %v2586 = vadd.f32 %v2451, %v2521
        %v2587 = vadd.f32 %v2452, %v2521
        %v2588 = vadd.f32 %v2453, %v2521
        %v2589 = vadd.f32 %v2454, %v2521
        %v2590 = vadd.f32 %v2455, %v2521
        %v2591 = vadd.f32 %v2456, %v2521
        %v2592 = vadd.f32 %v2457, %v2521
        %v2593 = vadd.f32 %v2458, %v2521
        %v2594 = vadd.f32 %v2459, %v2521
        %v2595 = vadd.f32 %v2460, %v2521
        %v2596 = vadd.f32 %v2461, %v2521
        %v2597 = vadd.f32 %v2462, %v2521
        %v2598 = vadd.f32 %v2463, %v2521
        %v2599 = vadd.f32 %v2464, %v2521
        %v2600 = vadd.f32 %v2465, %v2521
        %v2601 = vadd.f32 %v2466, %v2521
        %v2602 = vadd.f32 %v2467, %v2521
        %v2603 = vadd.f32 %v2468, %v2521
        %v2604 = vadd.f32 %v2469, %v2521
        %v2605 = vadd.f32 %v2470, %v2521
        %v2606 = vadd.f32 %v2471, %v2521
        %v2607 = vadd.f32 %v2472, %v2521
        %v2608 = vadd.f32 %v2473, %v2521
        %v2609 = vadd.f32 %v2474, %v2521
        %v2610 = vadd.f32 %v2475, %v2521
        %v2611 = vadd.f32 %v2476, %v2521
        %v2612 = vadd.f32 %v2477, %v2521
        %v2613 = vadd.f32 %v2478, %v2521
        %v2614 = vadd.f32 %v2479, %v2521
        %v2615 = vadd.f32 %v2480, %v2521
        %v2616 = vadd.f32 %v2481, %v2521
        %v2617 = vadd.f32 %v2482, %v2521
        %v2618 = vadd.f32 %v2483, %v2521
        %v2619 = vadd.f32 %v2484, %v2521
        %v2620 = vadd.f32 %v2485, %v2521
        %v2621 = vadd.f32 %v2486, %v2521
        %v2622 = vadd.f32 %v2487, %v2521
        %v2623 = vadd.f32 %v2488, %v2521
        %v2624 = vadd.f32 %v2489, %v2521
        %v2625 = vadd.f32 %v2490, %v2521
        %v2626 = vadd.f32 %v2491, %v2521
        %v2627 = vadd.f32 %v2492, %v2521
        %v2628 = vadd.f32 %v2493, %v2521
        %v2629 = vadd.f32 %v2494, %v2521
        %v2630 = vadd.f32 %v2495, %v2521
        %v2631 = vadd.f32 %v2496, %v2521
        %v2632 = vadd.f32 %v2497, %v2521
        %v2633 = vadd.f32 %v2498, %v2521
        %v2634 = vadd.f32 %v2499, %v2521
        %v2635 = vadd.f32 %v2500, %v2521
        %v2636 = vadd.f32 %v2501, %v2521
        %v2637 = vadd.f32 %v2502, %v2521
        %v2638 = vadd.f32 %v2503, %v2521
        %v2639 = vadd.f32 %v2504, %v2521
        %v2640 = vadd.f32 %v2505, %v2521
        %v2641 = vadd.f32 %v2506, %v2521
        %v2642 = vadd.f32 %v2507, %v2521
        %v2643 = vadd.f32 %v2508, %v2521
        %v2644 = vadd.f32 %v2509, %v2521
        %v2645 = vadd.f32 %v2510, %v2521
        %v2646 = vadd.f32 %v2511, %v2521
        %v2647 = vadd.f32 %v2512, %v2521
        %v2648 = vadd.f32 %v2513, %v2521
        %v2649 = vadd.f32 %v2514, %v2521
        %v2650 = vadd.f32 %v2515, %v2521
        %v2651 = vmax.f32 %v2523, 0.0
        %v2652 = vmax.f32 %v2524, 0.0
        %v2653 = vmax.f32 %v2525, 0.0
        %v2654 = vmax.f32 %v2526, 0.0
        %v2655 = vmax.f32 %v2527, 0.0
        %v2656 = vmax.f32 %v2528, 0.0
        %v2657 = vmax.f32 %v2529, 0.0
        %v2658 = vmax.f32 %v2530, 0.0
        %v2659 = vmax.f32 %v2531, 0.0
        %v2660 = vmax.f32 %v2532, 0.0
        %v2661 = vmax.f32 %v2533, 0.0
        %v2662 = vmax.f32 %v2534, 0.0
        %v2663 = vmax.f32 %v2535, 0.0
        %v2664 = vmax.f32 %v2536, 0.0
        %v2665 = vmax.f32 %v2537, 0.0
        %v2666 = vmax.f32 %v2538, 0.0
        %v2667 = vmax.f32 %v2539, 0.0
        %v2668 = vmax.f32 %v2540, 0.0
        %v2669 = vmax.f32 %v2541, 0.0
        %v2670 = vmax.f32 %v2542, 0.0
        %v2671 = vmax.f32 %v2543, 0.0
        %v2672 = vmax.f32 %v2544, 0.0
        %v2673 = vmax.f32 %v2545, 0.0
        %v2674 = vmax.f32 %v2546, 0.0
        %v2675 = vmax.f32 %v2547, 0.0
        %v2676 = vmax.f32 %v2548, 0.0
        %v2677 = vmax.f32 %v2549, 0.0
        %v2678 = vmax.f32 %v2550, 0.0
        %v2679 = vmax.f32 %v2551, 0.0
        %v2680 = vmax.f32 %v2552, 0.0
        %v2681 = vmax.f32 %v2553, 0.0
        %v2682 = vmax.f32 %v2554, 0.0
        %v2683 = vmax.f32 %v2555, 0.0
        %v2684 = vmax.f32 %v2556, 0.0
        %v2685 = vmax.f32 %v2557, 0.0
        %v2686 = vmax.f32 %v2558, 0.0
        %v2687 = vmax.f32 %v2559, 0.0
        %v2688 = vmax.f32 %v2560, 0.0
        %v2689 = vmax.f32 %v2561, 0.0
        %v2690 = vmax.f32 %v2562, 0.0
        %v2691 = vmax.f32 %v2563, 0.0
        %v2692 = vmax.f32 %v2564, 0.0
        %v2693 = vmax.f32 %v2565, 0.0
        %v2694 = vmax.f32 %v2566, 0.0
        %v2695 = vmax.f32 %v2567, 0.0
        %v2696 = vmax.f32 %v2568, 0.0
        %v2697 = vmax.f32 %v2569, 0.0
        %v2698 = vmax.f32 %v2570, 0.0
        %v2699 = vmax.f32 %v2571, 0.0
        %v2700 = vmax.f32 %v2572, 0.0
        %v2701 = vmax.f32 %v2573, 0.0
        %v2702 = vmax.f32 %v2574, 0.0
        %v2703 = vmax.f32 %v2575, 0.0
        %v2704 = vmax.f32 %v2576, 0.0
        %v2705 = vmax.f32 %v2577, 0.0
        %v2706 = vmax.f32 %v2578, 0.0
        %v2707 = vmax.f32 %v2579, 0.0
        %v2708 = vmax.f32 %v2580, 0.0
        %v2709 = vmax.f32 %v2581, 0.0
        %v2710 = vmax.f32 %v2582, 0.0
        %v2711 = vmax.f32 %v2583, 0.0
        %v2712 = vmax.f32 %v2584, 0.0
        %v2713 = vmax.f32 %v2585, 0.0
        %v2714 = vmax.f32 %v2586, 0.0
        %v2715 = vmax.f32 %v2587, 0.0
        %v2716 = vmax.f32 %v2588, 0.0
        %v2717 = vmax.f32 %v2589, 0.0
        %v2718 = vmax.f32 %v2590, 0.0
        %v2719 = vmax.f32 %v2591, 0.0
        %v2720 = vmax.f32 %v2592, 0.0
        %v2721 = vmax.f32 %v2593, 0.0
        %v2722 = vmax.f32 %v2594, 0.0
        %v2723 = vmax.f32 %v2595, 0.0
        %v2724 = vmax.f32 %v2596, 0.0
        %v2725 = vmax.f32 %v2597, 0.0
        %v2726 = vmax.f32 %v2598, 0.0
        %v2727 = vmax.f32 %v2599, 0.0
        %v2728 = vmax.f32 %v2600, 0.0
        %v2729 = vmax.f32 %v2601, 0.0
        %v2730 = vmax.f32 %v2602, 0.0
        %v2731 = vmax.f32 %v2603, 0.0
        %v2732 = vmax.f32 %v2604, 0.0
        %v2733 = vmax.f32 %v2605, 0.0
        %v2734 = vmax.f32 %v2606, 0.0
        %v2735 = vmax.f32 %v2607, 0.0
        %v2736 = vmax.f32 %v2608, 0.0
        %v2737 = vmax.f32 %v2609, 0.0
        %v2738 = vmax.f32 %v2610, 0.0
        %v2739 = vmax.f32 %v2611, 0.0
        %v2740 = vmax.f32 %v2612, 0.0
        %v2741 = vmax.f32 %v2613, 0.0
        %v2742 = vmax.f32 %v2614, 0.0
        %v2743 = vmax.f32 %v2615, 0.0
        %v2744 = vmax.f32 %v2616, 0.0
        %v2745 = vmax.f32 %v2617, 0.0
        %v2746 = vmax.f32 %v2618, 0.0
        %v2747 = vmax.f32 %v2619, 0.0
        %v2748 = vmax.f32 %v2620, 0.0
        %v2749 = vmax.f32 %v2621, 0.0
        %v2750 = vmax.f32 %v2622, 0.0
        %v2751 = vmax.f32 %v2623, 0.0
        %v2752 = vmax.f32 %v2624, 0.0
        %v2753 = vmax.f32 %v2625, 0.0
        %v2754 = vmax.f32 %v2626, 0.0
        %v2755 = vmax.f32 %v2627, 0.0
        %v2756 = vmax.f32 %v2628, 0.0
        %v2757 = vmax.f32 %v2629, 0.0
        %v2758 = vmax.f32 %v2630, 0.0
        %v2759 = vmax.f32 %v2631, 0.0
        %v2760 = vmax.f32 %v2632, 0.0
        %v2761 = vmax.f32 %v2633, 0.0
        %v2762 = vmax.f32 %v2634, 0.0
        %v2763 = vmax.f32 %v2635, 0.0
        %v2764 = vmax.f32 %v2636, 0.0
        %v2765 = vmax.f32 %v2637, 0.0
        %v2766 = vmax.f32 %v2638, 0.0
        %v2767 = vmax.f32 %v2639, 0.0
        %v2768 = vmax.f32 %v2640, 0.0
        %v2769 = vmax.f32 %v2641, 0.0
        %v2770 = vmax.f32 %v2642, 0.0
        %v2771 = vmax.f32 %v2643, 0.0
        %v2772 = vmax.f32 %v2644, 0.0
        %v2773 = vmax.f32 %v2645, 0.0
        %v2774 = vmax.f32 %v2646, 0.0
        %v2775 = vmax.f32 %v2647, 0.0
        %v2776 = vmax.f32 %v2648, 0.0
        %v2777 = vmax.f32 %v2649, 0.0
        %v2778 = vmax.f32 %v2650, 0.0
        %v2779 = vmax.f32 %v2651, %v2683
        %v2780 = vmax.f32 %v2652, %v2684
        %v2781 = vmax.f32 %v2653, %v2685
        %v2782 = vmax.f32 %v2654, %v2686
        %v2783 = vmax.f32 %v2655, %v2687
        %v2784 = vmax.f32 %v2656, %v2688
        %v2785 = vmax.f32 %v2657, %v2689
        %v2786 = vmax.f32 %v2658, %v2690
        %v2787 = vmax.f32 %v2659, %v2691
        %v2788 = vmax.f32 %v2660, %v2692
        %v2789 = vmax.f32 %v2661, %v2693
        %v2790 = vmax.f32 %v2662, %v2694
        %v2791 = vmax.f32 %v2663, %v2695
        %v2792 = vmax.f32 %v2664, %v2696
        %v2793 = vmax.f32 %v2665, %v2697
        %v2794 = vmax.f32 %v2666, %v2698
        %v2795 = vmax.f32 %v2667, %v2699
        %v2796 = vmax.f32 %v2668, %v2700
        %v2797 = vmax.f32 %v2669, %v2701
        %v2798 = vmax.f32 %v2670, %v2702
        %v2799 = vmax.f32 %v2671, %v2703
        %v2800 = vmax.f32 %v2672, %v2704
        %v2801 = vmax.f32 %v2673, %v2705
        %v2802 = vmax.f32 %v2674, %v2706
        %v2803 = vmax.f32 %v2675, %v2707
        %v2804 = vmax.f32 %v2676, %v2708
        %v2805 = vmax.f32 %v2677, %v2709
        %v2806 = vmax.f32 %v2678, %v2710
        %v2807 = vmax.f32 %v2679, %v2711
        %v2808 = vmax.f32 %v2680, %v2712
        %v2809 = vmax.f32 %v2681, %v2713
        %v2810 = vmax.f32 %v2682, %v2714
        %v2811 = vmax.f32 %v2715, %v2747
        %v2812 = vmax.f32 %v2716, %v2748
        %v2813 = vmax.f32 %v2717, %v2749
        %v2814 = vmax.f32 %v2718, %v2750
        %v2815 = vmax.f32 %v2719, %v2751
        %v2816 = vmax.f32 %v2720, %v2752
        %v2817 = vmax.f32 %v2721, %v2753
        %v2818 = vmax.f32 %v2722, %v2754
        %v2819 = vmax.f32 %v2723, %v2755
        %v2820 = vmax.f32 %v2724, %v2756
        %v2821 = vmax.f32 %v2725, %v2757
        %v2822 = vmax.f32 %v2726, %v2758
        %v2823 = vmax.f32 %v2727, %v2759
        %v2824 = vmax.f32 %v2728, %v2760
        %v2825 = vmax.f32 %v2729, %v2761
        %v2826 = vmax.f32 %v2730, %v2762
        %v2827 = vmax.f32 %v2731, %v2763
        %v2828 = vmax.f32 %v2732, %v2764
        %v2829 = vmax.f32 %v2733, %v2765
        %v2830 = vmax.f32 %v2734, %v2766
        %v2831 = vmax.f32 %v2735, %v2767
        %v2832 = vmax.f32 %v2736, %v2768
        %v2833 = vmax.f32 %v2737, %v2769
        %v2834 = vmax.f32 %v2738, %v2770
        %v2835 = vmax.f32 %v2739, %v2771
        %v2836 = vmax.f32 %v2740, %v2772
        %v2837 = vmax.f32 %v2741, %v2773
        %v2838 = vmax.f32 %v2742, %v2774
        %v2839 = vmax.f32 %v2743, %v2775
        %v2840 = vmax.f32 %v2744, %v2776
        %v2841 = vmax.f32 %v2745, %v2777
        %v2842 = vmax.f32 %v2746, %v2778
        %v2843 = vmax.f32 %v2779, %v2811
        %v2844 = vmax.f32 %v2780, %v2812
        %v2845 = vmax.f32 %v2781, %v2813
        %v2846 = vmax.f32 %v2782, %v2814
        %v2847 = vmax.f32 %v2783, %v2815
        %v2848 = vmax.f32 %v2784, %v2816
        %v2849 = vmax.f32 %v2785, %v2817
        %v2850 = vmax.f32 %v2786, %v2818
        %v2851 = vmax.f32 %v2787, %v2819
        %v2852 = vmax.f32 %v2788, %v2820
        %v2853 = vmax.f32 %v2789, %v2821
        %v2854 = vmax.f32 %v2790, %v2822
        %v2855 = vmax.f32 %v2791, %v2823
        %v2856 = vmax.f32 %v2792, %v2824
        %v2857 = vmax.f32 %v2793, %v2825
        %v2858 = vmax.f32 %v2794, %v2826
        %v2859 = vmax.f32 %v2795, %v2827
        %v2860 = vmax.f32 %v2796, %v2828
        %v2861 = vmax.f32 %v2797, %v2829
        %v2862 = vmax.f32 %v2798, %v2830
        %v2863 = vmax.f32 %v2799, %v2831
        %v2864 = vmax.f32 %v2800, %v2832
        %v2865 = vmax.f32 %v2801, %v2833
        %v2866 = vmax.f32 %v2802, %v2834
        %v2867 = vmax.f32 %v2803, %v2835
        %v2868 = vmax.f32 %v2804, %v2836
        %v2869 = vmax.f32 %v2805, %v2837
        %v2870 = vmax.f32 %v2806, %v2838
        %v2871 = vmax.f32 %v2807, %v2839
        %v2872 = vmax.f32 %v2808, %v2840
        %v2873 = vmax.f32 %v2809, %v2841
        %v2874 = vmax.f32 %v2810, %v2842
        %v2875 = vld [vmem:[%s9] sm:$0xff]
        %v2876 = vld [vmem:[%s9 + $0x8] sm:$0xff]
        %v2877 = vld [vmem:[%s9 + $0x10] sm:$0xff]
        %v2878 = vld [vmem:[%s9 + $0x18] sm:$0xff]
        %v2879 = vld [vmem:[%s9 + $0x20] sm:$0xff]
        %v2880 = vld [vmem:[%s9 + $0x28] sm:$0xff]
        %v2881 = vld [vmem:[%s9 + $0x30] sm:$0xff]
        %v2882 = vld [vmem:[%s9 + $0x38] sm:$0xff]
        %vm2883 = vcmask 523264
        %v2885 = vsel %vm2883, %v2843, 0
        %v2888 = vsel %vm2883, %v2844, 0
        %v2891 = vsel %vm2883, %v2845, 0
        %v2894 = vsel %vm2883, %v2846, 0
        %v2897 = vsel %vm2883, %v2847, 0
        %v2900 = vsel %vm2883, %v2848, 0
        %v2903 = vsel %vm2883, %v2849, 0
        %v2906 = vsel %vm2883, %v2850, 0
        %v2909 = vsel %vm2883, %v2851, 0
        %v2912 = vsel %vm2883, %v2852, 0
        %v2915 = vsel %vm2883, %v2853, 0
        %v2918 = vsel %vm2883, %v2854, 0
        %v2921 = vsel %vm2883, %v2855, 0
        %v2924 = vsel %vm2883, %v2856, 0
        %v2927 = vsel %vm2883, %v2857, 0
        %v2930 = vsel %vm2883, %v2858, 0
        %v2933 = vsel %vm2883, %v2859, 0
        %v2936 = vsel %vm2883, %v2860, 0
        %v2939 = vsel %vm2883, %v2861, 0
        %v2942 = vsel %vm2883, %v2862, 0
        %v2945 = vsel %vm2883, %v2863, 0
        %v2948 = vsel %vm2883, %v2864, 0
        %v2951 = vsel %vm2883, %v2865, 0
        %v2954 = vsel %vm2883, %v2866, 0
        %v2957 = vsel %vm2883, %v2867, 0
        %v2960 = vsel %vm2883, %v2868, 0
        %v2963 = vsel %vm2883, %v2869, 0
        %v2966 = vsel %vm2883, %v2870, 0
        %v2969 = vsel %vm2883, %v2871, 0
        %v2972 = vsel %vm2883, %v2872, 0
        %v2975 = vsel %vm2883, %v2873, 0
        %v2978 = vsel %vm2883, %v2874, 0
        %2980 = vmatprep.subr.mxu0 0.0
        %2981 = vmatpush1.msra.mxu0 0.0
        %2982 = vmatprep.subr.mxu0 0.0
        %2983 = vmatpush1.msra.mxu0 0.0
        %2984 = vmatprep.subr.mxu0 0.0
        %2985 = vmatpush1.msra.mxu0 0.0
        %2986 = vmatprep.subr.mxu0 0.0
        %2987 = vmatpush1.msra.mxu0 0.0
        %2988 = vmatprep.subr.mxu0 0.0
        %2989 = vmatpush1.msra.mxu0 0.0
        %2990 = vmatprep.subr.mxu0 0.0
        %2991 = vmatpush1.msra.mxu0 0.0
        %2992 = vmatprep.subr.mxu0 0.0
        %2993 = vmatpush1.msra.mxu0 0.0
        %2994 = vmatprep.subr.mxu0 0.0
        %2995 = vmatpush1.msra.mxu0 0.0
        %2996 = vmatprep.subr.mxu0 0.0
        %2997 = vmatpush1.msra.mxu0 %v2882
        %2998 = vmatprep.subr.mxu0 0.0
        %2999 = vmatpush1.msra.mxu0 %v2881
        %3000 = vmatprep.subr.mxu0 0.0
        %3001 = vmatpush1.msra.mxu0 %v2880
        %3002 = vmatprep.subr.mxu0 0.0
        %3003 = vmatpush1.msra.mxu0 %v2879
        %3004 = vmatprep.subr.mxu0 0.0
        %3005 = vmatpush1.msra.mxu0 %v2878
        %3006 = vmatprep.subr.mxu0 0.0
        %3007 = vmatpush1.msra.mxu0 %v2877
        %3008 = vmatprep.subr.mxu0 0.0
        %3009 = vmatpush1.msra.mxu0 %v2876
        %3010 = vmatprep.subr.mxu0 0.0
        %3011 = vmatpush1.msra.mxu0 %v2875
        %3012 = vmatprep.subr.mxu0 0.0
        %3013 = vmatpush2.msra.mxu0 0.0
        %3014 = vmatprep.subr.mxu0 0.0
        %3015 = vmatpush2.msra.mxu0 0.0
        %3016 = vmatprep.subr.mxu0 0.0
        %3017 = vmatpush2.msra.mxu0 0.0
        %3018 = vmatprep.subr.mxu0 0.0
        %3019 = vmatpush2.msra.mxu0 0.0
        %3020 = vmatprep.subr.mxu0 0.0
        %3021 = vmatpush2.msra.mxu0 0.0
        %3022 = vmatprep.subr.mxu0 0.0
        %3023 = vmatpush2.msra.mxu0 0.0
        %3024 = vmatprep.subr.mxu0 0.0
        %3025 = vmatpush2.msra.mxu0 0.0
        %3026 = vmatprep.subr.mxu0 0.0
        %3027 = vmatpush2.msra.mxu0 0.0
        %3028 = vmatprep.subr.mxu0 0.0
        %3029 = vmatpush2.msra.mxu0 0.0
        %3030 = vmatprep.subr.mxu0 0.0
        %3031 = vmatpush2.msra.mxu0 0.0
        %3032 = vmatprep.subr.mxu0 0.0
        %3033 = vmatpush2.msra.mxu0 0.0
        %3034 = vmatprep.subr.mxu0 0.0
        %3035 = vmatpush2.msra.mxu0 0.0
        %3036 = vmatprep.subr.mxu0 0.0
        %3037 = vmatpush2.msra.mxu0 0.0
        %3038 = vmatprep.subr.mxu0 0.0
        %3039 = vmatpush2.msra.mxu0 0.0
        %3040 = vmatprep.subr.mxu0 0.0
        %3041 = vmatpush2.msra.mxu0 0.0
        %3042 = vmatprep.subr.mxu0 0.0
        %3043 = vmatpush2.msra.mxu0 0.0
        %3044 = vmatprep.mubr.f32.mxu0 0.0
        %3045 = vmatmul.mubr.f32.gmra.mxu0 %v2885
        %v3046 = vpop.f32.mrf.mxu0
        %v3047 = vadd.f32 0.0, %v3046
        %v3048 = vpop.f32.mrf.mxu0
        %3049 = vmatprep.mubr.f32.mxu0 0.0
        %3050 = vmatmul.mubr.f32.gmra.mxu0 %v2888
        %v3051 = vpop.f32.mrf.mxu0
        %v3052 = vadd.f32 0.0, %v3051
        %v3053 = vpop.f32.mrf.mxu0
        %3054 = vmatprep.mubr.f32.mxu0 0.0
        %3055 = vmatmul.mubr.f32.gmra.mxu0 %v2891
        %v3056 = vpop.f32.mrf.mxu0
        %v3057 = vadd.f32 0.0, %v3056
        %v3058 = vpop.f32.mrf.mxu0
        %3059 = vmatprep.mubr.f32.mxu0 0.0
        %3060 = vmatmul.mubr.f32.gmra.mxu0 %v2894
        %v3061 = vpop.f32.mrf.mxu0
        %v3062 = vadd.f32 0.0, %v3061
        %v3063 = vpop.f32.mrf.mxu0
        %3064 = vmatprep.mubr.f32.mxu0 0.0
        %3065 = vmatmul.mubr.f32.gmra.mxu0 %v2897
        %v3066 = vpop.f32.mrf.mxu0
        %v3067 = vadd.f32 0.0, %v3066
        %v3068 = vpop.f32.mrf.mxu0
        %3069 = vmatprep.mubr.f32.mxu0 0.0
        %3070 = vmatmul.mubr.f32.gmra.mxu0 %v2900
        %v3071 = vpop.f32.mrf.mxu0
        %v3072 = vadd.f32 0.0, %v3071
        %v3073 = vpop.f32.mrf.mxu0
        %3074 = vmatprep.mubr.f32.mxu0 0.0
        %3075 = vmatmul.mubr.f32.gmra.mxu0 %v2903
        %v3076 = vpop.f32.mrf.mxu0
        %v3077 = vadd.f32 0.0, %v3076
        %v3078 = vpop.f32.mrf.mxu0
        %3079 = vmatprep.mubr.f32.mxu0 0.0
        %3080 = vmatmul.mubr.f32.gmra.mxu0 %v2906
        %v3081 = vpop.f32.mrf.mxu0
        %v3082 = vadd.f32 0.0, %v3081
        %v3083 = vpop.f32.mrf.mxu0
        %3084 = vmatprep.mubr.f32.mxu0 0.0
        %3085 = vmatmul.mubr.f32.gmra.mxu0 %v2909
        %v3086 = vpop.f32.mrf.mxu0
        %v3087 = vadd.f32 0.0, %v3086
        %v3088 = vpop.f32.mrf.mxu0
        %3089 = vmatprep.mubr.f32.mxu0 0.0
        %3090 = vmatmul.mubr.f32.gmra.mxu0 %v2912
        %v3091 = vpop.f32.mrf.mxu0
        %v3092 = vadd.f32 0.0, %v3091
        %v3093 = vpop.f32.mrf.mxu0
        %3094 = vmatprep.mubr.f32.mxu0 0.0
        %3095 = vmatmul.mubr.f32.gmra.mxu0 %v2915
        %v3096 = vpop.f32.mrf.mxu0
        %v3097 = vadd.f32 0.0, %v3096
        %v3098 = vpop.f32.mrf.mxu0
        %3099 = vmatprep.mubr.f32.mxu0 0.0
        %3100 = vmatmul.mubr.f32.gmra.mxu0 %v2918
        %v3101 = vpop.f32.mrf.mxu0
        %v3102 = vadd.f32 0.0, %v3101
        %v3103 = vpop.f32.mrf.mxu0
        %3104 = vmatprep.mubr.f32.mxu0 0.0
        %3105 = vmatmul.mubr.f32.gmra.mxu0 %v2921
        %v3106 = vpop.f32.mrf.mxu0
        %v3107 = vadd.f32 0.0, %v3106
        %v3108 = vpop.f32.mrf.mxu0
        %3109 = vmatprep.mubr.f32.mxu0 0.0
        %3110 = vmatmul.mubr.f32.gmra.mxu0 %v2924
        %v3111 = vpop.f32.mrf.mxu0
        %v3112 = vadd.f32 0.0, %v3111
        %v3113 = vpop.f32.mrf.mxu0
        %3114 = vmatprep.mubr.f32.mxu0 0.0
        %3115 = vmatmul.mubr.f32.gmra.mxu0 %v2927
        %v3116 = vpop.f32.mrf.mxu0
        %v3117 = vadd.f32 0.0, %v3116
        %v3118 = vpop.f32.mrf.mxu0
        %3119 = vmatprep.mubr.f32.mxu0 0.0
        %3120 = vmatmul.mubr.f32.gmra.mxu0 %v2930
        %v3121 = vpop.f32.mrf.mxu0
        %v3122 = vadd.f32 0.0, %v3121
        %v3123 = vpop.f32.mrf.mxu0
        %3124 = vmatprep.mubr.f32.mxu0 0.0
        %3125 = vmatmul.mubr.f32.gmra.mxu0 %v2933
        %v3126 = vpop.f32.mrf.mxu0
        %v3127 = vadd.f32 0.0, %v3126
        %v3128 = vpop.f32.mrf.mxu0
        %3129 = vmatprep.mubr.f32.mxu0 0.0
        %3130 = vmatmul.mubr.f32.gmra.mxu0 %v2936
        %v3131 = vpop.f32.mrf.mxu0
        %v3132 = vadd.f32 0.0, %v3131
        %v3133 = vpop.f32.mrf.mxu0
        %3134 = vmatprep.mubr.f32.mxu0 0.0
        %3135 = vmatmul.mubr.f32.gmra.mxu0 %v2939
        %v3136 = vpop.f32.mrf.mxu0
        %v3137 = vadd.f32 0.0, %v3136
        %v3138 = vpop.f32.mrf.mxu0
        %3139 = vmatprep.mubr.f32.mxu0 0.0
        %3140 = vmatmul.mubr.f32.gmra.mxu0 %v2942
        %v3141 = vpop.f32.mrf.mxu0
        %v3142 = vadd.f32 0.0, %v3141
        %v3143 = vpop.f32.mrf.mxu0
        %3144 = vmatprep.mubr.f32.mxu0 0.0
        %3145 = vmatmul.mubr.f32.gmra.mxu0 %v2945
        %v3146 = vpop.f32.mrf.mxu0
        %v3147 = vadd.f32 0.0, %v3146
        %v3148 = vpop.f32.mrf.mxu0
        %3149 = vmatprep.mubr.f32.mxu0 0.0
        %3150 = vmatmul.mubr.f32.gmra.mxu0 %v2948
        %v3151 = vpop.f32.mrf.mxu0
        %v3152 = vadd.f32 0.0, %v3151
        %v3153 = vpop.f32.mrf.mxu0
        %3154 = vmatprep.mubr.f32.mxu0 0.0
        %3155 = vmatmul.mubr.f32.gmra.mxu0 %v2951
        %v3156 = vpop.f32.mrf.mxu0
        %v3157 = vadd.f32 0.0, %v3156
        %v3158 = vpop.f32.mrf.mxu0
        %3159 = vmatprep.mubr.f32.mxu0 0.0
        %3160 = vmatmul.mubr.f32.gmra.mxu0 %v2954
        %v3161 = vpop.f32.mrf.mxu0
        %v3162 = vadd.f32 0.0, %v3161
        %v3163 = vpop.f32.mrf.mxu0
        %3164 = vmatprep.mubr.f32.mxu0 0.0
        %3165 = vmatmul.mubr.f32.gmra.mxu0 %v2957
        %v3166 = vpop.f32.mrf.mxu0
        %v3167 = vadd.f32 0.0, %v3166
        %v3168 = vpop.f32.mrf.mxu0
        %3169 = vmatprep.mubr.f32.mxu0 0.0
        %3170 = vmatmul.mubr.f32.gmra.mxu0 %v2960
        %v3171 = vpop.f32.mrf.mxu0
        %v3172 = vadd.f32 0.0, %v3171
        %v3173 = vpop.f32.mrf.mxu0
        %3174 = vmatprep.mubr.f32.mxu0 0.0
        %3175 = vmatmul.mubr.f32.gmra.mxu0 %v2963
        %v3176 = vpop.f32.mrf.mxu0
        %v3177 = vadd.f32 0.0, %v3176
        %v3178 = vpop.f32.mrf.mxu0
        %3179 = vmatprep.mubr.f32.mxu0 0.0
        %3180 = vmatmul.mubr.f32.gmra.mxu0 %v2966
        %v3181 = vpop.f32.mrf.mxu0
        %v3182 = vadd.f32 0.0, %v3181
        %v3183 = vpop.f32.mrf.mxu0
        %3184 = vmatprep.mubr.f32.mxu0 0.0
        %3185 = vmatmul.mubr.f32.gmra.mxu0 %v2969
        %v3186 = vpop.f32.mrf.mxu0
        %v3187 = vadd.f32 0.0, %v3186
        %v3188 = vpop.f32.mrf.mxu0
        %3189 = vmatprep.mubr.f32.mxu0 0.0
        %3190 = vmatmul.mubr.f32.gmra.mxu0 %v2972
        %v3191 = vpop.f32.mrf.mxu0
        %v3192 = vadd.f32 0.0, %v3191
        %v3193 = vpop.f32.mrf.mxu0
        %3194 = vmatprep.mubr.f32.mxu0 0.0
        %3195 = vmatmul.mubr.f32.gmra.mxu0 %v2975
        %v3196 = vpop.f32.mrf.mxu0
        %v3197 = vadd.f32 0.0, %v3196
        %v3198 = vpop.f32.mrf.mxu0
        %3199 = vmatprep.mubr.f32.mxu0 0.0
        %3200 = vmatmul.mubr.f32.gmra.mxu0 %v2978
        %v3201 = vpop.f32.mrf.mxu0
        %v3202 = vadd.f32 0.0, %v3201
        %v3203 = vpop.f32.mrf.mxu0
        %3204 = vdwg.mxu0
        %v3205 = vld [vmem:[%s11] sm:$0x1]
        %v3207 = vlaneseq
        %v3208 = vshrl.u32 %v3207, 7
        %v3209 = vsub.s32 0, %v3208
        %v3210 = vrot.slane %v3205, %v3209
        %v3212 = vmul.f32 %v3047, %v3210
        %v3213 = vmul.f32 %v3052, %v3210
        %v3214 = vmul.f32 %v3057, %v3210
        %v3215 = vmul.f32 %v3062, %v3210
        %v3216 = vmul.f32 %v3067, %v3210
        %v3217 = vmul.f32 %v3072, %v3210
        %v3218 = vmul.f32 %v3077, %v3210
        %v3219 = vmul.f32 %v3082, %v3210
        %v3220 = vmul.f32 %v3087, %v3210
        %v3221 = vmul.f32 %v3092, %v3210
        %v3222 = vmul.f32 %v3097, %v3210
        %v3223 = vmul.f32 %v3102, %v3210
        %v3224 = vmul.f32 %v3107, %v3210
        %v3225 = vmul.f32 %v3112, %v3210
        %v3226 = vmul.f32 %v3117, %v3210
        %v3227 = vmul.f32 %v3122, %v3210
        %v3228 = vmul.f32 %v3127, %v3210
        %v3229 = vmul.f32 %v3132, %v3210
        %v3230 = vmul.f32 %v3137, %v3210
        %v3231 = vmul.f32 %v3142, %v3210
        %v3232 = vmul.f32 %v3147, %v3210
        %v3233 = vmul.f32 %v3152, %v3210
        %v3234 = vmul.f32 %v3157, %v3210
        %v3235 = vmul.f32 %v3162, %v3210
        %v3236 = vmul.f32 %v3167, %v3210
        %v3237 = vmul.f32 %v3172, %v3210
        %v3238 = vmul.f32 %v3177, %v3210
        %v3239 = vmul.f32 %v3182, %v3210
        %v3240 = vmul.f32 %v3187, %v3210
        %v3241 = vmul.f32 %v3192, %v3210
        %v3242 = vmul.f32 %v3197, %v3210
        %v3243 = vmul.f32 %v3202, %v3210
        %v3244 = vld [vmem:[%s13] sm:$0x1]
        %v3246 = vlaneseq
        %v3247 = vshrl.u32 %v3246, 7
        %v3248 = vsub.s32 0, %v3247
        %v3249 = vrot.slane %v3244, %v3248
        %v3251 = vadd.f32 %v3212, %v3249
        %v3252 = vadd.f32 %v3213, %v3249
        %v3253 = vadd.f32 %v3214, %v3249
        %v3254 = vadd.f32 %v3215, %v3249
        %v3255 = vadd.f32 %v3216, %v3249
        %v3256 = vadd.f32 %v3217, %v3249
        %v3257 = vadd.f32 %v3218, %v3249
        %v3258 = vadd.f32 %v3219, %v3249
        %v3259 = vadd.f32 %v3220, %v3249
        %v3260 = vadd.f32 %v3221, %v3249
        %v3261 = vadd.f32 %v3222, %v3249
        %v3262 = vadd.f32 %v3223, %v3249
        %v3263 = vadd.f32 %v3224, %v3249
        %v3264 = vadd.f32 %v3225, %v3249
        %v3265 = vadd.f32 %v3226, %v3249
        %v3266 = vadd.f32 %v3227, %v3249
        %v3267 = vadd.f32 %v3228, %v3249
        %v3268 = vadd.f32 %v3229, %v3249
        %v3269 = vadd.f32 %v3230, %v3249
        %v3270 = vadd.f32 %v3231, %v3249
        %v3271 = vadd.f32 %v3232, %v3249
        %v3272 = vadd.f32 %v3233, %v3249
        %v3273 = vadd.f32 %v3234, %v3249
        %v3274 = vadd.f32 %v3235, %v3249
        %v3275 = vadd.f32 %v3236, %v3249
        %v3276 = vadd.f32 %v3237, %v3249
        %v3277 = vadd.f32 %v3238, %v3249
        %v3278 = vadd.f32 %v3239, %v3249
        %v3279 = vadd.f32 %v3240, %v3249
        %v3280 = vadd.f32 %v3241, %v3249
        %v3281 = vadd.f32 %v3242, %v3249
        %v3282 = vadd.f32 %v3243, %v3249
        %v3283 = vmax.f32 %v3251, 0.0
        %v3284 = vmax.f32 %v3252, 0.0
        %v3285 = vmax.f32 %v3253, 0.0
        %v3286 = vmax.f32 %v3254, 0.0
        %v3287 = vmax.f32 %v3255, 0.0
        %v3288 = vmax.f32 %v3256, 0.0
        %v3289 = vmax.f32 %v3257, 0.0
        %v3290 = vmax.f32 %v3258, 0.0
        %v3291 = vmax.f32 %v3259, 0.0
        %v3292 = vmax.f32 %v3260, 0.0
        %v3293 = vmax.f32 %v3261, 0.0
        %v3294 = vmax.f32 %v3262, 0.0
        %v3295 = vmax.f32 %v3263, 0.0
        %v3296 = vmax.f32 %v3264, 0.0
        %v3297 = vmax.f32 %v3265, 0.0
        %v3298 = vmax.f32 %v3266, 0.0
        %v3299 = vmax.f32 %v3267, 0.0
        %v3300 = vmax.f32 %v3268, 0.0
        %v3301 = vmax.f32 %v3269, 0.0
        %v3302 = vmax.f32 %v3270, 0.0
        %v3303 = vmax.f32 %v3271, 0.0
        %v3304 = vmax.f32 %v3272, 0.0
        %v3305 = vmax.f32 %v3273, 0.0
        %v3306 = vmax.f32 %v3274, 0.0
        %v3307 = vmax.f32 %v3275, 0.0
        %v3308 = vmax.f32 %v3276, 0.0
        %v3309 = vmax.f32 %v3277, 0.0
        %v3310 = vmax.f32 %v3278, 0.0
        %v3311 = vmax.f32 %v3279, 0.0
        %v3312 = vmax.f32 %v3280, 0.0
        %v3313 = vmax.f32 %v3281, 0.0
        %v3314 = vmax.f32 %v3282, 0.0
        %v3348 = vrot.slane 0.0, 7
        %v3349 = vsel %vm1672, %v3348, %v3348
        %v3350 = vrot.slane %v3283, 7
        %v3351 = vrot.slane %v3284, 7
        %v3352 = vsel %vm1672, %v3350, %v3351
        %v3353 = vrot.slane %v3285, 7
        %v3354 = vrot.slane %v3286, 7
        %v3355 = vsel %vm1672, %v3353, %v3354
        %v3356 = vrot.slane %v3287, 7
        %v3357 = vrot.slane %v3288, 7
        %v3358 = vsel %vm1672, %v3356, %v3357
        %v3359 = vrot.slane %v3289, 7
        %v3360 = vrot.slane %v3290, 7
        %v3361 = vsel %vm1672, %v3359, %v3360
        %v3362 = vrot.slane %v3291, 7
        %v3363 = vrot.slane %v3292, 7
        %v3364 = vsel %vm1672, %v3362, %v3363
        %v3365 = vrot.slane %v3293, 7
        %v3366 = vrot.slane %v3294, 7
        %v3367 = vsel %vm1672, %v3365, %v3366
        %v3368 = vrot.slane %v3295, 7
        %v3369 = vrot.slane %v3296, 7
        %v3370 = vsel %vm1672, %v3368, %v3369
        %v3371 = vrot.slane %v3297, 7
        %v3372 = vrot.slane %v3298, 7
        %v3373 = vsel %vm1672, %v3371, %v3372
        %v3374 = vrot.slane %v3299, 7
        %v3375 = vrot.slane %v3300, 7
        %v3376 = vsel %vm1672, %v3374, %v3375
        %v3377 = vrot.slane %v3301, 7
        %v3378 = vrot.slane %v3302, 7
        %v3379 = vsel %vm1672, %v3377, %v3378
        %v3380 = vrot.slane %v3303, 7
        %v3381 = vrot.slane %v3304, 7
        %v3382 = vsel %vm1672, %v3380, %v3381
        %v3383 = vrot.slane %v3305, 7
        %v3384 = vrot.slane %v3306, 7
        %v3385 = vsel %vm1672, %v3383, %v3384
        %v3386 = vrot.slane %v3307, 7
        %v3387 = vrot.slane %v3308, 7
        %v3388 = vsel %vm1672, %v3386, %v3387
        %v3389 = vrot.slane %v3309, 7
        %v3390 = vrot.slane %v3310, 7
        %v3391 = vsel %vm1672, %v3389, %v3390
        %v3392 = vrot.slane %v3311, 7
        %v3393 = vrot.slane %v3312, 7
        %v3394 = vsel %vm1672, %v3392, %v3393
        %v3395 = vrot.slane %v3313, 7
        %v3396 = vrot.slane %v3314, 7
        %v3397 = vsel %vm1672, %v3395, %v3396
        %v3448 = vsel %vm1672, 0.0, %v3348
        %v3449 = vsel %vm1672, 0.0, %v3350
        %v3450 = vsel %vm1672, 0.0, %v3353
        %v3451 = vsel %vm1672, 0.0, %v3356
        %v3452 = vsel %vm1672, 0.0, %v3359
        %v3453 = vsel %vm1672, 0.0, %v3362
        %v3454 = vsel %vm1672, 0.0, %v3365
        %v3455 = vsel %vm1672, 0.0, %v3368
        %v3456 = vsel %vm1672, 0.0, %v3371
        %v3457 = vsel %vm1672, 0.0, %v3374
        %v3458 = vsel %vm1672, 0.0, %v3377
        %v3459 = vsel %vm1672, 0.0, %v3380
        %v3460 = vsel %vm1672, 0.0, %v3383
        %v3461 = vsel %vm1672, 0.0, %v3386
        %v3462 = vsel %vm1672, 0.0, %v3389
        %v3463 = vsel %vm1672, 0.0, %v3392
        %v3464 = vsel %vm1672, 0.0, %v3395
        %v3465 = vsel %vm1672, %v3348, 0.0
        %v3466 = vsel %vm1672, %v3351, 0.0
        %v3467 = vsel %vm1672, %v3354, 0.0
        %v3468 = vsel %vm1672, %v3357, 0.0
        %v3469 = vsel %vm1672, %v3360, 0.0
        %v3470 = vsel %vm1672, %v3363, 0.0
        %v3471 = vsel %vm1672, %v3366, 0.0
        %v3472 = vsel %vm1672, %v3369, 0.0
        %v3473 = vsel %vm1672, %v3372, 0.0
        %v3474 = vsel %vm1672, %v3375, 0.0
        %v3475 = vsel %vm1672, %v3378, 0.0
        %v3476 = vsel %vm1672, %v3381, 0.0
        %v3477 = vsel %vm1672, %v3384, 0.0
        %v3478 = vsel %vm1672, %v3387, 0.0
        %v3479 = vsel %vm1672, %v3390, 0.0
        %v3480 = vsel %vm1672, %v3393, 0.0
        %v3481 = vsel %vm1672, %v3396, 0.0
        %vm3514 = vcmask 1046528
        %v3515 = vrot.slane %v3448, 1
        %v3516 = vrot.slane %v3349, 1
        %v3517 = vsel %vm3514, %v3515, %v3516
        %v3518 = vrot.slane %v3465, 1
        %v3519 = vsel %vm3514, %v3516, %v3518
        %v3520 = vrot.slane %v3449, 1
        %v3521 = vrot.slane %v3352, 1
        %v3522 = vsel %vm3514, %v3520, %v3521
        %v3523 = vrot.slane %v3466, 1
        %v3524 = vsel %vm3514, %v3521, %v3523
        %v3525 = vrot.slane %v3450, 1
        %v3526 = vrot.slane %v3355, 1
        %v3527 = vsel %vm3514, %v3525, %v3526
        %v3528 = vrot.slane %v3467, 1
        %v3529 = vsel %vm3514, %v3526, %v3528
        %v3530 = vrot.slane %v3451, 1
        %v3531 = vrot.slane %v3358, 1
        %v3532 = vsel %vm3514, %v3530, %v3531
        %v3533 = vrot.slane %v3468, 1
        %v3534 = vsel %vm3514, %v3531, %v3533
        %v3535 = vrot.slane %v3452, 1
        %v3536 = vrot.slane %v3361, 1
        %v3537 = vsel %vm3514, %v3535, %v3536
        %v3538 = vrot.slane %v3469, 1
        %v3539 = vsel %vm3514, %v3536, %v3538
        %v3540 = vrot.slane %v3453, 1
        %v3541 = vrot.slane %v3364, 1
        %v3542 = vsel %vm3514, %v3540, %v3541
        %v3543 = vrot.slane %v3470, 1
        %v3544 = vsel %vm3514, %v3541, %v3543
        %v3545 = vrot.slane %v3454, 1
        %v3546 = vrot.slane %v3367, 1
        %v3547 = vsel %vm3514, %v3545, %v3546
        %v3548 = vrot.slane %v3471, 1
        %v3549 = vsel %vm3514, %v3546, %v3548
        %v3550 = vrot.slane %v3455, 1
        %v3551 = vrot.slane %v3370, 1
        %v3552 = vsel %vm3514, %v3550, %v3551
        %v3553 = vrot.slane %v3472, 1
        %v3554 = vsel %vm3514, %v3551, %v3553
        %v3555 = vrot.slane %v3456, 1
        %v3556 = vrot.slane %v3373, 1
        %v3557 = vsel %vm3514, %v3555, %v3556
        %v3558 = vrot.slane %v3473, 1
        %v3559 = vsel %vm3514, %v3556, %v3558
        %v3560 = vrot.slane %v3457, 1
        %v3561 = vrot.slane %v3376, 1
        %v3562 = vsel %vm3514, %v3560, %v3561
        %v3563 = vrot.slane %v3474, 1
        %v3564 = vsel %vm3514, %v3561, %v3563
        %v3565 = vrot.slane %v3458, 1
        %v3566 = vrot.slane %v3379, 1
        %v3567 = vsel %vm3514, %v3565, %v3566
        %v3568 = vrot.slane %v3475, 1
        %v3569 = vsel %vm3514, %v3566, %v3568
        %v3570 = vrot.slane %v3459, 1
        %v3571 = vrot.slane %v3382, 1
        %v3572 = vsel %vm3514, %v3570, %v3571
        %v3573 = vrot.slane %v3476, 1
        %v3574 = vsel %vm3514, %v3571, %v3573
        %v3575 = vrot.slane %v3460, 1
        %v3576 = vrot.slane %v3385, 1
        %v3577 = vsel %vm3514, %v3575, %v3576
        %v3578 = vrot.slane %v3477, 1
        %v3579 = vsel %vm3514, %v3576, %v3578
        %v3580 = vrot.slane %v3461, 1
        %v3581 = vrot.slane %v3388, 1
        %v3582 = vsel %vm3514, %v3580, %v3581
        %v3583 = vrot.slane %v3478, 1
        %v3584 = vsel %vm3514, %v3581, %v3583
        %v3585 = vrot.slane %v3462, 1
        %v3586 = vrot.slane %v3391, 1
        %v3587 = vsel %vm3514, %v3585, %v3586
        %v3588 = vrot.slane %v3479, 1
        %v3589 = vsel %vm3514, %v3586, %v3588
        %v3590 = vrot.slane %v3463, 1
        %v3591 = vrot.slane %v3394, 1
        %v3592 = vsel %vm3514, %v3590, %v3591
        %v3593 = vrot.slane %v3480, 1
        %v3594 = vsel %vm3514, %v3591, %v3593
        %vm3595 = vcmask 1045504
        %v3596 = vrot.slane %v3448, 2
        %v3597 = vrot.slane %v3349, 2
        %v3598 = vsel %vm3595, %v3596, %v3597
        %v3599 = vrot.slane %v3465, 2
        %v3600 = vsel %vm3595, %v3597, %v3599
        %v3601 = vrot.slane %v3449, 2
        %v3602 = vrot.slane %v3352, 2
        %v3603 = vsel %vm3595, %v3601, %v3602
        %v3604 = vrot.slane %v3466, 2
        %v3605 = vsel %vm3595, %v3602, %v3604
        %v3606 = vrot.slane %v3450, 2
        %v3607 = vrot.slane %v3355, 2
        %v3608 = vsel %vm3595, %v3606, %v3607
        %v3609 = vrot.slane %v3467, 2
        %v3610 = vsel %vm3595, %v3607, %v3609
        %v3611 = vrot.slane %v3451, 2
        %v3612 = vrot.slane %v3358, 2
        %v3613 = vsel %vm3595, %v3611, %v3612
        %v3614 = vrot.slane %v3468, 2
        %v3615 = vsel %vm3595, %v3612, %v3614
        %v3616 = vrot.slane %v3452, 2
        %v3617 = vrot.slane %v3361, 2
        %v3618 = vsel %vm3595, %v3616, %v3617
        %v3619 = vrot.slane %v3469, 2
        %v3620 = vsel %vm3595, %v3617, %v3619
        %v3621 = vrot.slane %v3453, 2
        %v3622 = vrot.slane %v3364, 2
        %v3623 = vsel %vm3595, %v3621, %v3622
        %v3624 = vrot.slane %v3470, 2
        %v3625 = vsel %vm3595, %v3622, %v3624
        %v3626 = vrot.slane %v3454, 2
        %v3627 = vrot.slane %v3367, 2
        %v3628 = vsel %vm3595, %v3626, %v3627
        %v3629 = vrot.slane %v3471, 2
        %v3630 = vsel %vm3595, %v3627, %v3629
        %v3631 = vrot.slane %v3455, 2
        %v3632 = vrot.slane %v3370, 2
        %v3633 = vsel %vm3595, %v3631, %v3632
        %v3634 = vrot.slane %v3472, 2
        %v3635 = vsel %vm3595, %v3632, %v3634
        %v3636 = vrot.slane %v3456, 2
        %v3637 = vrot.slane %v3373, 2
        %v3638 = vsel %vm3595, %v3636, %v3637
        %v3639 = vrot.slane %v3473, 2
        %v3640 = vsel %vm3595, %v3637, %v3639
        %v3641 = vrot.slane %v3457, 2
        %v3642 = vrot.slane %v3376, 2
        %v3643 = vsel %vm3595, %v3641, %v3642
        %v3644 = vrot.slane %v3474, 2
        %v3645 = vsel %vm3595, %v3642, %v3644
        %v3646 = vrot.slane %v3458, 2
        %v3647 = vrot.slane %v3379, 2
        %v3648 = vsel %vm3595, %v3646, %v3647
        %v3649 = vrot.slane %v3475, 2
        %v3650 = vsel %vm3595, %v3647, %v3649
        %v3651 = vrot.slane %v3459, 2
        %v3652 = vrot.slane %v3382, 2
        %v3653 = vsel %vm3595, %v3651, %v3652
        %v3654 = vrot.slane %v3476, 2
        %v3655 = vsel %vm3595, %v3652, %v3654
        %v3656 = vrot.slane %v3460, 2
        %v3657 = vrot.slane %v3385, 2
        %v3658 = vsel %vm3595, %v3656, %v3657
        %v3659 = vrot.slane %v3477, 2
        %v3660 = vsel %vm3595, %v3657, %v3659
        %v3661 = vrot.slane %v3461, 2
        %v3662 = vrot.slane %v3388, 2
        %v3663 = vsel %vm3595, %v3661, %v3662
        %v3664 = vrot.slane %v3478, 2
        %v3665 = vsel %vm3595, %v3662, %v3664
        %v3666 = vrot.slane %v3462, 2
        %v3667 = vrot.slane %v3391, 2
        %v3668 = vsel %vm3595, %v3666, %v3667
        %v3669 = vrot.slane %v3479, 2
        %v3670 = vsel %vm3595, %v3667, %v3669
        %v3671 = vrot.slane %v3463, 2
        %v3672 = vrot.slane %v3394, 2
        %v3673 = vsel %vm3595, %v3671, %v3672
        %v3674 = vrot.slane %v3480, 2
        %v3675 = vsel %vm3595, %v3672, %v3674
        %v3710 = vrot.slane %v3464, 1
        %v3711 = vrot.slane %v3397, 1
        %v3712 = vsel %vm3514, %v3710, %v3711
        %v3713 = vrot.slane %v3481, 1
        %v3714 = vsel %vm3514, %v3711, %v3713
        %v3747 = vrot.slane %v3464, 2
        %v3748 = vrot.slane %v3397, 2
        %v3749 = vsel %vm3595, %v3747, %v3748
        %v3750 = vrot.slane %v3481, 2
        %v3751 = vsel %vm3595, %v3748, %v3750
        %3752 = vrot.lane.b32.xlu0 %v3517, 64
        %v3753 = vpop.permute.xlu0 %3752
        %3754 = vrot.lane.b32.xlu0 %v3519, 64
        %v3755 = vpop.permute.xlu0 %3754
        %3756 = vrot.lane.b32.xlu0 %v3522, 64
        %v3757 = vpop.permute.xlu0 %3756
        %3758 = vrot.lane.b32.xlu0 %v3524, 64
        %v3759 = vpop.permute.xlu0 %3758
        %3760 = vrot.lane.b32.xlu0 %v3527, 64
        %v3761 = vpop.permute.xlu0 %3760
        %3762 = vrot.lane.b32.xlu0 %v3529, 64
        %v3763 = vpop.permute.xlu0 %3762
        %3764 = vrot.lane.b32.xlu0 %v3532, 64
        %v3765 = vpop.permute.xlu0 %3764
        %3766 = vrot.lane.b32.xlu0 %v3534, 64
        %v3767 = vpop.permute.xlu0 %3766
        %3768 = vrot.lane.b32.xlu0 %v3537, 64
        %v3769 = vpop.permute.xlu0 %3768
        %3770 = vrot.lane.b32.xlu0 %v3539, 64
        %v3771 = vpop.permute.xlu0 %3770
        %3772 = vrot.lane.b32.xlu0 %v3542, 64
        %v3773 = vpop.permute.xlu0 %3772
        %3774 = vrot.lane.b32.xlu0 %v3544, 64
        %v3775 = vpop.permute.xlu0 %3774
        %3776 = vrot.lane.b32.xlu0 %v3547, 64
        %v3777 = vpop.permute.xlu0 %3776
        %3778 = vrot.lane.b32.xlu0 %v3549, 64
        %v3779 = vpop.permute.xlu0 %3778
        %3780 = vrot.lane.b32.xlu0 %v3552, 64
        %v3781 = vpop.permute.xlu0 %3780
        %3782 = vrot.lane.b32.xlu0 %v3554, 64
        %v3783 = vpop.permute.xlu0 %3782
        %3784 = vrot.lane.b32.xlu0 %v3557, 64
        %v3785 = vpop.permute.xlu0 %3784
        %3786 = vrot.lane.b32.xlu0 %v3559, 64
        %v3787 = vpop.permute.xlu0 %3786
        %3788 = vrot.lane.b32.xlu0 %v3562, 64
        %v3789 = vpop.permute.xlu0 %3788
        %3790 = vrot.lane.b32.xlu0 %v3564, 64
        %v3791 = vpop.permute.xlu0 %3790
        %3792 = vrot.lane.b32.xlu0 %v3567, 64
        %v3793 = vpop.permute.xlu0 %3792
        %3794 = vrot.lane.b32.xlu0 %v3569, 64
        %v3795 = vpop.permute.xlu0 %3794
        %3796 = vrot.lane.b32.xlu0 %v3572, 64
        %v3797 = vpop.permute.xlu0 %3796
        %3798 = vrot.lane.b32.xlu0 %v3574, 64
        %v3799 = vpop.permute.xlu0 %3798
        %3800 = vrot.lane.b32.xlu0 %v3577, 64
        %v3801 = vpop.permute.xlu0 %3800
        %3802 = vrot.lane.b32.xlu0 %v3579, 64
        %v3803 = vpop.permute.xlu0 %3802
        %3804 = vrot.lane.b32.xlu0 %v3582, 64
        %v3805 = vpop.permute.xlu0 %3804
        %3806 = vrot.lane.b32.xlu0 %v3584, 64
        %v3807 = vpop.permute.xlu0 %3806
        %3808 = vrot.lane.b32.xlu0 %v3587, 64
        %v3809 = vpop.permute.xlu0 %3808
        %3810 = vrot.lane.b32.xlu0 %v3589, 64
        %v3811 = vpop.permute.xlu0 %3810
        %3812 = vrot.lane.b32.xlu0 %v3592, 64
        %v3813 = vpop.permute.xlu0 %3812
        %3814 = vrot.lane.b32.xlu0 %v3594, 64
        %v3815 = vpop.permute.xlu0 %3814
        %3848 = vrot.lane.b32.xlu0 %v3449, 64
        %v3849 = vpop.permute.xlu0 %3848
        %3850 = vrot.lane.b32.xlu0 %v3352, 64
        %v3851 = vpop.permute.xlu0 %3850
        %3852 = vrot.lane.b32.xlu0 %v3450, 64
        %v3853 = vpop.permute.xlu0 %3852
        %3854 = vrot.lane.b32.xlu0 %v3355, 64
        %v3855 = vpop.permute.xlu0 %3854
        %3856 = vrot.lane.b32.xlu0 %v3451, 64
        %v3857 = vpop.permute.xlu0 %3856
        %3858 = vrot.lane.b32.xlu0 %v3358, 64
        %v3859 = vpop.permute.xlu0 %3858
        %3860 = vrot.lane.b32.xlu0 %v3452, 64
        %v3861 = vpop.permute.xlu0 %3860
        %3862 = vrot.lane.b32.xlu0 %v3361, 64
        %v3863 = vpop.permute.xlu0 %3862
        %3864 = vrot.lane.b32.xlu0 %v3453, 64
        %v3865 = vpop.permute.xlu0 %3864
        %3866 = vrot.lane.b32.xlu0 %v3364, 64
        %v3867 = vpop.permute.xlu0 %3866
        %3868 = vrot.lane.b32.xlu0 %v3454, 64
        %v3869 = vpop.permute.xlu0 %3868
        %3870 = vrot.lane.b32.xlu0 %v3367, 64
        %v3871 = vpop.permute.xlu0 %3870
        %3872 = vrot.lane.b32.xlu0 %v3455, 64
        %v3873 = vpop.permute.xlu0 %3872
        %3874 = vrot.lane.b32.xlu0 %v3370, 64
        %v3875 = vpop.permute.xlu0 %3874
        %3876 = vrot.lane.b32.xlu0 %v3456, 64
        %v3877 = vpop.permute.xlu0 %3876
        %3878 = vrot.lane.b32.xlu0 %v3373, 64
        %v3879 = vpop.permute.xlu0 %3878
        %3880 = vrot.lane.b32.xlu0 %v3457, 64
        %v3881 = vpop.permute.xlu0 %3880
        %3882 = vrot.lane.b32.xlu0 %v3376, 64
        %v3883 = vpop.permute.xlu0 %3882
        %3884 = vrot.lane.b32.xlu0 %v3458, 64
        %v3885 = vpop.permute.xlu0 %3884
        %3886 = vrot.lane.b32.xlu0 %v3379, 64
        %v3887 = vpop.permute.xlu0 %3886
        %3888 = vrot.lane.b32.xlu0 %v3459, 64
        %v3889 = vpop.permute.xlu0 %3888
        %3890 = vrot.lane.b32.xlu0 %v3382, 64
        %v3891 = vpop.permute.xlu0 %3890
        %3892 = vrot.lane.b32.xlu0 %v3460, 64
        %v3893 = vpop.permute.xlu0 %3892
        %3894 = vrot.lane.b32.xlu0 %v3385, 64
        %v3895 = vpop.permute.xlu0 %3894
        %3896 = vrot.lane.b32.xlu0 %v3461, 64
        %v3897 = vpop.permute.xlu0 %3896
        %3898 = vrot.lane.b32.xlu0 %v3388, 64
        %v3899 = vpop.permute.xlu0 %3898
        %3900 = vrot.lane.b32.xlu0 %v3462, 64
        %v3901 = vpop.permute.xlu0 %3900
        %3902 = vrot.lane.b32.xlu0 %v3391, 64
        %v3903 = vpop.permute.xlu0 %3902
        %3904 = vrot.lane.b32.xlu0 %v3463, 64
        %v3905 = vpop.permute.xlu0 %3904
        %3906 = vrot.lane.b32.xlu0 %v3394, 64
        %v3907 = vpop.permute.xlu0 %3906
        %3908 = vrot.lane.b32.xlu0 %v3464, 64
        %v3909 = vpop.permute.xlu0 %3908
        %3910 = vrot.lane.b32.xlu0 %v3397, 64
        %v3911 = vpop.permute.xlu0 %3910
        %3944 = vrot.lane.b32.xlu0 %v3603, 64
        %v3945 = vpop.permute.xlu0 %3944
        %3946 = vrot.lane.b32.xlu0 %v3605, 64
        %v3947 = vpop.permute.xlu0 %3946
        %3948 = vrot.lane.b32.xlu0 %v3608, 64
        %v3949 = vpop.permute.xlu0 %3948
        %3950 = vrot.lane.b32.xlu0 %v3610, 64
        %v3951 = vpop.permute.xlu0 %3950
        %3952 = vrot.lane.b32.xlu0 %v3613, 64
        %v3953 = vpop.permute.xlu0 %3952
        %3954 = vrot.lane.b32.xlu0 %v3615, 64
        %v3955 = vpop.permute.xlu0 %3954
        %3956 = vrot.lane.b32.xlu0 %v3618, 64
        %v3957 = vpop.permute.xlu0 %3956
        %3958 = vrot.lane.b32.xlu0 %v3620, 64
        %v3959 = vpop.permute.xlu0 %3958
        %3960 = vrot.lane.b32.xlu0 %v3623, 64
        %v3961 = vpop.permute.xlu0 %3960
        %3962 = vrot.lane.b32.xlu0 %v3625, 64
        %v3963 = vpop.permute.xlu0 %3962
        %3964 = vrot.lane.b32.xlu0 %v3628, 64
        %v3965 = vpop.permute.xlu0 %3964
        %3966 = vrot.lane.b32.xlu0 %v3630, 64
        %v3967 = vpop.permute.xlu0 %3966
        %3968 = vrot.lane.b32.xlu0 %v3633, 64
        %v3969 = vpop.permute.xlu0 %3968
        %3970 = vrot.lane.b32.xlu0 %v3635, 64
        %v3971 = vpop.permute.xlu0 %3970
        %3972 = vrot.lane.b32.xlu0 %v3638, 64
        %v3973 = vpop.permute.xlu0 %3972
        %3974 = vrot.lane.b32.xlu0 %v3640, 64
        %v3975 = vpop.permute.xlu0 %3974
        %3976 = vrot.lane.b32.xlu0 %v3643, 64
        %v3977 = vpop.permute.xlu0 %3976
        %3978 = vrot.lane.b32.xlu0 %v3645, 64
        %v3979 = vpop.permute.xlu0 %3978
        %3980 = vrot.lane.b32.xlu0 %v3648, 64
        %v3981 = vpop.permute.xlu0 %3980
        %3982 = vrot.lane.b32.xlu0 %v3650, 64
        %v3983 = vpop.permute.xlu0 %3982
        %3984 = vrot.lane.b32.xlu0 %v3653, 64
        %v3985 = vpop.permute.xlu0 %3984
        %3986 = vrot.lane.b32.xlu0 %v3655, 64
        %v3987 = vpop.permute.xlu0 %3986
        %3988 = vrot.lane.b32.xlu0 %v3658, 64
        %v3989 = vpop.permute.xlu0 %3988
        %3990 = vrot.lane.b32.xlu0 %v3660, 64
        %v3991 = vpop.permute.xlu0 %3990
        %3992 = vrot.lane.b32.xlu0 %v3663, 64
        %v3993 = vpop.permute.xlu0 %3992
        %3994 = vrot.lane.b32.xlu0 %v3665, 64
        %v3995 = vpop.permute.xlu0 %3994
        %3996 = vrot.lane.b32.xlu0 %v3668, 64
        %v3997 = vpop.permute.xlu0 %3996
        %3998 = vrot.lane.b32.xlu0 %v3670, 64
        %v3999 = vpop.permute.xlu0 %3998
        %4000 = vrot.lane.b32.xlu0 %v3673, 64
        %v4001 = vpop.permute.xlu0 %4000
        %4002 = vrot.lane.b32.xlu0 %v3675, 64
        %v4003 = vpop.permute.xlu0 %4002
        %4004 = vrot.lane.b32.xlu0 %v3749, 64
        %v4005 = vpop.permute.xlu0 %4004
        %4006 = vrot.lane.b32.xlu0 %v3751, 64
        %v4007 = vpop.permute.xlu0 %4006
        %4040 = vrot.lane.b32.xlu0 %v3712, 64
        %v4041 = vpop.permute.xlu0 %4040
        %4042 = vrot.lane.b32.xlu0 %v3714, 64
        %v4043 = vpop.permute.xlu0 %4042
        %v4046 = vsel %vm2883, %v3448, %v3753
        %v4047 = vsel %vm2883, %v3349, %v3755
        %v4048 = vsel %vm2883, %v3449, %v3757
        %v4049 = vsel %vm2883, %v3352, %v3759
        %v4050 = vsel %vm2883, %v3450, %v3761
        %v4051 = vsel %vm2883, %v3355, %v3763
        %v4052 = vsel %vm2883, %v3451, %v3765
        %v4053 = vsel %vm2883, %v3358, %v3767
        %v4054 = vsel %vm2883, %v3452, %v3769
        %v4055 = vsel %vm2883, %v3361, %v3771
        %v4056 = vsel %vm2883, %v3453, %v3773
        %v4057 = vsel %vm2883, %v3364, %v3775
        %v4058 = vsel %vm2883, %v3454, %v3777
        %v4059 = vsel %vm2883, %v3367, %v3779
        %v4060 = vsel %vm2883, %v3455, %v3781
        %v4061 = vsel %vm2883, %v3370, %v3783
        %v4062 = vsel %vm2883, %v3456, %v3785
        %v4063 = vsel %vm2883, %v3373, %v3787
        %v4064 = vsel %vm2883, %v3457, %v3789
        %v4065 = vsel %vm2883, %v3376, %v3791
        %v4066 = vsel %vm2883, %v3458, %v3793
        %v4067 = vsel %vm2883, %v3379, %v3795
        %v4068 = vsel %vm2883, %v3459, %v3797
        %v4069 = vsel %vm2883, %v3382, %v3799
        %v4070 = vsel %vm2883, %v3460, %v3801
        %v4071 = vsel %vm2883, %v3385, %v3803
        %v4072 = vsel %vm2883, %v3461, %v3805
        %v4073 = vsel %vm2883, %v3388, %v3807
        %v4074 = vsel %vm2883, %v3462, %v3809
        %v4075 = vsel %vm2883, %v3391, %v3811
        %v4076 = vsel %vm2883, %v3463, %v3813
        %v4077 = vsel %vm2883, %v3394, %v3815
        %v4078 = vsel %vm2883, %v3598, %v3849
        %v4079 = vsel %vm2883, %v3600, %v3851
        %v4080 = vsel %vm2883, %v3603, %v3853
        %v4081 = vsel %vm2883, %v3605, %v3855
        %v4082 = vsel %vm2883, %v3608, %v3857
        %v4083 = vsel %vm2883, %v3610, %v3859
        %v4084 = vsel %vm2883, %v3613, %v3861
        %v4085 = vsel %vm2883, %v3615, %v3863
        %v4086 = vsel %vm2883, %v3618, %v3865
        %v4087 = vsel %vm2883, %v3620, %v3867
        %v4088 = vsel %vm2883, %v3623, %v3869
        %v4089 = vsel %vm2883, %v3625, %v3871
        %v4090 = vsel %vm2883, %v3628, %v3873
        %v4091 = vsel %vm2883, %v3630, %v3875
        %v4092 = vsel %vm2883, %v3633, %v3877
        %v4093 = vsel %vm2883, %v3635, %v3879
        %v4094 = vsel %vm2883, %v3638, %v3881
        %v4095 = vsel %vm2883, %v3640, %v3883
        %v4096 = vsel %vm2883, %v3643, %v3885
        %v4097 = vsel %vm2883, %v3645, %v3887
        %v4098 = vsel %vm2883, %v3648, %v3889
        %v4099 = vsel %vm2883, %v3650, %v3891
        %v4100 = vsel %vm2883, %v3653, %v3893
        %v4101 = vsel %vm2883, %v3655, %v3895
        %v4102 = vsel %vm2883, %v3658, %v3897
        %v4103 = vsel %vm2883, %v3660, %v3899
        %v4104 = vsel %vm2883, %v3663, %v3901
        %v4105 = vsel %vm2883, %v3665, %v3903
        %v4106 = vsel %vm2883, %v3668, %v3905
        %v4107 = vsel %vm2883, %v3670, %v3907
        %v4108 = vsel %vm2883, %v3673, %v3909
        %v4109 = vsel %vm2883, %v3675, %v3911
        %v4110 = vsel %vm2883, %v3522, %v3945
        %v4111 = vsel %vm2883, %v3524, %v3947
        %v4112 = vsel %vm2883, %v3527, %v3949
        %v4113 = vsel %vm2883, %v3529, %v3951
        %v4114 = vsel %vm2883, %v3532, %v3953
        %v4115 = vsel %vm2883, %v3534, %v3955
        %v4116 = vsel %vm2883, %v3537, %v3957
        %v4117 = vsel %vm2883, %v3539, %v3959
        %v4118 = vsel %vm2883, %v3542, %v3961
        %v4119 = vsel %vm2883, %v3544, %v3963
        %v4120 = vsel %vm2883, %v3547, %v3965
        %v4121 = vsel %vm2883, %v3549, %v3967
        %v4122 = vsel %vm2883, %v3552, %v3969
        %v4123 = vsel %vm2883, %v3554, %v3971
        %v4124 = vsel %vm2883, %v3557, %v3973
        %v4125 = vsel %vm2883, %v3559, %v3975
        %v4126 = vsel %vm2883, %v3562, %v3977
        %v4127 = vsel %vm2883, %v3564, %v3979
        %v4128 = vsel %vm2883, %v3567, %v3981
        %v4129 = vsel %vm2883, %v3569, %v3983
        %v4130 = vsel %vm2883, %v3572, %v3985
        %v4131 = vsel %vm2883, %v3574, %v3987
        %v4132 = vsel %vm2883, %v3577, %v3989
        %v4133 = vsel %vm2883, %v3579, %v3991
        %v4134 = vsel %vm2883, %v3582, %v3993
        %v4135 = vsel %vm2883, %v3584, %v3995
        %v4136 = vsel %vm2883, %v3587, %v3997
        %v4137 = vsel %vm2883, %v3589, %v3999
        %v4138 = vsel %vm2883, %v3592, %v4001
        %v4139 = vsel %vm2883, %v3594, %v4003
        %v4140 = vsel %vm2883, %v3712, %v4005
        %v4141 = vsel %vm2883, %v3714, %v4007
        %v4142 = vsel %vm2883, %v3464, %v4041
        %v4143 = vsel %vm2883, %v3397, %v4043
        %v4144 = vld [vmem:[%s15] sm:$0xff]
        %v4145 = vld [vmem:[%s15 + $0x8] sm:$0xff]
        %v4146 = vld [vmem:[%s15 + $0x10] sm:$0xff]
        %v4147 = vld [vmem:[%s15 + $0x18] sm:$0xff]
        %v4148 = vld [vmem:[%s15 + $0x20] sm:$0xff]
        %v4149 = vld [vmem:[%s15 + $0x28] sm:$0xff]
        %v4150 = vld [vmem:[%s15 + $0x30] sm:$0xff]
        %v4151 = vld [vmem:[%s15 + $0x38] sm:$0xff]
        %v4152 = vld [vmem:[%s15 + $0x40] sm:$0xff]
        %v4153 = vld [vmem:[%s15 + $0x48] sm:$0xff]
        %v4154 = vld [vmem:[%s15 + $0x50] sm:$0xff]
        %v4155 = vld [vmem:[%s15 + $0x58] sm:$0xff]
        %v4156 = vld [vmem:[%s15 + $0x60] sm:$0xff]
        %v4157 = vld [vmem:[%s15 + $0x68] sm:$0xff]
        %v4158 = vld [vmem:[%s15 + $0x70] sm:$0xff]
        %v4159 = vld [vmem:[%s15 + $0x78] sm:$0xff]
        %v4160 = vld [vmem:[%s15 + $0x80] sm:$0xff]
        %v4161 = vld [vmem:[%s15 + $0x88] sm:$0xff]
        %v4162 = vld [vmem:[%s15 + $0x90] sm:$0xff]
        %v4163 = vld [vmem:[%s15 + $0x98] sm:$0xff]
        %v4164 = vld [vmem:[%s15 + $0xa0] sm:$0xff]
        %v4165 = vld [vmem:[%s15 + $0xa8] sm:$0xff]
        %v4166 = vld [vmem:[%s15 + $0xb0] sm:$0xff]
        %v4167 = vld [vmem:[%s15 + $0xb8] sm:$0xff]
        %v4168 = vld [vmem:[%s15 + $0xc0] sm:$0xff]
        %v4169 = vld [vmem:[%s15 + $0xc8] sm:$0xff]
        %v4170 = vld [vmem:[%s15 + $0xd0] sm:$0xff]
        %v4171 = vld [vmem:[%s15 + $0xd8] sm:$0xff]
        %v4172 = vld [vmem:[%s15 + $0xe0] sm:$0xff]
        %v4173 = vld [vmem:[%s15 + $0xe8] sm:$0xff]
        %v4174 = vld [vmem:[%s15 + $0xf0] sm:$0xff]
        %v4175 = vld [vmem:[%s15 + $0xf8] sm:$0xff]
        %v4176 = vld [vmem:[%s15 + $0x100] sm:$0xff]
        %v4177 = vld [vmem:[%s15 + $0x108] sm:$0xff]
        %v4178 = vld [vmem:[%s15 + $0x110] sm:$0xff]
        %v4179 = vld [vmem:[%s15 + $0x118] sm:$0xff]
        %v4180 = vld [vmem:[%s15 + $0x120] sm:$0xff]
        %v4181 = vld [vmem:[%s15 + $0x128] sm:$0xff]
        %v4182 = vld [vmem:[%s15 + $0x130] sm:$0xff]
        %v4183 = vld [vmem:[%s15 + $0x138] sm:$0xff]
        %v4184 = vld [vmem:[%s15 + $0x140] sm:$0xff]
        %v4185 = vld [vmem:[%s15 + $0x148] sm:$0xff]
        %v4186 = vld [vmem:[%s15 + $0x150] sm:$0xff]
        %v4187 = vld [vmem:[%s15 + $0x158] sm:$0xff]
        %v4188 = vld [vmem:[%s15 + $0x160] sm:$0xff]
        %v4189 = vld [vmem:[%s15 + $0x168] sm:$0xff]
        %v4190 = vld [vmem:[%s15 + $0x170] sm:$0xff]
        %v4191 = vld [vmem:[%s15 + $0x178] sm:$0xff]
        %v4192 = vld [vmem:[%s15 + $0x180] sm:$0xff]
        %v4193 = vld [vmem:[%s15 + $0x188] sm:$0xff]
        %v4194 = vld [vmem:[%s15 + $0x190] sm:$0xff]
        %v4195 = vld [vmem:[%s15 + $0x198] sm:$0xff]
        %v4196 = vld [vmem:[%s15 + $0x1a0] sm:$0xff]
        %v4197 = vld [vmem:[%s15 + $0x1a8] sm:$0xff]
        %v4198 = vld [vmem:[%s15 + $0x1b0] sm:$0xff]
        %v4199 = vld [vmem:[%s15 + $0x1b8] sm:$0xff]
        %v4200 = vld [vmem:[%s15 + $0x1c0] sm:$0xff]
        %v4201 = vld [vmem:[%s15 + $0x1c8] sm:$0xff]
        %v4202 = vld [vmem:[%s15 + $0x1d0] sm:$0xff]
        %v4203 = vld [vmem:[%s15 + $0x1d8] sm:$0xff]
        %v4204 = vld [vmem:[%s15 + $0x1e0] sm:$0xff]
        %v4205 = vld [vmem:[%s15 + $0x1e8] sm:$0xff]
        %v4206 = vld [vmem:[%s15 + $0x1f0] sm:$0xff]
        %v4207 = vld [vmem:[%s15 + $0x1f8] sm:$0xff]
        %v4208 = vld [vmem:[%s15 + $0x200] sm:$0xff]
        %v4209 = vld [vmem:[%s15 + $0x208] sm:$0xff]
        %v4210 = vld [vmem:[%s15 + $0x210] sm:$0xff]
        %v4211 = vld [vmem:[%s15 + $0x218] sm:$0xff]
        %v4212 = vld [vmem:[%s15 + $0x220] sm:$0xff]
        %v4213 = vld [vmem:[%s15 + $0x228] sm:$0xff]
        %v4214 = vld [vmem:[%s15 + $0x230] sm:$0xff]
        %v4215 = vld [vmem:[%s15 + $0x238] sm:$0xff]
        %v4216 = vsel %vm2883, %v3608, 0
        %v4218 = vsel %vm2883, %v3610, 0
        %v4220 = vsel %vm2883, %v3613, 0
        %v4222 = vsel %vm2883, %v3615, 0
        %v4224 = vsel %vm2883, %v3618, 0
        %v4226 = vsel %vm2883, %v3620, 0
        %v4228 = vsel %vm2883, %v3623, 0
        %v4230 = vsel %vm2883, %v3625, 0
        %v4232 = vsel %vm2883, %v3628, 0
        %v4234 = vsel %vm2883, %v3630, 0
        %v4236 = vsel %vm2883, %v3633, 0
        %v4238 = vsel %vm2883, %v3635, 0
        %v4240 = vsel %vm2883, %v3638, 0
        %v4242 = vsel %vm2883, %v3640, 0
        %v4244 = vsel %vm2883, %v3643, 0
        %v4246 = vsel %vm2883, %v3645, 0
        %v4248 = vsel %vm2883, %v3648, 0
        %v4250 = vsel %vm2883, %v3650, 0
        %v4252 = vsel %vm2883, %v3653, 0
        %v4254 = vsel %vm2883, %v3655, 0
        %v4256 = vsel %vm2883, %v3658, 0
        %v4258 = vsel %vm2883, %v3660, 0
        %v4260 = vsel %vm2883, %v3663, 0
        %v4262 = vsel %vm2883, %v3665, 0
        %v4264 = vsel %vm2883, %v3668, 0
        %v4266 = vsel %vm2883, %v3670, 0
        %v4268 = vsel %vm2883, %v3673, 0
        %v4270 = vsel %vm2883, %v3675, 0
        %v4272 = vsel %vm2883, %v3749, 0
        %v4274 = vsel %vm2883, %v3751, 0
        %v4276 = vsel %vm2883, %v3598, 0
        %v4278 = vsel %vm2883, %v3600, 0
        %4280 = vmatprep.subr.mxu0 0.0
        %4281 = vmatpush1.msra.mxu0 %v4159
        %4282 = vmatprep.subr.mxu0 0.0
        %4283 = vmatpush1.msra.mxu0 %v4158
        %4284 = vmatprep.subr.mxu0 0.0
        %4285 = vmatpush1.msra.mxu0 %v4157
        %4286 = vmatprep.subr.mxu0 0.0
        %4287 = vmatpush1.msra.mxu0 %v4156
        %4288 = vmatprep.subr.mxu0 0.0
        %4289 = vmatpush1.msra.mxu0 %v4155
        %4290 = vmatprep.subr.mxu0 0.0
        %4291 = vmatpush1.msra.mxu0 %v4154
        %4292 = vmatprep.subr.mxu0 0.0
        %4293 = vmatpush1.msra.mxu0 %v4153
        %4294 = vmatprep.subr.mxu0 0.0
        %4295 = vmatpush1.msra.mxu0 %v4152
        %4296 = vmatprep.subr.mxu0 0.0
        %4297 = vmatpush1.msra.mxu0 %v4151
        %4298 = vmatprep.subr.mxu0 0.0
        %4299 = vmatpush1.msra.mxu0 %v4150
        %4300 = vmatprep.subr.mxu0 0.0
        %4301 = vmatpush1.msra.mxu0 %v4149
        %4302 = vmatprep.subr.mxu0 0.0
        %4303 = vmatpush1.msra.mxu0 %v4148
        %4304 = vmatprep.subr.mxu0 0.0
        %4305 = vmatpush1.msra.mxu0 %v4147
        %4306 = vmatprep.subr.mxu0 0.0
        %4307 = vmatpush1.msra.mxu0 %v4146
        %4308 = vmatprep.subr.mxu0 0.0
        %4309 = vmatpush1.msra.mxu0 %v4145
        %4310 = vmatprep.subr.mxu0 0.0
        %4311 = vmatpush1.msra.mxu0 %v4144
        %4312 = vmatprep.subr.mxu0 0.0
        %4313 = vmatpush2.msra.mxu0 %v4175
        %4314 = vmatprep.subr.mxu0 0.0
        %4315 = vmatpush2.msra.mxu0 %v4174
        %4316 = vmatprep.subr.mxu0 0.0
        %4317 = vmatpush2.msra.mxu0 %v4173
        %4318 = vmatprep.subr.mxu0 0.0
        %4319 = vmatpush2.msra.mxu0 %v4172
        %4320 = vmatprep.subr.mxu0 0.0
        %4321 = vmatpush2.msra.mxu0 %v4171
        %4322 = vmatprep.subr.mxu0 0.0
        %4323 = vmatpush2.msra.mxu0 %v4170
        %4324 = vmatprep.subr.mxu0 0.0
        %4325 = vmatpush2.msra.mxu0 %v4169
        %4326 = vmatprep.subr.mxu0 0.0
        %4327 = vmatpush2.msra.mxu0 %v4168
        %4328 = vmatprep.subr.mxu0 0.0
        %4329 = vmatpush2.msra.mxu0 %v4167
        %4330 = vmatprep.subr.mxu0 0.0
        %4331 = vmatpush2.msra.mxu0 %v4166
        %4332 = vmatprep.subr.mxu0 0.0
        %4333 = vmatpush2.msra.mxu0 %v4165
        %4334 = vmatprep.subr.mxu0 0.0
        %4335 = vmatpush2.msra.mxu0 %v4164
        %4336 = vmatprep.subr.mxu0 0.0
        %4337 = vmatpush2.msra.mxu0 %v4163
        %4338 = vmatprep.subr.mxu0 0.0
        %4339 = vmatpush2.msra.mxu0 %v4162
        %4340 = vmatprep.subr.mxu0 0.0
        %4341 = vmatpush2.msra.mxu0 %v4161
        %4342 = vmatprep.subr.mxu0 0.0
        %4343 = vmatpush2.msra.mxu0 %v4160
        %4344 = vmatprep.mubr.f32.mxu0 %v4078
        %4345 = vmatmul.mubr.f32.gmra.mxu0 %v4046
        %v4346 = vpop.f32.mrf.mxu0
        %v4347 = vadd.f32 0.0, %v4346
        %v4348 = vpop.f32.mrf.mxu0
        %4349 = vmatprep.mubr.f32.mxu0 %v4079
        %4350 = vmatmul.mubr.f32.gmra.mxu0 %v4047
        %v4351 = vpop.f32.mrf.mxu0
        %v4352 = vadd.f32 0.0, %v4351
        %v4353 = vpop.f32.mrf.mxu0
        %4354 = vmatprep.mubr.f32.mxu0 %v4080
        %4355 = vmatmul.mubr.f32.gmra.mxu0 %v4048
        %v4356 = vpop.f32.mrf.mxu0
        %v4357 = vadd.f32 0.0, %v4356
        %v4358 = vpop.f32.mrf.mxu0
        %4359 = vmatprep.mubr.f32.mxu0 %v4081
        %4360 = vmatmul.mubr.f32.gmra.mxu0 %v4049
        %v4361 = vpop.f32.mrf.mxu0
        %v4362 = vadd.f32 0.0, %v4361
        %v4363 = vpop.f32.mrf.mxu0
        %4364 = vmatprep.mubr.f32.mxu0 %v4082
        %4365 = vmatmul.mubr.f32.gmra.mxu0 %v4050
        %v4366 = vpop.f32.mrf.mxu0
        %v4367 = vadd.f32 0.0, %v4366
        %v4368 = vpop.f32.mrf.mxu0
        %4369 = vmatprep.mubr.f32.mxu0 %v4083
        %4370 = vmatmul.mubr.f32.gmra.mxu0 %v4051
        %v4371 = vpop.f32.mrf.mxu0
        %v4372 = vadd.f32 0.0, %v4371
        %v4373 = vpop.f32.mrf.mxu0
        %4374 = vmatprep.mubr.f32.mxu0 %v4084
        %4375 = vmatmul.mubr.f32.gmra.mxu0 %v4052
        %v4376 = vpop.f32.mrf.mxu0
        %v4377 = vadd.f32 0.0, %v4376
        %v4378 = vpop.f32.mrf.mxu0
        %4379 = vmatprep.mubr.f32.mxu0 %v4085
        %4380 = vmatmul.mubr.f32.gmra.mxu0 %v4053
        %v4381 = vpop.f32.mrf.mxu0
        %v4382 = vadd.f32 0.0, %v4381
        %v4383 = vpop.f32.mrf.mxu0
        %4384 = vmatprep.mubr.f32.mxu0 %v4086
        %4385 = vmatmul.mubr.f32.gmra.mxu0 %v4054
        %v4386 = vpop.f32.mrf.mxu0
        %v4387 = vadd.f32 0.0, %v4386
        %v4388 = vpop.f32.mrf.mxu0
        %4389 = vmatprep.mubr.f32.mxu0 %v4087
        %4390 = vmatmul.mubr.f32.gmra.mxu0 %v4055
        %v4391 = vpop.f32.mrf.mxu0
        %v4392 = vadd.f32 0.0, %v4391
        %v4393 = vpop.f32.mrf.mxu0
        %4394 = vmatprep.mubr.f32.mxu0 %v4088
        %4395 = vmatmul.mubr.f32.gmra.mxu0 %v4056
        %v4396 = vpop.f32.mrf.mxu0
        %v4397 = vadd.f32 0.0, %v4396
        %v4398 = vpop.f32.mrf.mxu0
        %4399 = vmatprep.mubr.f32.mxu0 %v4089
        %4400 = vmatmul.mubr.f32.gmra.mxu0 %v4057
        %v4401 = vpop.f32.mrf.mxu0
        %v4402 = vadd.f32 0.0, %v4401
        %v4403 = vpop.f32.mrf.mxu0
        %4404 = vmatprep.mubr.f32.mxu0 %v4090
        %4405 = vmatmul.mubr.f32.gmra.mxu0 %v4058
        %v4406 = vpop.f32.mrf.mxu0
        %v4407 = vadd.f32 0.0, %v4406
        %v4408 = vpop.f32.mrf.mxu0
        %4409 = vmatprep.mubr.f32.mxu0 %v4091
        %4410 = vmatmul.mubr.f32.gmra.mxu0 %v4059
        %v4411 = vpop.f32.mrf.mxu0
        %v4412 = vadd.f32 0.0, %v4411
        %v4413 = vpop.f32.mrf.mxu0
        %4414 = vmatprep.mubr.f32.mxu0 %v4092
        %4415 = vmatmul.mubr.f32.gmra.mxu0 %v4060
        %v4416 = vpop.f32.mrf.mxu0
        %v4417 = vadd.f32 0.0, %v4416
        %v4418 = vpop.f32.mrf.mxu0
        %4419 = vmatprep.mubr.f32.mxu0 %v4093
        %4420 = vmatmul.mubr.f32.gmra.mxu0 %v4061
        %v4421 = vpop.f32.mrf.mxu0
        %v4422 = vadd.f32 0.0, %v4421
        %v4423 = vpop.f32.mrf.mxu0
        %4424 = vmatprep.mubr.f32.mxu0 %v4094
        %4425 = vmatmul.mubr.f32.gmra.mxu0 %v4062
        %v4426 = vpop.f32.mrf.mxu0
        %v4427 = vadd.f32 0.0, %v4426
        %v4428 = vpop.f32.mrf.mxu0
        %4429 = vmatprep.mubr.f32.mxu0 %v4095
        %4430 = vmatmul.mubr.f32.gmra.mxu0 %v4063
        %v4431 = vpop.f32.mrf.mxu0
        %v4432 = vadd.f32 0.0, %v4431
        %v4433 = vpop.f32.mrf.mxu0
        %4434 = vmatprep.mubr.f32.mxu0 %v4096
        %4435 = vmatmul.mubr.f32.gmra.mxu0 %v4064
        %v4436 = vpop.f32.mrf.mxu0
        %v4437 = vadd.f32 0.0, %v4436
        %v4438 = vpop.f32.mrf.mxu0
        %4439 = vmatprep.mubr.f32.mxu0 %v4097
        %4440 = vmatmul.mubr.f32.gmra.mxu0 %v4065
        %v4441 = vpop.f32.mrf.mxu0
        %v4442 = vadd.f32 0.0, %v4441
        %v4443 = vpop.f32.mrf.mxu0
        %4444 = vmatprep.mubr.f32.mxu0 %v4098
        %4445 = vmatmul.mubr.f32.gmra.mxu0 %v4066
        %v4446 = vpop.f32.mrf.mxu0
        %v4447 = vadd.f32 0.0, %v4446
        %v4448 = vpop.f32.mrf.mxu0
        %4449 = vmatprep.mubr.f32.mxu0 %v4099
        %4450 = vmatmul.mubr.f32.gmra.mxu0 %v4067
        %v4451 = vpop.f32.mrf.mxu0
        %v4452 = vadd.f32 0.0, %v4451
        %v4453 = vpop.f32.mrf.mxu0
        %4454 = vmatprep.mubr.f32.mxu0 %v4100
        %4455 = vmatmul.mubr.f32.gmra.mxu0 %v4068
        %v4456 = vpop.f32.mrf.mxu0
        %v4457 = vadd.f32 0.0, %v4456
        %v4458 = vpop.f32.mrf.mxu0
        %4459 = vmatprep.mubr.f32.mxu0 %v4101
        %4460 = vmatmul.mubr.f32.gmra.mxu0 %v4069
        %v4461 = vpop.f32.mrf.mxu0
        %v4462 = vadd.f32 0.0, %v4461
        %v4463 = vpop.f32.mrf.mxu0
        %4464 = vmatprep.mubr.f32.mxu0 %v4102
        %4465 = vmatmul.mubr.f32.gmra.mxu0 %v4070
        %v4466 = vpop.f32.mrf.mxu0
        %v4467 = vadd.f32 0.0, %v4466
        %v4468 = vpop.f32.mrf.mxu0
        %4469 = vmatprep.mubr.f32.mxu0 %v4103
        %4470 = vmatmul.mubr.f32.gmra.mxu0 %v4071
        %v4471 = vpop.f32.mrf.mxu0
        %v4472 = vadd.f32 0.0, %v4471
        %v4473 = vpop.f32.mrf.mxu0
        %4474 = vmatprep.mubr.f32.mxu0 %v4104
        %4475 = vmatmul.mubr.f32.gmra.mxu0 %v4072
        %v4476 = vpop.f32.mrf.mxu0
        %v4477 = vadd.f32 0.0, %v4476
        %v4478 = vpop.f32.mrf.mxu0
        %4479 = vmatprep.mubr.f32.mxu0 %v4105
        %4480 = vmatmul.mubr.f32.gmra.mxu0 %v4073
        %v4481 = vpop.f32.mrf.mxu0
        %v4482 = vadd.f32 0.0, %v4481
        %v4483 = vpop.f32.mrf.mxu0
        %4484 = vmatprep.mubr.f32.mxu0 %v4106
        %4485 = vmatmul.mubr.f32.gmra.mxu0 %v4074
        %v4486 = vpop.f32.mrf.mxu0
        %v4487 = vadd.f32 0.0, %v4486
        %v4488 = vpop.f32.mrf.mxu0
        %4489 = vmatprep.mubr.f32.mxu0 %v4107
        %4490 = vmatmul.mubr.f32.gmra.mxu0 %v4075
        %v4491 = vpop.f32.mrf.mxu0
        %v4492 = vadd.f32 0.0, %v4491
        %v4493 = vpop.f32.mrf.mxu0
        %4494 = vmatprep.mubr.f32.mxu0 %v4108
        %4495 = vmatmul.mubr.f32.gmra.mxu0 %v4076
        %v4496 = vpop.f32.mrf.mxu0
        %v4497 = vadd.f32 0.0, %v4496
        %v4498 = vpop.f32.mrf.mxu0
        %4499 = vmatprep.mubr.f32.mxu0 %v4109
        %4500 = vmatmul.mubr.f32.gmra.mxu0 %v4077
        %v4501 = vpop.f32.mrf.mxu0
        %v4502 = vadd.f32 0.0, %v4501
        %v4503 = vpop.f32.mrf.mxu0
        %4504 = vdwg.mxu0
        %4505 = vmatprep.subr.mxu0 0.0
        %4506 = vmatpush1.msra.mxu0 %v4191
        %4507 = vmatprep.subr.mxu0 0.0
        %4508 = vmatpush1.msra.mxu0 %v4190
        %4509 = vmatprep.subr.mxu0 0.0
        %4510 = vmatpush1.msra.mxu0 %v4189
        %4511 = vmatprep.subr.mxu0 0.0
        %4512 = vmatpush1.msra.mxu0 %v4188
        %4513 = vmatprep.subr.mxu0 0.0
        %4514 = vmatpush1.msra.mxu0 %v4187
        %4515 = vmatprep.subr.mxu0 0.0
        %4516 = vmatpush1.msra.mxu0 %v4186
        %4517 = vmatprep.subr.mxu0 0.0
        %4518 = vmatpush1.msra.mxu0 %v4185
        %4519 = vmatprep.subr.mxu0 0.0
        %4520 = vmatpush1.msra.mxu0 %v4184
        %4521 = vmatprep.subr.mxu0 0.0
        %4522 = vmatpush1.msra.mxu0 %v4183
        %4523 = vmatprep.subr.mxu0 0.0
        %4524 = vmatpush1.msra.mxu0 %v4182
        %4525 = vmatprep.subr.mxu0 0.0
        %4526 = vmatpush1.msra.mxu0 %v4181
        %4527 = vmatprep.subr.mxu0 0.0
        %4528 = vmatpush1.msra.mxu0 %v4180
        %4529 = vmatprep.subr.mxu0 0.0
        %4530 = vmatpush1.msra.mxu0 %v4179
        %4531 = vmatprep.subr.mxu0 0.0
        %4532 = vmatpush1.msra.mxu0 %v4178
        %4533 = vmatprep.subr.mxu0 0.0
        %4534 = vmatpush1.msra.mxu0 %v4177
        %4535 = vmatprep.subr.mxu0 0.0
        %4536 = vmatpush1.msra.mxu0 %v4176
        %4537 = vmatprep.subr.mxu0 0.0
        %4538 = vmatpush2.msra.mxu0 %v4207
        %4539 = vmatprep.subr.mxu0 0.0
        %4540 = vmatpush2.msra.mxu0 %v4206
        %4541 = vmatprep.subr.mxu0 0.0
        %4542 = vmatpush2.msra.mxu0 %v4205
        %4543 = vmatprep.subr.mxu0 0.0
        %4544 = vmatpush2.msra.mxu0 %v4204
        %4545 = vmatprep.subr.mxu0 0.0
        %4546 = vmatpush2.msra.mxu0 %v4203
        %4547 = vmatprep.subr.mxu0 0.0
        %4548 = vmatpush2.msra.mxu0 %v4202
        %4549 = vmatprep.subr.mxu0 0.0
        %4550 = vmatpush2.msra.mxu0 %v4201
        %4551 = vmatprep.subr.mxu0 0.0
        %4552 = vmatpush2.msra.mxu0 %v4200
        %4553 = vmatprep.subr.mxu0 0.0
        %4554 = vmatpush2.msra.mxu0 %v4199
        %4555 = vmatprep.subr.mxu0 0.0
        %4556 = vmatpush2.msra.mxu0 %v4198
        %4557 = vmatprep.subr.mxu0 0.0
        %4558 = vmatpush2.msra.mxu0 %v4197
        %4559 = vmatprep.subr.mxu0 0.0
        %4560 = vmatpush2.msra.mxu0 %v4196
        %4561 = vmatprep.subr.mxu0 0.0
        %4562 = vmatpush2.msra.mxu0 %v4195
        %4563 = vmatprep.subr.mxu0 0.0
        %4564 = vmatpush2.msra.mxu0 %v4194
        %4565 = vmatprep.subr.mxu0 0.0
        %4566 = vmatpush2.msra.mxu0 %v4193
        %4567 = vmatprep.subr.mxu0 0.0
        %4568 = vmatpush2.msra.mxu0 %v4192
        %4569 = vmatprep.mubr.f32.mxu0 %v4050
        %4570 = vmatmul.mubr.f32.gmra.mxu0 %v4110
        %v4571 = vpop.f32.mrf.mxu0
        %v4572 = vadd.f32 %v4347, %v4571
        %v4573 = vpop.f32.mrf.mxu0
        %4574 = vmatprep.mubr.f32.mxu0 %v4051
        %4575 = vmatmul.mubr.f32.gmra.mxu0 %v4111
        %v4576 = vpop.f32.mrf.mxu0
        %v4577 = vadd.f32 %v4352, %v4576
        %v4578 = vpop.f32.mrf.mxu0
        %4579 = vmatprep.mubr.f32.mxu0 %v4052
        %4580 = vmatmul.mubr.f32.gmra.mxu0 %v4112
        %v4581 = vpop.f32.mrf.mxu0
        %v4582 = vadd.f32 %v4357, %v4581
        %v4583 = vpop.f32.mrf.mxu0
        %4584 = vmatprep.mubr.f32.mxu0 %v4053
        %4585 = vmatmul.mubr.f32.gmra.mxu0 %v4113
        %v4586 = vpop.f32.mrf.mxu0
        %v4587 = vadd.f32 %v4362, %v4586
        %v4588 = vpop.f32.mrf.mxu0
        %4589 = vmatprep.mubr.f32.mxu0 %v4054
        %4590 = vmatmul.mubr.f32.gmra.mxu0 %v4114
        %v4591 = vpop.f32.mrf.mxu0
        %v4592 = vadd.f32 %v4367, %v4591
        %v4593 = vpop.f32.mrf.mxu0
        %4594 = vmatprep.mubr.f32.mxu0 %v4055
        %4595 = vmatmul.mubr.f32.gmra.mxu0 %v4115
        %v4596 = vpop.f32.mrf.mxu0
        %v4597 = vadd.f32 %v4372, %v4596
        %v4598 = vpop.f32.mrf.mxu0
        %4599 = vmatprep.mubr.f32.mxu0 %v4056
        %4600 = vmatmul.mubr.f32.gmra.mxu0 %v4116
        %v4601 = vpop.f32.mrf.mxu0
        %v4602 = vadd.f32 %v4377, %v4601
        %v4603 = vpop.f32.mrf.mxu0
        %4604 = vmatprep.mubr.f32.mxu0 %v4057
        %4605 = vmatmul.mubr.f32.gmra.mxu0 %v4117
        %v4606 = vpop.f32.mrf.mxu0
        %v4607 = vadd.f32 %v4382, %v4606
        %v4608 = vpop.f32.mrf.mxu0
        %4609 = vmatprep.mubr.f32.mxu0 %v4058
        %4610 = vmatmul.mubr.f32.gmra.mxu0 %v4118
        %v4611 = vpop.f32.mrf.mxu0
        %v4612 = vadd.f32 %v4387, %v4611
        %v4613 = vpop.f32.mrf.mxu0
        %4614 = vmatprep.mubr.f32.mxu0 %v4059
        %4615 = vmatmul.mubr.f32.gmra.mxu0 %v4119
        %v4616 = vpop.f32.mrf.mxu0
        %v4617 = vadd.f32 %v4392, %v4616
        %v4618 = vpop.f32.mrf.mxu0
        %4619 = vmatprep.mubr.f32.mxu0 %v4060
        %4620 = vmatmul.mubr.f32.gmra.mxu0 %v4120
        %v4621 = vpop.f32.mrf.mxu0
        %v4622 = vadd.f32 %v4397, %v4621
        %v4623 = vpop.f32.mrf.mxu0
        %4624 = vmatprep.mubr.f32.mxu0 %v4061
        %4625 = vmatmul.mubr.f32.gmra.mxu0 %v4121
        %v4626 = vpop.f32.mrf.mxu0
        %v4627 = vadd.f32 %v4402, %v4626
        %v4628 = vpop.f32.mrf.mxu0
        %4629 = vmatprep.mubr.f32.mxu0 %v4062
        %4630 = vmatmul.mubr.f32.gmra.mxu0 %v4122
        %v4631 = vpop.f32.mrf.mxu0
        %v4632 = vadd.f32 %v4407, %v4631
        %v4633 = vpop.f32.mrf.mxu0
        %4634 = vmatprep.mubr.f32.mxu0 %v4063
        %4635 = vmatmul.mubr.f32.gmra.mxu0 %v4123
        %v4636 = vpop.f32.mrf.mxu0
        %v4637 = vadd.f32 %v4412, %v4636
        %v4638 = vpop.f32.mrf.mxu0
        %4639 = vmatprep.mubr.f32.mxu0 %v4064
        %4640 = vmatmul.mubr.f32.gmra.mxu0 %v4124
        %v4641 = vpop.f32.mrf.mxu0
        %v4642 = vadd.f32 %v4417, %v4641
        %v4643 = vpop.f32.mrf.mxu0
        %4644 = vmatprep.mubr.f32.mxu0 %v4065
        %4645 = vmatmul.mubr.f32.gmra.mxu0 %v4125
        %v4646 = vpop.f32.mrf.mxu0
        %v4647 = vadd.f32 %v4422, %v4646
        %v4648 = vpop.f32.mrf.mxu0
        %4649 = vmatprep.mubr.f32.mxu0 %v4066
        %4650 = vmatmul.mubr.f32.gmra.mxu0 %v4126
        %v4651 = vpop.f32.mrf.mxu0
        %v4652 = vadd.f32 %v4427, %v4651
        %v4653 = vpop.f32.mrf.mxu0
        %4654 = vmatprep.mubr.f32.mxu0 %v4067
        %4655 = vmatmul.mubr.f32.gmra.mxu0 %v4127
        %v4656 = vpop.f32.mrf.mxu0
        %v4657 = vadd.f32 %v4432, %v4656
        %v4658 = vpop.f32.mrf.mxu0
        %4659 = vmatprep.mubr.f32.mxu0 %v4068
        %4660 = vmatmul.mubr.f32.gmra.mxu0 %v4128
        %v4661 = vpop.f32.mrf.mxu0
        %v4662 = vadd.f32 %v4437, %v4661
        %v4663 = vpop.f32.mrf.mxu0
        %4664 = vmatprep.mubr.f32.mxu0 %v4069
        %4665 = vmatmul.mubr.f32.gmra.mxu0 %v4129
        %v4666 = vpop.f32.mrf.mxu0
        %v4667 = vadd.f32 %v4442, %v4666
        %v4668 = vpop.f32.mrf.mxu0
        %4669 = vmatprep.mubr.f32.mxu0 %v4070
        %4670 = vmatmul.mubr.f32.gmra.mxu0 %v4130
        %v4671 = vpop.f32.mrf.mxu0
        %v4672 = vadd.f32 %v4447, %v4671
        %v4673 = vpop.f32.mrf.mxu0
        %4674 = vmatprep.mubr.f32.mxu0 %v4071
        %4675 = vmatmul.mubr.f32.gmra.mxu0 %v4131
        %v4676 = vpop.f32.mrf.mxu0
        %v4677 = vadd.f32 %v4452, %v4676
        %v4678 = vpop.f32.mrf.mxu0
        %4679 = vmatprep.mubr.f32.mxu0 %v4072
        %4680 = vmatmul.mubr.f32.gmra.mxu0 %v4132
        %v4681 = vpop.f32.mrf.mxu0
        %v4682 = vadd.f32 %v4457, %v4681
        %v4683 = vpop.f32.mrf.mxu0
        %4684 = vmatprep.mubr.f32.mxu0 %v4073
        %4685 = vmatmul.mubr.f32.gmra.mxu0 %v4133
        %v4686 = vpop.f32.mrf.mxu0
        %v4687 = vadd.f32 %v4462, %v4686
        %v4688 = vpop.f32.mrf.mxu0
        %4689 = vmatprep.mubr.f32.mxu0 %v4074
        %4690 = vmatmul.mubr.f32.gmra.mxu0 %v4134
        %v4691 = vpop.f32.mrf.mxu0
        %v4692 = vadd.f32 %v4467, %v4691
        %v4693 = vpop.f32.mrf.mxu0
        %4694 = vmatprep.mubr.f32.mxu0 %v4075
        %4695 = vmatmul.mubr.f32.gmra.mxu0 %v4135
        %v4696 = vpop.f32.mrf.mxu0
        %v4697 = vadd.f32 %v4472, %v4696
        %v4698 = vpop.f32.mrf.mxu0
        %4699 = vmatprep.mubr.f32.mxu0 %v4076
        %4700 = vmatmul.mubr.f32.gmra.mxu0 %v4136
        %v4701 = vpop.f32.mrf.mxu0
        %v4702 = vadd.f32 %v4477, %v4701
        %v4703 = vpop.f32.mrf.mxu0
        %4704 = vmatprep.mubr.f32.mxu0 %v4077
        %4705 = vmatmul.mubr.f32.gmra.mxu0 %v4137
        %v4706 = vpop.f32.mrf.mxu0
        %v4707 = vadd.f32 %v4482, %v4706
        %v4708 = vpop.f32.mrf.mxu0
        %4709 = vmatprep.mubr.f32.mxu0 %v4142
        %4710 = vmatmul.mubr.f32.gmra.mxu0 %v4138
        %v4711 = vpop.f32.mrf.mxu0
        %v4712 = vadd.f32 %v4487, %v4711
        %v4713 = vpop.f32.mrf.mxu0
        %4714 = vmatprep.mubr.f32.mxu0 %v4143
        %4715 = vmatmul.mubr.f32.gmra.mxu0 %v4139
        %v4716 = vpop.f32.mrf.mxu0
        %v4717 = vadd.f32 %v4492, %v4716
        %v4718 = vpop.f32.mrf.mxu0
        %4719 = vmatprep.mubr.f32.mxu0 %v4046
        %4720 = vmatmul.mubr.f32.gmra.mxu0 %v4140
        %v4721 = vpop.f32.mrf.mxu0
        %v4722 = vadd.f32 %v4497, %v4721
        %v4723 = vpop.f32.mrf.mxu0
        %4724 = vmatprep.mubr.f32.mxu0 %v4047
        %4725 = vmatmul.mubr.f32.gmra.mxu0 %v4141
        %v4726 = vpop.f32.mrf.mxu0
        %v4727 = vadd.f32 %v4502, %v4726
        %v4728 = vpop.f32.mrf.mxu0
        %4729 = vdwg.mxu0
        %4730 = vmatprep.subr.mxu0 0.0
        %4731 = vmatpush1.msra.mxu0 0.0
        %4732 = vmatprep.subr.mxu0 0.0
        %4733 = vmatpush1.msra.mxu0 0.0
        %4734 = vmatprep.subr.mxu0 0.0
        %4735 = vmatpush1.msra.mxu0 0.0
        %4736 = vmatprep.subr.mxu0 0.0
        %4737 = vmatpush1.msra.mxu0 0.0
        %4738 = vmatprep.subr.mxu0 0.0
        %4739 = vmatpush1.msra.mxu0 0.0
        %4740 = vmatprep.subr.mxu0 0.0
        %4741 = vmatpush1.msra.mxu0 0.0
        %4742 = vmatprep.subr.mxu0 0.0
        %4743 = vmatpush1.msra.mxu0 0.0
        %4744 = vmatprep.subr.mxu0 0.0
        %4745 = vmatpush1.msra.mxu0 0.0
        %4746 = vmatprep.subr.mxu0 0.0
        %4747 = vmatpush1.msra.mxu0 %v4215
        %4748 = vmatprep.subr.mxu0 0.0
        %4749 = vmatpush1.msra.mxu0 %v4214
        %4750 = vmatprep.subr.mxu0 0.0
        %4751 = vmatpush1.msra.mxu0 %v4213
        %4752 = vmatprep.subr.mxu0 0.0
        %4753 = vmatpush1.msra.mxu0 %v4212
        %4754 = vmatprep.subr.mxu0 0.0
        %4755 = vmatpush1.msra.mxu0 %v4211
        %4756 = vmatprep.subr.mxu0 0.0
        %4757 = vmatpush1.msra.mxu0 %v4210
        %4758 = vmatprep.subr.mxu0 0.0
        %4759 = vmatpush1.msra.mxu0 %v4209
        %4760 = vmatprep.subr.mxu0 0.0
        %4761 = vmatpush1.msra.mxu0 %v4208
        %4762 = vmatprep.subr.mxu0 0.0
        %4763 = vmatpush2.msra.mxu0 0.0
        %4764 = vmatprep.subr.mxu0 0.0
        %4765 = vmatpush2.msra.mxu0 0.0
        %4766 = vmatprep.subr.mxu0 0.0
        %4767 = vmatpush2.msra.mxu0 0.0
        %4768 = vmatprep.subr.mxu0 0.0
        %4769 = vmatpush2.msra.mxu0 0.0
        %4770 = vmatprep.subr.mxu0 0.0
        %4771 = vmatpush2.msra.mxu0 0.0
        %4772 = vmatprep.subr.mxu0 0.0
        %4773 = vmatpush2.msra.mxu0 0.0
        %4774 = vmatprep.subr.mxu0 0.0
        %4775 = vmatpush2.msra.mxu0 0.0
        %4776 = vmatprep.subr.mxu0 0.0
        %4777 = vmatpush2.msra.mxu0 0.0
        %4778 = vmatprep.subr.mxu0 0.0
        %4779 = vmatpush2.msra.mxu0 0.0
        %4780 = vmatprep.subr.mxu0 0.0
        %4781 = vmatpush2.msra.mxu0 0.0
        %4782 = vmatprep.subr.mxu0 0.0
        %4783 = vmatpush2.msra.mxu0 0.0
        %4784 = vmatprep.subr.mxu0 0.0
        %4785 = vmatpush2.msra.mxu0 0.0
        %4786 = vmatprep.subr.mxu0 0.0
        %4787 = vmatpush2.msra.mxu0 0.0
        %4788 = vmatprep.subr.mxu0 0.0
        %4789 = vmatpush2.msra.mxu0 0.0
        %4790 = vmatprep.subr.mxu0 0.0
        %4791 = vmatpush2.msra.mxu0 0.0
        %4792 = vmatprep.subr.mxu0 0.0
        %4793 = vmatpush2.msra.mxu0 0.0
        %4794 = vmatprep.mubr.f32.mxu0 0.0
        %4795 = vmatmul.mubr.f32.gmra.mxu0 %v4216
        %v4796 = vpop.f32.mrf.mxu0
        %v4797 = vadd.f32 %v4572, %v4796
        %v4798 = vpop.f32.mrf.mxu0
        %4799 = vmatprep.mubr.f32.mxu0 0.0
        %4800 = vmatmul.mubr.f32.gmra.mxu0 %v4218
        %v4801 = vpop.f32.mrf.mxu0
        %v4802 = vadd.f32 %v4577, %v4801
        %v4803 = vpop.f32.mrf.mxu0
        %4804 = vmatprep.mubr.f32.mxu0 0.0
        %4805 = vmatmul.mubr.f32.gmra.mxu0 %v4220
        %v4806 = vpop.f32.mrf.mxu0
        %v4807 = vadd.f32 %v4582, %v4806
        %v4808 = vpop.f32.mrf.mxu0
        %4809 = vmatprep.mubr.f32.mxu0 0.0
        %4810 = vmatmul.mubr.f32.gmra.mxu0 %v4222
        %v4811 = vpop.f32.mrf.mxu0
        %v4812 = vadd.f32 %v4587, %v4811
        %v4813 = vpop.f32.mrf.mxu0
        %4814 = vmatprep.mubr.f32.mxu0 0.0
        %4815 = vmatmul.mubr.f32.gmra.mxu0 %v4224
        %v4816 = vpop.f32.mrf.mxu0
        %v4817 = vadd.f32 %v4592, %v4816
        %v4818 = vpop.f32.mrf.mxu0
        %4819 = vmatprep.mubr.f32.mxu0 0.0
        %4820 = vmatmul.mubr.f32.gmra.mxu0 %v4226
        %v4821 = vpop.f32.mrf.mxu0
        %v4822 = vadd.f32 %v4597, %v4821
        %v4823 = vpop.f32.mrf.mxu0
        %4824 = vmatprep.mubr.f32.mxu0 0.0
        %4825 = vmatmul.mubr.f32.gmra.mxu0 %v4228
        %v4826 = vpop.f32.mrf.mxu0
        %v4827 = vadd.f32 %v4602, %v4826
        %v4828 = vpop.f32.mrf.mxu0
        %4829 = vmatprep.mubr.f32.mxu0 0.0
        %4830 = vmatmul.mubr.f32.gmra.mxu0 %v4230
        %v4831 = vpop.f32.mrf.mxu0
        %v4832 = vadd.f32 %v4607, %v4831
        %v4833 = vpop.f32.mrf.mxu0
        %4834 = vmatprep.mubr.f32.mxu0 0.0
        %4835 = vmatmul.mubr.f32.gmra.mxu0 %v4232
        %v4836 = vpop.f32.mrf.mxu0
        %v4837 = vadd.f32 %v4612, %v4836
        %v4838 = vpop.f32.mrf.mxu0
        %4839 = vmatprep.mubr.f32.mxu0 0.0
        %4840 = vmatmul.mubr.f32.gmra.mxu0 %v4234
        %v4841 = vpop.f32.mrf.mxu0
        %v4842 = vadd.f32 %v4617, %v4841
        %v4843 = vpop.f32.mrf.mxu0
        %4844 = vmatprep.mubr.f32.mxu0 0.0
        %4845 = vmatmul.mubr.f32.gmra.mxu0 %v4236
        %v4846 = vpop.f32.mrf.mxu0
        %v4847 = vadd.f32 %v4622, %v4846
        %v4848 = vpop.f32.mrf.mxu0
        %4849 = vmatprep.mubr.f32.mxu0 0.0
        %4850 = vmatmul.mubr.f32.gmra.mxu0 %v4238
        %v4851 = vpop.f32.mrf.mxu0
        %v4852 = vadd.f32 %v4627, %v4851
        %v4853 = vpop.f32.mrf.mxu0
        %4854 = vmatprep.mubr.f32.mxu0 0.0
        %4855 = vmatmul.mubr.f32.gmra.mxu0 %v4240
        %v4856 = vpop.f32.mrf.mxu0
        %v4857 = vadd.f32 %v4632, %v4856
        %v4858 = vpop.f32.mrf.mxu0
        %4859 = vmatprep.mubr.f32.mxu0 0.0
        %4860 = vmatmul.mubr.f32.gmra.mxu0 %v4242
        %v4861 = vpop.f32.mrf.mxu0
        %v4862 = vadd.f32 %v4637, %v4861
        %v4863 = vpop.f32.mrf.mxu0
        %4864 = vmatprep.mubr.f32.mxu0 0.0
        %4865 = vmatmul.mubr.f32.gmra.mxu0 %v4244
        %v4866 = vpop.f32.mrf.mxu0
        %v4867 = vadd.f32 %v4642, %v4866
        %v4868 = vpop.f32.mrf.mxu0
        %4869 = vmatprep.mubr.f32.mxu0 0.0
        %4870 = vmatmul.mubr.f32.gmra.mxu0 %v4246
        %v4871 = vpop.f32.mrf.mxu0
        %v4872 = vadd.f32 %v4647, %v4871
        %v4873 = vpop.f32.mrf.mxu0
        %4874 = vmatprep.mubr.f32.mxu0 0.0
        %4875 = vmatmul.mubr.f32.gmra.mxu0 %v4248
        %v4876 = vpop.f32.mrf.mxu0
        %v4877 = vadd.f32 %v4652, %v4876
        %v4878 = vpop.f32.mrf.mxu0
        %4879 = vmatprep.mubr.f32.mxu0 0.0
        %4880 = vmatmul.mubr.f32.gmra.mxu0 %v4250
        %v4881 = vpop.f32.mrf.mxu0
        %v4882 = vadd.f32 %v4657, %v4881
        %v4883 = vpop.f32.mrf.mxu0
        %4884 = vmatprep.mubr.f32.mxu0 0.0
        %4885 = vmatmul.mubr.f32.gmra.mxu0 %v4252
        %v4886 = vpop.f32.mrf.mxu0
        %v4887 = vadd.f32 %v4662, %v4886
        %v4888 = vpop.f32.mrf.mxu0
        %4889 = vmatprep.mubr.f32.mxu0 0.0
        %4890 = vmatmul.mubr.f32.gmra.mxu0 %v4254
        %v4891 = vpop.f32.mrf.mxu0
        %v4892 = vadd.f32 %v4667, %v4891
        %v4893 = vpop.f32.mrf.mxu0
        %4894 = vmatprep.mubr.f32.mxu0 0.0
        %4895 = vmatmul.mubr.f32.gmra.mxu0 %v4256
        %v4896 = vpop.f32.mrf.mxu0
        %v4897 = vadd.f32 %v4672, %v4896
        %v4898 = vpop.f32.mrf.mxu0
        %4899 = vmatprep.mubr.f32.mxu0 0.0
        %4900 = vmatmul.mubr.f32.gmra.mxu0 %v4258
        %v4901 = vpop.f32.mrf.mxu0
        %v4902 = vadd.f32 %v4677, %v4901
        %v4903 = vpop.f32.mrf.mxu0
        %4904 = vmatprep.mubr.f32.mxu0 0.0
        %4905 = vmatmul.mubr.f32.gmra.mxu0 %v4260
        %v4906 = vpop.f32.mrf.mxu0
        %v4907 = vadd.f32 %v4682, %v4906
        %v4908 = vpop.f32.mrf.mxu0
        %4909 = vmatprep.mubr.f32.mxu0 0.0
        %4910 = vmatmul.mubr.f32.gmra.mxu0 %v4262
        %v4911 = vpop.f32.mrf.mxu0
        %v4912 = vadd.f32 %v4687, %v4911
        %v4913 = vpop.f32.mrf.mxu0
        %4914 = vmatprep.mubr.f32.mxu0 0.0
        %4915 = vmatmul.mubr.f32.gmra.mxu0 %v4264
        %v4916 = vpop.f32.mrf.mxu0
        %v4917 = vadd.f32 %v4692, %v4916
        %v4918 = vpop.f32.mrf.mxu0
        %4919 = vmatprep.mubr.f32.mxu0 0.0
        %4920 = vmatmul.mubr.f32.gmra.mxu0 %v4266
        %v4921 = vpop.f32.mrf.mxu0
        %v4922 = vadd.f32 %v4697, %v4921
        %v4923 = vpop.f32.mrf.mxu0
        %4924 = vmatprep.mubr.f32.mxu0 0.0
        %4925 = vmatmul.mubr.f32.gmra.mxu0 %v4268
        %v4926 = vpop.f32.mrf.mxu0
        %v4927 = vadd.f32 %v4702, %v4926
        %v4928 = vpop.f32.mrf.mxu0
        %4929 = vmatprep.mubr.f32.mxu0 0.0
        %4930 = vmatmul.mubr.f32.gmra.mxu0 %v4270
        %v4931 = vpop.f32.mrf.mxu0
        %v4932 = vadd.f32 %v4707, %v4931
        %v4933 = vpop.f32.mrf.mxu0
        %4934 = vmatprep.mubr.f32.mxu0 0.0
        %4935 = vmatmul.mubr.f32.gmra.mxu0 %v4272
        %v4936 = vpop.f32.mrf.mxu0
        %v4937 = vadd.f32 %v4712, %v4936
        %v4938 = vpop.f32.mrf.mxu0
        %4939 = vmatprep.mubr.f32.mxu0 0.0
        %4940 = vmatmul.mubr.f32.gmra.mxu0 %v4274
        %v4941 = vpop.f32.mrf.mxu0
        %v4942 = vadd.f32 %v4717, %v4941
        %v4943 = vpop.f32.mrf.mxu0
        %4944 = vmatprep.mubr.f32.mxu0 0.0
        %4945 = vmatmul.mubr.f32.gmra.mxu0 %v4276
        %v4946 = vpop.f32.mrf.mxu0
        %v4947 = vadd.f32 %v4722, %v4946
        %v4948 = vpop.f32.mrf.mxu0
        %4949 = vmatprep.mubr.f32.mxu0 0.0
        %4950 = vmatmul.mubr.f32.gmra.mxu0 %v4278
        %v4951 = vpop.f32.mrf.mxu0
        %v4952 = vadd.f32 %v4727, %v4951
        %v4953 = vpop.f32.mrf.mxu0
        %4954 = vdwg.mxu0
        %v4955 = vld [vmem:[%s17] sm:$0x1]
        %v4957 = vlaneseq
        %v4958 = vshrl.u32 %v4957, 7
        %v4959 = vsub.s32 0, %v4958
        %v4960 = vrot.slane %v4955, %v4959
        %v4962 = vmul.f32 %v4797, %v4960
        %v4963 = vmul.f32 %v4802, %v4960
        %v4964 = vmul.f32 %v4807, %v4960
        %v4965 = vmul.f32 %v4812, %v4960
        %v4966 = vmul.f32 %v4817, %v4960
        %v4967 = vmul.f32 %v4822, %v4960
        %v4968 = vmul.f32 %v4827, %v4960
        %v4969 = vmul.f32 %v4832, %v4960
        %v4970 = vmul.f32 %v4837, %v4960
        %v4971 = vmul.f32 %v4842, %v4960
        %v4972 = vmul.f32 %v4847, %v4960
        %v4973 = vmul.f32 %v4852, %v4960
        %v4974 = vmul.f32 %v4857, %v4960
        %v4975 = vmul.f32 %v4862, %v4960
        %v4976 = vmul.f32 %v4867, %v4960
        %v4977 = vmul.f32 %v4872, %v4960
        %v4978 = vmul.f32 %v4877, %v4960
        %v4979 = vmul.f32 %v4882, %v4960
        %v4980 = vmul.f32 %v4887, %v4960
        %v4981 = vmul.f32 %v4892, %v4960
        %v4982 = vmul.f32 %v4897, %v4960
        %v4983 = vmul.f32 %v4902, %v4960
        %v4984 = vmul.f32 %v4907, %v4960
        %v4985 = vmul.f32 %v4912, %v4960
        %v4986 = vmul.f32 %v4917, %v4960
        %v4987 = vmul.f32 %v4922, %v4960
        %v4988 = vmul.f32 %v4927, %v4960
        %v4989 = vmul.f32 %v4932, %v4960
        %v4990 = vmul.f32 %v4937, %v4960
        %v4991 = vmul.f32 %v4942, %v4960
        %v4992 = vmul.f32 %v4947, %v4960
        %v4993 = vmul.f32 %v4952, %v4960
        %v4994 = vld [vmem:[%s19] sm:$0x1]
        %v4996 = vlaneseq
        %v4997 = vshrl.u32 %v4996, 7
        %v4998 = vsub.s32 0, %v4997
        %v4999 = vrot.slane %v4994, %v4998
        %v5001 = vadd.f32 %v4962, %v4999
        %v5002 = vadd.f32 %v4963, %v4999
        %v5003 = vadd.f32 %v4964, %v4999
        %v5004 = vadd.f32 %v4965, %v4999
        %v5005 = vadd.f32 %v4966, %v4999
        %v5006 = vadd.f32 %v4967, %v4999
        %v5007 = vadd.f32 %v4968, %v4999
        %v5008 = vadd.f32 %v4969, %v4999
        %v5009 = vadd.f32 %v4970, %v4999
        %v5010 = vadd.f32 %v4971, %v4999
        %v5011 = vadd.f32 %v4972, %v4999
        %v5012 = vadd.f32 %v4973, %v4999
        %v5013 = vadd.f32 %v4974, %v4999
        %v5014 = vadd.f32 %v4975, %v4999
        %v5015 = vadd.f32 %v4976, %v4999
        %v5016 = vadd.f32 %v4977, %v4999
        %v5017 = vadd.f32 %v4978, %v4999
        %v5018 = vadd.f32 %v4979, %v4999
        %v5019 = vadd.f32 %v4980, %v4999
        %v5020 = vadd.f32 %v4981, %v4999
        %v5021 = vadd.f32 %v4982, %v4999
        %v5022 = vadd.f32 %v4983, %v4999
        %v5023 = vadd.f32 %v4984, %v4999
        %v5024 = vadd.f32 %v4985, %v4999
        %v5025 = vadd.f32 %v4986, %v4999
        %v5026 = vadd.f32 %v4987, %v4999
        %v5027 = vadd.f32 %v4988, %v4999
        %v5028 = vadd.f32 %v4989, %v4999
        %v5029 = vadd.f32 %v4990, %v4999
        %v5030 = vadd.f32 %v4991, %v4999
        %v5031 = vadd.f32 %v4992, %v4999
        %v5032 = vadd.f32 %v4993, %v4999
        %v5033 = vmax.f32 %v5001, 0.0
        %v5034 = vmax.f32 %v5002, 0.0
        %v5035 = vmax.f32 %v5003, 0.0
        %v5036 = vmax.f32 %v5004, 0.0
        %v5037 = vmax.f32 %v5005, 0.0
        %v5038 = vmax.f32 %v5006, 0.0
        %v5039 = vmax.f32 %v5007, 0.0
        %v5040 = vmax.f32 %v5008, 0.0
        %v5041 = vmax.f32 %v5009, 0.0
        %v5042 = vmax.f32 %v5010, 0.0
        %v5043 = vmax.f32 %v5011, 0.0
        %v5044 = vmax.f32 %v5012, 0.0
        %v5045 = vmax.f32 %v5013, 0.0
        %v5046 = vmax.f32 %v5014, 0.0
        %v5047 = vmax.f32 %v5015, 0.0
        %v5048 = vmax.f32 %v5016, 0.0
        %v5049 = vmax.f32 %v5017, 0.0
        %v5050 = vmax.f32 %v5018, 0.0
        %v5051 = vmax.f32 %v5019, 0.0
        %v5052 = vmax.f32 %v5020, 0.0
        %v5053 = vmax.f32 %v5021, 0.0
        %v5054 = vmax.f32 %v5022, 0.0
        %v5055 = vmax.f32 %v5023, 0.0
        %v5056 = vmax.f32 %v5024, 0.0
        %v5057 = vmax.f32 %v5025, 0.0
        %v5058 = vmax.f32 %v5026, 0.0
        %v5059 = vmax.f32 %v5027, 0.0
        %v5060 = vmax.f32 %v5028, 0.0
        %v5061 = vmax.f32 %v5029, 0.0
        %v5062 = vmax.f32 %v5030, 0.0
        %v5063 = vmax.f32 %v5031, 0.0
        %v5064 = vmax.f32 %v5032, 0.0
        %v5065 = vld [vmem:[%s21] sm:$0xff]
        %v5066 = vld [vmem:[%s21 + $0x8] sm:$0xff]
        %v5067 = vld [vmem:[%s21 + $0x10] sm:$0xff]
        %v5068 = vld [vmem:[%s21 + $0x18] sm:$0xff]
        %v5069 = vld [vmem:[%s21 + $0x20] sm:$0xff]
        %v5070 = vld [vmem:[%s21 + $0x28] sm:$0xff]
        %v5071 = vld [vmem:[%s21 + $0x30] sm:$0xff]
        %v5072 = vld [vmem:[%s21 + $0x38] sm:$0xff]
        %v5074 = vsel %vm2883, %v5033, 0
        %v5077 = vsel %vm2883, %v5034, 0
        %v5080 = vsel %vm2883, %v5035, 0
        %v5083 = vsel %vm2883, %v5036, 0
        %v5086 = vsel %vm2883, %v5037, 0
        %v5089 = vsel %vm2883, %v5038, 0
        %v5092 = vsel %vm2883, %v5039, 0
        %v5095 = vsel %vm2883, %v5040, 0
        %v5098 = vsel %vm2883, %v5041, 0
        %v5101 = vsel %vm2883, %v5042, 0
        %v5104 = vsel %vm2883, %v5043, 0
        %v5107 = vsel %vm2883, %v5044, 0
        %v5110 = vsel %vm2883, %v5045, 0
        %v5113 = vsel %vm2883, %v5046, 0
        %v5116 = vsel %vm2883, %v5047, 0
        %v5119 = vsel %vm2883, %v5048, 0
        %v5122 = vsel %vm2883, %v5049, 0
        %v5125 = vsel %vm2883, %v5050, 0
        %v5128 = vsel %vm2883, %v5051, 0
        %v5131 = vsel %vm2883, %v5052, 0
        %v5134 = vsel %vm2883, %v5053, 0
        %v5137 = vsel %vm2883, %v5054, 0
        %v5140 = vsel %vm2883, %v5055, 0
        %v5143 = vsel %vm2883, %v5056, 0
        %v5146 = vsel %vm2883, %v5057, 0
        %v5149 = vsel %vm2883, %v5058, 0
        %v5152 = vsel %vm2883, %v5059, 0
        %v5155 = vsel %vm2883, %v5060, 0
        %v5158 = vsel %vm2883, %v5061, 0
        %v5161 = vsel %vm2883, %v5062, 0
        %v5164 = vsel %vm2883, %v5063, 0
        %v5167 = vsel %vm2883, %v5064, 0
        %5169 = vmatprep.subr.mxu0 0.0
        %5170 = vmatpush1.msra.mxu0 0.0
        %5171 = vmatprep.subr.mxu0 0.0
        %5172 = vmatpush1.msra.mxu0 0.0
        %5173 = vmatprep.subr.mxu0 0.0
        %5174 = vmatpush1.msra.mxu0 0.0
        %5175 = vmatprep.subr.mxu0 0.0
        %5176 = vmatpush1.msra.mxu0 0.0
        %5177 = vmatprep.subr.mxu0 0.0
        %5178 = vmatpush1.msra.mxu0 0.0
        %5179 = vmatprep.subr.mxu0 0.0
        %5180 = vmatpush1.msra.mxu0 0.0
        %5181 = vmatprep.subr.mxu0 0.0
        %5182 = vmatpush1.msra.mxu0 0.0
        %5183 = vmatprep.subr.mxu0 0.0
        %5184 = vmatpush1.msra.mxu0 0.0
        %5185 = vmatprep.subr.mxu0 0.0
        %5186 = vmatpush1.msra.mxu0 %v5072
        %5187 = vmatprep.subr.mxu0 0.0
        %5188 = vmatpush1.msra.mxu0 %v5071
        %5189 = vmatprep.subr.mxu0 0.0
        %5190 = vmatpush1.msra.mxu0 %v5070
        %5191 = vmatprep.subr.mxu0 0.0
        %5192 = vmatpush1.msra.mxu0 %v5069
        %5193 = vmatprep.subr.mxu0 0.0
        %5194 = vmatpush1.msra.mxu0 %v5068
        %5195 = vmatprep.subr.mxu0 0.0
        %5196 = vmatpush1.msra.mxu0 %v5067
        %5197 = vmatprep.subr.mxu0 0.0
        %5198 = vmatpush1.msra.mxu0 %v5066
        %5199 = vmatprep.subr.mxu0 0.0
        %5200 = vmatpush1.msra.mxu0 %v5065
        %5201 = vmatprep.subr.mxu0 0.0
        %5202 = vmatpush2.msra.mxu0 0.0
        %5203 = vmatprep.subr.mxu0 0.0
        %5204 = vmatpush2.msra.mxu0 0.0
        %5205 = vmatprep.subr.mxu0 0.0
        %5206 = vmatpush2.msra.mxu0 0.0
        %5207 = vmatprep.subr.mxu0 0.0
        %5208 = vmatpush2.msra.mxu0 0.0
        %5209 = vmatprep.subr.mxu0 0.0
        %5210 = vmatpush2.msra.mxu0 0.0
        %5211 = vmatprep.subr.mxu0 0.0
        %5212 = vmatpush2.msra.mxu0 0.0
        %5213 = vmatprep.subr.mxu0 0.0
        %5214 = vmatpush2.msra.mxu0 0.0
        %5215 = vmatprep.subr.mxu0 0.0
        %5216 = vmatpush2.msra.mxu0 0.0
        %5217 = vmatprep.subr.mxu0 0.0
        %5218 = vmatpush2.msra.mxu0 0.0
        %5219 = vmatprep.subr.mxu0 0.0
        %5220 = vmatpush2.msra.mxu0 0.0
        %5221 = vmatprep.subr.mxu0 0.0
        %5222 = vmatpush2.msra.mxu0 0.0
        %5223 = vmatprep.subr.mxu0 0.0
        %5224 = vmatpush2.msra.mxu0 0.0
        %5225 = vmatprep.subr.mxu0 0.0
        %5226 = vmatpush2.msra.mxu0 0.0
        %5227 = vmatprep.subr.mxu0 0.0
        %5228 = vmatpush2.msra.mxu0 0.0
        %5229 = vmatprep.subr.mxu0 0.0
        %5230 = vmatpush2.msra.mxu0 0.0
        %5231 = vmatprep.subr.mxu0 0.0
        %5232 = vmatpush2.msra.mxu0 0.0
        %5233 = vmatprep.mubr.f32.mxu0 0.0
        %5234 = vmatmul.mubr.f32.gmra.mxu0 %v5074
        %v5235 = vpop.f32.mrf.mxu0
        %v5236 = vadd.f32 0.0, %v5235
        %v5237 = vpop.f32.mrf.mxu0
        %5238 = vmatprep.mubr.f32.mxu0 0.0
        %5239 = vmatmul.mubr.f32.gmra.mxu0 %v5077
        %v5240 = vpop.f32.mrf.mxu0
        %v5241 = vadd.f32 0.0, %v5240
        %v5242 = vpop.f32.mrf.mxu0
        %5243 = vmatprep.mubr.f32.mxu0 0.0
        %5244 = vmatmul.mubr.f32.gmra.mxu0 %v5080
        %v5245 = vpop.f32.mrf.mxu0
        %v5246 = vadd.f32 0.0, %v5245
        %v5247 = vpop.f32.mrf.mxu0
        %5248 = vmatprep.mubr.f32.mxu0 0.0
        %5249 = vmatmul.mubr.f32.gmra.mxu0 %v5083
        %v5250 = vpop.f32.mrf.mxu0
        %v5251 = vadd.f32 0.0, %v5250
        %v5252 = vpop.f32.mrf.mxu0
        %5253 = vmatprep.mubr.f32.mxu0 0.0
        %5254 = vmatmul.mubr.f32.gmra.mxu0 %v5086
        %v5255 = vpop.f32.mrf.mxu0
        %v5256 = vadd.f32 0.0, %v5255
        %v5257 = vpop.f32.mrf.mxu0
        %5258 = vmatprep.mubr.f32.mxu0 0.0
        %5259 = vmatmul.mubr.f32.gmra.mxu0 %v5089
        %v5260 = vpop.f32.mrf.mxu0
        %v5261 = vadd.f32 0.0, %v5260
        %v5262 = vpop.f32.mrf.mxu0
        %5263 = vmatprep.mubr.f32.mxu0 0.0
        %5264 = vmatmul.mubr.f32.gmra.mxu0 %v5092
        %v5265 = vpop.f32.mrf.mxu0
        %v5266 = vadd.f32 0.0, %v5265
        %v5267 = vpop.f32.mrf.mxu0
        %5268 = vmatprep.mubr.f32.mxu0 0.0
        %5269 = vmatmul.mubr.f32.gmra.mxu0 %v5095
        %v5270 = vpop.f32.mrf.mxu0
        %v5271 = vadd.f32 0.0, %v5270
        %v5272 = vpop.f32.mrf.mxu0
        %5273 = vmatprep.mubr.f32.mxu0 0.0
        %5274 = vmatmul.mubr.f32.gmra.mxu0 %v5098
        %v5275 = vpop.f32.mrf.mxu0
        %v5276 = vadd.f32 0.0, %v5275
        %v5277 = vpop.f32.mrf.mxu0
        %5278 = vmatprep.mubr.f32.mxu0 0.0
        %5279 = vmatmul.mubr.f32.gmra.mxu0 %v5101
        %v5280 = vpop.f32.mrf.mxu0
        %v5281 = vadd.f32 0.0, %v5280
        %v5282 = vpop.f32.mrf.mxu0
        %5283 = vmatprep.mubr.f32.mxu0 0.0
        %5284 = vmatmul.mubr.f32.gmra.mxu0 %v5104
        %v5285 = vpop.f32.mrf.mxu0
        %v5286 = vadd.f32 0.0, %v5285
        %v5287 = vpop.f32.mrf.mxu0
        %5288 = vmatprep.mubr.f32.mxu0 0.0
        %5289 = vmatmul.mubr.f32.gmra.mxu0 %v5107
        %v5290 = vpop.f32.mrf.mxu0
        %v5291 = vadd.f32 0.0, %v5290
        %v5292 = vpop.f32.mrf.mxu0
        %5293 = vmatprep.mubr.f32.mxu0 0.0
        %5294 = vmatmul.mubr.f32.gmra.mxu0 %v5110
        %v5295 = vpop.f32.mrf.mxu0
        %v5296 = vadd.f32 0.0, %v5295
        %v5297 = vpop.f32.mrf.mxu0
        %5298 = vmatprep.mubr.f32.mxu0 0.0
        %5299 = vmatmul.mubr.f32.gmra.mxu0 %v5113
        %v5300 = vpop.f32.mrf.mxu0
        %v5301 = vadd.f32 0.0, %v5300
        %v5302 = vpop.f32.mrf.mxu0
        %5303 = vmatprep.mubr.f32.mxu0 0.0
        %5304 = vmatmul.mubr.f32.gmra.mxu0 %v5116
        %v5305 = vpop.f32.mrf.mxu0
        %v5306 = vadd.f32 0.0, %v5305
        %v5307 = vpop.f32.mrf.mxu0
        %5308 = vmatprep.mubr.f32.mxu0 0.0
        %5309 = vmatmul.mubr.f32.gmra.mxu0 %v5119
        %v5310 = vpop.f32.mrf.mxu0
        %v5311 = vadd.f32 0.0, %v5310
        %v5312 = vpop.f32.mrf.mxu0
        %5313 = vmatprep.mubr.f32.mxu0 0.0
        %5314 = vmatmul.mubr.f32.gmra.mxu0 %v5122
        %v5315 = vpop.f32.mrf.mxu0
        %v5316 = vadd.f32 0.0, %v5315
        %v5317 = vpop.f32.mrf.mxu0
        %5318 = vmatprep.mubr.f32.mxu0 0.0
        %5319 = vmatmul.mubr.f32.gmra.mxu0 %v5125
        %v5320 = vpop.f32.mrf.mxu0
        %v5321 = vadd.f32 0.0, %v5320
        %v5322 = vpop.f32.mrf.mxu0
        %5323 = vmatprep.mubr.f32.mxu0 0.0
        %5324 = vmatmul.mubr.f32.gmra.mxu0 %v5128
        %v5325 = vpop.f32.mrf.mxu0
        %v5326 = vadd.f32 0.0, %v5325
        %v5327 = vpop.f32.mrf.mxu0
        %5328 = vmatprep.mubr.f32.mxu0 0.0
        %5329 = vmatmul.mubr.f32.gmra.mxu0 %v5131
        %v5330 = vpop.f32.mrf.mxu0
        %v5331 = vadd.f32 0.0, %v5330
        %v5332 = vpop.f32.mrf.mxu0
        %5333 = vmatprep.mubr.f32.mxu0 0.0
        %5334 = vmatmul.mubr.f32.gmra.mxu0 %v5134
        %v5335 = vpop.f32.mrf.mxu0
        %v5336 = vadd.f32 0.0, %v5335
        %v5337 = vpop.f32.mrf.mxu0
        %5338 = vmatprep.mubr.f32.mxu0 0.0
        %5339 = vmatmul.mubr.f32.gmra.mxu0 %v5137
        %v5340 = vpop.f32.mrf.mxu0
        %v5341 = vadd.f32 0.0, %v5340
        %v5342 = vpop.f32.mrf.mxu0
        %5343 = vmatprep.mubr.f32.mxu0 0.0
        %5344 = vmatmul.mubr.f32.gmra.mxu0 %v5140
        %v5345 = vpop.f32.mrf.mxu0
        %v5346 = vadd.f32 0.0, %v5345
        %v5347 = vpop.f32.mrf.mxu0
        %5348 = vmatprep.mubr.f32.mxu0 0.0
        %5349 = vmatmul.mubr.f32.gmra.mxu0 %v5143
        %v5350 = vpop.f32.mrf.mxu0
        %v5351 = vadd.f32 0.0, %v5350
        %v5352 = vpop.f32.mrf.mxu0
        %5353 = vmatprep.mubr.f32.mxu0 0.0
        %5354 = vmatmul.mubr.f32.gmra.mxu0 %v5146
        %v5355 = vpop.f32.mrf.mxu0
        %v5356 = vadd.f32 0.0, %v5355
        %v5357 = vpop.f32.mrf.mxu0
        %5358 = vmatprep.mubr.f32.mxu0 0.0
        %5359 = vmatmul.mubr.f32.gmra.mxu0 %v5149
        %v5360 = vpop.f32.mrf.mxu0
        %v5361 = vadd.f32 0.0, %v5360
        %v5362 = vpop.f32.mrf.mxu0
        %5363 = vmatprep.mubr.f32.mxu0 0.0
        %5364 = vmatmul.mubr.f32.gmra.mxu0 %v5152
        %v5365 = vpop.f32.mrf.mxu0
        %v5366 = vadd.f32 0.0, %v5365
        %v5367 = vpop.f32.mrf.mxu0
        %5368 = vmatprep.mubr.f32.mxu0 0.0
        %5369 = vmatmul.mubr.f32.gmra.mxu0 %v5155
        %v5370 = vpop.f32.mrf.mxu0
        %v5371 = vadd.f32 0.0, %v5370
        %v5372 = vpop.f32.mrf.mxu0
        %5373 = vmatprep.mubr.f32.mxu0 0.0
        %5374 = vmatmul.mubr.f32.gmra.mxu0 %v5158
        %v5375 = vpop.f32.mrf.mxu0
        %v5376 = vadd.f32 0.0, %v5375
        %v5377 = vpop.f32.mrf.mxu0
        %5378 = vmatprep.mubr.f32.mxu0 0.0
        %5379 = vmatmul.mubr.f32.gmra.mxu0 %v5161
        %v5380 = vpop.f32.mrf.mxu0
        %v5381 = vadd.f32 0.0, %v5380
        %v5382 = vpop.f32.mrf.mxu0
        %5383 = vmatprep.mubr.f32.mxu0 0.0
        %5384 = vmatmul.mubr.f32.gmra.mxu0 %v5164
        %v5385 = vpop.f32.mrf.mxu0
        %v5386 = vadd.f32 0.0, %v5385
        %v5387 = vpop.f32.mrf.mxu0
        %5388 = vmatprep.mubr.f32.mxu0 0.0
        %5389 = vmatmul.mubr.f32.gmra.mxu0 %v5167
        %v5390 = vpop.f32.mrf.mxu0
        %v5391 = vadd.f32 0.0, %v5390
        %v5392 = vpop.f32.mrf.mxu0
        %5393 = vdwg.mxu0
        %v5394 = vld [vmem:[%s23] sm:$0x1]
        %v5396 = vlaneseq
        %v5397 = vshrl.u32 %v5396, 7
        %v5398 = vsub.s32 0, %v5397
        %v5399 = vrot.slane %v5394, %v5398
        %v5401 = vmul.f32 %v5236, %v5399
        %v5402 = vmul.f32 %v5241, %v5399
        %v5403 = vmul.f32 %v5246, %v5399
        %v5404 = vmul.f32 %v5251, %v5399
        %v5405 = vmul.f32 %v5256, %v5399
        %v5406 = vmul.f32 %v5261, %v5399
        %v5407 = vmul.f32 %v5266, %v5399
        %v5408 = vmul.f32 %v5271, %v5399
        %v5409 = vmul.f32 %v5276, %v5399
        %v5410 = vmul.f32 %v5281, %v5399
        %v5411 = vmul.f32 %v5286, %v5399
        %v5412 = vmul.f32 %v5291, %v5399
        %v5413 = vmul.f32 %v5296, %v5399
        %v5414 = vmul.f32 %v5301, %v5399
        %v5415 = vmul.f32 %v5306, %v5399
        %v5416 = vmul.f32 %v5311, %v5399
        %v5417 = vmul.f32 %v5316, %v5399
        %v5418 = vmul.f32 %v5321, %v5399
        %v5419 = vmul.f32 %v5326, %v5399
        %v5420 = vmul.f32 %v5331, %v5399
        %v5421 = vmul.f32 %v5336, %v5399
        %v5422 = vmul.f32 %v5341, %v5399
        %v5423 = vmul.f32 %v5346, %v5399
        %v5424 = vmul.f32 %v5351, %v5399
        %v5425 = vmul.f32 %v5356, %v5399
        %v5426 = vmul.f32 %v5361, %v5399
        %v5427 = vmul.f32 %v5366, %v5399
        %v5428 = vmul.f32 %v5371, %v5399
        %v5429 = vmul.f32 %v5376, %v5399
        %v5430 = vmul.f32 %v5381, %v5399
        %v5431 = vmul.f32 %v5386, %v5399
        %v5432 = vmul.f32 %v5391, %v5399
        %v5433 = vld [vmem:[%s25] sm:$0x1]
        %v5435 = vlaneseq
        %v5436 = vshrl.u32 %v5435, 7
        %v5437 = vsub.s32 0, %v5436
        %v5438 = vrot.slane %v5433, %v5437
        %v5440 = vadd.f32 %v5401, %v5438
        %v5441 = vadd.f32 %v5402, %v5438
        %v5442 = vadd.f32 %v5403, %v5438
        %v5443 = vadd.f32 %v5404, %v5438
        %v5444 = vadd.f32 %v5405, %v5438
        %v5445 = vadd.f32 %v5406, %v5438
        %v5446 = vadd.f32 %v5407, %v5438
        %v5447 = vadd.f32 %v5408, %v5438
        %v5448 = vadd.f32 %v5409, %v5438
        %v5449 = vadd.f32 %v5410, %v5438
        %v5450 = vadd.f32 %v5411, %v5438
        %v5451 = vadd.f32 %v5412, %v5438
        %v5452 = vadd.f32 %v5413, %v5438
        %v5453 = vadd.f32 %v5414, %v5438
        %v5454 = vadd.f32 %v5415, %v5438
        %v5455 = vadd.f32 %v5416, %v5438
        %v5456 = vadd.f32 %v5417, %v5438
        %v5457 = vadd.f32 %v5418, %v5438
        %v5458 = vadd.f32 %v5419, %v5438
        %v5459 = vadd.f32 %v5420, %v5438
        %v5460 = vadd.f32 %v5421, %v5438
        %v5461 = vadd.f32 %v5422, %v5438
        %v5462 = vadd.f32 %v5423, %v5438
        %v5463 = vadd.f32 %v5424, %v5438
        %v5464 = vadd.f32 %v5425, %v5438
        %v5465 = vadd.f32 %v5426, %v5438
        %v5466 = vadd.f32 %v5427, %v5438
        %v5467 = vadd.f32 %v5428, %v5438
        %v5468 = vadd.f32 %v5429, %v5438
        %v5469 = vadd.f32 %v5430, %v5438
        %v5470 = vadd.f32 %v5431, %v5438
        %v5471 = vadd.f32 %v5432, %v5438
        %v5472 = vld [vmem:[%s27] sm:$0xff]
        %v5473 = vld [vmem:[%s27 + $0x8] sm:$0xff]
        %v5474 = vld [vmem:[%s27 + $0x10] sm:$0xff]
        %v5475 = vld [vmem:[%s27 + $0x18] sm:$0xff]
        %v5476 = vld [vmem:[%s27 + $0x20] sm:$0xff]
        %v5477 = vld [vmem:[%s27 + $0x28] sm:$0xff]
        %v5478 = vld [vmem:[%s27 + $0x30] sm:$0xff]
        %v5479 = vld [vmem:[%s27 + $0x38] sm:$0xff]
        %5480 = vmatprep.subr.mxu0 0.0
        %5481 = vmatpush1.msra.mxu0 0.0
        %5482 = vmatprep.subr.mxu0 0.0
        %5483 = vmatpush1.msra.mxu0 0.0
        %5484 = vmatprep.subr.mxu0 0.0
        %5485 = vmatpush1.msra.mxu0 0.0
        %5486 = vmatprep.subr.mxu0 0.0
        %5487 = vmatpush1.msra.mxu0 0.0
        %5488 = vmatprep.subr.mxu0 0.0
        %5489 = vmatpush1.msra.mxu0 0.0
        %5490 = vmatprep.subr.mxu0 0.0
        %5491 = vmatpush1.msra.mxu0 0.0
        %5492 = vmatprep.subr.mxu0 0.0
        %5493 = vmatpush1.msra.mxu0 0.0
        %5494 = vmatprep.subr.mxu0 0.0
        %5495 = vmatpush1.msra.mxu0 0.0
        %5496 = vmatprep.subr.mxu0 0.0
        %5497 = vmatpush1.msra.mxu0 %v5479
        %5498 = vmatprep.subr.mxu0 0.0
        %5499 = vmatpush1.msra.mxu0 %v5478
        %5500 = vmatprep.subr.mxu0 0.0
        %5501 = vmatpush1.msra.mxu0 %v5477
        %5502 = vmatprep.subr.mxu0 0.0
        %5503 = vmatpush1.msra.mxu0 %v5476
        %5504 = vmatprep.subr.mxu0 0.0
        %5505 = vmatpush1.msra.mxu0 %v5475
        %5506 = vmatprep.subr.mxu0 0.0
        %5507 = vmatpush1.msra.mxu0 %v5474
        %5508 = vmatprep.subr.mxu0 0.0
        %5509 = vmatpush1.msra.mxu0 %v5473
        %5510 = vmatprep.subr.mxu0 0.0
        %5511 = vmatpush1.msra.mxu0 %v5472
        %5512 = vmatprep.subr.mxu0 0.0
        %5513 = vmatpush2.msra.mxu0 0.0
        %5514 = vmatprep.subr.mxu0 0.0
        %5515 = vmatpush2.msra.mxu0 0.0
        %5516 = vmatprep.subr.mxu0 0.0
        %5517 = vmatpush2.msra.mxu0 0.0
        %5518 = vmatprep.subr.mxu0 0.0
        %5519 = vmatpush2.msra.mxu0 0.0
        %5520 = vmatprep.subr.mxu0 0.0
        %5521 = vmatpush2.msra.mxu0 0.0
        %5522 = vmatprep.subr.mxu0 0.0
        %5523 = vmatpush2.msra.mxu0 0.0
        %5524 = vmatprep.subr.mxu0 0.0
        %5525 = vmatpush2.msra.mxu0 0.0
        %5526 = vmatprep.subr.mxu0 0.0
        %5527 = vmatpush2.msra.mxu0 0.0
        %5528 = vmatprep.subr.mxu0 0.0
        %5529 = vmatpush2.msra.mxu0 0.0
        %5530 = vmatprep.subr.mxu0 0.0
        %5531 = vmatpush2.msra.mxu0 0.0
        %5532 = vmatprep.subr.mxu0 0.0
        %5533 = vmatpush2.msra.mxu0 0.0
        %5534 = vmatprep.subr.mxu0 0.0
        %5535 = vmatpush2.msra.mxu0 0.0
        %5536 = vmatprep.subr.mxu0 0.0
        %5537 = vmatpush2.msra.mxu0 0.0
        %5538 = vmatprep.subr.mxu0 0.0
        %5539 = vmatpush2.msra.mxu0 0.0
        %5540 = vmatprep.subr.mxu0 0.0
        %5541 = vmatpush2.msra.mxu0 0.0
        %5542 = vmatprep.subr.mxu0 0.0
        %5543 = vmatpush2.msra.mxu0 0.0
        %5544 = vmatprep.mubr.f32.mxu0 0.0
        %5545 = vmatmul.mubr.f32.gmra.mxu0 %v2885
        %v5546 = vpop.f32.mrf.mxu0
        %v5547 = vadd.f32 0.0, %v5546
        %v5548 = vpop.f32.mrf.mxu0
        %5549 = vmatprep.mubr.f32.mxu0 0.0
        %5550 = vmatmul.mubr.f32.gmra.mxu0 %v2888
        %v5551 = vpop.f32.mrf.mxu0
        %v5552 = vadd.f32 0.0, %v5551
        %v5553 = vpop.f32.mrf.mxu0
        %5554 = vmatprep.mubr.f32.mxu0 0.0
        %5555 = vmatmul.mubr.f32.gmra.mxu0 %v2891
        %v5556 = vpop.f32.mrf.mxu0
        %v5557 = vadd.f32 0.0, %v5556
        %v5558 = vpop.f32.mrf.mxu0
        %5559 = vmatprep.mubr.f32.mxu0 0.0
        %5560 = vmatmul.mubr.f32.gmra.mxu0 %v2894
        %v5561 = vpop.f32.mrf.mxu0
        %v5562 = vadd.f32 0.0, %v5561
        %v5563 = vpop.f32.mrf.mxu0
        %5564 = vmatprep.mubr.f32.mxu0 0.0
        %5565 = vmatmul.mubr.f32.gmra.mxu0 %v2897
        %v5566 = vpop.f32.mrf.mxu0
        %v5567 = vadd.f32 0.0, %v5566
        %v5568 = vpop.f32.mrf.mxu0
        %5569 = vmatprep.mubr.f32.mxu0 0.0
        %5570 = vmatmul.mubr.f32.gmra.mxu0 %v2900
        %v5571 = vpop.f32.mrf.mxu0
        %v5572 = vadd.f32 0.0, %v5571
        %v5573 = vpop.f32.mrf.mxu0
        %5574 = vmatprep.mubr.f32.mxu0 0.0
        %5575 = vmatmul.mubr.f32.gmra.mxu0 %v2903
        %v5576 = vpop.f32.mrf.mxu0
        %v5577 = vadd.f32 0.0, %v5576
        %v5578 = vpop.f32.mrf.mxu0
        %5579 = vmatprep.mubr.f32.mxu0 0.0
        %5580 = vmatmul.mubr.f32.gmra.mxu0 %v2906
        %v5581 = vpop.f32.mrf.mxu0
        %v5582 = vadd.f32 0.0, %v5581
        %v5583 = vpop.f32.mrf.mxu0
        %5584 = vmatprep.mubr.f32.mxu0 0.0
        %5585 = vmatmul.mubr.f32.gmra.mxu0 %v2909
        %v5586 = vpop.f32.mrf.mxu0
        %v5587 = vadd.f32 0.0, %v5586
        %v5588 = vpop.f32.mrf.mxu0
        %5589 = vmatprep.mubr.f32.mxu0 0.0
        %5590 = vmatmul.mubr.f32.gmra.mxu0 %v2912
        %v5591 = vpop.f32.mrf.mxu0
        %v5592 = vadd.f32 0.0, %v5591
        %v5593 = vpop.f32.mrf.mxu0
        %5594 = vmatprep.mubr.f32.mxu0 0.0
        %5595 = vmatmul.mubr.f32.gmra.mxu0 %v2915
        %v5596 = vpop.f32.mrf.mxu0
        %v5597 = vadd.f32 0.0, %v5596
        %v5598 = vpop.f32.mrf.mxu0
        %5599 = vmatprep.mubr.f32.mxu0 0.0
        %5600 = vmatmul.mubr.f32.gmra.mxu0 %v2918
        %v5601 = vpop.f32.mrf.mxu0
        %v5602 = vadd.f32 0.0, %v5601
        %v5603 = vpop.f32.mrf.mxu0
        %5604 = vmatprep.mubr.f32.mxu0 0.0
        %5605 = vmatmul.mubr.f32.gmra.mxu0 %v2921
        %v5606 = vpop.f32.mrf.mxu0
        %v5607 = vadd.f32 0.0, %v5606
        %v5608 = vpop.f32.mrf.mxu0
        %5609 = vmatprep.mubr.f32.mxu0 0.0
        %5610 = vmatmul.mubr.f32.gmra.mxu0 %v2924
        %v5611 = vpop.f32.mrf.mxu0
        %v5612 = vadd.f32 0.0, %v5611
        %v5613 = vpop.f32.mrf.mxu0
        %5614 = vmatprep.mubr.f32.mxu0 0.0
        %5615 = vmatmul.mubr.f32.gmra.mxu0 %v2927
        %v5616 = vpop.f32.mrf.mxu0
        %v5617 = vadd.f32 0.0, %v5616
        %v5618 = vpop.f32.mrf.mxu0
        %5619 = vmatprep.mubr.f32.mxu0 0.0
        %5620 = vmatmul.mubr.f32.gmra.mxu0 %v2930
        %v5621 = vpop.f32.mrf.mxu0
        %v5622 = vadd.f32 0.0, %v5621
        %v5623 = vpop.f32.mrf.mxu0
        %5624 = vmatprep.mubr.f32.mxu0 0.0
        %5625 = vmatmul.mubr.f32.gmra.mxu0 %v2933
        %v5626 = vpop.f32.mrf.mxu0
        %v5627 = vadd.f32 0.0, %v5626
        %v5628 = vpop.f32.mrf.mxu0
        %5629 = vmatprep.mubr.f32.mxu0 0.0
        %5630 = vmatmul.mubr.f32.gmra.mxu0 %v2936
        %v5631 = vpop.f32.mrf.mxu0
        %v5632 = vadd.f32 0.0, %v5631
        %v5633 = vpop.f32.mrf.mxu0
        %5634 = vmatprep.mubr.f32.mxu0 0.0
        %5635 = vmatmul.mubr.f32.gmra.mxu0 %v2939
        %v5636 = vpop.f32.mrf.mxu0
        %v5637 = vadd.f32 0.0, %v5636
        %v5638 = vpop.f32.mrf.mxu0
        %5639 = vmatprep.mubr.f32.mxu0 0.0
        %5640 = vmatmul.mubr.f32.gmra.mxu0 %v2942
        %v5641 = vpop.f32.mrf.mxu0
        %v5642 = vadd.f32 0.0, %v5641
        %v5643 = vpop.f32.mrf.mxu0
        %5644 = vmatprep.mubr.f32.mxu0 0.0
        %5645 = vmatmul.mubr.f32.gmra.mxu0 %v2945
        %v5646 = vpop.f32.mrf.mxu0
        %v5647 = vadd.f32 0.0, %v5646
        %v5648 = vpop.f32.mrf.mxu0
        %5649 = vmatprep.mubr.f32.mxu0 0.0
        %5650 = vmatmul.mubr.f32.gmra.mxu0 %v2948
        %v5651 = vpop.f32.mrf.mxu0
        %v5652 = vadd.f32 0.0, %v5651
        %v5653 = vpop.f32.mrf.mxu0
        %5654 = vmatprep.mubr.f32.mxu0 0.0
        %5655 = vmatmul.mubr.f32.gmra.mxu0 %v2951
        %v5656 = vpop.f32.mrf.mxu0
        %v5657 = vadd.f32 0.0, %v5656
        %v5658 = vpop.f32.mrf.mxu0
        %5659 = vmatprep.mubr.f32.mxu0 0.0
        %5660 = vmatmul.mubr.f32.gmra.mxu0 %v2954
        %v5661 = vpop.f32.mrf.mxu0
        %v5662 = vadd.f32 0.0, %v5661
        %v5663 = vpop.f32.mrf.mxu0
        %5664 = vmatprep.mubr.f32.mxu0 0.0
        %5665 = vmatmul.mubr.f32.gmra.mxu0 %v2957
        %v5666 = vpop.f32.mrf.mxu0
        %v5667 = vadd.f32 0.0, %v5666
        %v5668 = vpop.f32.mrf.mxu0
        %5669 = vmatprep.mubr.f32.mxu0 0.0
        %5670 = vmatmul.mubr.f32.gmra.mxu0 %v2960
        %v5671 = vpop.f32.mrf.mxu0
        %v5672 = vadd.f32 0.0, %v5671
        %v5673 = vpop.f32.mrf.mxu0
        %5674 = vmatprep.mubr.f32.mxu0 0.0
        %5675 = vmatmul.mubr.f32.gmra.mxu0 %v2963
        %v5676 = vpop.f32.mrf.mxu0
        %v5677 = vadd.f32 0.0, %v5676
        %v5678 = vpop.f32.mrf.mxu0
        %5679 = vmatprep.mubr.f32.mxu0 0.0
        %5680 = vmatmul.mubr.f32.gmra.mxu0 %v2966
        %v5681 = vpop.f32.mrf.mxu0
        %v5682 = vadd.f32 0.0, %v5681
        %v5683 = vpop.f32.mrf.mxu0
        %5684 = vmatprep.mubr.f32.mxu0 0.0
        %5685 = vmatmul.mubr.f32.gmra.mxu0 %v2969
        %v5686 = vpop.f32.mrf.mxu0
        %v5687 = vadd.f32 0.0, %v5686
        %v5688 = vpop.f32.mrf.mxu0
        %5689 = vmatprep.mubr.f32.mxu0 0.0
        %5690 = vmatmul.mubr.f32.gmra.mxu0 %v2972
        %v5691 = vpop.f32.mrf.mxu0
        %v5692 = vadd.f32 0.0, %v5691
        %v5693 = vpop.f32.mrf.mxu0
        %5694 = vmatprep.mubr.f32.mxu0 0.0
        %5695 = vmatmul.mubr.f32.gmra.mxu0 %v2975
        %v5696 = vpop.f32.mrf.mxu0
        %v5697 = vadd.f32 0.0, %v5696
        %v5698 = vpop.f32.mrf.mxu0
        %5699 = vmatprep.mubr.f32.mxu0 0.0
        %5700 = vmatmul.mubr.f32.gmra.mxu0 %v2978
        %v5701 = vpop.f32.mrf.mxu0
        %v5702 = vadd.f32 0.0, %v5701
        %v5703 = vpop.f32.mrf.mxu0
        %5704 = vdwg.mxu0
        %v5705 = vadd.f32 %v5440, %v5547
        %v5706 = vadd.f32 %v5441, %v5552
        %v5707 = vadd.f32 %v5442, %v5557
        %v5708 = vadd.f32 %v5443, %v5562
        %v5709 = vadd.f32 %v5444, %v5567
        %v5710 = vadd.f32 %v5445, %v5572
        %v5711 = vadd.f32 %v5446, %v5577
        %v5712 = vadd.f32 %v5447, %v5582
        %v5713 = vadd.f32 %v5448, %v5587
        %v5714 = vadd.f32 %v5449, %v5592
        %v5715 = vadd.f32 %v5450, %v5597
        %v5716 = vadd.f32 %v5451, %v5602
        %v5717 = vadd.f32 %v5452, %v5607
        %v5718 = vadd.f32 %v5453, %v5612
        %v5719 = vadd.f32 %v5454, %v5617
        %v5720 = vadd.f32 %v5455, %v5622
        %v5721 = vadd.f32 %v5456, %v5627
        %v5722 = vadd.f32 %v5457, %v5632
        %v5723 = vadd.f32 %v5458, %v5637
        %v5724 = vadd.f32 %v5459, %v5642
        %v5725 = vadd.f32 %v5460, %v5647
        %v5726 = vadd.f32 %v5461, %v5652
        %v5727 = vadd.f32 %v5462, %v5657
        %v5728 = vadd.f32 %v5463, %v5662
        %v5729 = vadd.f32 %v5464, %v5667
        %v5730 = vadd.f32 %v5465, %v5672
        %v5731 = vadd.f32 %v5466, %v5677
        %v5732 = vadd.f32 %v5467, %v5682
        %v5733 = vadd.f32 %v5468, %v5687
        %v5734 = vadd.f32 %v5469, %v5692
        %v5735 = vadd.f32 %v5470, %v5697
        %v5736 = vadd.f32 %v5471, %v5702
        %v5737 = vmax.f32 %v5705, 0.0
        %v5738 = vmax.f32 %v5706, 0.0
        %v5739 = vmax.f32 %v5707, 0.0
        %v5740 = vmax.f32 %v5708, 0.0
        %v5741 = vmax.f32 %v5709, 0.0
        %v5742 = vmax.f32 %v5710, 0.0
        %v5743 = vmax.f32 %v5711, 0.0
        %v5744 = vmax.f32 %v5712, 0.0
        %v5745 = vmax.f32 %v5713, 0.0
        %v5746 = vmax.f32 %v5714, 0.0
        %v5747 = vmax.f32 %v5715, 0.0
        %v5748 = vmax.f32 %v5716, 0.0
        %v5749 = vmax.f32 %v5717, 0.0
        %v5750 = vmax.f32 %v5718, 0.0
        %v5751 = vmax.f32 %v5719, 0.0
        %v5752 = vmax.f32 %v5720, 0.0
        %v5753 = vmax.f32 %v5721, 0.0
        %v5754 = vmax.f32 %v5722, 0.0
        %v5755 = vmax.f32 %v5723, 0.0
        %v5756 = vmax.f32 %v5724, 0.0
        %v5757 = vmax.f32 %v5725, 0.0
        %v5758 = vmax.f32 %v5726, 0.0
        %v5759 = vmax.f32 %v5727, 0.0
        %v5760 = vmax.f32 %v5728, 0.0
        %v5761 = vmax.f32 %v5729, 0.0
        %v5762 = vmax.f32 %v5730, 0.0
        %v5763 = vmax.f32 %v5731, 0.0
        %v5764 = vmax.f32 %v5732, 0.0
        %v5765 = vmax.f32 %v5733, 0.0
        %v5766 = vmax.f32 %v5734, 0.0
        %v5767 = vmax.f32 %v5735, 0.0
        %v5768 = vmax.f32 %v5736, 0.0
        %v5801 = vcombine.high %v5737, %v5737
        %v5803 = vunpack.c.l.s4 1983009808
        %v5804 = vunpack.c.0.s8 %v5803
        %v5805 = vlaneseq
        %v5806 = vshrl.u32 %v5805, 7
        %v5807 = vsub.s32 %v5804, %v5806
        %v5808 = vrot.slane %v5737, %v5807
        %v5810 = vunpack.c.l.s4 1983009808
        %v5811 = vunpack.c.0.s8 %v5810
        %v5812 = vlaneseq
        %v5813 = vshrl.u32 %v5812, 7
        %v5814 = vsub.s32 %v5811, %v5813
        %v5815 = vrot.slane %v5801, %v5814
        %v5816 = vcombine.high %v5808, %v5808
        %v5817 = vcombine.high %v5815, %v5815
        %v5818 = vcombine.high %v5738, %v5738
        %v5820 = vunpack.c.l.s4 1983009808
        %v5821 = vunpack.c.0.s8 %v5820
        %v5822 = vlaneseq
        %v5823 = vshrl.u32 %v5822, 7
        %v5824 = vsub.s32 %v5821, %v5823
        %v5825 = vrot.slane %v5738, %v5824
        %v5827 = vunpack.c.l.s4 1983009808
        %v5828 = vunpack.c.0.s8 %v5827
        %v5829 = vlaneseq
        %v5830 = vshrl.u32 %v5829, 7
        %v5831 = vsub.s32 %v5828, %v5830
        %v5832 = vrot.slane %v5818, %v5831
        %v5833 = vcombine.high %v5825, %v5825
        %v5834 = vcombine.high %v5832, %v5832
        %v5835 = vcombine.high %v5739, %v5739
        %v5837 = vunpack.c.l.s4 1983009808
        %v5838 = vunpack.c.0.s8 %v5837
        %v5839 = vlaneseq
        %v5840 = vshrl.u32 %v5839, 7
        %v5841 = vsub.s32 %v5838, %v5840
        %v5842 = vrot.slane %v5739, %v5841
        %v5844 = vunpack.c.l.s4 1983009808
        %v5845 = vunpack.c.0.s8 %v5844
        %v5846 = vlaneseq
        %v5847 = vshrl.u32 %v5846, 7
        %v5848 = vsub.s32 %v5845, %v5847
        %v5849 = vrot.slane %v5835, %v5848
        %v5850 = vcombine.high %v5842, %v5842
        %v5851 = vcombine.high %v5849, %v5849
        %v5852 = vcombine.high %v5740, %v5740
        %v5854 = vunpack.c.l.s4 1983009808
        %v5855 = vunpack.c.0.s8 %v5854
        %v5856 = vlaneseq
        %v5857 = vshrl.u32 %v5856, 7
        %v5858 = vsub.s32 %v5855, %v5857
        %v5859 = vrot.slane %v5740, %v5858
        %v5861 = vunpack.c.l.s4 1983009808
        %v5862 = vunpack.c.0.s8 %v5861
        %v5863 = vlaneseq
        %v5864 = vshrl.u32 %v5863, 7
        %v5865 = vsub.s32 %v5862, %v5864
        %v5866 = vrot.slane %v5852, %v5865
        %v5867 = vcombine.high %v5859, %v5859
        %v5868 = vcombine.high %v5866, %v5866
        %v5869 = vcombine.high %v5741, %v5741
        %v5871 = vunpack.c.l.s4 1983009808
        %v5872 = vunpack.c.0.s8 %v5871
        %v5873 = vlaneseq
        %v5874 = vshrl.u32 %v5873, 7
        %v5875 = vsub.s32 %v5872, %v5874
        %v5876 = vrot.slane %v5741, %v5875
        %v5878 = vunpack.c.l.s4 1983009808
        %v5879 = vunpack.c.0.s8 %v5878
        %v5880 = vlaneseq
        %v5881 = vshrl.u32 %v5880, 7
        %v5882 = vsub.s32 %v5879, %v5881
        %v5883 = vrot.slane %v5869, %v5882
        %v5884 = vcombine.high %v5876, %v5876
        %v5885 = vcombine.high %v5883, %v5883
        %v5886 = vcombine.high %v5742, %v5742
        %v5888 = vunpack.c.l.s4 1983009808
        %v5889 = vunpack.c.0.s8 %v5888
        %v5890 = vlaneseq
        %v5891 = vshrl.u32 %v5890, 7
        %v5892 = vsub.s32 %v5889, %v5891
        %v5893 = vrot.slane %v5742, %v5892
        %v5895 = vunpack.c.l.s4 1983009808
        %v5896 = vunpack.c.0.s8 %v5895
        %v5897 = vlaneseq
        %v5898 = vshrl.u32 %v5897, 7
        %v5899 = vsub.s32 %v5896, %v5898
        %v5900 = vrot.slane %v5886, %v5899
        %v5901 = vcombine.high %v5893, %v5893
        %v5902 = vcombine.high %v5900, %v5900
        %v5903 = vcombine.high %v5743, %v5743
        %v5905 = vunpack.c.l.s4 1983009808
        %v5906 = vunpack.c.0.s8 %v5905
        %v5907 = vlaneseq
        %v5908 = vshrl.u32 %v5907, 7
        %v5909 = vsub.s32 %v5906, %v5908
        %v5910 = vrot.slane %v5743, %v5909
        %v5912 = vunpack.c.l.s4 1983009808
        %v5913 = vunpack.c.0.s8 %v5912
        %v5914 = vlaneseq
        %v5915 = vshrl.u32 %v5914, 7
        %v5916 = vsub.s32 %v5913, %v5915
        %v5917 = vrot.slane %v5903, %v5916
        %v5918 = vcombine.high %v5910, %v5910
        %v5919 = vcombine.high %v5917, %v5917
        %v5920 = vcombine.high %v5744, %v5744
        %v5922 = vunpack.c.l.s4 1983009808
        %v5923 = vunpack.c.0.s8 %v5922
        %v5924 = vlaneseq
        %v5925 = vshrl.u32 %v5924, 7
        %v5926 = vsub.s32 %v5923, %v5925
        %v5927 = vrot.slane %v5744, %v5926
        %v5929 = vunpack.c.l.s4 1983009808
        %v5930 = vunpack.c.0.s8 %v5929
        %v5931 = vlaneseq
        %v5932 = vshrl.u32 %v5931, 7
        %v5933 = vsub.s32 %v5930, %v5932
        %v5934 = vrot.slane %v5920, %v5933
        %v5935 = vcombine.high %v5927, %v5927
        %v5936 = vcombine.high %v5934, %v5934
        %v5937 = vcombine.high %v5745, %v5745
        %v5939 = vunpack.c.l.s4 1983009808
        %v5940 = vunpack.c.0.s8 %v5939
        %v5941 = vlaneseq
        %v5942 = vshrl.u32 %v5941, 7
        %v5943 = vsub.s32 %v5940, %v5942
        %v5944 = vrot.slane %v5745, %v5943
        %v5946 = vunpack.c.l.s4 1983009808
        %v5947 = vunpack.c.0.s8 %v5946
        %v5948 = vlaneseq
        %v5949 = vshrl.u32 %v5948, 7
        %v5950 = vsub.s32 %v5947, %v5949
        %v5951 = vrot.slane %v5937, %v5950
        %v5952 = vcombine.high %v5944, %v5944
        %v5953 = vcombine.high %v5951, %v5951
        %v5954 = vcombine.high %v5746, %v5746
        %v5956 = vunpack.c.l.s4 1983009808
        %v5957 = vunpack.c.0.s8 %v5956
        %v5958 = vlaneseq
        %v5959 = vshrl.u32 %v5958, 7
        %v5960 = vsub.s32 %v5957, %v5959
        %v5961 = vrot.slane %v5746, %v5960
        %v5963 = vunpack.c.l.s4 1983009808
        %v5964 = vunpack.c.0.s8 %v5963
        %v5965 = vlaneseq
        %v5966 = vshrl.u32 %v5965, 7
        %v5967 = vsub.s32 %v5964, %v5966
        %v5968 = vrot.slane %v5954, %v5967
        %v5969 = vcombine.high %v5961, %v5961
        %v5970 = vcombine.high %v5968, %v5968
        %v5971 = vcombine.high %v5747, %v5747
        %v5973 = vunpack.c.l.s4 1983009808
        %v5974 = vunpack.c.0.s8 %v5973
        %v5975 = vlaneseq
        %v5976 = vshrl.u32 %v5975, 7
        %v5977 = vsub.s32 %v5974, %v5976
        %v5978 = vrot.slane %v5747, %v5977
        %v5980 = vunpack.c.l.s4 1983009808
        %v5981 = vunpack.c.0.s8 %v5980
        %v5982 = vlaneseq
        %v5983 = vshrl.u32 %v5982, 7
        %v5984 = vsub.s32 %v5981, %v5983
        %v5985 = vrot.slane %v5971, %v5984
        %v5986 = vcombine.high %v5978, %v5978
        %v5987 = vcombine.high %v5985, %v5985
        %v5988 = vcombine.high %v5748, %v5748
        %v5990 = vunpack.c.l.s4 1983009808
        %v5991 = vunpack.c.0.s8 %v5990
        %v5992 = vlaneseq
        %v5993 = vshrl.u32 %v5992, 7
        %v5994 = vsub.s32 %v5991, %v5993
        %v5995 = vrot.slane %v5748, %v5994
        %v5997 = vunpack.c.l.s4 1983009808
        %v5998 = vunpack.c.0.s8 %v5997
        %v5999 = vlaneseq
        %v6000 = vshrl.u32 %v5999, 7
        %v6001 = vsub.s32 %v5998, %v6000
        %v6002 = vrot.slane %v5988, %v6001
        %v6003 = vcombine.high %v5995, %v5995
        %v6004 = vcombine.high %v6002, %v6002
        %v6005 = vcombine.high %v5749, %v5749
        %v6007 = vunpack.c.l.s4 1983009808
        %v6008 = vunpack.c.0.s8 %v6007
        %v6009 = vlaneseq
        %v6010 = vshrl.u32 %v6009, 7
        %v6011 = vsub.s32 %v6008, %v6010
        %v6012 = vrot.slane %v5749, %v6011
        %v6014 = vunpack.c.l.s4 1983009808
        %v6015 = vunpack.c.0.s8 %v6014
        %v6016 = vlaneseq
        %v6017 = vshrl.u32 %v6016, 7
        %v6018 = vsub.s32 %v6015, %v6017
        %v6019 = vrot.slane %v6005, %v6018
        %v6020 = vcombine.high %v6012, %v6012
        %v6021 = vcombine.high %v6019, %v6019
        %v6022 = vcombine.high %v5750, %v5750
        %v6024 = vunpack.c.l.s4 1983009808
        %v6025 = vunpack.c.0.s8 %v6024
        %v6026 = vlaneseq
        %v6027 = vshrl.u32 %v6026, 7
        %v6028 = vsub.s32 %v6025, %v6027
        %v6029 = vrot.slane %v5750, %v6028
        %v6031 = vunpack.c.l.s4 1983009808
        %v6032 = vunpack.c.0.s8 %v6031
        %v6033 = vlaneseq
        %v6034 = vshrl.u32 %v6033, 7
        %v6035 = vsub.s32 %v6032, %v6034
        %v6036 = vrot.slane %v6022, %v6035
        %v6037 = vcombine.high %v6029, %v6029
        %v6038 = vcombine.high %v6036, %v6036
        %v6039 = vcombine.high %v5751, %v5751
        %v6041 = vunpack.c.l.s4 1983009808
        %v6042 = vunpack.c.0.s8 %v6041
        %v6043 = vlaneseq
        %v6044 = vshrl.u32 %v6043, 7
        %v6045 = vsub.s32 %v6042, %v6044
        %v6046 = vrot.slane %v5751, %v6045
        %v6048 = vunpack.c.l.s4 1983009808
        %v6049 = vunpack.c.0.s8 %v6048
        %v6050 = vlaneseq
        %v6051 = vshrl.u32 %v6050, 7
        %v6052 = vsub.s32 %v6049, %v6051
        %v6053 = vrot.slane %v6039, %v6052
        %v6054 = vcombine.high %v6046, %v6046
        %v6055 = vcombine.high %v6053, %v6053
        %v6056 = vcombine.high %v5752, %v5752
        %v6058 = vunpack.c.l.s4 1983009808
        %v6059 = vunpack.c.0.s8 %v6058
        %v6060 = vlaneseq
        %v6061 = vshrl.u32 %v6060, 7
        %v6062 = vsub.s32 %v6059, %v6061
        %v6063 = vrot.slane %v5752, %v6062
        %v6065 = vunpack.c.l.s4 1983009808
        %v6066 = vunpack.c.0.s8 %v6065
        %v6067 = vlaneseq
        %v6068 = vshrl.u32 %v6067, 7
        %v6069 = vsub.s32 %v6066, %v6068
        %v6070 = vrot.slane %v6056, %v6069
        %v6071 = vcombine.high %v6063, %v6063
        %v6072 = vcombine.high %v6070, %v6070
        %v6073 = vcombine.high %v5753, %v5753
        %v6075 = vunpack.c.l.s4 1983009808
        %v6076 = vunpack.c.0.s8 %v6075
        %v6077 = vlaneseq
        %v6078 = vshrl.u32 %v6077, 7
        %v6079 = vsub.s32 %v6076, %v6078
        %v6080 = vrot.slane %v5753, %v6079
        %v6082 = vunpack.c.l.s4 1983009808
        %v6083 = vunpack.c.0.s8 %v6082
        %v6084 = vlaneseq
        %v6085 = vshrl.u32 %v6084, 7
        %v6086 = vsub.s32 %v6083, %v6085
        %v6087 = vrot.slane %v6073, %v6086
        %v6088 = vcombine.high %v6080, %v6080
        %v6089 = vcombine.high %v6087, %v6087
        %v6090 = vcombine.high %v5754, %v5754
        %v6092 = vunpack.c.l.s4 1983009808
        %v6093 = vunpack.c.0.s8 %v6092
        %v6094 = vlaneseq
        %v6095 = vshrl.u32 %v6094, 7
        %v6096 = vsub.s32 %v6093, %v6095
        %v6097 = vrot.slane %v5754, %v6096
        %v6099 = vunpack.c.l.s4 1983009808
        %v6100 = vunpack.c.0.s8 %v6099
        %v6101 = vlaneseq
        %v6102 = vshrl.u32 %v6101, 7
        %v6103 = vsub.s32 %v6100, %v6102
        %v6104 = vrot.slane %v6090, %v6103
        %v6105 = vcombine.high %v6097, %v6097
        %v6106 = vcombine.high %v6104, %v6104
        %v6107 = vcombine.high %v5755, %v5755
        %v6109 = vunpack.c.l.s4 1983009808
        %v6110 = vunpack.c.0.s8 %v6109
        %v6111 = vlaneseq
        %v6112 = vshrl.u32 %v6111, 7
        %v6113 = vsub.s32 %v6110, %v6112
        %v6114 = vrot.slane %v5755, %v6113
        %v6116 = vunpack.c.l.s4 1983009808
        %v6117 = vunpack.c.0.s8 %v6116
        %v6118 = vlaneseq
        %v6119 = vshrl.u32 %v6118, 7
        %v6120 = vsub.s32 %v6117, %v6119
        %v6121 = vrot.slane %v6107, %v6120
        %v6122 = vcombine.high %v6114, %v6114
        %v6123 = vcombine.high %v6121, %v6121
        %v6124 = vcombine.high %v5756, %v5756
        %v6126 = vunpack.c.l.s4 1983009808
        %v6127 = vunpack.c.0.s8 %v6126
        %v6128 = vlaneseq
        %v6129 = vshrl.u32 %v6128, 7
        %v6130 = vsub.s32 %v6127, %v6129
        %v6131 = vrot.slane %v5756, %v6130
        %v6133 = vunpack.c.l.s4 1983009808
        %v6134 = vunpack.c.0.s8 %v6133
        %v6135 = vlaneseq
        %v6136 = vshrl.u32 %v6135, 7
        %v6137 = vsub.s32 %v6134, %v6136
        %v6138 = vrot.slane %v6124, %v6137
        %v6139 = vcombine.high %v6131, %v6131
        %v6140 = vcombine.high %v6138, %v6138
        %v6141 = vcombine.high %v5757, %v5757
        %v6143 = vunpack.c.l.s4 1983009808
        %v6144 = vunpack.c.0.s8 %v6143
        %v6145 = vlaneseq
        %v6146 = vshrl.u32 %v6145, 7
        %v6147 = vsub.s32 %v6144, %v6146
        %v6148 = vrot.slane %v5757, %v6147
        %v6150 = vunpack.c.l.s4 1983009808
        %v6151 = vunpack.c.0.s8 %v6150
        %v6152 = vlaneseq
        %v6153 = vshrl.u32 %v6152, 7
        %v6154 = vsub.s32 %v6151, %v6153
        %v6155 = vrot.slane %v6141, %v6154
        %v6156 = vcombine.high %v6148, %v6148
        %v6157 = vcombine.high %v6155, %v6155
        %v6158 = vcombine.high %v5758, %v5758
        %v6160 = vunpack.c.l.s4 1983009808
        %v6161 = vunpack.c.0.s8 %v6160
        %v6162 = vlaneseq
        %v6163 = vshrl.u32 %v6162, 7
        %v6164 = vsub.s32 %v6161, %v6163
        %v6165 = vrot.slane %v5758, %v6164
        %v6167 = vunpack.c.l.s4 1983009808
        %v6168 = vunpack.c.0.s8 %v6167
        %v6169 = vlaneseq
        %v6170 = vshrl.u32 %v6169, 7
        %v6171 = vsub.s32 %v6168, %v6170
        %v6172 = vrot.slane %v6158, %v6171
        %v6173 = vcombine.high %v6165, %v6165
        %v6174 = vcombine.high %v6172, %v6172
        %v6175 = vcombine.high %v5759, %v5759
        %v6177 = vunpack.c.l.s4 1983009808
        %v6178 = vunpack.c.0.s8 %v6177
        %v6179 = vlaneseq
        %v6180 = vshrl.u32 %v6179, 7
        %v6181 = vsub.s32 %v6178, %v6180
        %v6182 = vrot.slane %v5759, %v6181
        %v6184 = vunpack.c.l.s4 1983009808
        %v6185 = vunpack.c.0.s8 %v6184
        %v6186 = vlaneseq
        %v6187 = vshrl.u32 %v6186, 7
        %v6188 = vsub.s32 %v6185, %v6187
        %v6189 = vrot.slane %v6175, %v6188
        %v6190 = vcombine.high %v6182, %v6182
        %v6191 = vcombine.high %v6189, %v6189
        %v6192 = vcombine.high %v5760, %v5760
        %v6194 = vunpack.c.l.s4 1983009808
        %v6195 = vunpack.c.0.s8 %v6194
        %v6196 = vlaneseq
        %v6197 = vshrl.u32 %v6196, 7
        %v6198 = vsub.s32 %v6195, %v6197
        %v6199 = vrot.slane %v5760, %v6198
        %v6201 = vunpack.c.l.s4 1983009808
        %v6202 = vunpack.c.0.s8 %v6201
        %v6203 = vlaneseq
        %v6204 = vshrl.u32 %v6203, 7
        %v6205 = vsub.s32 %v6202, %v6204
        %v6206 = vrot.slane %v6192, %v6205
        %v6207 = vcombine.high %v6199, %v6199
        %v6208 = vcombine.high %v6206, %v6206
        %v6209 = vcombine.high %v5761, %v5761
        %v6211 = vunpack.c.l.s4 1983009808
        %v6212 = vunpack.c.0.s8 %v6211
        %v6213 = vlaneseq
        %v6214 = vshrl.u32 %v6213, 7
        %v6215 = vsub.s32 %v6212, %v6214
        %v6216 = vrot.slane %v5761, %v6215
        %v6218 = vunpack.c.l.s4 1983009808
        %v6219 = vunpack.c.0.s8 %v6218
        %v6220 = vlaneseq
        %v6221 = vshrl.u32 %v6220, 7
        %v6222 = vsub.s32 %v6219, %v6221
        %v6223 = vrot.slane %v6209, %v6222
        %v6224 = vcombine.high %v6216, %v6216
        %v6225 = vcombine.high %v6223, %v6223
        %v6226 = vcombine.high %v5762, %v5762
        %v6228 = vunpack.c.l.s4 1983009808
        %v6229 = vunpack.c.0.s8 %v6228
        %v6230 = vlaneseq
        %v6231 = vshrl.u32 %v6230, 7
        %v6232 = vsub.s32 %v6229, %v6231
        %v6233 = vrot.slane %v5762, %v6232
        %v6235 = vunpack.c.l.s4 1983009808
        %v6236 = vunpack.c.0.s8 %v6235
        %v6237 = vlaneseq
        %v6238 = vshrl.u32 %v6237, 7
        %v6239 = vsub.s32 %v6236, %v6238
        %v6240 = vrot.slane %v6226, %v6239
        %v6241 = vcombine.high %v6233, %v6233
        %v6242 = vcombine.high %v6240, %v6240
        %v6243 = vcombine.high %v5763, %v5763
        %v6245 = vunpack.c.l.s4 1983009808
        %v6246 = vunpack.c.0.s8 %v6245
        %v6247 = vlaneseq
        %v6248 = vshrl.u32 %v6247, 7
        %v6249 = vsub.s32 %v6246, %v6248
        %v6250 = vrot.slane %v5763, %v6249
        %v6252 = vunpack.c.l.s4 1983009808
        %v6253 = vunpack.c.0.s8 %v6252
        %v6254 = vlaneseq
        %v6255 = vshrl.u32 %v6254, 7
        %v6256 = vsub.s32 %v6253, %v6255
        %v6257 = vrot.slane %v6243, %v6256
        %v6258 = vcombine.high %v6250, %v6250
        %v6259 = vcombine.high %v6257, %v6257
        %v6260 = vcombine.high %v5764, %v5764
        %v6262 = vunpack.c.l.s4 1983009808
        %v6263 = vunpack.c.0.s8 %v6262
        %v6264 = vlaneseq
        %v6265 = vshrl.u32 %v6264, 7
        %v6266 = vsub.s32 %v6263, %v6265
        %v6267 = vrot.slane %v5764, %v6266
        %v6269 = vunpack.c.l.s4 1983009808
        %v6270 = vunpack.c.0.s8 %v6269
        %v6271 = vlaneseq
        %v6272 = vshrl.u32 %v6271, 7
        %v6273 = vsub.s32 %v6270, %v6272
        %v6274 = vrot.slane %v6260, %v6273
        %v6275 = vcombine.high %v6267, %v6267
        %v6276 = vcombine.high %v6274, %v6274
        %v6277 = vcombine.high %v5765, %v5765
        %v6279 = vunpack.c.l.s4 1983009808
        %v6280 = vunpack.c.0.s8 %v6279
        %v6281 = vlaneseq
        %v6282 = vshrl.u32 %v6281, 7
        %v6283 = vsub.s32 %v6280, %v6282
        %v6284 = vrot.slane %v5765, %v6283
        %v6286 = vunpack.c.l.s4 1983009808
        %v6287 = vunpack.c.0.s8 %v6286
        %v6288 = vlaneseq
        %v6289 = vshrl.u32 %v6288, 7
        %v6290 = vsub.s32 %v6287, %v6289
        %v6291 = vrot.slane %v6277, %v6290
        %v6292 = vcombine.high %v6284, %v6284
        %v6293 = vcombine.high %v6291, %v6291
        %v6294 = vcombine.high %v5766, %v5766
        %v6296 = vunpack.c.l.s4 1983009808
        %v6297 = vunpack.c.0.s8 %v6296
        %v6298 = vlaneseq
        %v6299 = vshrl.u32 %v6298, 7
        %v6300 = vsub.s32 %v6297, %v6299
        %v6301 = vrot.slane %v5766, %v6300
        %v6303 = vunpack.c.l.s4 1983009808
        %v6304 = vunpack.c.0.s8 %v6303
        %v6305 = vlaneseq
        %v6306 = vshrl.u32 %v6305, 7
        %v6307 = vsub.s32 %v6304, %v6306
        %v6308 = vrot.slane %v6294, %v6307
        %v6309 = vcombine.high %v6301, %v6301
        %v6310 = vcombine.high %v6308, %v6308
        %v6311 = vcombine.high %v5767, %v5767
        %v6313 = vunpack.c.l.s4 1983009808
        %v6314 = vunpack.c.0.s8 %v6313
        %v6315 = vlaneseq
        %v6316 = vshrl.u32 %v6315, 7
        %v6317 = vsub.s32 %v6314, %v6316
        %v6318 = vrot.slane %v5767, %v6317
        %v6320 = vunpack.c.l.s4 1983009808
        %v6321 = vunpack.c.0.s8 %v6320
        %v6322 = vlaneseq
        %v6323 = vshrl.u32 %v6322, 7
        %v6324 = vsub.s32 %v6321, %v6323
        %v6325 = vrot.slane %v6311, %v6324
        %v6326 = vcombine.high %v6318, %v6318
        %v6327 = vcombine.high %v6325, %v6325
        %v6328 = vcombine.high %v5768, %v5768
        %v6330 = vunpack.c.l.s4 1983009808
        %v6331 = vunpack.c.0.s8 %v6330
        %v6332 = vlaneseq
        %v6333 = vshrl.u32 %v6332, 7
        %v6334 = vsub.s32 %v6331, %v6333
        %v6335 = vrot.slane %v5768, %v6334
        %v6337 = vunpack.c.l.s4 1983009808
        %v6338 = vunpack.c.0.s8 %v6337
        %v6339 = vlaneseq
        %v6340 = vshrl.u32 %v6339, 7
        %v6341 = vsub.s32 %v6338, %v6340
        %v6342 = vrot.slane %v6328, %v6341
        %v6343 = vcombine.high %v6335, %v6335
        %v6344 = vcombine.high %v6342, %v6342
        %v6473 = vrot.slane %v5808, 7
        %v6474 = vrot.slane %v6473, 2
        %v6475 = vrot.slane %v5816, 7
        %v6476 = vrot.slane %v6475, 2
        %v6477 = vrot.slane %v5815, 7
        %v6478 = vrot.slane %v6477, 2
        %v6479 = vrot.slane %v5817, 7
        %v6480 = vrot.slane %v6479, 2
        %v6481 = vrot.slane %v5825, 7
        %v6482 = vrot.slane %v6481, 2
        %v6483 = vrot.slane %v5833, 7
        %v6484 = vrot.slane %v6483, 2
        %v6485 = vrot.slane %v5832, 7
        %v6486 = vrot.slane %v6485, 2
        %v6487 = vrot.slane %v5834, 7
        %v6488 = vrot.slane %v6487, 2
        %v6489 = vrot.slane %v5842, 7
        %v6490 = vrot.slane %v6489, 2
        %v6491 = vrot.slane %v5850, 7
        %v6492 = vrot.slane %v6491, 2
        %v6493 = vrot.slane %v5849, 7
        %v6494 = vrot.slane %v6493, 2
        %v6495 = vrot.slane %v5851, 7
        %v6496 = vrot.slane %v6495, 2
        %v6497 = vrot.slane %v5859, 7
        %v6498 = vrot.slane %v6497, 2
        %v6499 = vrot.slane %v5867, 7
        %v6500 = vrot.slane %v6499, 2
        %v6501 = vrot.slane %v5866, 7
        %v6502 = vrot.slane %v6501, 2
        %v6503 = vrot.slane %v5868, 7
        %v6504 = vrot.slane %v6503, 2
        %v6505 = vrot.slane %v5876, 7
        %v6506 = vrot.slane %v6505, 2
        %v6507 = vrot.slane %v5884, 7
        %v6508 = vrot.slane %v6507, 2
        %v6509 = vrot.slane %v5883, 7
        %v6510 = vrot.slane %v6509, 2
        %v6511 = vrot.slane %v5885, 7
        %v6512 = vrot.slane %v6511, 2
        %v6513 = vrot.slane %v5893, 7
        %v6514 = vrot.slane %v6513, 2
        %v6515 = vrot.slane %v5901, 7
        %v6516 = vrot.slane %v6515, 2
        %v6517 = vrot.slane %v5900, 7
        %v6518 = vrot.slane %v6517, 2
        %v6519 = vrot.slane %v5902, 7
        %v6520 = vrot.slane %v6519, 2
        %v6521 = vrot.slane %v5910, 7
        %v6522 = vrot.slane %v6521, 2
        %v6523 = vrot.slane %v5918, 7
        %v6524 = vrot.slane %v6523, 2
        %v6525 = vrot.slane %v5917, 7
        %v6526 = vrot.slane %v6525, 2
        %v6527 = vrot.slane %v5919, 7
        %v6528 = vrot.slane %v6527, 2
        %v6529 = vrot.slane %v5927, 7
        %v6530 = vrot.slane %v6529, 2
        %v6531 = vrot.slane %v5935, 7
        %v6532 = vrot.slane %v6531, 2
        %v6533 = vrot.slane %v5934, 7
        %v6534 = vrot.slane %v6533, 2
        %v6535 = vrot.slane %v5936, 7
        %v6536 = vrot.slane %v6535, 2
        %v6537 = vrot.slane %v5944, 7
        %v6538 = vrot.slane %v6537, 2
        %v6539 = vrot.slane %v5952, 7
        %v6540 = vrot.slane %v6539, 2
        %v6541 = vrot.slane %v5951, 7
        %v6542 = vrot.slane %v6541, 2
        %v6543 = vrot.slane %v5953, 7
        %v6544 = vrot.slane %v6543, 2
        %v6545 = vrot.slane %v5961, 7
        %v6546 = vrot.slane %v6545, 2
        %v6547 = vrot.slane %v5969, 7
        %v6548 = vrot.slane %v6547, 2
        %v6549 = vrot.slane %v5968, 7
        %v6550 = vrot.slane %v6549, 2
        %v6551 = vrot.slane %v5970, 7
        %v6552 = vrot.slane %v6551, 2
        %v6553 = vrot.slane %v5978, 7
        %v6554 = vrot.slane %v6553, 2
        %v6555 = vrot.slane %v5986, 7
        %v6556 = vrot.slane %v6555, 2
        %v6557 = vrot.slane %v5985, 7
        %v6558 = vrot.slane %v6557, 2
        %v6559 = vrot.slane %v5987, 7
        %v6560 = vrot.slane %v6559, 2
        %v6561 = vrot.slane %v5995, 7
        %v6562 = vrot.slane %v6561, 2
        %v6563 = vrot.slane %v6003, 7
        %v6564 = vrot.slane %v6563, 2
        %v6565 = vrot.slane %v6002, 7
        %v6566 = vrot.slane %v6565, 2
        %v6567 = vrot.slane %v6004, 7
        %v6568 = vrot.slane %v6567, 2
        %v6569 = vrot.slane %v6012, 7
        %v6570 = vrot.slane %v6569, 2
        %v6571 = vrot.slane %v6020, 7
        %v6572 = vrot.slane %v6571, 2
        %v6573 = vrot.slane %v6019, 7
        %v6574 = vrot.slane %v6573, 2
        %v6575 = vrot.slane %v6021, 7
        %v6576 = vrot.slane %v6575, 2
        %v6577 = vrot.slane %v6029, 7
        %v6578 = vrot.slane %v6577, 2
        %v6579 = vrot.slane %v6037, 7
        %v6580 = vrot.slane %v6579, 2
        %v6581 = vrot.slane %v6036, 7
        %v6582 = vrot.slane %v6581, 2
        %v6583 = vrot.slane %v6038, 7
        %v6584 = vrot.slane %v6583, 2
        %v6585 = vrot.slane %v6046, 7
        %v6586 = vrot.slane %v6585, 2
        %v6587 = vrot.slane %v6054, 7
        %v6588 = vrot.slane %v6587, 2
        %v6589 = vrot.slane %v6053, 7
        %v6590 = vrot.slane %v6589, 2
        %v6591 = vrot.slane %v6055, 7
        %v6592 = vrot.slane %v6591, 2
        %v6593 = vrot.slane %v6063, 7
        %v6594 = vrot.slane %v6593, 2
        %v6595 = vrot.slane %v6071, 7
        %v6596 = vrot.slane %v6595, 2
        %v6597 = vrot.slane %v6070, 7
        %v6598 = vrot.slane %v6597, 2
        %v6599 = vrot.slane %v6072, 7
        %v6600 = vrot.slane %v6599, 2
        %v6601 = vrot.slane %v6080, 7
        %v6602 = vrot.slane %v6601, 2
        %v6603 = vrot.slane %v6088, 7
        %v6604 = vrot.slane %v6603, 2
        %v6605 = vrot.slane %v6087, 7
        %v6606 = vrot.slane %v6605, 2
        %v6607 = vrot.slane %v6089, 7
        %v6608 = vrot.slane %v6607, 2
        %v6609 = vrot.slane %v6097, 7
        %v6610 = vrot.slane %v6609, 2
        %v6611 = vrot.slane %v6105, 7
        %v6612 = vrot.slane %v6611, 2
        %v6613 = vrot.slane %v6104, 7
        %v6614 = vrot.slane %v6613, 2
        %v6615 = vrot.slane %v6106, 7
        %v6616 = vrot.slane %v6615, 2
        %v6617 = vrot.slane %v6114, 7
        %v6618 = vrot.slane %v6617, 2
        %v6619 = vrot.slane %v6122, 7
        %v6620 = vrot.slane %v6619, 2
        %v6621 = vrot.slane %v6121, 7
        %v6622 = vrot.slane %v6621, 2
        %v6623 = vrot.slane %v6123, 7
        %v6624 = vrot.slane %v6623, 2
        %v6625 = vrot.slane %v6131, 7
        %v6626 = vrot.slane %v6625, 2
        %v6627 = vrot.slane %v6139, 7
        %v6628 = vrot.slane %v6627, 2
        %v6629 = vrot.slane %v6138, 7
        %v6630 = vrot.slane %v6629, 2
        %v6631 = vrot.slane %v6140, 7
        %v6632 = vrot.slane %v6631, 2
        %v6633 = vrot.slane %v6148, 7
        %v6634 = vrot.slane %v6633, 2
        %v6635 = vrot.slane %v6156, 7
        %v6636 = vrot.slane %v6635, 2
        %v6637 = vrot.slane %v6155, 7
        %v6638 = vrot.slane %v6637, 2
        %v6639 = vrot.slane %v6157, 7
        %v6640 = vrot.slane %v6639, 2
        %v6641 = vrot.slane %v6165, 7
        %v6642 = vrot.slane %v6641, 2
        %v6643 = vrot.slane %v6173, 7
        %v6644 = vrot.slane %v6643, 2
        %v6645 = vrot.slane %v6172, 7
        %v6646 = vrot.slane %v6645, 2
        %v6647 = vrot.slane %v6174, 7
        %v6648 = vrot.slane %v6647, 2
        %v6649 = vrot.slane %v6182, 7
        %v6650 = vrot.slane %v6649, 2
        %v6651 = vrot.slane %v6190, 7
        %v6652 = vrot.slane %v6651, 2
        %v6653 = vrot.slane %v6189, 7
        %v6654 = vrot.slane %v6653, 2
        %v6655 = vrot.slane %v6191, 7
        %v6656 = vrot.slane %v6655, 2
        %v6657 = vrot.slane %v6199, 7
        %v6658 = vrot.slane %v6657, 2
        %v6659 = vrot.slane %v6207, 7
        %v6660 = vrot.slane %v6659, 2
        %v6661 = vrot.slane %v6206, 7
        %v6662 = vrot.slane %v6661, 2
        %v6663 = vrot.slane %v6208, 7
        %v6664 = vrot.slane %v6663, 2
        %v6665 = vrot.slane %v6216, 7
        %v6666 = vrot.slane %v6665, 2
        %v6667 = vrot.slane %v6224, 7
        %v6668 = vrot.slane %v6667, 2
        %v6669 = vrot.slane %v6223, 7
        %v6670 = vrot.slane %v6669, 2
        %v6671 = vrot.slane %v6225, 7
        %v6672 = vrot.slane %v6671, 2
        %v6673 = vrot.slane %v6233, 7
        %v6674 = vrot.slane %v6673, 2
        %v6675 = vrot.slane %v6241, 7
        %v6676 = vrot.slane %v6675, 2
        %v6677 = vrot.slane %v6240, 7
        %v6678 = vrot.slane %v6677, 2
        %v6679 = vrot.slane %v6242, 7
        %v6680 = vrot.slane %v6679, 2
        %v6681 = vrot.slane %v6250, 7
        %v6682 = vrot.slane %v6681, 2
        %v6683 = vrot.slane %v6258, 7
        %v6684 = vrot.slane %v6683, 2
        %v6685 = vrot.slane %v6257, 7
        %v6686 = vrot.slane %v6685, 2
        %v6687 = vrot.slane %v6259, 7
        %v6688 = vrot.slane %v6687, 2
        %v6689 = vrot.slane %v6267, 7
        %v6690 = vrot.slane %v6689, 2
        %v6691 = vrot.slane %v6275, 7
        %v6692 = vrot.slane %v6691, 2
        %v6693 = vrot.slane %v6274, 7
        %v6694 = vrot.slane %v6693, 2
        %v6695 = vrot.slane %v6276, 7
        %v6696 = vrot.slane %v6695, 2
        %v6697 = vrot.slane %v6284, 7
        %v6698 = vrot.slane %v6697, 2
        %v6699 = vrot.slane %v6292, 7
        %v6700 = vrot.slane %v6699, 2
        %v6701 = vrot.slane %v6291, 7
        %v6702 = vrot.slane %v6701, 2
        %v6703 = vrot.slane %v6293, 7
        %v6704 = vrot.slane %v6703, 2
        %v6705 = vrot.slane %v6301, 7
        %v6706 = vrot.slane %v6705, 2
        %v6707 = vrot.slane %v6309, 7
        %v6708 = vrot.slane %v6707, 2
        %v6709 = vrot.slane %v6308, 7
        %v6710 = vrot.slane %v6709, 2
        %v6711 = vrot.slane %v6310, 7
        %v6712 = vrot.slane %v6711, 2
        %v6713 = vrot.slane %v6318, 7
        %v6714 = vrot.slane %v6713, 2
        %v6715 = vrot.slane %v6326, 7
        %v6716 = vrot.slane %v6715, 2
        %v6717 = vrot.slane %v6325, 7
        %v6718 = vrot.slane %v6717, 2
        %v6719 = vrot.slane %v6327, 7
        %v6720 = vrot.slane %v6719, 2
        %v6721 = vrot.slane %v6335, 7
        %v6722 = vrot.slane %v6721, 2
        %v6723 = vrot.slane %v6343, 7
        %v6724 = vrot.slane %v6723, 2
        %v6725 = vrot.slane %v6342, 7
        %v6726 = vrot.slane %v6725, 2
        %v6727 = vrot.slane %v6344, 7
        %v6728 = vrot.slane %v6727, 2
        %v6857 = vmax.f32 %v5808, %v6474
        %v6858 = vmax.f32 %v5816, %v6476
        %v6859 = vmax.f32 %v5815, %v6478
        %v6860 = vmax.f32 %v5817, %v6480
        %v6861 = vmax.f32 %v5825, %v6482
        %v6862 = vmax.f32 %v5833, %v6484
        %v6863 = vmax.f32 %v5832, %v6486
        %v6864 = vmax.f32 %v5834, %v6488
        %v6865 = vmax.f32 %v5842, %v6490
        %v6866 = vmax.f32 %v5850, %v6492
        %v6867 = vmax.f32 %v5849, %v6494
        %v6868 = vmax.f32 %v5851, %v6496
        %v6869 = vmax.f32 %v5859, %v6498
        %v6870 = vmax.f32 %v5867, %v6500
        %v6871 = vmax.f32 %v5866, %v6502
        %v6872 = vmax.f32 %v5868, %v6504
        %v6873 = vmax.f32 %v5876, %v6506
        %v6874 = vmax.f32 %v5884, %v6508
        %v6875 = vmax.f32 %v5883, %v6510
        %v6876 = vmax.f32 %v5885, %v6512
        %v6877 = vmax.f32 %v5893, %v6514
        %v6878 = vmax.f32 %v5901, %v6516
        %v6879 = vmax.f32 %v5900, %v6518
        %v6880 = vmax.f32 %v5902, %v6520
        %v6881 = vmax.f32 %v5910, %v6522
        %v6882 = vmax.f32 %v5918, %v6524
        %v6883 = vmax.f32 %v5917, %v6526
        %v6884 = vmax.f32 %v5919, %v6528
        %v6885 = vmax.f32 %v5927, %v6530
        %v6886 = vmax.f32 %v5935, %v6532
        %v6887 = vmax.f32 %v5934, %v6534
        %v6888 = vmax.f32 %v5936, %v6536
        %v6889 = vmax.f32 %v5944, %v6538
        %v6890 = vmax.f32 %v5952, %v6540
        %v6891 = vmax.f32 %v5951, %v6542
        %v6892 = vmax.f32 %v5953, %v6544
        %v6893 = vmax.f32 %v5961, %v6546
        %v6894 = vmax.f32 %v5969, %v6548
        %v6895 = vmax.f32 %v5968, %v6550
        %v6896 = vmax.f32 %v5970, %v6552
        %v6897 = vmax.f32 %v5978, %v6554
        %v6898 = vmax.f32 %v5986, %v6556
        %v6899 = vmax.f32 %v5985, %v6558
        %v6900 = vmax.f32 %v5987, %v6560
        %v6901 = vmax.f32 %v5995, %v6562
        %v6902 = vmax.f32 %v6003, %v6564
        %v6903 = vmax.f32 %v6002, %v6566
        %v6904 = vmax.f32 %v6004, %v6568
        %v6905 = vmax.f32 %v6012, %v6570
        %v6906 = vmax.f32 %v6020, %v6572
        %v6907 = vmax.f32 %v6019, %v6574
        %v6908 = vmax.f32 %v6021, %v6576
        %v6909 = vmax.f32 %v6029, %v6578
        %v6910 = vmax.f32 %v6037, %v6580
        %v6911 = vmax.f32 %v6036, %v6582
        %v6912 = vmax.f32 %v6038, %v6584
        %v6913 = vmax.f32 %v6046, %v6586
        %v6914 = vmax.f32 %v6054, %v6588
        %v6915 = vmax.f32 %v6053, %v6590
        %v6916 = vmax.f32 %v6055, %v6592
        %v6917 = vmax.f32 %v6063, %v6594
        %v6918 = vmax.f32 %v6071, %v6596
        %v6919 = vmax.f32 %v6070, %v6598
        %v6920 = vmax.f32 %v6072, %v6600
        %v6921 = vmax.f32 %v6080, %v6602
        %v6922 = vmax.f32 %v6088, %v6604
        %v6923 = vmax.f32 %v6087, %v6606
        %v6924 = vmax.f32 %v6089, %v6608
        %v6925 = vmax.f32 %v6097, %v6610
        %v6926 = vmax.f32 %v6105, %v6612
        %v6927 = vmax.f32 %v6104, %v6614
        %v6928 = vmax.f32 %v6106, %v6616
        %v6929 = vmax.f32 %v6114, %v6618
        %v6930 = vmax.f32 %v6122, %v6620
        %v6931 = vmax.f32 %v6121, %v6622
        %v6932 = vmax.f32 %v6123, %v6624
        %v6933 = vmax.f32 %v6131, %v6626
        %v6934 = vmax.f32 %v6139, %v6628
        %v6935 = vmax.f32 %v6138, %v6630
        %v6936 = vmax.f32 %v6140, %v6632
        %v6937 = vmax.f32 %v6148, %v6634
        %v6938 = vmax.f32 %v6156, %v6636
        %v6939 = vmax.f32 %v6155, %v6638
        %v6940 = vmax.f32 %v6157, %v6640
        %v6941 = vmax.f32 %v6165, %v6642
        %v6942 = vmax.f32 %v6173, %v6644
        %v6943 = vmax.f32 %v6172, %v6646
        %v6944 = vmax.f32 %v6174, %v6648
        %v6945 = vmax.f32 %v6182, %v6650
        %v6946 = vmax.f32 %v6190, %v6652
        %v6947 = vmax.f32 %v6189, %v6654
        %v6948 = vmax.f32 %v6191, %v6656
        %v6949 = vmax.f32 %v6199, %v6658
        %v6950 = vmax.f32 %v6207, %v6660
        %v6951 = vmax.f32 %v6206, %v6662
        %v6952 = vmax.f32 %v6208, %v6664
        %v6953 = vmax.f32 %v6216, %v6666
        %v6954 = vmax.f32 %v6224, %v6668
        %v6955 = vmax.f32 %v6223, %v6670
        %v6956 = vmax.f32 %v6225, %v6672
        %v6957 = vmax.f32 %v6233, %v6674
        %v6958 = vmax.f32 %v6241, %v6676
        %v6959 = vmax.f32 %v6240, %v6678
        %v6960 = vmax.f32 %v6242, %v6680
        %v6961 = vmax.f32 %v6250, %v6682
        %v6962 = vmax.f32 %v6258, %v6684
        %v6963 = vmax.f32 %v6257, %v6686
        %v6964 = vmax.f32 %v6259, %v6688
        %v6965 = vmax.f32 %v6267, %v6690
        %v6966 = vmax.f32 %v6275, %v6692
        %v6967 = vmax.f32 %v6274, %v6694
        %v6968 = vmax.f32 %v6276, %v6696
        %v6969 = vmax.f32 %v6284, %v6698
        %v6970 = vmax.f32 %v6292, %v6700
        %v6971 = vmax.f32 %v6291, %v6702
        %v6972 = vmax.f32 %v6293, %v6704
        %v6973 = vmax.f32 %v6301, %v6706
        %v6974 = vmax.f32 %v6309, %v6708
        %v6975 = vmax.f32 %v6308, %v6710
        %v6976 = vmax.f32 %v6310, %v6712
        %v6977 = vmax.f32 %v6318, %v6714
        %v6978 = vmax.f32 %v6326, %v6716
        %v6979 = vmax.f32 %v6325, %v6718
        %v6980 = vmax.f32 %v6327, %v6720
        %v6981 = vmax.f32 %v6335, %v6722
        %v6982 = vmax.f32 %v6343, %v6724
        %v6983 = vmax.f32 %v6342, %v6726
        %v6984 = vmax.f32 %v6344, %v6728
        %v6985 = vmax.f32 %v6857, %v6865
        %v6986 = vmax.f32 %v6858, %v6866
        %v6987 = vmax.f32 %v6859, %v6867
        %v6988 = vmax.f32 %v6860, %v6868
        %v6989 = vmax.f32 %v6861, %v6869
        %v6990 = vmax.f32 %v6862, %v6870
        %v6991 = vmax.f32 %v6863, %v6871
        %v6992 = vmax.f32 %v6864, %v6872
        %v6993 = vmax.f32 %v6873, %v6881
        %v6994 = vmax.f32 %v6874, %v6882
        %v6995 = vmax.f32 %v6875, %v6883
        %v6996 = vmax.f32 %v6876, %v6884
        %v6997 = vmax.f32 %v6877, %v6885
        %v6998 = vmax.f32 %v6878, %v6886
        %v6999 = vmax.f32 %v6879, %v6887
        %v7000 = vmax.f32 %v6880, %v6888
        %v7001 = vmax.f32 %v6889, %v6897
        %v7002 = vmax.f32 %v6890, %v6898
        %v7003 = vmax.f32 %v6891, %v6899
        %v7004 = vmax.f32 %v6892, %v6900
        %v7005 = vmax.f32 %v6893, %v6901
        %v7006 = vmax.f32 %v6894, %v6902
        %v7007 = vmax.f32 %v6895, %v6903
        %v7008 = vmax.f32 %v6896, %v6904
        %v7009 = vmax.f32 %v6905, %v6913
        %v7010 = vmax.f32 %v6906, %v6914
        %v7011 = vmax.f32 %v6907, %v6915
        %v7012 = vmax.f32 %v6908, %v6916
        %v7013 = vmax.f32 %v6909, %v6917
        %v7014 = vmax.f32 %v6910, %v6918
        %v7015 = vmax.f32 %v6911, %v6919
        %v7016 = vmax.f32 %v6912, %v6920
        %v7017 = vmax.f32 %v6921, %v6929
        %v7018 = vmax.f32 %v6922, %v6930
        %v7019 = vmax.f32 %v6923, %v6931
        %v7020 = vmax.f32 %v6924, %v6932
        %v7021 = vmax.f32 %v6925, %v6933
        %v7022 = vmax.f32 %v6926, %v6934
        %v7023 = vmax.f32 %v6927, %v6935
        %v7024 = vmax.f32 %v6928, %v6936
        %v7025 = vmax.f32 %v6937, %v6945
        %v7026 = vmax.f32 %v6938, %v6946
        %v7027 = vmax.f32 %v6939, %v6947
        %v7028 = vmax.f32 %v6940, %v6948
        %v7029 = vmax.f32 %v6941, %v6949
        %v7030 = vmax.f32 %v6942, %v6950
        %v7031 = vmax.f32 %v6943, %v6951
        %v7032 = vmax.f32 %v6944, %v6952
        %v7033 = vmax.f32 %v6953, %v6961
        %v7034 = vmax.f32 %v6954, %v6962
        %v7035 = vmax.f32 %v6955, %v6963
        %v7036 = vmax.f32 %v6956, %v6964
        %v7037 = vmax.f32 %v6957, %v6965
        %v7038 = vmax.f32 %v6958, %v6966
        %v7039 = vmax.f32 %v6959, %v6967
        %v7040 = vmax.f32 %v6960, %v6968
        %v7041 = vmax.f32 %v6969, %v6977
        %v7042 = vmax.f32 %v6970, %v6978
        %v7043 = vmax.f32 %v6971, %v6979
        %v7044 = vmax.f32 %v6972, %v6980
        %v7045 = vmax.f32 %v6973, %v6981
        %v7046 = vmax.f32 %v6974, %v6982
        %v7047 = vmax.f32 %v6975, %v6983
        %v7048 = vmax.f32 %v6976, %v6984
        %v7049 = vld [vmem:[%s29] sm:$0xff]
        %v7050 = vld [vmem:[%s29 + $0x8] sm:$0xff]
        %v7051 = vld [vmem:[%s29 + $0x10] sm:$0xff]
        %v7052 = vld [vmem:[%s29 + $0x18] sm:$0xff]
        %v7053 = vld [vmem:[%s29 + $0x20] sm:$0xff]
        %v7054 = vld [vmem:[%s29 + $0x28] sm:$0xff]
        %v7055 = vld [vmem:[%s29 + $0x30] sm:$0xff]
        %v7056 = vld [vmem:[%s29 + $0x38] sm:$0xff]
        %v7057 = vld [vmem:[%s29 + $0x40] sm:$0xff]
        %v7058 = vld [vmem:[%s29 + $0x48] sm:$0xff]
        %v7059 = vld [vmem:[%s29 + $0x50] sm:$0xff]
        %v7060 = vld [vmem:[%s29 + $0x58] sm:$0xff]
        %v7061 = vld [vmem:[%s29 + $0x60] sm:$0xff]
        %v7062 = vld [vmem:[%s29 + $0x68] sm:$0xff]
        %v7063 = vld [vmem:[%s29 + $0x70] sm:$0xff]
        %v7064 = vld [vmem:[%s29 + $0x78] sm:$0xff]
        %v7129 = vlaneseq
        %v7130 = vshrl.u32 %v7129, 7
        %v7131 = vsub.s32 0, %v7130
        %v7132 = vrot.slane %v6985, %v7131
        %v7133 = vlaneseq
        %v7134 = vshrl.u32 %v7133, 7
        %v7135 = vsub.s32 0, %v7134
        %v7136 = vrot.slane %v6986, %v7135
        %v7137 = vlaneseq
        %v7138 = vshrl.u32 %v7137, 7
        %v7139 = vsub.s32 0, %v7138
        %v7140 = vrot.slane %v6987, %v7139
        %v7141 = vlaneseq
        %v7142 = vshrl.u32 %v7141, 7
        %v7143 = vsub.s32 0, %v7142
        %v7144 = vrot.slane %v6988, %v7143
        %v7145 = vlaneseq
        %v7146 = vshrl.u32 %v7145, 7
        %v7147 = vsub.s32 0, %v7146
        %v7148 = vrot.slane %v6989, %v7147
        %v7149 = vlaneseq
        %v7150 = vshrl.u32 %v7149, 7
        %v7151 = vsub.s32 0, %v7150
        %v7152 = vrot.slane %v6990, %v7151
        %v7153 = vlaneseq
        %v7154 = vshrl.u32 %v7153, 7
        %v7155 = vsub.s32 0, %v7154
        %v7156 = vrot.slane %v6991, %v7155
        %v7157 = vlaneseq
        %v7158 = vshrl.u32 %v7157, 7
        %v7159 = vsub.s32 0, %v7158
        %v7160 = vrot.slane %v6992, %v7159
        %v7161 = vlaneseq
        %v7162 = vshrl.u32 %v7161, 7
        %v7163 = vsub.s32 0, %v7162
        %v7164 = vrot.slane %v6993, %v7163
        %v7165 = vlaneseq
        %v7166 = vshrl.u32 %v7165, 7
        %v7167 = vsub.s32 0, %v7166
        %v7168 = vrot.slane %v6994, %v7167
        %v7169 = vlaneseq
        %v7170 = vshrl.u32 %v7169, 7
        %v7171 = vsub.s32 0, %v7170
        %v7172 = vrot.slane %v6995, %v7171
        %v7173 = vlaneseq
        %v7174 = vshrl.u32 %v7173, 7
        %v7175 = vsub.s32 0, %v7174
        %v7176 = vrot.slane %v6996, %v7175
        %v7177 = vlaneseq
        %v7178 = vshrl.u32 %v7177, 7
        %v7179 = vsub.s32 0, %v7178
        %v7180 = vrot.slane %v6997, %v7179
        %v7181 = vlaneseq
        %v7182 = vshrl.u32 %v7181, 7
        %v7183 = vsub.s32 0, %v7182
        %v7184 = vrot.slane %v6998, %v7183
        %v7185 = vlaneseq
        %v7186 = vshrl.u32 %v7185, 7
        %v7187 = vsub.s32 0, %v7186
        %v7188 = vrot.slane %v6999, %v7187
        %v7189 = vlaneseq
        %v7190 = vshrl.u32 %v7189, 7
        %v7191 = vsub.s32 0, %v7190
        %v7192 = vrot.slane %v7000, %v7191
        %v7193 = vlaneseq
        %v7194 = vshrl.u32 %v7193, 7
        %v7195 = vsub.s32 0, %v7194
        %v7196 = vrot.slane %v7001, %v7195
        %v7197 = vlaneseq
        %v7198 = vshrl.u32 %v7197, 7
        %v7199 = vsub.s32 0, %v7198
        %v7200 = vrot.slane %v7002, %v7199
        %v7201 = vlaneseq
        %v7202 = vshrl.u32 %v7201, 7
        %v7203 = vsub.s32 0, %v7202
        %v7204 = vrot.slane %v7003, %v7203
        %v7205 = vlaneseq
        %v7206 = vshrl.u32 %v7205, 7
        %v7207 = vsub.s32 0, %v7206
        %v7208 = vrot.slane %v7004, %v7207
        %v7209 = vlaneseq
        %v7210 = vshrl.u32 %v7209, 7
        %v7211 = vsub.s32 0, %v7210
        %v7212 = vrot.slane %v7005, %v7211
        %v7213 = vlaneseq
        %v7214 = vshrl.u32 %v7213, 7
        %v7215 = vsub.s32 0, %v7214
        %v7216 = vrot.slane %v7006, %v7215
        %v7217 = vlaneseq
        %v7218 = vshrl.u32 %v7217, 7
        %v7219 = vsub.s32 0, %v7218
        %v7220 = vrot.slane %v7007, %v7219
        %v7221 = vlaneseq
        %v7222 = vshrl.u32 %v7221, 7
        %v7223 = vsub.s32 0, %v7222
        %v7224 = vrot.slane %v7008, %v7223
        %v7225 = vlaneseq
        %v7226 = vshrl.u32 %v7225, 7
        %v7227 = vsub.s32 0, %v7226
        %v7228 = vrot.slane %v7009, %v7227
        %v7229 = vlaneseq
        %v7230 = vshrl.u32 %v7229, 7
        %v7231 = vsub.s32 0, %v7230
        %v7232 = vrot.slane %v7010, %v7231
        %v7233 = vlaneseq
        %v7234 = vshrl.u32 %v7233, 7
        %v7235 = vsub.s32 0, %v7234
        %v7236 = vrot.slane %v7011, %v7235
        %v7237 = vlaneseq
        %v7238 = vshrl.u32 %v7237, 7
        %v7239 = vsub.s32 0, %v7238
        %v7240 = vrot.slane %v7012, %v7239
        %v7241 = vlaneseq
        %v7242 = vshrl.u32 %v7241, 7
        %v7243 = vsub.s32 0, %v7242
        %v7244 = vrot.slane %v7013, %v7243
        %v7245 = vlaneseq
        %v7246 = vshrl.u32 %v7245, 7
        %v7247 = vsub.s32 0, %v7246
        %v7248 = vrot.slane %v7014, %v7247
        %v7249 = vlaneseq
        %v7250 = vshrl.u32 %v7249, 7
        %v7251 = vsub.s32 0, %v7250
        %v7252 = vrot.slane %v7015, %v7251
        %v7253 = vlaneseq
        %v7254 = vshrl.u32 %v7253, 7
        %v7255 = vsub.s32 0, %v7254
        %v7256 = vrot.slane %v7016, %v7255
        %v7257 = vlaneseq
        %v7258 = vshrl.u32 %v7257, 7
        %v7259 = vsub.s32 0, %v7258
        %v7260 = vrot.slane %v7017, %v7259
        %v7261 = vlaneseq
        %v7262 = vshrl.u32 %v7261, 7
        %v7263 = vsub.s32 0, %v7262
        %v7264 = vrot.slane %v7018, %v7263
        %v7265 = vlaneseq
        %v7266 = vshrl.u32 %v7265, 7
        %v7267 = vsub.s32 0, %v7266
        %v7268 = vrot.slane %v7019, %v7267
        %v7269 = vlaneseq
        %v7270 = vshrl.u32 %v7269, 7
        %v7271 = vsub.s32 0, %v7270
        %v7272 = vrot.slane %v7020, %v7271
        %v7273 = vlaneseq
        %v7274 = vshrl.u32 %v7273, 7
        %v7275 = vsub.s32 0, %v7274
        %v7276 = vrot.slane %v7021, %v7275
        %v7277 = vlaneseq
        %v7278 = vshrl.u32 %v7277, 7
        %v7279 = vsub.s32 0, %v7278
        %v7280 = vrot.slane %v7022, %v7279
        %v7281 = vlaneseq
        %v7282 = vshrl.u32 %v7281, 7
        %v7283 = vsub.s32 0, %v7282
        %v7284 = vrot.slane %v7023, %v7283
        %v7285 = vlaneseq
        %v7286 = vshrl.u32 %v7285, 7
        %v7287 = vsub.s32 0, %v7286
        %v7288 = vrot.slane %v7024, %v7287
        %v7289 = vlaneseq
        %v7290 = vshrl.u32 %v7289, 7
        %v7291 = vsub.s32 0, %v7290
        %v7292 = vrot.slane %v7025, %v7291
        %v7293 = vlaneseq
        %v7294 = vshrl.u32 %v7293, 7
        %v7295 = vsub.s32 0, %v7294
        %v7296 = vrot.slane %v7026, %v7295
        %v7297 = vlaneseq
        %v7298 = vshrl.u32 %v7297, 7
        %v7299 = vsub.s32 0, %v7298
        %v7300 = vrot.slane %v7027, %v7299
        %v7301 = vlaneseq
        %v7302 = vshrl.u32 %v7301, 7
        %v7303 = vsub.s32 0, %v7302
        %v7304 = vrot.slane %v7028, %v7303
        %v7305 = vlaneseq
        %v7306 = vshrl.u32 %v7305, 7
        %v7307 = vsub.s32 0, %v7306
        %v7308 = vrot.slane %v7029, %v7307
        %v7309 = vlaneseq
        %v7310 = vshrl.u32 %v7309, 7
        %v7311 = vsub.s32 0, %v7310
        %v7312 = vrot.slane %v7030, %v7311
        %v7313 = vlaneseq
        %v7314 = vshrl.u32 %v7313, 7
        %v7315 = vsub.s32 0, %v7314
        %v7316 = vrot.slane %v7031, %v7315
        %v7317 = vlaneseq
        %v7318 = vshrl.u32 %v7317, 7
        %v7319 = vsub.s32 0, %v7318
        %v7320 = vrot.slane %v7032, %v7319
        %v7321 = vlaneseq
        %v7322 = vshrl.u32 %v7321, 7
        %v7323 = vsub.s32 0, %v7322
        %v7324 = vrot.slane %v7033, %v7323
        %v7325 = vlaneseq
        %v7326 = vshrl.u32 %v7325, 7
        %v7327 = vsub.s32 0, %v7326
        %v7328 = vrot.slane %v7034, %v7327
        %v7329 = vlaneseq
        %v7330 = vshrl.u32 %v7329, 7
        %v7331 = vsub.s32 0, %v7330
        %v7332 = vrot.slane %v7035, %v7331
        %v7333 = vlaneseq
        %v7334 = vshrl.u32 %v7333, 7
        %v7335 = vsub.s32 0, %v7334
        %v7336 = vrot.slane %v7036, %v7335
        %v7337 = vlaneseq
        %v7338 = vshrl.u32 %v7337, 7
        %v7339 = vsub.s32 0, %v7338
        %v7340 = vrot.slane %v7037, %v7339
        %v7341 = vlaneseq
        %v7342 = vshrl.u32 %v7341, 7
        %v7343 = vsub.s32 0, %v7342
        %v7344 = vrot.slane %v7038, %v7343
        %v7345 = vlaneseq
        %v7346 = vshrl.u32 %v7345, 7
        %v7347 = vsub.s32 0, %v7346
        %v7348 = vrot.slane %v7039, %v7347
        %v7349 = vlaneseq
        %v7350 = vshrl.u32 %v7349, 7
        %v7351 = vsub.s32 0, %v7350
        %v7352 = vrot.slane %v7040, %v7351
        %v7353 = vlaneseq
        %v7354 = vshrl.u32 %v7353, 7
        %v7355 = vsub.s32 0, %v7354
        %v7356 = vrot.slane %v7041, %v7355
        %v7357 = vlaneseq
        %v7358 = vshrl.u32 %v7357, 7
        %v7359 = vsub.s32 0, %v7358
        %v7360 = vrot.slane %v7042, %v7359
        %v7361 = vlaneseq
        %v7362 = vshrl.u32 %v7361, 7
        %v7363 = vsub.s32 0, %v7362
        %v7364 = vrot.slane %v7043, %v7363
        %v7365 = vlaneseq
        %v7366 = vshrl.u32 %v7365, 7
        %v7367 = vsub.s32 0, %v7366
        %v7368 = vrot.slane %v7044, %v7367
        %v7369 = vlaneseq
        %v7370 = vshrl.u32 %v7369, 7
        %v7371 = vsub.s32 0, %v7370
        %v7372 = vrot.slane %v7045, %v7371
        %v7373 = vlaneseq
        %v7374 = vshrl.u32 %v7373, 7
        %v7375 = vsub.s32 0, %v7374
        %v7376 = vrot.slane %v7046, %v7375
        %v7377 = vlaneseq
        %v7378 = vshrl.u32 %v7377, 7
        %v7379 = vsub.s32 0, %v7378
        %v7380 = vrot.slane %v7047, %v7379
        %v7381 = vlaneseq
        %v7382 = vshrl.u32 %v7381, 7
        %v7383 = vsub.s32 0, %v7382
        %v7384 = vrot.slane %v7048, %v7383
        %vm7385 = vcmask 1041409
        %v7386 = vsel %vm7385, %v7136, %v7132
        %vm7387 = vcmask 1042434
        %v7388 = vsel %vm7387, %v7140, %v7386
        %vm7389 = vcmask 1043459
        %v7390 = vsel %vm7389, %v7144, %v7388
        %vm7391 = vcmask 1044484
        %v7392 = vsel %vm7391, %v7148, %v7390
        %vm7393 = vcmask 1045509
        %v7394 = vsel %vm7393, %v7152, %v7392
        %vm7395 = vcmask 1046534
        %v7396 = vsel %vm7395, %v7156, %v7394
        %vm7397 = vcmask 1047559
        %v7398 = vsel %vm7397, %v7160, %v7396
        %v7399 = vsel %vm7385, %v7168, %v7164
        %v7400 = vsel %vm7387, %v7172, %v7399
        %v7401 = vsel %vm7389, %v7176, %v7400
        %v7402 = vsel %vm7391, %v7180, %v7401
        %v7403 = vsel %vm7393, %v7184, %v7402
        %v7404 = vsel %vm7395, %v7188, %v7403
        %v7405 = vsel %vm7397, %v7192, %v7404
        %v7406 = vsel %vm7385, %v7200, %v7196
        %v7407 = vsel %vm7387, %v7204, %v7406
        %v7408 = vsel %vm7389, %v7208, %v7407
        %v7409 = vsel %vm7391, %v7212, %v7408
        %v7410 = vsel %vm7393, %v7216, %v7409
        %v7411 = vsel %vm7395, %v7220, %v7410
        %v7412 = vsel %vm7397, %v7224, %v7411
        %v7413 = vsel %vm7385, %v7232, %v7228
        %v7414 = vsel %vm7387, %v7236, %v7413
        %v7415 = vsel %vm7389, %v7240, %v7414
        %v7416 = vsel %vm7391, %v7244, %v7415
        %v7417 = vsel %vm7393, %v7248, %v7416
        %v7418 = vsel %vm7395, %v7252, %v7417
        %v7419 = vsel %vm7397, %v7256, %v7418
        %v7420 = vsel %vm7385, %v7264, %v7260
        %v7421 = vsel %vm7387, %v7268, %v7420
        %v7422 = vsel %vm7389, %v7272, %v7421
        %v7423 = vsel %vm7391, %v7276, %v7422
        %v7424 = vsel %vm7393, %v7280, %v7423
        %v7425 = vsel %vm7395, %v7284, %v7424
        %v7426 = vsel %vm7397, %v7288, %v7425
        %v7427 = vsel %vm7385, %v7296, %v7292
        %v7428 = vsel %vm7387, %v7300, %v7427
        %v7429 = vsel %vm7389, %v7304, %v7428
        %v7430 = vsel %vm7391, %v7308, %v7429
        %v7431 = vsel %vm7393, %v7312, %v7430
        %v7432 = vsel %vm7395, %v7316, %v7431
        %v7433 = vsel %vm7397, %v7320, %v7432
        %v7434 = vsel %vm7385, %v7328, %v7324
        %v7435 = vsel %vm7387, %v7332, %v7434
        %v7436 = vsel %vm7389, %v7336, %v7435
        %v7437 = vsel %vm7391, %v7340, %v7436
        %v7438 = vsel %vm7393, %v7344, %v7437
        %v7439 = vsel %vm7395, %v7348, %v7438
        %v7440 = vsel %vm7397, %v7352, %v7439
        %v7441 = vsel %vm7385, %v7360, %v7356
        %v7442 = vsel %vm7387, %v7364, %v7441
        %v7443 = vsel %vm7389, %v7368, %v7442
        %v7444 = vsel %vm7391, %v7372, %v7443
        %v7445 = vsel %vm7393, %v7376, %v7444
        %v7446 = vsel %vm7395, %v7380, %v7445
        %v7447 = vsel %vm7397, %v7384, %v7446
        %7456 = vmatprep.subr.mxu0 0.0
        %7457 = vmatpush1.msra.mxu0 %v7064
        %7458 = vmatprep.subr.mxu0 0.0
        %7459 = vmatpush1.msra.mxu0 %v7063
        %7460 = vmatprep.subr.mxu0 0.0
        %7461 = vmatpush1.msra.mxu0 %v7062
        %7462 = vmatprep.subr.mxu0 0.0
        %7463 = vmatpush1.msra.mxu0 %v7061
        %7464 = vmatprep.subr.mxu0 0.0
        %7465 = vmatpush1.msra.mxu0 %v7060
        %7466 = vmatprep.subr.mxu0 0.0
        %7467 = vmatpush1.msra.mxu0 %v7059
        %7468 = vmatprep.subr.mxu0 0.0
        %7469 = vmatpush1.msra.mxu0 %v7058
        %7470 = vmatprep.subr.mxu0 0.0
        %7471 = vmatpush1.msra.mxu0 %v7057
        %7472 = vmatprep.subr.mxu0 0.0
        %7473 = vmatpush1.msra.mxu0 %v7056
        %7474 = vmatprep.subr.mxu0 0.0
        %7475 = vmatpush1.msra.mxu0 %v7055
        %7476 = vmatprep.subr.mxu0 0.0
        %7477 = vmatpush1.msra.mxu0 %v7054
        %7478 = vmatprep.subr.mxu0 0.0
        %7479 = vmatpush1.msra.mxu0 %v7053
        %7480 = vmatprep.subr.mxu0 0.0
        %7481 = vmatpush1.msra.mxu0 %v7052
        %7482 = vmatprep.subr.mxu0 0.0
        %7483 = vmatpush1.msra.mxu0 %v7051
        %7484 = vmatprep.subr.mxu0 0.0
        %7485 = vmatpush1.msra.mxu0 %v7050
        %7486 = vmatprep.subr.mxu0 0.0
        %7487 = vmatpush1.msra.mxu0 %v7049
        %7488 = vmatprep.subr.mxu0 0.0
        %7489 = vmatpush2.msra.mxu0 0.0
        %7490 = vmatprep.subr.mxu0 0.0
        %7491 = vmatpush2.msra.mxu0 0.0
        %7492 = vmatprep.subr.mxu0 0.0
        %7493 = vmatpush2.msra.mxu0 0.0
        %7494 = vmatprep.subr.mxu0 0.0
        %7495 = vmatpush2.msra.mxu0 0.0
        %7496 = vmatprep.subr.mxu0 0.0
        %7497 = vmatpush2.msra.mxu0 0.0
        %7498 = vmatprep.subr.mxu0 0.0
        %7499 = vmatpush2.msra.mxu0 0.0
        %7500 = vmatprep.subr.mxu0 0.0
        %7501 = vmatpush2.msra.mxu0 0.0
        %7502 = vmatprep.subr.mxu0 0.0
        %7503 = vmatpush2.msra.mxu0 0.0
        %7504 = vmatprep.subr.mxu0 0.0
        %7505 = vmatpush2.msra.mxu0 0.0
        %7506 = vmatprep.subr.mxu0 0.0
        %7507 = vmatpush2.msra.mxu0 0.0
        %7508 = vmatprep.subr.mxu0 0.0
        %7509 = vmatpush2.msra.mxu0 0.0
        %7510 = vmatprep.subr.mxu0 0.0
        %7511 = vmatpush2.msra.mxu0 0.0
        %7512 = vmatprep.subr.mxu0 0.0
        %7513 = vmatpush2.msra.mxu0 0.0
        %7514 = vmatprep.subr.mxu0 0.0
        %7515 = vmatpush2.msra.mxu0 0.0
        %7516 = vmatprep.subr.mxu0 0.0
        %7517 = vmatpush2.msra.mxu0 0.0
        %7518 = vmatprep.subr.mxu0 0.0
        %7519 = vmatpush2.msra.mxu0 0.0
        %7520 = vmatprep.mubr.f32.mxu0 0.0
        %7521 = vmatmul.mubr.f32.gmra.mxu0 %v7398
        %v7522 = vpop.f32.mrf.mxu0
        %v7523 = vadd.f32 0.0, %v7522
        %v7524 = vpop.f32.mrf.mxu0
        %7525 = vmatprep.mubr.f32.mxu0 0.0
        %7526 = vmatmul.mubr.f32.gmra.mxu0 %v7405
        %v7527 = vpop.f32.mrf.mxu0
        %v7528 = vadd.f32 0.0, %v7527
        %v7529 = vpop.f32.mrf.mxu0
        %7530 = vmatprep.mubr.f32.mxu0 0.0
        %7531 = vmatmul.mubr.f32.gmra.mxu0 %v7412
        %v7532 = vpop.f32.mrf.mxu0
        %v7533 = vadd.f32 0.0, %v7532
        %v7534 = vpop.f32.mrf.mxu0
        %7535 = vmatprep.mubr.f32.mxu0 0.0
        %7536 = vmatmul.mubr.f32.gmra.mxu0 %v7419
        %v7537 = vpop.f32.mrf.mxu0
        %v7538 = vadd.f32 0.0, %v7537
        %v7539 = vpop.f32.mrf.mxu0
        %7540 = vmatprep.mubr.f32.mxu0 0.0
        %7541 = vmatmul.mubr.f32.gmra.mxu0 %v7426
        %v7542 = vpop.f32.mrf.mxu0
        %v7543 = vadd.f32 0.0, %v7542
        %v7544 = vpop.f32.mrf.mxu0
        %7545 = vmatprep.mubr.f32.mxu0 0.0
        %7546 = vmatmul.mubr.f32.gmra.mxu0 %v7433
        %v7547 = vpop.f32.mrf.mxu0
        %v7548 = vadd.f32 0.0, %v7547
        %v7549 = vpop.f32.mrf.mxu0
        %7550 = vmatprep.mubr.f32.mxu0 0.0
        %7551 = vmatmul.mubr.f32.gmra.mxu0 %v7440
        %v7552 = vpop.f32.mrf.mxu0
        %v7553 = vadd.f32 0.0, %v7552
        %v7554 = vpop.f32.mrf.mxu0
        %7555 = vmatprep.mubr.f32.mxu0 0.0
        %7556 = vmatmul.mubr.f32.gmra.mxu0 %v7447
        %v7557 = vpop.f32.mrf.mxu0
        %v7558 = vadd.f32 0.0, %v7557
        %v7559 = vpop.f32.mrf.mxu0
        %7560 = vdwg.mxu0
        %v7561 = vld [vmem:[%s31] sm:$0x1]
        %v7563 = vlaneseq
        %v7564 = vshrl.u32 %v7563, 7
        %v7565 = vsub.s32 0, %v7564
        %v7566 = vrot.slane %v7561, %v7565
        %v7568 = vmul.f32 %v7523, %v7566
        %v7569 = vmul.f32 %v7528, %v7566
        %v7570 = vmul.f32 %v7533, %v7566
        %v7571 = vmul.f32 %v7538, %v7566
        %v7572 = vmul.f32 %v7543, %v7566
        %v7573 = vmul.f32 %v7548, %v7566
        %v7574 = vmul.f32 %v7553, %v7566
        %v7575 = vmul.f32 %v7558, %v7566
        %v7576 = vld [vmem:[%s33] sm:$0x1]
        %v7578 = vlaneseq
        %v7579 = vshrl.u32 %v7578, 7
        %v7580 = vsub.s32 0, %v7579
        %v7581 = vrot.slane %v7576, %v7580
        %v7583 = vadd.f32 %v7568, %v7581
        %v7584 = vadd.f32 %v7569, %v7581
        %v7585 = vadd.f32 %v7570, %v7581
        %v7586 = vadd.f32 %v7571, %v7581
        %v7587 = vadd.f32 %v7572, %v7581
        %v7588 = vadd.f32 %v7573, %v7581
        %v7589 = vadd.f32 %v7574, %v7581
        %v7590 = vadd.f32 %v7575, %v7581
        %v7591 = vmax.f32 %v7583, 0.0
        %v7592 = vmax.f32 %v7584, 0.0
        %v7593 = vmax.f32 %v7585, 0.0
        %v7594 = vmax.f32 %v7586, 0.0
        %v7595 = vmax.f32 %v7587, 0.0
        %v7596 = vmax.f32 %v7588, 0.0
        %v7597 = vmax.f32 %v7589, 0.0
        %v7598 = vmax.f32 %v7590, 0.0
        %v7607 = vrot.slane %v7591, 7
        %v7608 = vrot.slane %v7592, 7
        %v7609 = vrot.slane %v7593, 7
        %v7610 = vrot.slane %v7594, 7
        %v7611 = vrot.slane %v7595, 7
        %v7612 = vrot.slane %v7596, 7
        %v7613 = vrot.slane %v7597, 7
        %v7614 = vrot.slane %v7598, 7
        %v7623 = vsel %vm1672, 0.0, %v7607
        %v7624 = vsel %vm1672, 0.0, %v7608
        %v7625 = vsel %vm1672, 0.0, %v7609
        %v7626 = vsel %vm1672, 0.0, %v7610
        %v7627 = vsel %vm1672, 0.0, %v7611
        %v7628 = vsel %vm1672, 0.0, %v7612
        %v7629 = vsel %vm1672, 0.0, %v7613
        %v7630 = vsel %vm1672, 0.0, %v7614
        %v7631 = vsel %vm1672, %v7607, 0.0
        %v7632 = vsel %vm1672, %v7608, 0.0
        %v7633 = vsel %vm1672, %v7609, 0.0
        %v7634 = vsel %vm1672, %v7610, 0.0
        %v7635 = vsel %vm1672, %v7611, 0.0
        %v7636 = vsel %vm1672, %v7612, 0.0
        %v7637 = vsel %vm1672, %v7613, 0.0
        %v7638 = vsel %vm1672, %v7614, 0.0
        %v7653 = vsel %vm3514, %v3515, %v3518
        %v7654 = vrot.slane %v7623, 1
        %v7655 = vrot.slane %v7631, 1
        %v7656 = vsel %vm3514, %v7654, %v7655
        %v7657 = vrot.slane %v7624, 1
        %v7658 = vrot.slane %v7632, 1
        %v7659 = vsel %vm3514, %v7657, %v7658
        %v7660 = vrot.slane %v7625, 1
        %v7661 = vrot.slane %v7633, 1
        %v7662 = vsel %vm3514, %v7660, %v7661
        %v7663 = vrot.slane %v7626, 1
        %v7664 = vrot.slane %v7634, 1
        %v7665 = vsel %vm3514, %v7663, %v7664
        %v7666 = vrot.slane %v7627, 1
        %v7667 = vrot.slane %v7635, 1
        %v7668 = vsel %vm3514, %v7666, %v7667
        %v7669 = vrot.slane %v7628, 1
        %v7670 = vrot.slane %v7636, 1
        %v7671 = vsel %vm3514, %v7669, %v7670
        %v7672 = vrot.slane %v7629, 1
        %v7673 = vrot.slane %v7637, 1
        %v7674 = vsel %vm3514, %v7672, %v7673
        %v7683 = vsel %vm3595, %v3596, %v3599
        %v7684 = vrot.slane %v7623, 2
        %v7685 = vrot.slane %v7631, 2
        %v7686 = vsel %vm3595, %v7684, %v7685
        %v7687 = vrot.slane %v7624, 2
        %v7688 = vrot.slane %v7632, 2
        %v7689 = vsel %vm3595, %v7687, %v7688
        %v7690 = vrot.slane %v7625, 2
        %v7691 = vrot.slane %v7633, 2
        %v7692 = vsel %vm3595, %v7690, %v7691
        %v7693 = vrot.slane %v7626, 2
        %v7694 = vrot.slane %v7634, 2
        %v7695 = vsel %vm3595, %v7693, %v7694
        %v7696 = vrot.slane %v7627, 2
        %v7697 = vrot.slane %v7635, 2
        %v7698 = vsel %vm3595, %v7696, %v7697
        %v7699 = vrot.slane %v7628, 2
        %v7700 = vrot.slane %v7636, 2
        %v7701 = vsel %vm3595, %v7699, %v7700
        %v7702 = vrot.slane %v7629, 2
        %v7703 = vrot.slane %v7637, 2
        %v7704 = vsel %vm3595, %v7702, %v7703
        %v7715 = vrot.slane %v7630, 1
        %v7716 = vrot.slane %v7638, 1
        %v7717 = vsel %vm3514, %v7715, %v7716
        %v7719 = vrot.slane %v7630, 2
        %v7720 = vrot.slane %v7638, 2
        %v7721 = vsel %vm3595, %v7719, %v7720
        %v7723 = vld [vmem:[%s35] sm:$0xff]
        %v7724 = vld [vmem:[%s35 + $0x8] sm:$0xff]
        %v7725 = vld [vmem:[%s35 + $0x10] sm:$0xff]
        %v7726 = vld [vmem:[%s35 + $0x18] sm:$0xff]
        %v7727 = vld [vmem:[%s35 + $0x20] sm:$0xff]
        %v7728 = vld [vmem:[%s35 + $0x28] sm:$0xff]
        %v7729 = vld [vmem:[%s35 + $0x30] sm:$0xff]
        %v7730 = vld [vmem:[%s35 + $0x38] sm:$0xff]
        %v7731 = vld [vmem:[%s35 + $0x40] sm:$0xff]
        %v7732 = vld [vmem:[%s35 + $0x48] sm:$0xff]
        %v7733 = vld [vmem:[%s35 + $0x50] sm:$0xff]
        %v7734 = vld [vmem:[%s35 + $0x58] sm:$0xff]
        %v7735 = vld [vmem:[%s35 + $0x60] sm:$0xff]
        %v7736 = vld [vmem:[%s35 + $0x68] sm:$0xff]
        %v7737 = vld [vmem:[%s35 + $0x70] sm:$0xff]
        %v7738 = vld [vmem:[%s35 + $0x78] sm:$0xff]
        %v7739 = vld [vmem:[%s35 + $0x80] sm:$0xff]
        %v7740 = vld [vmem:[%s35 + $0x88] sm:$0xff]
        %v7741 = vld [vmem:[%s35 + $0x90] sm:$0xff]
        %v7742 = vld [vmem:[%s35 + $0x98] sm:$0xff]
        %v7743 = vld [vmem:[%s35 + $0xa0] sm:$0xff]
        %v7744 = vld [vmem:[%s35 + $0xa8] sm:$0xff]
        %v7745 = vld [vmem:[%s35 + $0xb0] sm:$0xff]
        %v7746 = vld [vmem:[%s35 + $0xb8] sm:$0xff]
        %v7747 = vld [vmem:[%s35 + $0xc0] sm:$0xff]
        %v7748 = vld [vmem:[%s35 + $0xc8] sm:$0xff]
        %v7749 = vld [vmem:[%s35 + $0xd0] sm:$0xff]
        %v7750 = vld [vmem:[%s35 + $0xd8] sm:$0xff]
        %v7751 = vld [vmem:[%s35 + $0xe0] sm:$0xff]
        %v7752 = vld [vmem:[%s35 + $0xe8] sm:$0xff]
        %v7753 = vld [vmem:[%s35 + $0xf0] sm:$0xff]
        %v7754 = vld [vmem:[%s35 + $0xf8] sm:$0xff]
        %v7755 = vld [vmem:[%s35 + $0x100] sm:$0xff]
        %v7756 = vld [vmem:[%s35 + $0x108] sm:$0xff]
        %v7757 = vld [vmem:[%s35 + $0x110] sm:$0xff]
        %v7758 = vld [vmem:[%s35 + $0x118] sm:$0xff]
        %v7759 = vld [vmem:[%s35 + $0x120] sm:$0xff]
        %v7760 = vld [vmem:[%s35 + $0x128] sm:$0xff]
        %v7761 = vld [vmem:[%s35 + $0x130] sm:$0xff]
        %v7762 = vld [vmem:[%s35 + $0x138] sm:$0xff]
        %v7763 = vld [vmem:[%s35 + $0x140] sm:$0xff]
        %v7764 = vld [vmem:[%s35 + $0x148] sm:$0xff]
        %v7765 = vld [vmem:[%s35 + $0x150] sm:$0xff]
        %v7766 = vld [vmem:[%s35 + $0x158] sm:$0xff]
        %v7767 = vld [vmem:[%s35 + $0x160] sm:$0xff]
        %v7768 = vld [vmem:[%s35 + $0x168] sm:$0xff]
        %v7769 = vld [vmem:[%s35 + $0x170] sm:$0xff]
        %v7770 = vld [vmem:[%s35 + $0x178] sm:$0xff]
        %v7771 = vld [vmem:[%s35 + $0x180] sm:$0xff]
        %v7772 = vld [vmem:[%s35 + $0x188] sm:$0xff]
        %v7773 = vld [vmem:[%s35 + $0x190] sm:$0xff]
        %v7774 = vld [vmem:[%s35 + $0x198] sm:$0xff]
        %v7775 = vld [vmem:[%s35 + $0x1a0] sm:$0xff]
        %v7776 = vld [vmem:[%s35 + $0x1a8] sm:$0xff]
        %v7777 = vld [vmem:[%s35 + $0x1b0] sm:$0xff]
        %v7778 = vld [vmem:[%s35 + $0x1b8] sm:$0xff]
        %v7779 = vld [vmem:[%s35 + $0x1c0] sm:$0xff]
        %v7780 = vld [vmem:[%s35 + $0x1c8] sm:$0xff]
        %v7781 = vld [vmem:[%s35 + $0x1d0] sm:$0xff]
        %v7782 = vld [vmem:[%s35 + $0x1d8] sm:$0xff]
        %v7783 = vld [vmem:[%s35 + $0x1e0] sm:$0xff]
        %v7784 = vld [vmem:[%s35 + $0x1e8] sm:$0xff]
        %v7785 = vld [vmem:[%s35 + $0x1f0] sm:$0xff]
        %v7786 = vld [vmem:[%s35 + $0x1f8] sm:$0xff]
        %v7787 = vld [vmem:[%s35 + $0x200] sm:$0xff]
        %v7788 = vld [vmem:[%s35 + $0x208] sm:$0xff]
        %v7789 = vld [vmem:[%s35 + $0x210] sm:$0xff]
        %v7790 = vld [vmem:[%s35 + $0x218] sm:$0xff]
        %v7791 = vld [vmem:[%s35 + $0x220] sm:$0xff]
        %v7792 = vld [vmem:[%s35 + $0x228] sm:$0xff]
        %v7793 = vld [vmem:[%s35 + $0x230] sm:$0xff]
        %v7794 = vld [vmem:[%s35 + $0x238] sm:$0xff]
        %v7795 = vld [vmem:[%s35 + $0x240] sm:$0xff]
        %v7796 = vld [vmem:[%s35 + $0x248] sm:$0xff]
        %v7797 = vld [vmem:[%s35 + $0x250] sm:$0xff]
        %v7798 = vld [vmem:[%s35 + $0x258] sm:$0xff]
        %v7799 = vld [vmem:[%s35 + $0x260] sm:$0xff]
        %v7800 = vld [vmem:[%s35 + $0x268] sm:$0xff]
        %v7801 = vld [vmem:[%s35 + $0x270] sm:$0xff]
        %v7802 = vld [vmem:[%s35 + $0x278] sm:$0xff]
        %v7803 = vld [vmem:[%s35 + $0x280] sm:$0xff]
        %v7804 = vld [vmem:[%s35 + $0x288] sm:$0xff]
        %v7805 = vld [vmem:[%s35 + $0x290] sm:$0xff]
        %v7806 = vld [vmem:[%s35 + $0x298] sm:$0xff]
        %v7807 = vld [vmem:[%s35 + $0x2a0] sm:$0xff]
        %v7808 = vld [vmem:[%s35 + $0x2a8] sm:$0xff]
        %v7809 = vld [vmem:[%s35 + $0x2b0] sm:$0xff]
        %v7810 = vld [vmem:[%s35 + $0x2b8] sm:$0xff]
        %v7811 = vld [vmem:[%s35 + $0x2c0] sm:$0xff]
        %v7812 = vld [vmem:[%s35 + $0x2c8] sm:$0xff]
        %v7813 = vld [vmem:[%s35 + $0x2d0] sm:$0xff]
        %v7814 = vld [vmem:[%s35 + $0x2d8] sm:$0xff]
        %v7815 = vld [vmem:[%s35 + $0x2e0] sm:$0xff]
        %v7816 = vld [vmem:[%s35 + $0x2e8] sm:$0xff]
        %v7817 = vld [vmem:[%s35 + $0x2f0] sm:$0xff]
        %v7818 = vld [vmem:[%s35 + $0x2f8] sm:$0xff]
        %v7819 = vld [vmem:[%s35 + $0x300] sm:$0xff]
        %v7820 = vld [vmem:[%s35 + $0x308] sm:$0xff]
        %v7821 = vld [vmem:[%s35 + $0x310] sm:$0xff]
        %v7822 = vld [vmem:[%s35 + $0x318] sm:$0xff]
        %v7823 = vld [vmem:[%s35 + $0x320] sm:$0xff]
        %v7824 = vld [vmem:[%s35 + $0x328] sm:$0xff]
        %v7825 = vld [vmem:[%s35 + $0x330] sm:$0xff]
        %v7826 = vld [vmem:[%s35 + $0x338] sm:$0xff]
        %v7827 = vld [vmem:[%s35 + $0x340] sm:$0xff]
        %v7828 = vld [vmem:[%s35 + $0x348] sm:$0xff]
        %v7829 = vld [vmem:[%s35 + $0x350] sm:$0xff]
        %v7830 = vld [vmem:[%s35 + $0x358] sm:$0xff]
        %v7831 = vld [vmem:[%s35 + $0x360] sm:$0xff]
        %v7832 = vld [vmem:[%s35 + $0x368] sm:$0xff]
        %v7833 = vld [vmem:[%s35 + $0x370] sm:$0xff]
        %v7834 = vld [vmem:[%s35 + $0x378] sm:$0xff]
        %v7835 = vld [vmem:[%s35 + $0x380] sm:$0xff]
        %v7836 = vld [vmem:[%s35 + $0x388] sm:$0xff]
        %v7837 = vld [vmem:[%s35 + $0x390] sm:$0xff]
        %v7838 = vld [vmem:[%s35 + $0x398] sm:$0xff]
        %v7839 = vld [vmem:[%s35 + $0x3a0] sm:$0xff]
        %v7840 = vld [vmem:[%s35 + $0x3a8] sm:$0xff]
        %v7841 = vld [vmem:[%s35 + $0x3b0] sm:$0xff]
        %v7842 = vld [vmem:[%s35 + $0x3b8] sm:$0xff]
        %v7843 = vld [vmem:[%s35 + $0x3c0] sm:$0xff]
        %v7844 = vld [vmem:[%s35 + $0x3c8] sm:$0xff]
        %v7845 = vld [vmem:[%s35 + $0x3d0] sm:$0xff]
        %v7846 = vld [vmem:[%s35 + $0x3d8] sm:$0xff]
        %v7847 = vld [vmem:[%s35 + $0x3e0] sm:$0xff]
        %v7848 = vld [vmem:[%s35 + $0x3e8] sm:$0xff]
        %v7849 = vld [vmem:[%s35 + $0x3f0] sm:$0xff]
        %v7850 = vld [vmem:[%s35 + $0x3f8] sm:$0xff]
        %v7851 = vld [vmem:[%s35 + $0x400] sm:$0xff]
        %v7852 = vld [vmem:[%s35 + $0x408] sm:$0xff]
        %v7853 = vld [vmem:[%s35 + $0x410] sm:$0xff]
        %v7854 = vld [vmem:[%s35 + $0x418] sm:$0xff]
        %v7855 = vld [vmem:[%s35 + $0x420] sm:$0xff]
        %v7856 = vld [vmem:[%s35 + $0x428] sm:$0xff]
        %v7857 = vld [vmem:[%s35 + $0x430] sm:$0xff]
        %v7858 = vld [vmem:[%s35 + $0x438] sm:$0xff]
        %v7859 = vld [vmem:[%s35 + $0x440] sm:$0xff]
        %v7860 = vld [vmem:[%s35 + $0x448] sm:$0xff]
        %v7861 = vld [vmem:[%s35 + $0x450] sm:$0xff]
        %v7862 = vld [vmem:[%s35 + $0x458] sm:$0xff]
        %v7863 = vld [vmem:[%s35 + $0x460] sm:$0xff]
        %v7864 = vld [vmem:[%s35 + $0x468] sm:$0xff]
        %v7865 = vld [vmem:[%s35 + $0x470] sm:$0xff]
        %v7866 = vld [vmem:[%s35 + $0x478] sm:$0xff]
        %7867 = vmatprep.subr.mxu0 0.0
        %7868 = vmatpush1.msra.mxu0 %v7738
        %7869 = vmatprep.subr.mxu0 0.0
        %7870 = vmatpush1.msra.mxu0 %v7737
        %7871 = vmatprep.subr.mxu0 0.0
        %7872 = vmatpush1.msra.mxu0 %v7736
        %7873 = vmatprep.subr.mxu0 0.0
        %7874 = vmatpush1.msra.mxu0 %v7735
        %7875 = vmatprep.subr.mxu0 0.0
        %7876 = vmatpush1.msra.mxu0 %v7734
        %7877 = vmatprep.subr.mxu0 0.0
        %7878 = vmatpush1.msra.mxu0 %v7733
        %7879 = vmatprep.subr.mxu0 0.0
        %7880 = vmatpush1.msra.mxu0 %v7732
        %7881 = vmatprep.subr.mxu0 0.0
        %7882 = vmatpush1.msra.mxu0 %v7731
        %7883 = vmatprep.subr.mxu0 0.0
        %7884 = vmatpush1.msra.mxu0 %v7730
        %7885 = vmatprep.subr.mxu0 0.0
        %7886 = vmatpush1.msra.mxu0 %v7729
        %7887 = vmatprep.subr.mxu0 0.0
        %7888 = vmatpush1.msra.mxu0 %v7728
        %7889 = vmatprep.subr.mxu0 0.0
        %7890 = vmatpush1.msra.mxu0 %v7727
        %7891 = vmatprep.subr.mxu0 0.0
        %7892 = vmatpush1.msra.mxu0 %v7726
        %7893 = vmatprep.subr.mxu0 0.0
        %7894 = vmatpush1.msra.mxu0 %v7725
        %7895 = vmatprep.subr.mxu0 0.0
        %7896 = vmatpush1.msra.mxu0 %v7724
        %7897 = vmatprep.subr.mxu0 0.0
        %7898 = vmatpush1.msra.mxu0 %v7723
        %7899 = vmatprep.subr.mxu0 0.0
        %7900 = vmatpush2.msra.mxu0 %v7754
        %7901 = vmatprep.subr.mxu0 0.0
        %7902 = vmatpush2.msra.mxu0 %v7753
        %7903 = vmatprep.subr.mxu0 0.0
        %7904 = vmatpush2.msra.mxu0 %v7752
        %7905 = vmatprep.subr.mxu0 0.0
        %7906 = vmatpush2.msra.mxu0 %v7751
        %7907 = vmatprep.subr.mxu0 0.0
        %7908 = vmatpush2.msra.mxu0 %v7750
        %7909 = vmatprep.subr.mxu0 0.0
        %7910 = vmatpush2.msra.mxu0 %v7749
        %7911 = vmatprep.subr.mxu0 0.0
        %7912 = vmatpush2.msra.mxu0 %v7748
        %7913 = vmatprep.subr.mxu0 0.0
        %7914 = vmatpush2.msra.mxu0 %v7747
        %7915 = vmatprep.subr.mxu0 0.0
        %7916 = vmatpush2.msra.mxu0 %v7746
        %7917 = vmatprep.subr.mxu0 0.0
        %7918 = vmatpush2.msra.mxu0 %v7745
        %7919 = vmatprep.subr.mxu0 0.0
        %7920 = vmatpush2.msra.mxu0 %v7744
        %7921 = vmatprep.subr.mxu0 0.0
        %7922 = vmatpush2.msra.mxu0 %v7743
        %7923 = vmatprep.subr.mxu0 0.0
        %7924 = vmatpush2.msra.mxu0 %v7742
        %7925 = vmatprep.subr.mxu0 0.0
        %7926 = vmatpush2.msra.mxu0 %v7741
        %7927 = vmatprep.subr.mxu0 0.0
        %7928 = vmatpush2.msra.mxu0 %v7740
        %7929 = vmatprep.subr.mxu0 0.0
        %7930 = vmatpush2.msra.mxu0 %v7739
        %7931 = vmatprep.mubr.f32.mxu0 %v7653
        %7932 = vmatmul.mubr.f32.gmra.mxu0 %v3448
        %v7933 = vpop.f32.mrf.mxu0
        %v7934 = vadd.f32 0.0, %v7933
        %v7935 = vpop.f32.mrf.mxu0
        %7936 = vmatprep.mubr.f32.mxu0 %v7656
        %7937 = vmatmul.mubr.f32.gmra.mxu0 %v7623
        %v7938 = vpop.f32.mrf.mxu0
        %v7939 = vadd.f32 0.0, %v7938
        %v7940 = vpop.f32.mrf.mxu0
        %7941 = vmatprep.mubr.f32.mxu0 %v7659
        %7942 = vmatmul.mubr.f32.gmra.mxu0 %v7624
        %v7943 = vpop.f32.mrf.mxu0
        %v7944 = vadd.f32 0.0, %v7943
        %v7945 = vpop.f32.mrf.mxu0
        %7946 = vmatprep.mubr.f32.mxu0 %v7662
        %7947 = vmatmul.mubr.f32.gmra.mxu0 %v7625
        %v7948 = vpop.f32.mrf.mxu0
        %v7949 = vadd.f32 0.0, %v7948
        %v7950 = vpop.f32.mrf.mxu0
        %7951 = vmatprep.mubr.f32.mxu0 %v7665
        %7952 = vmatmul.mubr.f32.gmra.mxu0 %v7626
        %v7953 = vpop.f32.mrf.mxu0
        %v7954 = vadd.f32 0.0, %v7953
        %v7955 = vpop.f32.mrf.mxu0
        %7956 = vmatprep.mubr.f32.mxu0 %v7668
        %7957 = vmatmul.mubr.f32.gmra.mxu0 %v7627
        %v7958 = vpop.f32.mrf.mxu0
        %v7959 = vadd.f32 0.0, %v7958
        %v7960 = vpop.f32.mrf.mxu0
        %7961 = vmatprep.mubr.f32.mxu0 %v7671
        %7962 = vmatmul.mubr.f32.gmra.mxu0 %v7628
        %v7963 = vpop.f32.mrf.mxu0
        %v7964 = vadd.f32 0.0, %v7963
        %v7965 = vpop.f32.mrf.mxu0
        %7966 = vmatprep.mubr.f32.mxu0 %v7674
        %7967 = vmatmul.mubr.f32.gmra.mxu0 %v7629
        %v7968 = vpop.f32.mrf.mxu0
        %v7969 = vadd.f32 0.0, %v7968
        %v7970 = vpop.f32.mrf.mxu0
        %7971 = vdwg.mxu0
        %7972 = vmatprep.subr.mxu0 0.0
        %7973 = vmatpush1.msra.mxu0 %v7770
        %7974 = vmatprep.subr.mxu0 0.0
        %7975 = vmatpush1.msra.mxu0 %v7769
        %7976 = vmatprep.subr.mxu0 0.0
        %7977 = vmatpush1.msra.mxu0 %v7768
        %7978 = vmatprep.subr.mxu0 0.0
        %7979 = vmatpush1.msra.mxu0 %v7767
        %7980 = vmatprep.subr.mxu0 0.0
        %7981 = vmatpush1.msra.mxu0 %v7766
        %7982 = vmatprep.subr.mxu0 0.0
        %7983 = vmatpush1.msra.mxu0 %v7765
        %7984 = vmatprep.subr.mxu0 0.0
        %7985 = vmatpush1.msra.mxu0 %v7764
        %7986 = vmatprep.subr.mxu0 0.0
        %7987 = vmatpush1.msra.mxu0 %v7763
        %7988 = vmatprep.subr.mxu0 0.0
        %7989 = vmatpush1.msra.mxu0 %v7762
        %7990 = vmatprep.subr.mxu0 0.0
        %7991 = vmatpush1.msra.mxu0 %v7761
        %7992 = vmatprep.subr.mxu0 0.0
        %7993 = vmatpush1.msra.mxu0 %v7760
        %7994 = vmatprep.subr.mxu0 0.0
        %7995 = vmatpush1.msra.mxu0 %v7759
        %7996 = vmatprep.subr.mxu0 0.0
        %7997 = vmatpush1.msra.mxu0 %v7758
        %7998 = vmatprep.subr.mxu0 0.0
        %7999 = vmatpush1.msra.mxu0 %v7757
        %8000 = vmatprep.subr.mxu0 0.0
        %8001 = vmatpush1.msra.mxu0 %v7756
        %8002 = vmatprep.subr.mxu0 0.0
        %8003 = vmatpush1.msra.mxu0 %v7755
        %8004 = vmatprep.subr.mxu0 0.0
        %8005 = vmatpush2.msra.mxu0 %v7786
        %8006 = vmatprep.subr.mxu0 0.0
        %8007 = vmatpush2.msra.mxu0 %v7785
        %8008 = vmatprep.subr.mxu0 0.0
        %8009 = vmatpush2.msra.mxu0 %v7784
        %8010 = vmatprep.subr.mxu0 0.0
        %8011 = vmatpush2.msra.mxu0 %v7783
        %8012 = vmatprep.subr.mxu0 0.0
        %8013 = vmatpush2.msra.mxu0 %v7782
        %8014 = vmatprep.subr.mxu0 0.0
        %8015 = vmatpush2.msra.mxu0 %v7781
        %8016 = vmatprep.subr.mxu0 0.0
        %8017 = vmatpush2.msra.mxu0 %v7780
        %8018 = vmatprep.subr.mxu0 0.0
        %8019 = vmatpush2.msra.mxu0 %v7779
        %8020 = vmatprep.subr.mxu0 0.0
        %8021 = vmatpush2.msra.mxu0 %v7778
        %8022 = vmatprep.subr.mxu0 0.0
        %8023 = vmatpush2.msra.mxu0 %v7777
        %8024 = vmatprep.subr.mxu0 0.0
        %8025 = vmatpush2.msra.mxu0 %v7776
        %8026 = vmatprep.subr.mxu0 0.0
        %8027 = vmatpush2.msra.mxu0 %v7775
        %8028 = vmatprep.subr.mxu0 0.0
        %8029 = vmatpush2.msra.mxu0 %v7774
        %8030 = vmatprep.subr.mxu0 0.0
        %8031 = vmatpush2.msra.mxu0 %v7773
        %8032 = vmatprep.subr.mxu0 0.0
        %8033 = vmatpush2.msra.mxu0 %v7772
        %8034 = vmatprep.subr.mxu0 0.0
        %8035 = vmatpush2.msra.mxu0 %v7771
        %8036 = vmatprep.mubr.f32.mxu0 %v7623
        %8037 = vmatmul.mubr.f32.gmra.mxu0 %v7683
        %v8038 = vpop.f32.mrf.mxu0
        %v8039 = vadd.f32 %v7934, %v8038
        %v8040 = vpop.f32.mrf.mxu0
        %8041 = vmatprep.mubr.f32.mxu0 %v7624
        %8042 = vmatmul.mubr.f32.gmra.mxu0 %v7686
        %v8043 = vpop.f32.mrf.mxu0
        %v8044 = vadd.f32 %v7939, %v8043
        %v8045 = vpop.f32.mrf.mxu0
        %8046 = vmatprep.mubr.f32.mxu0 %v7625
        %8047 = vmatmul.mubr.f32.gmra.mxu0 %v7689
        %v8048 = vpop.f32.mrf.mxu0
        %v8049 = vadd.f32 %v7944, %v8048
        %v8050 = vpop.f32.mrf.mxu0
        %8051 = vmatprep.mubr.f32.mxu0 %v7626
        %8052 = vmatmul.mubr.f32.gmra.mxu0 %v7692
        %v8053 = vpop.f32.mrf.mxu0
        %v8054 = vadd.f32 %v7949, %v8053
        %v8055 = vpop.f32.mrf.mxu0
        %8056 = vmatprep.mubr.f32.mxu0 %v7627
        %8057 = vmatmul.mubr.f32.gmra.mxu0 %v7695
        %v8058 = vpop.f32.mrf.mxu0
        %v8059 = vadd.f32 %v7954, %v8058
        %v8060 = vpop.f32.mrf.mxu0
        %8061 = vmatprep.mubr.f32.mxu0 %v7628
        %8062 = vmatmul.mubr.f32.gmra.mxu0 %v7698
        %v8063 = vpop.f32.mrf.mxu0
        %v8064 = vadd.f32 %v7959, %v8063
        %v8065 = vpop.f32.mrf.mxu0
        %8066 = vmatprep.mubr.f32.mxu0 %v7629
        %8067 = vmatmul.mubr.f32.gmra.mxu0 %v7701
        %v8068 = vpop.f32.mrf.mxu0
        %v8069 = vadd.f32 %v7964, %v8068
        %v8070 = vpop.f32.mrf.mxu0
        %8071 = vmatprep.mubr.f32.mxu0 %v7630
        %8072 = vmatmul.mubr.f32.gmra.mxu0 %v7704
        %v8073 = vpop.f32.mrf.mxu0
        %v8074 = vadd.f32 %v7969, %v8073
        %v8075 = vpop.f32.mrf.mxu0
        %8076 = vdwg.mxu0
        %8077 = vmatprep.subr.mxu0 0.0
        %8078 = vmatpush1.msra.mxu0 %v7802
        %8079 = vmatprep.subr.mxu0 0.0
        %8080 = vmatpush1.msra.mxu0 %v7801
        %8081 = vmatprep.subr.mxu0 0.0
        %8082 = vmatpush1.msra.mxu0 %v7800
        %8083 = vmatprep.subr.mxu0 0.0
        %8084 = vmatpush1.msra.mxu0 %v7799
        %8085 = vmatprep.subr.mxu0 0.0
        %8086 = vmatpush1.msra.mxu0 %v7798
        %8087 = vmatprep.subr.mxu0 0.0
        %8088 = vmatpush1.msra.mxu0 %v7797
        %8089 = vmatprep.subr.mxu0 0.0
        %8090 = vmatpush1.msra.mxu0 %v7796
        %8091 = vmatprep.subr.mxu0 0.0
        %8092 = vmatpush1.msra.mxu0 %v7795
        %8093 = vmatprep.subr.mxu0 0.0
        %8094 = vmatpush1.msra.mxu0 %v7794
        %8095 = vmatprep.subr.mxu0 0.0
        %8096 = vmatpush1.msra.mxu0 %v7793
        %8097 = vmatprep.subr.mxu0 0.0
        %8098 = vmatpush1.msra.mxu0 %v7792
        %8099 = vmatprep.subr.mxu0 0.0
        %8100 = vmatpush1.msra.mxu0 %v7791
        %8101 = vmatprep.subr.mxu0 0.0
        %8102 = vmatpush1.msra.mxu0 %v7790
        %8103 = vmatprep.subr.mxu0 0.0
        %8104 = vmatpush1.msra.mxu0 %v7789
        %8105 = vmatprep.subr.mxu0 0.0
        %8106 = vmatpush1.msra.mxu0 %v7788
        %8107 = vmatprep.subr.mxu0 0.0
        %8108 = vmatpush1.msra.mxu0 %v7787
        %8109 = vmatprep.subr.mxu0 0.0
        %8110 = vmatpush2.msra.mxu0 %v7818
        %8111 = vmatprep.subr.mxu0 0.0
        %8112 = vmatpush2.msra.mxu0 %v7817
        %8113 = vmatprep.subr.mxu0 0.0
        %8114 = vmatpush2.msra.mxu0 %v7816
        %8115 = vmatprep.subr.mxu0 0.0
        %8116 = vmatpush2.msra.mxu0 %v7815
        %8117 = vmatprep.subr.mxu0 0.0
        %8118 = vmatpush2.msra.mxu0 %v7814
        %8119 = vmatprep.subr.mxu0 0.0
        %8120 = vmatpush2.msra.mxu0 %v7813
        %8121 = vmatprep.subr.mxu0 0.0
        %8122 = vmatpush2.msra.mxu0 %v7812
        %8123 = vmatprep.subr.mxu0 0.0
        %8124 = vmatpush2.msra.mxu0 %v7811
        %8125 = vmatprep.subr.mxu0 0.0
        %8126 = vmatpush2.msra.mxu0 %v7810
        %8127 = vmatprep.subr.mxu0 0.0
        %8128 = vmatpush2.msra.mxu0 %v7809
        %8129 = vmatprep.subr.mxu0 0.0
        %8130 = vmatpush2.msra.mxu0 %v7808
        %8131 = vmatprep.subr.mxu0 0.0
        %8132 = vmatpush2.msra.mxu0 %v7807
        %8133 = vmatprep.subr.mxu0 0.0
        %8134 = vmatpush2.msra.mxu0 %v7806
        %8135 = vmatprep.subr.mxu0 0.0
        %8136 = vmatpush2.msra.mxu0 %v7805
        %8137 = vmatprep.subr.mxu0 0.0
        %8138 = vmatpush2.msra.mxu0 %v7804
        %8139 = vmatprep.subr.mxu0 0.0
        %8140 = vmatpush2.msra.mxu0 %v7803
        %8141 = vmatprep.mubr.f32.mxu0 %v7686
        %8142 = vmatmul.mubr.f32.gmra.mxu0 %v7656
        %v8143 = vpop.f32.mrf.mxu0
        %v8144 = vadd.f32 %v8039, %v8143
        %v8145 = vpop.f32.mrf.mxu0
        %8146 = vmatprep.mubr.f32.mxu0 %v7689
        %8147 = vmatmul.mubr.f32.gmra.mxu0 %v7659
        %v8148 = vpop.f32.mrf.mxu0
        %v8149 = vadd.f32 %v8044, %v8148
        %v8150 = vpop.f32.mrf.mxu0
        %8151 = vmatprep.mubr.f32.mxu0 %v7692
        %8152 = vmatmul.mubr.f32.gmra.mxu0 %v7662
        %v8153 = vpop.f32.mrf.mxu0
        %v8154 = vadd.f32 %v8049, %v8153
        %v8155 = vpop.f32.mrf.mxu0
        %8156 = vmatprep.mubr.f32.mxu0 %v7695
        %8157 = vmatmul.mubr.f32.gmra.mxu0 %v7665
        %v8158 = vpop.f32.mrf.mxu0
        %v8159 = vadd.f32 %v8054, %v8158
        %v8160 = vpop.f32.mrf.mxu0
        %8161 = vmatprep.mubr.f32.mxu0 %v7698
        %8162 = vmatmul.mubr.f32.gmra.mxu0 %v7668
        %v8163 = vpop.f32.mrf.mxu0
        %v8164 = vadd.f32 %v8059, %v8163
        %v8165 = vpop.f32.mrf.mxu0
        %8166 = vmatprep.mubr.f32.mxu0 %v7701
        %8167 = vmatmul.mubr.f32.gmra.mxu0 %v7671
        %v8168 = vpop.f32.mrf.mxu0
        %v8169 = vadd.f32 %v8064, %v8168
        %v8170 = vpop.f32.mrf.mxu0
        %8171 = vmatprep.mubr.f32.mxu0 %v7704
        %8172 = vmatmul.mubr.f32.gmra.mxu0 %v7674
        %v8173 = vpop.f32.mrf.mxu0
        %v8174 = vadd.f32 %v8069, %v8173
        %v8175 = vpop.f32.mrf.mxu0
        %8176 = vmatprep.mubr.f32.mxu0 %v7721
        %8177 = vmatmul.mubr.f32.gmra.mxu0 %v7717
        %v8178 = vpop.f32.mrf.mxu0
        %v8179 = vadd.f32 %v8074, %v8178
        %v8180 = vpop.f32.mrf.mxu0
        %8181 = vdwg.mxu0
        %8182 = vmatprep.subr.mxu0 0.0
        %8183 = vmatpush1.msra.mxu0 %v7834
        %8184 = vmatprep.subr.mxu0 0.0
        %8185 = vmatpush1.msra.mxu0 %v7833
        %8186 = vmatprep.subr.mxu0 0.0
        %8187 = vmatpush1.msra.mxu0 %v7832
        %8188 = vmatprep.subr.mxu0 0.0
        %8189 = vmatpush1.msra.mxu0 %v7831
        %8190 = vmatprep.subr.mxu0 0.0
        %8191 = vmatpush1.msra.mxu0 %v7830
        %8192 = vmatprep.subr.mxu0 0.0
        %8193 = vmatpush1.msra.mxu0 %v7829
        %8194 = vmatprep.subr.mxu0 0.0
        %8195 = vmatpush1.msra.mxu0 %v7828
        %8196 = vmatprep.subr.mxu0 0.0
        %8197 = vmatpush1.msra.mxu0 %v7827
        %8198 = vmatprep.subr.mxu0 0.0
        %8199 = vmatpush1.msra.mxu0 %v7826
        %8200 = vmatprep.subr.mxu0 0.0
        %8201 = vmatpush1.msra.mxu0 %v7825
        %8202 = vmatprep.subr.mxu0 0.0
        %8203 = vmatpush1.msra.mxu0 %v7824
        %8204 = vmatprep.subr.mxu0 0.0
        %8205 = vmatpush1.msra.mxu0 %v7823
        %8206 = vmatprep.subr.mxu0 0.0
        %8207 = vmatpush1.msra.mxu0 %v7822
        %8208 = vmatprep.subr.mxu0 0.0
        %8209 = vmatpush1.msra.mxu0 %v7821
        %8210 = vmatprep.subr.mxu0 0.0
        %8211 = vmatpush1.msra.mxu0 %v7820
        %8212 = vmatprep.subr.mxu0 0.0
        %8213 = vmatpush1.msra.mxu0 %v7819
        %8214 = vmatprep.subr.mxu0 0.0
        %8215 = vmatpush2.msra.mxu0 %v7850
        %8216 = vmatprep.subr.mxu0 0.0
        %8217 = vmatpush2.msra.mxu0 %v7849
        %8218 = vmatprep.subr.mxu0 0.0
        %8219 = vmatpush2.msra.mxu0 %v7848
        %8220 = vmatprep.subr.mxu0 0.0
        %8221 = vmatpush2.msra.mxu0 %v7847
        %8222 = vmatprep.subr.mxu0 0.0
        %8223 = vmatpush2.msra.mxu0 %v7846
        %8224 = vmatprep.subr.mxu0 0.0
        %8225 = vmatpush2.msra.mxu0 %v7845
        %8226 = vmatprep.subr.mxu0 0.0
        %8227 = vmatpush2.msra.mxu0 %v7844
        %8228 = vmatprep.subr.mxu0 0.0
        %8229 = vmatpush2.msra.mxu0 %v7843
        %8230 = vmatprep.subr.mxu0 0.0
        %8231 = vmatpush2.msra.mxu0 %v7842
        %8232 = vmatprep.subr.mxu0 0.0
        %8233 = vmatpush2.msra.mxu0 %v7841
        %8234 = vmatprep.subr.mxu0 0.0
        %8235 = vmatpush2.msra.mxu0 %v7840
        %8236 = vmatprep.subr.mxu0 0.0
        %8237 = vmatpush2.msra.mxu0 %v7839
        %8238 = vmatprep.subr.mxu0 0.0
        %8239 = vmatpush2.msra.mxu0 %v7838
        %8240 = vmatprep.subr.mxu0 0.0
        %8241 = vmatpush2.msra.mxu0 %v7837
        %8242 = vmatprep.subr.mxu0 0.0
        %8243 = vmatpush2.msra.mxu0 %v7836
        %8244 = vmatprep.subr.mxu0 0.0
        %8245 = vmatpush2.msra.mxu0 %v7835
        %8246 = vmatprep.mubr.f32.mxu0 %v7659
        %8247 = vmatmul.mubr.f32.gmra.mxu0 %v7624
        %v8248 = vpop.f32.mrf.mxu0
        %v8249 = vadd.f32 %v8144, %v8248
        %v8250 = vpop.f32.mrf.mxu0
        %8251 = vmatprep.mubr.f32.mxu0 %v7662
        %8252 = vmatmul.mubr.f32.gmra.mxu0 %v7625
        %v8253 = vpop.f32.mrf.mxu0
        %v8254 = vadd.f32 %v8149, %v8253
        %v8255 = vpop.f32.mrf.mxu0
        %8256 = vmatprep.mubr.f32.mxu0 %v7665
        %8257 = vmatmul.mubr.f32.gmra.mxu0 %v7626
        %v8258 = vpop.f32.mrf.mxu0
        %v8259 = vadd.f32 %v8154, %v8258
        %v8260 = vpop.f32.mrf.mxu0
        %8261 = vmatprep.mubr.f32.mxu0 %v7668
        %8262 = vmatmul.mubr.f32.gmra.mxu0 %v7627
        %v8263 = vpop.f32.mrf.mxu0
        %v8264 = vadd.f32 %v8159, %v8263
        %v8265 = vpop.f32.mrf.mxu0
        %8266 = vmatprep.mubr.f32.mxu0 %v7671
        %8267 = vmatmul.mubr.f32.gmra.mxu0 %v7628
        %v8268 = vpop.f32.mrf.mxu0
        %v8269 = vadd.f32 %v8164, %v8268
        %v8270 = vpop.f32.mrf.mxu0
        %8271 = vmatprep.mubr.f32.mxu0 %v7674
        %8272 = vmatmul.mubr.f32.gmra.mxu0 %v7629
        %v8273 = vpop.f32.mrf.mxu0
        %v8274 = vadd.f32 %v8169, %v8273
        %v8275 = vpop.f32.mrf.mxu0
        %8276 = vmatprep.mubr.f32.mxu0 %v7717
        %8277 = vmatmul.mubr.f32.gmra.mxu0 %v7630
        %v8278 = vpop.f32.mrf.mxu0
        %v8279 = vadd.f32 %v8174, %v8278
        %v8280 = vpop.f32.mrf.mxu0
        %8281 = vmatprep.mubr.f32.mxu0 %v7653
        %8282 = vmatmul.mubr.f32.gmra.mxu0 %v3448
        %v8283 = vpop.f32.mrf.mxu0
        %v8284 = vadd.f32 %v8179, %v8283
        %v8285 = vpop.f32.mrf.mxu0
        %8286 = vdwg.mxu0
        %8287 = vmatprep.subr.mxu0 0.0
        %8288 = vmatpush1.msra.mxu0 %v7866
        %8289 = vmatprep.subr.mxu0 0.0
        %8290 = vmatpush1.msra.mxu0 %v7865
        %8291 = vmatprep.subr.mxu0 0.0
        %8292 = vmatpush1.msra.mxu0 %v7864
        %8293 = vmatprep.subr.mxu0 0.0
        %8294 = vmatpush1.msra.mxu0 %v7863
        %8295 = vmatprep.subr.mxu0 0.0
        %8296 = vmatpush1.msra.mxu0 %v7862
        %8297 = vmatprep.subr.mxu0 0.0
        %8298 = vmatpush1.msra.mxu0 %v7861
        %8299 = vmatprep.subr.mxu0 0.0
        %8300 = vmatpush1.msra.mxu0 %v7860
        %8301 = vmatprep.subr.mxu0 0.0
        %8302 = vmatpush1.msra.mxu0 %v7859
        %8303 = vmatprep.subr.mxu0 0.0
        %8304 = vmatpush1.msra.mxu0 %v7858
        %8305 = vmatprep.subr.mxu0 0.0
        %8306 = vmatpush1.msra.mxu0 %v7857
        %8307 = vmatprep.subr.mxu0 0.0
        %8308 = vmatpush1.msra.mxu0 %v7856
        %8309 = vmatprep.subr.mxu0 0.0
        %8310 = vmatpush1.msra.mxu0 %v7855
        %8311 = vmatprep.subr.mxu0 0.0
        %8312 = vmatpush1.msra.mxu0 %v7854
        %8313 = vmatprep.subr.mxu0 0.0
        %8314 = vmatpush1.msra.mxu0 %v7853
        %8315 = vmatprep.subr.mxu0 0.0
        %8316 = vmatpush1.msra.mxu0 %v7852
        %8317 = vmatprep.subr.mxu0 0.0
        %8318 = vmatpush1.msra.mxu0 %v7851
        %8319 = vmatprep.subr.mxu0 0.0
        %8320 = vmatpush2.msra.mxu0 0.0
        %8321 = vmatprep.subr.mxu0 0.0
        %8322 = vmatpush2.msra.mxu0 0.0
        %8323 = vmatprep.subr.mxu0 0.0
        %8324 = vmatpush2.msra.mxu0 0.0
        %8325 = vmatprep.subr.mxu0 0.0
        %8326 = vmatpush2.msra.mxu0 0.0
        %8327 = vmatprep.subr.mxu0 0.0
        %8328 = vmatpush2.msra.mxu0 0.0
        %8329 = vmatprep.subr.mxu0 0.0
        %8330 = vmatpush2.msra.mxu0 0.0
        %8331 = vmatprep.subr.mxu0 0.0
        %8332 = vmatpush2.msra.mxu0 0.0
        %8333 = vmatprep.subr.mxu0 0.0
        %8334 = vmatpush2.msra.mxu0 0.0
        %8335 = vmatprep.subr.mxu0 0.0
        %8336 = vmatpush2.msra.mxu0 0.0
        %8337 = vmatprep.subr.mxu0 0.0
        %8338 = vmatpush2.msra.mxu0 0.0
        %8339 = vmatprep.subr.mxu0 0.0
        %8340 = vmatpush2.msra.mxu0 0.0
        %8341 = vmatprep.subr.mxu0 0.0
        %8342 = vmatpush2.msra.mxu0 0.0
        %8343 = vmatprep.subr.mxu0 0.0
        %8344 = vmatpush2.msra.mxu0 0.0
        %8345 = vmatprep.subr.mxu0 0.0
        %8346 = vmatpush2.msra.mxu0 0.0
        %8347 = vmatprep.subr.mxu0 0.0
        %8348 = vmatpush2.msra.mxu0 0.0
        %8349 = vmatprep.subr.mxu0 0.0
        %8350 = vmatpush2.msra.mxu0 0.0
        %8351 = vmatprep.mubr.f32.mxu0 0.0
        %8352 = vmatmul.mubr.f32.gmra.mxu0 %v7689
        %v8353 = vpop.f32.mrf.mxu0
        %v8354 = vadd.f32 %v8249, %v8353
        %v8355 = vpop.f32.mrf.mxu0
        %8356 = vmatprep.mubr.f32.mxu0 0.0
        %8357 = vmatmul.mubr.f32.gmra.mxu0 %v7692
        %v8358 = vpop.f32.mrf.mxu0
        %v8359 = vadd.f32 %v8254, %v8358
        %v8360 = vpop.f32.mrf.mxu0
        %8361 = vmatprep.mubr.f32.mxu0 0.0
        %8362 = vmatmul.mubr.f32.gmra.mxu0 %v7695
        %v8363 = vpop.f32.mrf.mxu0
        %v8364 = vadd.f32 %v8259, %v8363
        %v8365 = vpop.f32.mrf.mxu0
        %8366 = vmatprep.mubr.f32.mxu0 0.0
        %8367 = vmatmul.mubr.f32.gmra.mxu0 %v7698
        %v8368 = vpop.f32.mrf.mxu0
        %v8369 = vadd.f32 %v8264, %v8368
        %v8370 = vpop.f32.mrf.mxu0
        %8371 = vmatprep.mubr.f32.mxu0 0.0
        %8372 = vmatmul.mubr.f32.gmra.mxu0 %v7701
        %v8373 = vpop.f32.mrf.mxu0
        %v8374 = vadd.f32 %v8269, %v8373
        %v8375 = vpop.f32.mrf.mxu0
        %8376 = vmatprep.mubr.f32.mxu0 0.0
        %8377 = vmatmul.mubr.f32.gmra.mxu0 %v7704
        %v8378 = vpop.f32.mrf.mxu0
        %v8379 = vadd.f32 %v8274, %v8378
        %v8380 = vpop.f32.mrf.mxu0
        %8381 = vmatprep.mubr.f32.mxu0 0.0
        %8382 = vmatmul.mubr.f32.gmra.mxu0 %v7721
        %v8383 = vpop.f32.mrf.mxu0
        %v8384 = vadd.f32 %v8279, %v8383
        %v8385 = vpop.f32.mrf.mxu0
        %8386 = vmatprep.mubr.f32.mxu0 0.0
        %8387 = vmatmul.mubr.f32.gmra.mxu0 %v7683
        %v8388 = vpop.f32.mrf.mxu0
        %v8389 = vadd.f32 %v8284, %v8388
        %v8390 = vpop.f32.mrf.mxu0
        %8391 = vdwg.mxu0
        %v8392 = vld [vmem:[%s37] sm:$0x1]
        %v8394 = vlaneseq
        %v8395 = vshrl.u32 %v8394, 7
        %v8396 = vsub.s32 0, %v8395
        %v8397 = vrot.slane %v8392, %v8396
        %v8399 = vmul.f32 %v8354, %v8397
        %v8400 = vmul.f32 %v8359, %v8397
        %v8401 = vmul.f32 %v8364, %v8397
        %v8402 = vmul.f32 %v8369, %v8397
        %v8403 = vmul.f32 %v8374, %v8397
        %v8404 = vmul.f32 %v8379, %v8397
        %v8405 = vmul.f32 %v8384, %v8397
        %v8406 = vmul.f32 %v8389, %v8397
        %v8407 = vld [vmem:[%s39] sm:$0x1]
        %v8409 = vlaneseq
        %v8410 = vshrl.u32 %v8409, 7
        %v8411 = vsub.s32 0, %v8410
        %v8412 = vrot.slane %v8407, %v8411
        %v8414 = vadd.f32 %v8399, %v8412
        %v8415 = vadd.f32 %v8400, %v8412
        %v8416 = vadd.f32 %v8401, %v8412
        %v8417 = vadd.f32 %v8402, %v8412
        %v8418 = vadd.f32 %v8403, %v8412
        %v8419 = vadd.f32 %v8404, %v8412
        %v8420 = vadd.f32 %v8405, %v8412
        %v8421 = vadd.f32 %v8406, %v8412
        %v8422 = vmax.f32 %v8414, 0.0
        %v8423 = vmax.f32 %v8415, 0.0
        %v8424 = vmax.f32 %v8416, 0.0
        %v8425 = vmax.f32 %v8417, 0.0
        %v8426 = vmax.f32 %v8418, 0.0
        %v8427 = vmax.f32 %v8419, 0.0
        %v8428 = vmax.f32 %v8420, 0.0
        %v8429 = vmax.f32 %v8421, 0.0
        %v8430 = vld [vmem:[%s41] sm:$0xff]
        %v8431 = vld [vmem:[%s41 + $0x8] sm:$0xff]
        %v8432 = vld [vmem:[%s41 + $0x10] sm:$0xff]
        %v8433 = vld [vmem:[%s41 + $0x18] sm:$0xff]
        %v8434 = vld [vmem:[%s41 + $0x20] sm:$0xff]
        %v8435 = vld [vmem:[%s41 + $0x28] sm:$0xff]
        %v8436 = vld [vmem:[%s41 + $0x30] sm:$0xff]
        %v8437 = vld [vmem:[%s41 + $0x38] sm:$0xff]
        %v8438 = vld [vmem:[%s41 + $0x40] sm:$0xff]
        %v8439 = vld [vmem:[%s41 + $0x48] sm:$0xff]
        %v8440 = vld [vmem:[%s41 + $0x50] sm:$0xff]
        %v8441 = vld [vmem:[%s41 + $0x58] sm:$0xff]
        %v8442 = vld [vmem:[%s41 + $0x60] sm:$0xff]
        %v8443 = vld [vmem:[%s41 + $0x68] sm:$0xff]
        %v8444 = vld [vmem:[%s41 + $0x70] sm:$0xff]
        %v8445 = vld [vmem:[%s41 + $0x78] sm:$0xff]
        %8446 = vmatprep.subr.mxu0 0.0
        %8447 = vmatpush1.msra.mxu0 %v8445
        %8448 = vmatprep.subr.mxu0 0.0
        %8449 = vmatpush1.msra.mxu0 %v8444
        %8450 = vmatprep.subr.mxu0 0.0
        %8451 = vmatpush1.msra.mxu0 %v8443
        %8452 = vmatprep.subr.mxu0 0.0
        %8453 = vmatpush1.msra.mxu0 %v8442
        %8454 = vmatprep.subr.mxu0 0.0
        %8455 = vmatpush1.msra.mxu0 %v8441
        %8456 = vmatprep.subr.mxu0 0.0
        %8457 = vmatpush1.msra.mxu0 %v8440
        %8458 = vmatprep.subr.mxu0 0.0
        %8459 = vmatpush1.msra.mxu0 %v8439
        %8460 = vmatprep.subr.mxu0 0.0
        %8461 = vmatpush1.msra.mxu0 %v8438
        %8462 = vmatprep.subr.mxu0 0.0
        %8463 = vmatpush1.msra.mxu0 %v8437
        %8464 = vmatprep.subr.mxu0 0.0
        %8465 = vmatpush1.msra.mxu0 %v8436
        %8466 = vmatprep.subr.mxu0 0.0
        %8467 = vmatpush1.msra.mxu0 %v8435
        %8468 = vmatprep.subr.mxu0 0.0
        %8469 = vmatpush1.msra.mxu0 %v8434
        %8470 = vmatprep.subr.mxu0 0.0
        %8471 = vmatpush1.msra.mxu0 %v8433
        %8472 = vmatprep.subr.mxu0 0.0
        %8473 = vmatpush1.msra.mxu0 %v8432
        %8474 = vmatprep.subr.mxu0 0.0
        %8475 = vmatpush1.msra.mxu0 %v8431
        %8476 = vmatprep.subr.mxu0 0.0
        %8477 = vmatpush1.msra.mxu0 %v8430
        %8478 = vmatprep.subr.mxu0 0.0
        %8479 = vmatpush2.msra.mxu0 0.0
        %8480 = vmatprep.subr.mxu0 0.0
        %8481 = vmatpush2.msra.mxu0 0.0
        %8482 = vmatprep.subr.mxu0 0.0
        %8483 = vmatpush2.msra.mxu0 0.0
        %8484 = vmatprep.subr.mxu0 0.0
        %8485 = vmatpush2.msra.mxu0 0.0
        %8486 = vmatprep.subr.mxu0 0.0
        %8487 = vmatpush2.msra.mxu0 0.0
        %8488 = vmatprep.subr.mxu0 0.0
        %8489 = vmatpush2.msra.mxu0 0.0
        %8490 = vmatprep.subr.mxu0 0.0
        %8491 = vmatpush2.msra.mxu0 0.0
        %8492 = vmatprep.subr.mxu0 0.0
        %8493 = vmatpush2.msra.mxu0 0.0
        %8494 = vmatprep.subr.mxu0 0.0
        %8495 = vmatpush2.msra.mxu0 0.0
        %8496 = vmatprep.subr.mxu0 0.0
        %8497 = vmatpush2.msra.mxu0 0.0
        %8498 = vmatprep.subr.mxu0 0.0
        %8499 = vmatpush2.msra.mxu0 0.0
        %8500 = vmatprep.subr.mxu0 0.0
        %8501 = vmatpush2.msra.mxu0 0.0
        %8502 = vmatprep.subr.mxu0 0.0
        %8503 = vmatpush2.msra.mxu0 0.0
        %8504 = vmatprep.subr.mxu0 0.0
        %8505 = vmatpush2.msra.mxu0 0.0
        %8506 = vmatprep.subr.mxu0 0.0
        %8507 = vmatpush2.msra.mxu0 0.0
        %8508 = vmatprep.subr.mxu0 0.0
        %8509 = vmatpush2.msra.mxu0 0.0
        %8510 = vmatprep.mubr.f32.mxu0 0.0
        %8511 = vmatmul.mubr.f32.gmra.mxu0 %v8422
        %v8512 = vpop.f32.mrf.mxu0
        %v8513 = vadd.f32 0.0, %v8512
        %v8514 = vpop.f32.mrf.mxu0
        %8515 = vmatprep.mubr.f32.mxu0 0.0
        %8516 = vmatmul.mubr.f32.gmra.mxu0 %v8423
        %v8517 = vpop.f32.mrf.mxu0
        %v8518 = vadd.f32 0.0, %v8517
        %v8519 = vpop.f32.mrf.mxu0
        %8520 = vmatprep.mubr.f32.mxu0 0.0
        %8521 = vmatmul.mubr.f32.gmra.mxu0 %v8424
        %v8522 = vpop.f32.mrf.mxu0
        %v8523 = vadd.f32 0.0, %v8522
        %v8524 = vpop.f32.mrf.mxu0
        %8525 = vmatprep.mubr.f32.mxu0 0.0
        %8526 = vmatmul.mubr.f32.gmra.mxu0 %v8425
        %v8527 = vpop.f32.mrf.mxu0
        %v8528 = vadd.f32 0.0, %v8527
        %v8529 = vpop.f32.mrf.mxu0
        %8530 = vmatprep.mubr.f32.mxu0 0.0
        %8531 = vmatmul.mubr.f32.gmra.mxu0 %v8426
        %v8532 = vpop.f32.mrf.mxu0
        %v8533 = vadd.f32 0.0, %v8532
        %v8534 = vpop.f32.mrf.mxu0
        %8535 = vmatprep.mubr.f32.mxu0 0.0
        %8536 = vmatmul.mubr.f32.gmra.mxu0 %v8427
        %v8537 = vpop.f32.mrf.mxu0
        %v8538 = vadd.f32 0.0, %v8537
        %v8539 = vpop.f32.mrf.mxu0
        %8540 = vmatprep.mubr.f32.mxu0 0.0
        %8541 = vmatmul.mubr.f32.gmra.mxu0 %v8428
        %v8542 = vpop.f32.mrf.mxu0
        %v8543 = vadd.f32 0.0, %v8542
        %v8544 = vpop.f32.mrf.mxu0
        %8545 = vmatprep.mubr.f32.mxu0 0.0
        %8546 = vmatmul.mubr.f32.gmra.mxu0 %v8429
        %v8547 = vpop.f32.mrf.mxu0
        %v8548 = vadd.f32 0.0, %v8547
        %v8549 = vpop.f32.mrf.mxu0
        %8550 = vdwg.mxu0
        %v8551 = vld [vmem:[%s43] sm:$0x1]
        %v8553 = vlaneseq
        %v8554 = vshrl.u32 %v8553, 7
        %v8555 = vsub.s32 0, %v8554
        %v8556 = vrot.slane %v8551, %v8555
        %v8558 = vmul.f32 %v8513, %v8556
        %v8559 = vmul.f32 %v8518, %v8556
        %v8560 = vmul.f32 %v8523, %v8556
        %v8561 = vmul.f32 %v8528, %v8556
        %v8562 = vmul.f32 %v8533, %v8556
        %v8563 = vmul.f32 %v8538, %v8556
        %v8564 = vmul.f32 %v8543, %v8556
        %v8565 = vmul.f32 %v8548, %v8556
        %v8566 = vld [vmem:[%s45] sm:$0x1]
        %v8568 = vlaneseq
        %v8569 = vshrl.u32 %v8568, 7
        %v8570 = vsub.s32 0, %v8569
        %v8571 = vrot.slane %v8566, %v8570
        %v8573 = vadd.f32 %v8558, %v8571
        %v8574 = vadd.f32 %v8559, %v8571
        %v8575 = vadd.f32 %v8560, %v8571
        %v8576 = vadd.f32 %v8561, %v8571
        %v8577 = vadd.f32 %v8562, %v8571
        %v8578 = vadd.f32 %v8563, %v8571
        %v8579 = vadd.f32 %v8564, %v8571
        %v8580 = vadd.f32 %v8565, %v8571
        %v8581 = vadd.f32 %v8573, %v7398
        %v8582 = vadd.f32 %v8574, %v7405
        %v8583 = vadd.f32 %v8575, %v7412
        %v8584 = vadd.f32 %v8576, %v7419
        %v8585 = vadd.f32 %v8577, %v7426
        %v8586 = vadd.f32 %v8578, %v7433
        %v8587 = vadd.f32 %v8579, %v7440
        %v8588 = vadd.f32 %v8580, %v7447
        %v8589 = vmax.f32 %v8581, 0.0
        %v8590 = vmax.f32 %v8582, 0.0
        %v8591 = vmax.f32 %v8583, 0.0
        %v8592 = vmax.f32 %v8584, 0.0
        %v8593 = vmax.f32 %v8585, 0.0
        %v8594 = vmax.f32 %v8586, 0.0
        %v8595 = vmax.f32 %v8587, 0.0
        %v8596 = vmax.f32 %v8588, 0.0
        %v8605 = vcombine.high %v8589, %v8589
        %v8607 = vunpack.c.l.s4 1983009808
        %v8608 = vunpack.c.0.s8 %v8607
        %v8609 = vlaneseq
        %v8610 = vshrl.u32 %v8609, 7
        %v8611 = vsub.s32 %v8608, %v8610
        %v8612 = vrot.slane %v8589, %v8611
        %v8614 = vunpack.c.l.s4 1983009808
        %v8615 = vunpack.c.0.s8 %v8614
        %v8616 = vlaneseq
        %v8617 = vshrl.u32 %v8616, 7
        %v8618 = vsub.s32 %v8615, %v8617
        %v8619 = vrot.slane %v8605, %v8618
        %v8620 = vcombine.high %v8612, %v8612
        %v8621 = vcombine.high %v8619, %v8619
        %v8622 = vcombine.high %v8590, %v8590
        %v8624 = vunpack.c.l.s4 1983009808
        %v8625 = vunpack.c.0.s8 %v8624
        %v8626 = vlaneseq
        %v8627 = vshrl.u32 %v8626, 7
        %v8628 = vsub.s32 %v8625, %v8627
        %v8629 = vrot.slane %v8590, %v8628
        %v8631 = vunpack.c.l.s4 1983009808
        %v8632 = vunpack.c.0.s8 %v8631
        %v8633 = vlaneseq
        %v8634 = vshrl.u32 %v8633, 7
        %v8635 = vsub.s32 %v8632, %v8634
        %v8636 = vrot.slane %v8622, %v8635
        %v8637 = vcombine.high %v8629, %v8629
        %v8638 = vcombine.high %v8636, %v8636
        %v8639 = vcombine.high %v8591, %v8591
        %v8641 = vunpack.c.l.s4 1983009808
        %v8642 = vunpack.c.0.s8 %v8641
        %v8643 = vlaneseq
        %v8644 = vshrl.u32 %v8643, 7
        %v8645 = vsub.s32 %v8642, %v8644
        %v8646 = vrot.slane %v8591, %v8645
        %v8648 = vunpack.c.l.s4 1983009808
        %v8649 = vunpack.c.0.s8 %v8648
        %v8650 = vlaneseq
        %v8651 = vshrl.u32 %v8650, 7
        %v8652 = vsub.s32 %v8649, %v8651
        %v8653 = vrot.slane %v8639, %v8652
        %v8654 = vcombine.high %v8646, %v8646
        %v8655 = vcombine.high %v8653, %v8653
        %v8656 = vcombine.high %v8592, %v8592
        %v8658 = vunpack.c.l.s4 1983009808
        %v8659 = vunpack.c.0.s8 %v8658
        %v8660 = vlaneseq
        %v8661 = vshrl.u32 %v8660, 7
        %v8662 = vsub.s32 %v8659, %v8661
        %v8663 = vrot.slane %v8592, %v8662
        %v8665 = vunpack.c.l.s4 1983009808
        %v8666 = vunpack.c.0.s8 %v8665
        %v8667 = vlaneseq
        %v8668 = vshrl.u32 %v8667, 7
        %v8669 = vsub.s32 %v8666, %v8668
        %v8670 = vrot.slane %v8656, %v8669
        %v8671 = vcombine.high %v8663, %v8663
        %v8672 = vcombine.high %v8670, %v8670
        %v8673 = vcombine.high %v8593, %v8593
        %v8675 = vunpack.c.l.s4 1983009808
        %v8676 = vunpack.c.0.s8 %v8675
        %v8677 = vlaneseq
        %v8678 = vshrl.u32 %v8677, 7
        %v8679 = vsub.s32 %v8676, %v8678
        %v8680 = vrot.slane %v8593, %v8679
        %v8682 = vunpack.c.l.s4 1983009808
        %v8683 = vunpack.c.0.s8 %v8682
        %v8684 = vlaneseq
        %v8685 = vshrl.u32 %v8684, 7
        %v8686 = vsub.s32 %v8683, %v8685
        %v8687 = vrot.slane %v8673, %v8686
        %v8688 = vcombine.high %v8680, %v8680
        %v8689 = vcombine.high %v8687, %v8687
        %v8690 = vcombine.high %v8594, %v8594
        %v8692 = vunpack.c.l.s4 1983009808
        %v8693 = vunpack.c.0.s8 %v8692
        %v8694 = vlaneseq
        %v8695 = vshrl.u32 %v8694, 7
        %v8696 = vsub.s32 %v8693, %v8695
        %v8697 = vrot.slane %v8594, %v8696
        %v8699 = vunpack.c.l.s4 1983009808
        %v8700 = vunpack.c.0.s8 %v8699
        %v8701 = vlaneseq
        %v8702 = vshrl.u32 %v8701, 7
        %v8703 = vsub.s32 %v8700, %v8702
        %v8704 = vrot.slane %v8690, %v8703
        %v8705 = vcombine.high %v8697, %v8697
        %v8706 = vcombine.high %v8704, %v8704
        %v8707 = vcombine.high %v8595, %v8595
        %v8709 = vunpack.c.l.s4 1983009808
        %v8710 = vunpack.c.0.s8 %v8709
        %v8711 = vlaneseq
        %v8712 = vshrl.u32 %v8711, 7
        %v8713 = vsub.s32 %v8710, %v8712
        %v8714 = vrot.slane %v8595, %v8713
        %v8716 = vunpack.c.l.s4 1983009808
        %v8717 = vunpack.c.0.s8 %v8716
        %v8718 = vlaneseq
        %v8719 = vshrl.u32 %v8718, 7
        %v8720 = vsub.s32 %v8717, %v8719
        %v8721 = vrot.slane %v8707, %v8720
        %v8722 = vcombine.high %v8714, %v8714
        %v8723 = vcombine.high %v8721, %v8721
        %v8724 = vcombine.high %v8596, %v8596
        %v8726 = vunpack.c.l.s4 1983009808
        %v8727 = vunpack.c.0.s8 %v8726
        %v8728 = vlaneseq
        %v8729 = vshrl.u32 %v8728, 7
        %v8730 = vsub.s32 %v8727, %v8729
        %v8731 = vrot.slane %v8596, %v8730
        %v8733 = vunpack.c.l.s4 1983009808
        %v8734 = vunpack.c.0.s8 %v8733
        %v8735 = vlaneseq
        %v8736 = vshrl.u32 %v8735, 7
        %v8737 = vsub.s32 %v8734, %v8736
        %v8738 = vrot.slane %v8724, %v8737
        %v8739 = vcombine.high %v8731, %v8731
        %v8740 = vcombine.high %v8738, %v8738
        %v8773 = vrot.slane %v8612, 7
        %v8774 = vrot.slane %v8773, 2
        %v8775 = vrot.slane %v8620, 7
        %v8776 = vrot.slane %v8775, 2
        %v8777 = vrot.slane %v8619, 7
        %v8778 = vrot.slane %v8777, 2
        %v8779 = vrot.slane %v8621, 7
        %v8780 = vrot.slane %v8779, 2
        %v8781 = vrot.slane %v8629, 7
        %v8782 = vrot.slane %v8781, 2
        %v8783 = vrot.slane %v8637, 7
        %v8784 = vrot.slane %v8783, 2
        %v8785 = vrot.slane %v8636, 7
        %v8786 = vrot.slane %v8785, 2
        %v8787 = vrot.slane %v8638, 7
        %v8788 = vrot.slane %v8787, 2
        %v8789 = vrot.slane %v8646, 7
        %v8790 = vrot.slane %v8789, 2
        %v8791 = vrot.slane %v8654, 7
        %v8792 = vrot.slane %v8791, 2
        %v8793 = vrot.slane %v8653, 7
        %v8794 = vrot.slane %v8793, 2
        %v8795 = vrot.slane %v8655, 7
        %v8796 = vrot.slane %v8795, 2
        %v8797 = vrot.slane %v8663, 7
        %v8798 = vrot.slane %v8797, 2
        %v8799 = vrot.slane %v8671, 7
        %v8800 = vrot.slane %v8799, 2
        %v8801 = vrot.slane %v8670, 7
        %v8802 = vrot.slane %v8801, 2
        %v8803 = vrot.slane %v8672, 7
        %v8804 = vrot.slane %v8803, 2
        %v8805 = vrot.slane %v8680, 7
        %v8806 = vrot.slane %v8805, 2
        %v8807 = vrot.slane %v8688, 7
        %v8808 = vrot.slane %v8807, 2
        %v8809 = vrot.slane %v8687, 7
        %v8810 = vrot.slane %v8809, 2
        %v8811 = vrot.slane %v8689, 7
        %v8812 = vrot.slane %v8811, 2
        %v8813 = vrot.slane %v8697, 7
        %v8814 = vrot.slane %v8813, 2
        %v8815 = vrot.slane %v8705, 7
        %v8816 = vrot.slane %v8815, 2
        %v8817 = vrot.slane %v8704, 7
        %v8818 = vrot.slane %v8817, 2
        %v8819 = vrot.slane %v8706, 7
        %v8820 = vrot.slane %v8819, 2
        %v8821 = vrot.slane %v8714, 7
        %v8822 = vrot.slane %v8821, 2
        %v8823 = vrot.slane %v8722, 7
        %v8824 = vrot.slane %v8823, 2
        %v8825 = vrot.slane %v8721, 7
        %v8826 = vrot.slane %v8825, 2
        %v8827 = vrot.slane %v8723, 7
        %v8828 = vrot.slane %v8827, 2
        %v8829 = vrot.slane %v8731, 7
        %v8830 = vrot.slane %v8829, 2
        %v8831 = vrot.slane %v8739, 7
        %v8832 = vrot.slane %v8831, 2
        %v8833 = vrot.slane %v8738, 7
        %v8834 = vrot.slane %v8833, 2
        %v8835 = vrot.slane %v8740, 7
        %v8836 = vrot.slane %v8835, 2
        %v8869 = vmax.f32 %v8612, %v8774
        %v8870 = vmax.f32 %v8620, %v8776
        %v8871 = vmax.f32 %v8619, %v8778
        %v8872 = vmax.f32 %v8621, %v8780
        %v8873 = vmax.f32 %v8629, %v8782
        %v8874 = vmax.f32 %v8637, %v8784
        %v8875 = vmax.f32 %v8636, %v8786
        %v8876 = vmax.f32 %v8638, %v8788
        %v8877 = vmax.f32 %v8646, %v8790
        %v8878 = vmax.f32 %v8654, %v8792
        %v8879 = vmax.f32 %v8653, %v8794
        %v8880 = vmax.f32 %v8655, %v8796
        %v8881 = vmax.f32 %v8663, %v8798
        %v8882 = vmax.f32 %v8671, %v8800
        %v8883 = vmax.f32 %v8670, %v8802
        %v8884 = vmax.f32 %v8672, %v8804
        %v8885 = vmax.f32 %v8680, %v8806
        %v8886 = vmax.f32 %v8688, %v8808
        %v8887 = vmax.f32 %v8687, %v8810
        %v8888 = vmax.f32 %v8689, %v8812
        %v8889 = vmax.f32 %v8697, %v8814
        %v8890 = vmax.f32 %v8705, %v8816
        %v8891 = vmax.f32 %v8704, %v8818
        %v8892 = vmax.f32 %v8706, %v8820
        %v8893 = vmax.f32 %v8714, %v8822
        %v8894 = vmax.f32 %v8722, %v8824
        %v8895 = vmax.f32 %v8721, %v8826
        %v8896 = vmax.f32 %v8723, %v8828
        %v8897 = vmax.f32 %v8731, %v8830
        %v8898 = vmax.f32 %v8739, %v8832
        %v8899 = vmax.f32 %v8738, %v8834
        %v8900 = vmax.f32 %v8740, %v8836
        %v8901 = vmax.f32 %v8869, %v8873
        %v8902 = vmax.f32 %v8870, %v8874
        %v8903 = vmax.f32 %v8871, %v8875
        %v8904 = vmax.f32 %v8872, %v8876
        %v8905 = vmax.f32 %v8877, %v8881
        %v8906 = vmax.f32 %v8878, %v8882
        %v8907 = vmax.f32 %v8879, %v8883
        %v8908 = vmax.f32 %v8880, %v8884
        %v8909 = vmax.f32 %v8885, %v8889
        %v8910 = vmax.f32 %v8886, %v8890
        %v8911 = vmax.f32 %v8887, %v8891
        %v8912 = vmax.f32 %v8888, %v8892
        %v8913 = vmax.f32 %v8893, %v8897
        %v8914 = vmax.f32 %v8894, %v8898
        %v8915 = vmax.f32 %v8895, %v8899
        %v8916 = vmax.f32 %v8896, %v8900
        %v8917 = vld [vmem:[%s47] sm:$0xff]
        %v8918 = vld [vmem:[%s47 + $0x8] sm:$0xff]
        %v8919 = vld [vmem:[%s47 + $0x10] sm:$0xff]
        %v8920 = vld [vmem:[%s47 + $0x18] sm:$0xff]
        %v8921 = vld [vmem:[%s47 + $0x20] sm:$0xff]
        %v8922 = vld [vmem:[%s47 + $0x28] sm:$0xff]
        %v8923 = vld [vmem:[%s47 + $0x30] sm:$0xff]
        %v8924 = vld [vmem:[%s47 + $0x38] sm:$0xff]
        %v8925 = vld [vmem:[%s47 + $0x40] sm:$0xff]
        %v8926 = vld [vmem:[%s47 + $0x48] sm:$0xff]
        %v8927 = vld [vmem:[%s47 + $0x50] sm:$0xff]
        %v8928 = vld [vmem:[%s47 + $0x58] sm:$0xff]
        %v8929 = vld [vmem:[%s47 + $0x60] sm:$0xff]
        %v8930 = vld [vmem:[%s47 + $0x68] sm:$0xff]
        %v8931 = vld [vmem:[%s47 + $0x70] sm:$0xff]
        %v8932 = vld [vmem:[%s47 + $0x78] sm:$0xff]
        %v8949 = vlaneseq
        %v8950 = vshrl.u32 %v8949, 7
        %v8951 = vsub.s32 0, %v8950
        %v8952 = vrot.slane %v8901, %v8951
        %v8953 = vlaneseq
        %v8954 = vshrl.u32 %v8953, 7
        %v8955 = vsub.s32 0, %v8954
        %v8956 = vrot.slane %v8902, %v8955
        %v8957 = vlaneseq
        %v8958 = vshrl.u32 %v8957, 7
        %v8959 = vsub.s32 0, %v8958
        %v8960 = vrot.slane %v8903, %v8959
        %v8961 = vlaneseq
        %v8962 = vshrl.u32 %v8961, 7
        %v8963 = vsub.s32 0, %v8962
        %v8964 = vrot.slane %v8904, %v8963
        %v8965 = vlaneseq
        %v8966 = vshrl.u32 %v8965, 7
        %v8967 = vsub.s32 0, %v8966
        %v8968 = vrot.slane %v8905, %v8967
        %v8969 = vlaneseq
        %v8970 = vshrl.u32 %v8969, 7
        %v8971 = vsub.s32 0, %v8970
        %v8972 = vrot.slane %v8906, %v8971
        %v8973 = vlaneseq
        %v8974 = vshrl.u32 %v8973, 7
        %v8975 = vsub.s32 0, %v8974
        %v8976 = vrot.slane %v8907, %v8975
        %v8977 = vlaneseq
        %v8978 = vshrl.u32 %v8977, 7
        %v8979 = vsub.s32 0, %v8978
        %v8980 = vrot.slane %v8908, %v8979
        %v8981 = vlaneseq
        %v8982 = vshrl.u32 %v8981, 7
        %v8983 = vsub.s32 0, %v8982
        %v8984 = vrot.slane %v8909, %v8983
        %v8985 = vlaneseq
        %v8986 = vshrl.u32 %v8985, 7
        %v8987 = vsub.s32 0, %v8986
        %v8988 = vrot.slane %v8910, %v8987
        %v8989 = vlaneseq
        %v8990 = vshrl.u32 %v8989, 7
        %v8991 = vsub.s32 0, %v8990
        %v8992 = vrot.slane %v8911, %v8991
        %v8993 = vlaneseq
        %v8994 = vshrl.u32 %v8993, 7
        %v8995 = vsub.s32 0, %v8994
        %v8996 = vrot.slane %v8912, %v8995
        %v8997 = vlaneseq
        %v8998 = vshrl.u32 %v8997, 7
        %v8999 = vsub.s32 0, %v8998
        %v9000 = vrot.slane %v8913, %v8999
        %v9001 = vlaneseq
        %v9002 = vshrl.u32 %v9001, 7
        %v9003 = vsub.s32 0, %v9002
        %v9004 = vrot.slane %v8914, %v9003
        %v9005 = vlaneseq
        %v9006 = vshrl.u32 %v9005, 7
        %v9007 = vsub.s32 0, %v9006
        %v9008 = vrot.slane %v8915, %v9007
        %v9009 = vlaneseq
        %v9010 = vshrl.u32 %v9009, 7
        %v9011 = vsub.s32 0, %v9010
        %v9012 = vrot.slane %v8916, %v9011
        %v9013 = vsel %vm7385, %v8956, %v8952
        %v9014 = vsel %vm7387, %v8960, %v9013
        %v9015 = vsel %vm7389, %v8964, %v9014
        %v9016 = vsel %vm7391, %v8968, %v9015
        %v9017 = vsel %vm7393, %v8972, %v9016
        %v9018 = vsel %vm7395, %v8976, %v9017
        %v9019 = vsel %vm7397, %v8980, %v9018
        %v9020 = vsel %vm7385, %v8988, %v8984
        %v9021 = vsel %vm7387, %v8992, %v9020
        %v9022 = vsel %vm7389, %v8996, %v9021
        %v9023 = vsel %vm7391, %v9000, %v9022
        %v9024 = vsel %vm7393, %v9004, %v9023
        %v9025 = vsel %vm7395, %v9008, %v9024
        %v9026 = vsel %vm7397, %v9012, %v9025
        %9029 = vmatprep.subr.mxu0 0.0
        %9030 = vmatpush1.msra.mxu0 %v8932
        %9031 = vmatprep.subr.mxu0 0.0
        %9032 = vmatpush1.msra.mxu0 %v8931
        %9033 = vmatprep.subr.mxu0 0.0
        %9034 = vmatpush1.msra.mxu0 %v8930
        %9035 = vmatprep.subr.mxu0 0.0
        %9036 = vmatpush1.msra.mxu0 %v8929
        %9037 = vmatprep.subr.mxu0 0.0
        %9038 = vmatpush1.msra.mxu0 %v8928
        %9039 = vmatprep.subr.mxu0 0.0
        %9040 = vmatpush1.msra.mxu0 %v8927
        %9041 = vmatprep.subr.mxu0 0.0
        %9042 = vmatpush1.msra.mxu0 %v8926
        %9043 = vmatprep.subr.mxu0 0.0
        %9044 = vmatpush1.msra.mxu0 %v8925
        %9045 = vmatprep.subr.mxu0 0.0
        %9046 = vmatpush1.msra.mxu0 %v8924
        %9047 = vmatprep.subr.mxu0 0.0
        %9048 = vmatpush1.msra.mxu0 %v8923
        %9049 = vmatprep.subr.mxu0 0.0
        %9050 = vmatpush1.msra.mxu0 %v8922
        %9051 = vmatprep.subr.mxu0 0.0
        %9052 = vmatpush1.msra.mxu0 %v8921
        %9053 = vmatprep.subr.mxu0 0.0
        %9054 = vmatpush1.msra.mxu0 %v8920
        %9055 = vmatprep.subr.mxu0 0.0
        %9056 = vmatpush1.msra.mxu0 %v8919
        %9057 = vmatprep.subr.mxu0 0.0
        %9058 = vmatpush1.msra.mxu0 %v8918
        %9059 = vmatprep.subr.mxu0 0.0
        %9060 = vmatpush1.msra.mxu0 %v8917
        %9061 = vmatprep.subr.mxu0 0.0
        %9062 = vmatpush2.msra.mxu0 0.0
        %9063 = vmatprep.subr.mxu0 0.0
        %9064 = vmatpush2.msra.mxu0 0.0
        %9065 = vmatprep.subr.mxu0 0.0
        %9066 = vmatpush2.msra.mxu0 0.0
        %9067 = vmatprep.subr.mxu0 0.0
        %9068 = vmatpush2.msra.mxu0 0.0
        %9069 = vmatprep.subr.mxu0 0.0
        %9070 = vmatpush2.msra.mxu0 0.0
        %9071 = vmatprep.subr.mxu0 0.0
        %9072 = vmatpush2.msra.mxu0 0.0
        %9073 = vmatprep.subr.mxu0 0.0
        %9074 = vmatpush2.msra.mxu0 0.0
        %9075 = vmatprep.subr.mxu0 0.0
        %9076 = vmatpush2.msra.mxu0 0.0
        %9077 = vmatprep.subr.mxu0 0.0
        %9078 = vmatpush2.msra.mxu0 0.0
        %9079 = vmatprep.subr.mxu0 0.0
        %9080 = vmatpush2.msra.mxu0 0.0
        %9081 = vmatprep.subr.mxu0 0.0
        %9082 = vmatpush2.msra.mxu0 0.0
        %9083 = vmatprep.subr.mxu0 0.0
        %9084 = vmatpush2.msra.mxu0 0.0
        %9085 = vmatprep.subr.mxu0 0.0
        %9086 = vmatpush2.msra.mxu0 0.0
        %9087 = vmatprep.subr.mxu0 0.0
        %9088 = vmatpush2.msra.mxu0 0.0
        %9089 = vmatprep.subr.mxu0 0.0
        %9090 = vmatpush2.msra.mxu0 0.0
        %9091 = vmatprep.subr.mxu0 0.0
        %9092 = vmatpush2.msra.mxu0 0.0
        %9093 = vmatprep.mubr.f32.mxu0 0.0
        %9094 = vmatmul.mubr.f32.gmra.mxu0 %v9019
        %v9095 = vpop.f32.mrf.mxu0
        %v9096 = vadd.f32 0.0, %v9095
        %v9097 = vpop.f32.mrf.mxu0
        %9098 = vmatprep.mubr.f32.mxu0 0.0
        %9099 = vmatmul.mubr.f32.gmra.mxu0 %v9026
        %v9100 = vpop.f32.mrf.mxu0
        %v9101 = vadd.f32 0.0, %v9100
        %v9102 = vpop.f32.mrf.mxu0
        %9103 = vdwg.mxu0
        %v9104 = vld [vmem:[%s49] sm:$0x1]
        %v9106 = vlaneseq
        %v9107 = vshrl.u32 %v9106, 7
        %v9108 = vsub.s32 0, %v9107
        %v9109 = vrot.slane %v9104, %v9108
        %v9111 = vmul.f32 %v9096, %v9109
        %v9112 = vmul.f32 %v9101, %v9109
        %v9113 = vld [vmem:[%s51] sm:$0x1]
        %v9115 = vlaneseq
        %v9116 = vshrl.u32 %v9115, 7
        %v9117 = vsub.s32 0, %v9116
        %v9118 = vrot.slane %v9113, %v9117
        %v9120 = vadd.f32 %v9111, %v9118
        %v9121 = vadd.f32 %v9112, %v9118
        %v9122 = vmax.f32 %v9120, 0.0
        %v9123 = vmax.f32 %v9121, 0.0
        %v9126 = vcombine.high %v9122, %v9122
        %v9127 = vcombine.high %v9123, %v9123
        %v9128 = vrot.slane %v9122, 7
        %v9129 = vrot.slane %v9126, 7
        %v9130 = vrot.slane %v9123, 7
        %v9131 = vrot.slane %v9127, 7
        %v9136 = vsel %vm1672, 0.0, %v9128
        %v9137 = vsel %vm1672, 0.0, %v9129
        %v9138 = vsel %vm1672, 0.0, %v9130
        %v9139 = vsel %vm1672, 0.0, %v9131
        %vm9140 = vcmask 1044480
        %v9141 = vsel %vm9140, %v3448, 0.0
        %v9142 = vsel %vm9140, %v9136, 0.0
        %v9143 = vsel %vm9140, %v9137, 0.0
        %v9144 = vsel %vm9140, %v9138, 0.0
        %v9145 = vsel %vm9140, %v9139, 0.0
        %v9150 = vcombine.high %v9141, %v9141
        %v9151 = vcombine.high %v9142, %v9142
        %v9152 = vcombine.high %v9143, %v9143
        %v9153 = vcombine.high %v9144, %v9144
        %vm9154 = vcmask 1042432
        %vm9155 = vcmask 1046532
        %vm9156 = vmor %vm9154, %vm9155
        %v9157 = vrot.slane %v9141, 5
        %v9158 = vrot.slane %v9157, 4
        %v9159 = vrot.slane %v9150, 5
        %v9160 = vsel %vm9156, %v9158, %v9159
        %v9161 = vrot.slane %v9142, 5
        %v9162 = vrot.slane %v9161, 4
        %v9163 = vrot.slane %v9151, 5
        %v9164 = vsel %vm9156, %v9162, %v9163
        %v9165 = vrot.slane %v9143, 5
        %v9166 = vrot.slane %v9165, 4
        %v9167 = vrot.slane %v9152, 5
        %v9168 = vsel %vm9156, %v9166, %v9167
        %v9169 = vrot.slane %v9144, 5
        %v9170 = vrot.slane %v9169, 4
        %v9171 = vrot.slane %v9153, 5
        %v9172 = vsel %vm9156, %v9170, %v9171
        %vm9173 = vcmask 1041408
        %vm9174 = vcmask 1045508
        %vm9175 = vmor %vm9173, %vm9174
        %v9176 = vrot.slane %v9141, 6
        %v9177 = vrot.slane %v9176, 4
        %v9178 = vrot.slane %v9150, 6
        %v9179 = vsel %vm9175, %v9177, %v9178
        %v9180 = vrot.slane %v9142, 6
        %v9181 = vrot.slane %v9180, 4
        %v9182 = vrot.slane %v9151, 6
        %v9183 = vsel %vm9175, %v9181, %v9182
        %v9184 = vrot.slane %v9143, 6
        %v9185 = vrot.slane %v9184, 4
        %v9186 = vrot.slane %v9152, 6
        %v9187 = vsel %vm9175, %v9185, %v9186
        %v9188 = vrot.slane %v9144, 6
        %v9189 = vrot.slane %v9188, 4
        %v9190 = vrot.slane %v9153, 6
        %v9191 = vsel %vm9175, %v9189, %v9190
        %v9193 = vcombine.high %v9145, %v9145
        %v9194 = vrot.slane %v9145, 5
        %v9195 = vrot.slane %v9194, 4
        %v9196 = vrot.slane %v9193, 5
        %v9197 = vsel %vm9156, %v9195, %v9196
        %v9198 = vrot.slane %v9145, 6
        %v9199 = vrot.slane %v9198, 4
        %v9200 = vrot.slane %v9193, 6
        %v9201 = vsel %vm9175, %v9199, %v9200
        %v9202 = vcombine.low %v9141, %v9142
        %v9203 = vcombine.low %v9143, %v9144
        %v9206 = vcombine.low %v9160, %v9164
        %v9207 = vcombine.low %v9168, %v9172
        %v9210 = vcombine.low %v9179, %v9183
        %v9211 = vcombine.low %v9187, %v9191
        %v9214 = vcombine.low %v9142, %v9143
        %v9215 = vcombine.low %v9144, %v9145
        %v9218 = vcombine.low %v9164, %v9168
        %v9219 = vcombine.low %v9172, %v9197
        %v9222 = vcombine.low %v9183, %v9187
        %v9223 = vcombine.low %v9191, %v9201
        %v9226 = vcombine.low %v9145, %v9141
        %v9228 = vcombine.low %v9197, %v9160
        %v9230 = vcombine.low %v9201, %v9179
        %v9232 = vld [vmem:[%s53] sm:$0xff]
        %v9233 = vld [vmem:[%s53 + $0x8] sm:$0xff]
        %v9234 = vld [vmem:[%s53 + $0x10] sm:$0xff]
        %v9235 = vld [vmem:[%s53 + $0x18] sm:$0xff]
        %v9236 = vld [vmem:[%s53 + $0x20] sm:$0xff]
        %v9237 = vld [vmem:[%s53 + $0x28] sm:$0xff]
        %v9238 = vld [vmem:[%s53 + $0x30] sm:$0xff]
        %v9239 = vld [vmem:[%s53 + $0x38] sm:$0xff]
        %v9240 = vld [vmem:[%s53 + $0x40] sm:$0xff]
        %v9241 = vld [vmem:[%s53 + $0x48] sm:$0xff]
        %v9242 = vld [vmem:[%s53 + $0x50] sm:$0xff]
        %v9243 = vld [vmem:[%s53 + $0x58] sm:$0xff]
        %v9244 = vld [vmem:[%s53 + $0x60] sm:$0xff]
        %v9245 = vld [vmem:[%s53 + $0x68] sm:$0xff]
        %v9246 = vld [vmem:[%s53 + $0x70] sm:$0xff]
        %v9247 = vld [vmem:[%s53 + $0x78] sm:$0xff]
        %v9248 = vld [vmem:[%s53 + $0x80] sm:$0xff]
        %v9249 = vld [vmem:[%s53 + $0x88] sm:$0xff]
        %v9250 = vld [vmem:[%s53 + $0x90] sm:$0xff]
        %v9251 = vld [vmem:[%s53 + $0x98] sm:$0xff]
        %v9252 = vld [vmem:[%s53 + $0xa0] sm:$0xff]
        %v9253 = vld [vmem:[%s53 + $0xa8] sm:$0xff]
        %v9254 = vld [vmem:[%s53 + $0xb0] sm:$0xff]
        %v9255 = vld [vmem:[%s53 + $0xb8] sm:$0xff]
        %v9256 = vld [vmem:[%s53 + $0xc0] sm:$0xff]
        %v9257 = vld [vmem:[%s53 + $0xc8] sm:$0xff]
        %v9258 = vld [vmem:[%s53 + $0xd0] sm:$0xff]
        %v9259 = vld [vmem:[%s53 + $0xd8] sm:$0xff]
        %v9260 = vld [vmem:[%s53 + $0xe0] sm:$0xff]
        %v9261 = vld [vmem:[%s53 + $0xe8] sm:$0xff]
        %v9262 = vld [vmem:[%s53 + $0xf0] sm:$0xff]
        %v9263 = vld [vmem:[%s53 + $0xf8] sm:$0xff]
        %v9264 = vld [vmem:[%s53 + $0x100] sm:$0xff]
        %v9265 = vld [vmem:[%s53 + $0x108] sm:$0xff]
        %v9266 = vld [vmem:[%s53 + $0x110] sm:$0xff]
        %v9267 = vld [vmem:[%s53 + $0x118] sm:$0xff]
        %v9268 = vld [vmem:[%s53 + $0x120] sm:$0xff]
        %v9269 = vld [vmem:[%s53 + $0x128] sm:$0xff]
        %v9270 = vld [vmem:[%s53 + $0x130] sm:$0xff]
        %v9271 = vld [vmem:[%s53 + $0x138] sm:$0xff]
        %v9272 = vld [vmem:[%s53 + $0x140] sm:$0xff]
        %v9273 = vld [vmem:[%s53 + $0x148] sm:$0xff]
        %v9274 = vld [vmem:[%s53 + $0x150] sm:$0xff]
        %v9275 = vld [vmem:[%s53 + $0x158] sm:$0xff]
        %v9276 = vld [vmem:[%s53 + $0x160] sm:$0xff]
        %v9277 = vld [vmem:[%s53 + $0x168] sm:$0xff]
        %v9278 = vld [vmem:[%s53 + $0x170] sm:$0xff]
        %v9279 = vld [vmem:[%s53 + $0x178] sm:$0xff]
        %v9280 = vld [vmem:[%s53 + $0x180] sm:$0xff]
        %v9281 = vld [vmem:[%s53 + $0x188] sm:$0xff]
        %v9282 = vld [vmem:[%s53 + $0x190] sm:$0xff]
        %v9283 = vld [vmem:[%s53 + $0x198] sm:$0xff]
        %v9284 = vld [vmem:[%s53 + $0x1a0] sm:$0xff]
        %v9285 = vld [vmem:[%s53 + $0x1a8] sm:$0xff]
        %v9286 = vld [vmem:[%s53 + $0x1b0] sm:$0xff]
        %v9287 = vld [vmem:[%s53 + $0x1b8] sm:$0xff]
        %v9288 = vld [vmem:[%s53 + $0x1c0] sm:$0xff]
        %v9289 = vld [vmem:[%s53 + $0x1c8] sm:$0xff]
        %v9290 = vld [vmem:[%s53 + $0x1d0] sm:$0xff]
        %v9291 = vld [vmem:[%s53 + $0x1d8] sm:$0xff]
        %v9292 = vld [vmem:[%s53 + $0x1e0] sm:$0xff]
        %v9293 = vld [vmem:[%s53 + $0x1e8] sm:$0xff]
        %v9294 = vld [vmem:[%s53 + $0x1f0] sm:$0xff]
        %v9295 = vld [vmem:[%s53 + $0x1f8] sm:$0xff]
        %v9296 = vld [vmem:[%s53 + $0x200] sm:$0xff]
        %v9297 = vld [vmem:[%s53 + $0x208] sm:$0xff]
        %v9298 = vld [vmem:[%s53 + $0x210] sm:$0xff]
        %v9299 = vld [vmem:[%s53 + $0x218] sm:$0xff]
        %v9300 = vld [vmem:[%s53 + $0x220] sm:$0xff]
        %v9301 = vld [vmem:[%s53 + $0x228] sm:$0xff]
        %v9302 = vld [vmem:[%s53 + $0x230] sm:$0xff]
        %v9303 = vld [vmem:[%s53 + $0x238] sm:$0xff]
        %v9304 = vld [vmem:[%s53 + $0x240] sm:$0xff]
        %v9305 = vld [vmem:[%s53 + $0x248] sm:$0xff]
        %v9306 = vld [vmem:[%s53 + $0x250] sm:$0xff]
        %v9307 = vld [vmem:[%s53 + $0x258] sm:$0xff]
        %v9308 = vld [vmem:[%s53 + $0x260] sm:$0xff]
        %v9309 = vld [vmem:[%s53 + $0x268] sm:$0xff]
        %v9310 = vld [vmem:[%s53 + $0x270] sm:$0xff]
        %v9311 = vld [vmem:[%s53 + $0x278] sm:$0xff]
        %v9312 = vld [vmem:[%s53 + $0x280] sm:$0xff]
        %v9313 = vld [vmem:[%s53 + $0x288] sm:$0xff]
        %v9314 = vld [vmem:[%s53 + $0x290] sm:$0xff]
        %v9315 = vld [vmem:[%s53 + $0x298] sm:$0xff]
        %v9316 = vld [vmem:[%s53 + $0x2a0] sm:$0xff]
        %v9317 = vld [vmem:[%s53 + $0x2a8] sm:$0xff]
        %v9318 = vld [vmem:[%s53 + $0x2b0] sm:$0xff]
        %v9319 = vld [vmem:[%s53 + $0x2b8] sm:$0xff]
        %v9320 = vld [vmem:[%s53 + $0x2c0] sm:$0xff]
        %v9321 = vld [vmem:[%s53 + $0x2c8] sm:$0xff]
        %v9322 = vld [vmem:[%s53 + $0x2d0] sm:$0xff]
        %v9323 = vld [vmem:[%s53 + $0x2d8] sm:$0xff]
        %v9324 = vld [vmem:[%s53 + $0x2e0] sm:$0xff]
        %v9325 = vld [vmem:[%s53 + $0x2e8] sm:$0xff]
        %v9326 = vld [vmem:[%s53 + $0x2f0] sm:$0xff]
        %v9327 = vld [vmem:[%s53 + $0x2f8] sm:$0xff]
        %v9328 = vld [vmem:[%s53 + $0x300] sm:$0xff]
        %v9329 = vld [vmem:[%s53 + $0x308] sm:$0xff]
        %v9330 = vld [vmem:[%s53 + $0x310] sm:$0xff]
        %v9331 = vld [vmem:[%s53 + $0x318] sm:$0xff]
        %v9332 = vld [vmem:[%s53 + $0x320] sm:$0xff]
        %v9333 = vld [vmem:[%s53 + $0x328] sm:$0xff]
        %v9334 = vld [vmem:[%s53 + $0x330] sm:$0xff]
        %v9335 = vld [vmem:[%s53 + $0x338] sm:$0xff]
        %v9336 = vld [vmem:[%s53 + $0x340] sm:$0xff]
        %v9337 = vld [vmem:[%s53 + $0x348] sm:$0xff]
        %v9338 = vld [vmem:[%s53 + $0x350] sm:$0xff]
        %v9339 = vld [vmem:[%s53 + $0x358] sm:$0xff]
        %v9340 = vld [vmem:[%s53 + $0x360] sm:$0xff]
        %v9341 = vld [vmem:[%s53 + $0x368] sm:$0xff]
        %v9342 = vld [vmem:[%s53 + $0x370] sm:$0xff]
        %v9343 = vld [vmem:[%s53 + $0x378] sm:$0xff]
        %v9344 = vld [vmem:[%s53 + $0x380] sm:$0xff]
        %v9345 = vld [vmem:[%s53 + $0x388] sm:$0xff]
        %v9346 = vld [vmem:[%s53 + $0x390] sm:$0xff]
        %v9347 = vld [vmem:[%s53 + $0x398] sm:$0xff]
        %v9348 = vld [vmem:[%s53 + $0x3a0] sm:$0xff]
        %v9349 = vld [vmem:[%s53 + $0x3a8] sm:$0xff]
        %v9350 = vld [vmem:[%s53 + $0x3b0] sm:$0xff]
        %v9351 = vld [vmem:[%s53 + $0x3b8] sm:$0xff]
        %v9352 = vld [vmem:[%s53 + $0x3c0] sm:$0xff]
        %v9353 = vld [vmem:[%s53 + $0x3c8] sm:$0xff]
        %v9354 = vld [vmem:[%s53 + $0x3d0] sm:$0xff]
        %v9355 = vld [vmem:[%s53 + $0x3d8] sm:$0xff]
        %v9356 = vld [vmem:[%s53 + $0x3e0] sm:$0xff]
        %v9357 = vld [vmem:[%s53 + $0x3e8] sm:$0xff]
        %v9358 = vld [vmem:[%s53 + $0x3f0] sm:$0xff]
        %v9359 = vld [vmem:[%s53 + $0x3f8] sm:$0xff]
        %v9360 = vld [vmem:[%s53 + $0x400] sm:$0xff]
        %v9361 = vld [vmem:[%s53 + $0x408] sm:$0xff]
        %v9362 = vld [vmem:[%s53 + $0x410] sm:$0xff]
        %v9363 = vld [vmem:[%s53 + $0x418] sm:$0xff]
        %v9364 = vld [vmem:[%s53 + $0x420] sm:$0xff]
        %v9365 = vld [vmem:[%s53 + $0x428] sm:$0xff]
        %v9366 = vld [vmem:[%s53 + $0x430] sm:$0xff]
        %v9367 = vld [vmem:[%s53 + $0x438] sm:$0xff]
        %v9368 = vld [vmem:[%s53 + $0x440] sm:$0xff]
        %v9369 = vld [vmem:[%s53 + $0x448] sm:$0xff]
        %v9370 = vld [vmem:[%s53 + $0x450] sm:$0xff]
        %v9371 = vld [vmem:[%s53 + $0x458] sm:$0xff]
        %v9372 = vld [vmem:[%s53 + $0x460] sm:$0xff]
        %v9373 = vld [vmem:[%s53 + $0x468] sm:$0xff]
        %v9374 = vld [vmem:[%s53 + $0x470] sm:$0xff]
        %v9375 = vld [vmem:[%s53 + $0x478] sm:$0xff]
        %9376 = vmatprep.subr.mxu0 0.0
        %9377 = vmatpush1.msra.mxu0 %v9247
        %9378 = vmatprep.subr.mxu0 0.0
        %9379 = vmatpush1.msra.mxu0 %v9246
        %9380 = vmatprep.subr.mxu0 0.0
        %9381 = vmatpush1.msra.mxu0 %v9245
        %9382 = vmatprep.subr.mxu0 0.0
        %9383 = vmatpush1.msra.mxu0 %v9244
        %9384 = vmatprep.subr.mxu0 0.0
        %9385 = vmatpush1.msra.mxu0 %v9243
        %9386 = vmatprep.subr.mxu0 0.0
        %9387 = vmatpush1.msra.mxu0 %v9242
        %9388 = vmatprep.subr.mxu0 0.0
        %9389 = vmatpush1.msra.mxu0 %v9241
        %9390 = vmatprep.subr.mxu0 0.0
        %9391 = vmatpush1.msra.mxu0 %v9240
        %9392 = vmatprep.subr.mxu0 0.0
        %9393 = vmatpush1.msra.mxu0 %v9239
        %9394 = vmatprep.subr.mxu0 0.0
        %9395 = vmatpush1.msra.mxu0 %v9238
        %9396 = vmatprep.subr.mxu0 0.0
        %9397 = vmatpush1.msra.mxu0 %v9237
        %9398 = vmatprep.subr.mxu0 0.0
        %9399 = vmatpush1.msra.mxu0 %v9236
        %9400 = vmatprep.subr.mxu0 0.0
        %9401 = vmatpush1.msra.mxu0 %v9235
        %9402 = vmatprep.subr.mxu0 0.0
        %9403 = vmatpush1.msra.mxu0 %v9234
        %9404 = vmatprep.subr.mxu0 0.0
        %9405 = vmatpush1.msra.mxu0 %v9233
        %9406 = vmatprep.subr.mxu0 0.0
        %9407 = vmatpush1.msra.mxu0 %v9232
        %9408 = vmatprep.subr.mxu0 0.0
        %9409 = vmatpush2.msra.mxu0 %v9263
        %9410 = vmatprep.subr.mxu0 0.0
        %9411 = vmatpush2.msra.mxu0 %v9262
        %9412 = vmatprep.subr.mxu0 0.0
        %9413 = vmatpush2.msra.mxu0 %v9261
        %9414 = vmatprep.subr.mxu0 0.0
        %9415 = vmatpush2.msra.mxu0 %v9260
        %9416 = vmatprep.subr.mxu0 0.0
        %9417 = vmatpush2.msra.mxu0 %v9259
        %9418 = vmatprep.subr.mxu0 0.0
        %9419 = vmatpush2.msra.mxu0 %v9258
        %9420 = vmatprep.subr.mxu0 0.0
        %9421 = vmatpush2.msra.mxu0 %v9257
        %9422 = vmatprep.subr.mxu0 0.0
        %9423 = vmatpush2.msra.mxu0 %v9256
        %9424 = vmatprep.subr.mxu0 0.0
        %9425 = vmatpush2.msra.mxu0 %v9255
        %9426 = vmatprep.subr.mxu0 0.0
        %9427 = vmatpush2.msra.mxu0 %v9254
        %9428 = vmatprep.subr.mxu0 0.0
        %9429 = vmatpush2.msra.mxu0 %v9253
        %9430 = vmatprep.subr.mxu0 0.0
        %9431 = vmatpush2.msra.mxu0 %v9252
        %9432 = vmatprep.subr.mxu0 0.0
        %9433 = vmatpush2.msra.mxu0 %v9251
        %9434 = vmatprep.subr.mxu0 0.0
        %9435 = vmatpush2.msra.mxu0 %v9250
        %9436 = vmatprep.subr.mxu0 0.0
        %9437 = vmatpush2.msra.mxu0 %v9249
        %9438 = vmatprep.subr.mxu0 0.0
        %9439 = vmatpush2.msra.mxu0 %v9248
        %9440 = vmatprep.mubr.f32.mxu0 %v9206
        %9441 = vmatmul.mubr.f32.gmra.mxu0 %v9202
        %v9442 = vpop.f32.mrf.mxu0
        %v9443 = vadd.f32 0.0, %v9442
        %v9444 = vpop.f32.mrf.mxu0
        %9445 = vmatprep.mubr.f32.mxu0 %v9207
        %9446 = vmatmul.mubr.f32.gmra.mxu0 %v9203
        %v9447 = vpop.f32.mrf.mxu0
        %v9448 = vadd.f32 0.0, %v9447
        %v9449 = vpop.f32.mrf.mxu0
        %9450 = vdwg.mxu0
        %9451 = vmatprep.subr.mxu0 0.0
        %9452 = vmatpush1.msra.mxu0 %v9279
        %9453 = vmatprep.subr.mxu0 0.0
        %9454 = vmatpush1.msra.mxu0 %v9278
        %9455 = vmatprep.subr.mxu0 0.0
        %9456 = vmatpush1.msra.mxu0 %v9277
        %9457 = vmatprep.subr.mxu0 0.0
        %9458 = vmatpush1.msra.mxu0 %v9276
        %9459 = vmatprep.subr.mxu0 0.0
        %9460 = vmatpush1.msra.mxu0 %v9275
        %9461 = vmatprep.subr.mxu0 0.0
        %9462 = vmatpush1.msra.mxu0 %v9274
        %9463 = vmatprep.subr.mxu0 0.0
        %9464 = vmatpush1.msra.mxu0 %v9273
        %9465 = vmatprep.subr.mxu0 0.0
        %9466 = vmatpush1.msra.mxu0 %v9272
        %9467 = vmatprep.subr.mxu0 0.0
        %9468 = vmatpush1.msra.mxu0 %v9271
        %9469 = vmatprep.subr.mxu0 0.0
        %9470 = vmatpush1.msra.mxu0 %v9270
        %9471 = vmatprep.subr.mxu0 0.0
        %9472 = vmatpush1.msra.mxu0 %v9269
        %9473 = vmatprep.subr.mxu0 0.0
        %9474 = vmatpush1.msra.mxu0 %v9268
        %9475 = vmatprep.subr.mxu0 0.0
        %9476 = vmatpush1.msra.mxu0 %v9267
        %9477 = vmatprep.subr.mxu0 0.0
        %9478 = vmatpush1.msra.mxu0 %v9266
        %9479 = vmatprep.subr.mxu0 0.0
        %9480 = vmatpush1.msra.mxu0 %v9265
        %9481 = vmatprep.subr.mxu0 0.0
        %9482 = vmatpush1.msra.mxu0 %v9264
        %9483 = vmatprep.subr.mxu0 0.0
        %9484 = vmatpush2.msra.mxu0 %v9295
        %9485 = vmatprep.subr.mxu0 0.0
        %9486 = vmatpush2.msra.mxu0 %v9294
        %9487 = vmatprep.subr.mxu0 0.0
        %9488 = vmatpush2.msra.mxu0 %v9293
        %9489 = vmatprep.subr.mxu0 0.0
        %9490 = vmatpush2.msra.mxu0 %v9292
        %9491 = vmatprep.subr.mxu0 0.0
        %9492 = vmatpush2.msra.mxu0 %v9291
        %9493 = vmatprep.subr.mxu0 0.0
        %9494 = vmatpush2.msra.mxu0 %v9290
        %9495 = vmatprep.subr.mxu0 0.0
        %9496 = vmatpush2.msra.mxu0 %v9289
        %9497 = vmatprep.subr.mxu0 0.0
        %9498 = vmatpush2.msra.mxu0 %v9288
        %9499 = vmatprep.subr.mxu0 0.0
        %9500 = vmatpush2.msra.mxu0 %v9287
        %9501 = vmatprep.subr.mxu0 0.0
        %9502 = vmatpush2.msra.mxu0 %v9286
        %9503 = vmatprep.subr.mxu0 0.0
        %9504 = vmatpush2.msra.mxu0 %v9285
        %9505 = vmatprep.subr.mxu0 0.0
        %9506 = vmatpush2.msra.mxu0 %v9284
        %9507 = vmatprep.subr.mxu0 0.0
        %9508 = vmatpush2.msra.mxu0 %v9283
        %9509 = vmatprep.subr.mxu0 0.0
        %9510 = vmatpush2.msra.mxu0 %v9282
        %9511 = vmatprep.subr.mxu0 0.0
        %9512 = vmatpush2.msra.mxu0 %v9281
        %9513 = vmatprep.subr.mxu0 0.0
        %9514 = vmatpush2.msra.mxu0 %v9280
        %9515 = vmatprep.mubr.f32.mxu0 %v9214
        %9516 = vmatmul.mubr.f32.gmra.mxu0 %v9210
        %v9517 = vpop.f32.mrf.mxu0
        %v9518 = vadd.f32 %v9443, %v9517
        %v9519 = vpop.f32.mrf.mxu0
        %9520 = vmatprep.mubr.f32.mxu0 %v9215
        %9521 = vmatmul.mubr.f32.gmra.mxu0 %v9211
        %v9522 = vpop.f32.mrf.mxu0
        %v9523 = vadd.f32 %v9448, %v9522
        %v9524 = vpop.f32.mrf.mxu0
        %9525 = vdwg.mxu0
        %9526 = vmatprep.subr.mxu0 0.0
        %9527 = vmatpush1.msra.mxu0 %v9311
        %9528 = vmatprep.subr.mxu0 0.0
        %9529 = vmatpush1.msra.mxu0 %v9310
        %9530 = vmatprep.subr.mxu0 0.0
        %9531 = vmatpush1.msra.mxu0 %v9309
        %9532 = vmatprep.subr.mxu0 0.0
        %9533 = vmatpush1.msra.mxu0 %v9308
        %9534 = vmatprep.subr.mxu0 0.0
        %9535 = vmatpush1.msra.mxu0 %v9307
        %9536 = vmatprep.subr.mxu0 0.0
        %9537 = vmatpush1.msra.mxu0 %v9306
        %9538 = vmatprep.subr.mxu0 0.0
        %9539 = vmatpush1.msra.mxu0 %v9305
        %9540 = vmatprep.subr.mxu0 0.0
        %9541 = vmatpush1.msra.mxu0 %v9304
        %9542 = vmatprep.subr.mxu0 0.0
        %9543 = vmatpush1.msra.mxu0 %v9303
        %9544 = vmatprep.subr.mxu0 0.0
        %9545 = vmatpush1.msra.mxu0 %v9302
        %9546 = vmatprep.subr.mxu0 0.0
        %9547 = vmatpush1.msra.mxu0 %v9301
        %9548 = vmatprep.subr.mxu0 0.0
        %9549 = vmatpush1.msra.mxu0 %v9300
        %9550 = vmatprep.subr.mxu0 0.0
        %9551 = vmatpush1.msra.mxu0 %v9299
        %9552 = vmatprep.subr.mxu0 0.0
        %9553 = vmatpush1.msra.mxu0 %v9298
        %9554 = vmatprep.subr.mxu0 0.0
        %9555 = vmatpush1.msra.mxu0 %v9297
        %9556 = vmatprep.subr.mxu0 0.0
        %9557 = vmatpush1.msra.mxu0 %v9296
        %9558 = vmatprep.subr.mxu0 0.0
        %9559 = vmatpush2.msra.mxu0 %v9327
        %9560 = vmatprep.subr.mxu0 0.0
        %9561 = vmatpush2.msra.mxu0 %v9326
        %9562 = vmatprep.subr.mxu0 0.0
        %9563 = vmatpush2.msra.mxu0 %v9325
        %9564 = vmatprep.subr.mxu0 0.0
        %9565 = vmatpush2.msra.mxu0 %v9324
        %9566 = vmatprep.subr.mxu0 0.0
        %9567 = vmatpush2.msra.mxu0 %v9323
        %9568 = vmatprep.subr.mxu0 0.0
        %9569 = vmatpush2.msra.mxu0 %v9322
        %9570 = vmatprep.subr.mxu0 0.0
        %9571 = vmatpush2.msra.mxu0 %v9321
        %9572 = vmatprep.subr.mxu0 0.0
        %9573 = vmatpush2.msra.mxu0 %v9320
        %9574 = vmatprep.subr.mxu0 0.0
        %9575 = vmatpush2.msra.mxu0 %v9319
        %9576 = vmatprep.subr.mxu0 0.0
        %9577 = vmatpush2.msra.mxu0 %v9318
        %9578 = vmatprep.subr.mxu0 0.0
        %9579 = vmatpush2.msra.mxu0 %v9317
        %9580 = vmatprep.subr.mxu0 0.0
        %9581 = vmatpush2.msra.mxu0 %v9316
        %9582 = vmatprep.subr.mxu0 0.0
        %9583 = vmatpush2.msra.mxu0 %v9315
        %9584 = vmatprep.subr.mxu0 0.0
        %9585 = vmatpush2.msra.mxu0 %v9314
        %9586 = vmatprep.subr.mxu0 0.0
        %9587 = vmatpush2.msra.mxu0 %v9313
        %9588 = vmatprep.subr.mxu0 0.0
        %9589 = vmatpush2.msra.mxu0 %v9312
        %9590 = vmatprep.mubr.f32.mxu0 %v9222
        %9591 = vmatmul.mubr.f32.gmra.mxu0 %v9218
        %v9592 = vpop.f32.mrf.mxu0
        %v9593 = vadd.f32 %v9518, %v9592
        %v9594 = vpop.f32.mrf.mxu0
        %9595 = vmatprep.mubr.f32.mxu0 %v9223
        %9596 = vmatmul.mubr.f32.gmra.mxu0 %v9219
        %v9597 = vpop.f32.mrf.mxu0
        %v9598 = vadd.f32 %v9523, %v9597
        %v9599 = vpop.f32.mrf.mxu0
        %9600 = vdwg.mxu0
        %9601 = vmatprep.subr.mxu0 0.0
        %9602 = vmatpush1.msra.mxu0 %v9343
        %9603 = vmatprep.subr.mxu0 0.0
        %9604 = vmatpush1.msra.mxu0 %v9342
        %9605 = vmatprep.subr.mxu0 0.0
        %9606 = vmatpush1.msra.mxu0 %v9341
        %9607 = vmatprep.subr.mxu0 0.0
        %9608 = vmatpush1.msra.mxu0 %v9340
        %9609 = vmatprep.subr.mxu0 0.0
        %9610 = vmatpush1.msra.mxu0 %v9339
        %9611 = vmatprep.subr.mxu0 0.0
        %9612 = vmatpush1.msra.mxu0 %v9338
        %9613 = vmatprep.subr.mxu0 0.0
        %9614 = vmatpush1.msra.mxu0 %v9337
        %9615 = vmatprep.subr.mxu0 0.0
        %9616 = vmatpush1.msra.mxu0 %v9336
        %9617 = vmatprep.subr.mxu0 0.0
        %9618 = vmatpush1.msra.mxu0 %v9335
        %9619 = vmatprep.subr.mxu0 0.0
        %9620 = vmatpush1.msra.mxu0 %v9334
        %9621 = vmatprep.subr.mxu0 0.0
        %9622 = vmatpush1.msra.mxu0 %v9333
        %9623 = vmatprep.subr.mxu0 0.0
        %9624 = vmatpush1.msra.mxu0 %v9332
        %9625 = vmatprep.subr.mxu0 0.0
        %9626 = vmatpush1.msra.mxu0 %v9331
        %9627 = vmatprep.subr.mxu0 0.0
        %9628 = vmatpush1.msra.mxu0 %v9330
        %9629 = vmatprep.subr.mxu0 0.0
        %9630 = vmatpush1.msra.mxu0 %v9329
        %9631 = vmatprep.subr.mxu0 0.0
        %9632 = vmatpush1.msra.mxu0 %v9328
        %9633 = vmatprep.subr.mxu0 0.0
        %9634 = vmatpush2.msra.mxu0 %v9359
        %9635 = vmatprep.subr.mxu0 0.0
        %9636 = vmatpush2.msra.mxu0 %v9358
        %9637 = vmatprep.subr.mxu0 0.0
        %9638 = vmatpush2.msra.mxu0 %v9357
        %9639 = vmatprep.subr.mxu0 0.0
        %9640 = vmatpush2.msra.mxu0 %v9356
        %9641 = vmatprep.subr.mxu0 0.0
        %9642 = vmatpush2.msra.mxu0 %v9355
        %9643 = vmatprep.subr.mxu0 0.0
        %9644 = vmatpush2.msra.mxu0 %v9354
        %9645 = vmatprep.subr.mxu0 0.0
        %9646 = vmatpush2.msra.mxu0 %v9353
        %9647 = vmatprep.subr.mxu0 0.0
        %9648 = vmatpush2.msra.mxu0 %v9352
        %9649 = vmatprep.subr.mxu0 0.0
        %9650 = vmatpush2.msra.mxu0 %v9351
        %9651 = vmatprep.subr.mxu0 0.0
        %9652 = vmatpush2.msra.mxu0 %v9350
        %9653 = vmatprep.subr.mxu0 0.0
        %9654 = vmatpush2.msra.mxu0 %v9349
        %9655 = vmatprep.subr.mxu0 0.0
        %9656 = vmatpush2.msra.mxu0 %v9348
        %9657 = vmatprep.subr.mxu0 0.0
        %9658 = vmatpush2.msra.mxu0 %v9347
        %9659 = vmatprep.subr.mxu0 0.0
        %9660 = vmatpush2.msra.mxu0 %v9346
        %9661 = vmatprep.subr.mxu0 0.0
        %9662 = vmatpush2.msra.mxu0 %v9345
        %9663 = vmatprep.subr.mxu0 0.0
        %9664 = vmatpush2.msra.mxu0 %v9344
        %9665 = vmatprep.mubr.f32.mxu0 %v9207
        %9666 = vmatmul.mubr.f32.gmra.mxu0 %v9203
        %v9667 = vpop.f32.mrf.mxu0
        %v9668 = vadd.f32 %v9593, %v9667
        %v9669 = vpop.f32.mrf.mxu0
        %9670 = vmatprep.mubr.f32.mxu0 %v9228
        %9671 = vmatmul.mubr.f32.gmra.mxu0 %v9226
        %v9672 = vpop.f32.mrf.mxu0
        %v9673 = vadd.f32 %v9598, %v9672
        %v9674 = vpop.f32.mrf.mxu0
        %9675 = vdwg.mxu0
        %9676 = vmatprep.subr.mxu0 0.0
        %9677 = vmatpush1.msra.mxu0 %v9375
        %9678 = vmatprep.subr.mxu0 0.0
        %9679 = vmatpush1.msra.mxu0 %v9374
        %9680 = vmatprep.subr.mxu0 0.0
        %9681 = vmatpush1.msra.mxu0 %v9373
        %9682 = vmatprep.subr.mxu0 0.0
        %9683 = vmatpush1.msra.mxu0 %v9372
        %9684 = vmatprep.subr.mxu0 0.0
        %9685 = vmatpush1.msra.mxu0 %v9371
        %9686 = vmatprep.subr.mxu0 0.0
        %9687 = vmatpush1.msra.mxu0 %v9370
        %9688 = vmatprep.subr.mxu0 0.0
        %9689 = vmatpush1.msra.mxu0 %v9369
        %9690 = vmatprep.subr.mxu0 0.0
        %9691 = vmatpush1.msra.mxu0 %v9368
        %9692 = vmatprep.subr.mxu0 0.0
        %9693 = vmatpush1.msra.mxu0 %v9367
        %9694 = vmatprep.subr.mxu0 0.0
        %9695 = vmatpush1.msra.mxu0 %v9366
        %9696 = vmatprep.subr.mxu0 0.0
        %9697 = vmatpush1.msra.mxu0 %v9365
        %9698 = vmatprep.subr.mxu0 0.0
        %9699 = vmatpush1.msra.mxu0 %v9364
        %9700 = vmatprep.subr.mxu0 0.0
        %9701 = vmatpush1.msra.mxu0 %v9363
        %9702 = vmatprep.subr.mxu0 0.0
        %9703 = vmatpush1.msra.mxu0 %v9362
        %9704 = vmatprep.subr.mxu0 0.0
        %9705 = vmatpush1.msra.mxu0 %v9361
        %9706 = vmatprep.subr.mxu0 0.0
        %9707 = vmatpush1.msra.mxu0 %v9360
        %9708 = vmatprep.subr.mxu0 0.0
        %9709 = vmatpush2.msra.mxu0 0.0
        %9710 = vmatprep.subr.mxu0 0.0
        %9711 = vmatpush2.msra.mxu0 0.0
        %9712 = vmatprep.subr.mxu0 0.0
        %9713 = vmatpush2.msra.mxu0 0.0
        %9714 = vmatprep.subr.mxu0 0.0
        %9715 = vmatpush2.msra.mxu0 0.0
        %9716 = vmatprep.subr.mxu0 0.0
        %9717 = vmatpush2.msra.mxu0 0.0
        %9718 = vmatprep.subr.mxu0 0.0
        %9719 = vmatpush2.msra.mxu0 0.0
        %9720 = vmatprep.subr.mxu0 0.0
        %9721 = vmatpush2.msra.mxu0 0.0
        %9722 = vmatprep.subr.mxu0 0.0
        %9723 = vmatpush2.msra.mxu0 0.0
        %9724 = vmatprep.subr.mxu0 0.0
        %9725 = vmatpush2.msra.mxu0 0.0
        %9726 = vmatprep.subr.mxu0 0.0
        %9727 = vmatpush2.msra.mxu0 0.0
        %9728 = vmatprep.subr.mxu0 0.0
        %9729 = vmatpush2.msra.mxu0 0.0
        %9730 = vmatprep.subr.mxu0 0.0
        %9731 = vmatpush2.msra.mxu0 0.0
        %9732 = vmatprep.subr.mxu0 0.0
        %9733 = vmatpush2.msra.mxu0 0.0
        %9734 = vmatprep.subr.mxu0 0.0
        %9735 = vmatpush2.msra.mxu0 0.0
        %9736 = vmatprep.subr.mxu0 0.0
        %9737 = vmatpush2.msra.mxu0 0.0
        %9738 = vmatprep.subr.mxu0 0.0
        %9739 = vmatpush2.msra.mxu0 0.0
        %9740 = vmatprep.mubr.f32.mxu0 0.0
        %9741 = vmatmul.mubr.f32.gmra.mxu0 %v9211
        %v9742 = vpop.f32.mrf.mxu0
        %v9743 = vadd.f32 %v9668, %v9742
        %v9744 = vpop.f32.mrf.mxu0
        %9745 = vmatprep.mubr.f32.mxu0 0.0
        %9746 = vmatmul.mubr.f32.gmra.mxu0 %v9230
        %v9747 = vpop.f32.mrf.mxu0
        %v9748 = vadd.f32 %v9673, %v9747
        %v9749 = vpop.f32.mrf.mxu0
        %9750 = vdwg.mxu0
        %v9751 = vld [vmem:[%s55] sm:$0x1]
        %v9753 = vlaneseq
        %v9754 = vshrl.u32 %v9753, 7
        %v9755 = vsub.s32 0, %v9754
        %v9756 = vrot.slane %v9751, %v9755
        %v9758 = vmul.f32 %v9743, %v9756
        %v9759 = vmul.f32 %v9748, %v9756
        %v9760 = vld [vmem:[%s57] sm:$0x1]
        %v9762 = vlaneseq
        %v9763 = vshrl.u32 %v9762, 7
        %v9764 = vsub.s32 0, %v9763
        %v9765 = vrot.slane %v9760, %v9764
        %v9767 = vadd.f32 %v9758, %v9765
        %v9768 = vadd.f32 %v9759, %v9765
        %v9769 = vmax.f32 %v9767, 0.0
        %v9770 = vmax.f32 %v9768, 0.0
        %v9771 = vld [vmem:[%s59] sm:$0xff]
        %v9772 = vld [vmem:[%s59 + $0x8] sm:$0xff]
        %v9773 = vld [vmem:[%s59 + $0x10] sm:$0xff]
        %v9774 = vld [vmem:[%s59 + $0x18] sm:$0xff]
        %v9775 = vld [vmem:[%s59 + $0x20] sm:$0xff]
        %v9776 = vld [vmem:[%s59 + $0x28] sm:$0xff]
        %v9777 = vld [vmem:[%s59 + $0x30] sm:$0xff]
        %v9778 = vld [vmem:[%s59 + $0x38] sm:$0xff]
        %v9779 = vld [vmem:[%s59 + $0x40] sm:$0xff]
        %v9780 = vld [vmem:[%s59 + $0x48] sm:$0xff]
        %v9781 = vld [vmem:[%s59 + $0x50] sm:$0xff]
        %v9782 = vld [vmem:[%s59 + $0x58] sm:$0xff]
        %v9783 = vld [vmem:[%s59 + $0x60] sm:$0xff]
        %v9784 = vld [vmem:[%s59 + $0x68] sm:$0xff]
        %v9785 = vld [vmem:[%s59 + $0x70] sm:$0xff]
        %v9786 = vld [vmem:[%s59 + $0x78] sm:$0xff]
        %9787 = vmatprep.subr.mxu0 0.0
        %9788 = vmatpush1.msra.mxu0 %v9786
        %9789 = vmatprep.subr.mxu0 0.0
        %9790 = vmatpush1.msra.mxu0 %v9785
        %9791 = vmatprep.subr.mxu0 0.0
        %9792 = vmatpush1.msra.mxu0 %v9784
        %9793 = vmatprep.subr.mxu0 0.0
        %9794 = vmatpush1.msra.mxu0 %v9783
        %9795 = vmatprep.subr.mxu0 0.0
        %9796 = vmatpush1.msra.mxu0 %v9782
        %9797 = vmatprep.subr.mxu0 0.0
        %9798 = vmatpush1.msra.mxu0 %v9781
        %9799 = vmatprep.subr.mxu0 0.0
        %9800 = vmatpush1.msra.mxu0 %v9780
        %9801 = vmatprep.subr.mxu0 0.0
        %9802 = vmatpush1.msra.mxu0 %v9779
        %9803 = vmatprep.subr.mxu0 0.0
        %9804 = vmatpush1.msra.mxu0 %v9778
        %9805 = vmatprep.subr.mxu0 0.0
        %9806 = vmatpush1.msra.mxu0 %v9777
        %9807 = vmatprep.subr.mxu0 0.0
        %9808 = vmatpush1.msra.mxu0 %v9776
        %9809 = vmatprep.subr.mxu0 0.0
        %9810 = vmatpush1.msra.mxu0 %v9775
        %9811 = vmatprep.subr.mxu0 0.0
        %9812 = vmatpush1.msra.mxu0 %v9774
        %9813 = vmatprep.subr.mxu0 0.0
        %9814 = vmatpush1.msra.mxu0 %v9773
        %9815 = vmatprep.subr.mxu0 0.0
        %9816 = vmatpush1.msra.mxu0 %v9772
        %9817 = vmatprep.subr.mxu0 0.0
        %9818 = vmatpush1.msra.mxu0 %v9771
        %9819 = vmatprep.subr.mxu0 0.0
        %9820 = vmatpush2.msra.mxu0 0.0
        %9821 = vmatprep.subr.mxu0 0.0
        %9822 = vmatpush2.msra.mxu0 0.0
        %9823 = vmatprep.subr.mxu0 0.0
        %9824 = vmatpush2.msra.mxu0 0.0
        %9825 = vmatprep.subr.mxu0 0.0
        %9826 = vmatpush2.msra.mxu0 0.0
        %9827 = vmatprep.subr.mxu0 0.0
        %9828 = vmatpush2.msra.mxu0 0.0
        %9829 = vmatprep.subr.mxu0 0.0
        %9830 = vmatpush2.msra.mxu0 0.0
        %9831 = vmatprep.subr.mxu0 0.0
        %9832 = vmatpush2.msra.mxu0 0.0
        %9833 = vmatprep.subr.mxu0 0.0
        %9834 = vmatpush2.msra.mxu0 0.0
        %9835 = vmatprep.subr.mxu0 0.0
        %9836 = vmatpush2.msra.mxu0 0.0
        %9837 = vmatprep.subr.mxu0 0.0
        %9838 = vmatpush2.msra.mxu0 0.0
        %9839 = vmatprep.subr.mxu0 0.0
        %9840 = vmatpush2.msra.mxu0 0.0
        %9841 = vmatprep.subr.mxu0 0.0
        %9842 = vmatpush2.msra.mxu0 0.0
        %9843 = vmatprep.subr.mxu0 0.0
        %9844 = vmatpush2.msra.mxu0 0.0
        %9845 = vmatprep.subr.mxu0 0.0
        %9846 = vmatpush2.msra.mxu0 0.0
        %9847 = vmatprep.subr.mxu0 0.0
        %9848 = vmatpush2.msra.mxu0 0.0
        %9849 = vmatprep.subr.mxu0 0.0
        %9850 = vmatpush2.msra.mxu0 0.0
        %9851 = vmatprep.mubr.f32.mxu0 0.0
        %9852 = vmatmul.mubr.f32.gmra.mxu0 %v9769
        %v9853 = vpop.f32.mrf.mxu0
        %v9854 = vadd.f32 0.0, %v9853
        %v9855 = vpop.f32.mrf.mxu0
        %9856 = vmatprep.mubr.f32.mxu0 0.0
        %9857 = vmatmul.mubr.f32.gmra.mxu0 %v9770
        %v9858 = vpop.f32.mrf.mxu0
        %v9859 = vadd.f32 0.0, %v9858
        %v9860 = vpop.f32.mrf.mxu0
        %9861 = vdwg.mxu0
        %v9862 = vld [vmem:[%s61] sm:$0x1]
        %v9864 = vlaneseq
        %v9865 = vshrl.u32 %v9864, 7
        %v9866 = vsub.s32 0, %v9865
        %v9867 = vrot.slane %v9862, %v9866
        %v9869 = vmul.f32 %v9854, %v9867
        %v9870 = vmul.f32 %v9859, %v9867
        %v9871 = vld [vmem:[%s63] sm:$0x1]
        %v9873 = vlaneseq
        %v9874 = vshrl.u32 %v9873, 7
        %v9875 = vsub.s32 0, %v9874
        %v9876 = vrot.slane %v9871, %v9875
        %v9878 = vadd.f32 %v9869, %v9876
        %v9879 = vadd.f32 %v9870, %v9876
        %v9880 = vld [vmem:[%s65] sm:$0xff]
        %v9881 = vld [vmem:[%s65 + $0x8] sm:$0xff]
        %v9882 = vld [vmem:[%s65 + $0x10] sm:$0xff]
        %v9883 = vld [vmem:[%s65 + $0x18] sm:$0xff]
        %v9884 = vld [vmem:[%s65 + $0x20] sm:$0xff]
        %v9885 = vld [vmem:[%s65 + $0x28] sm:$0xff]
        %v9886 = vld [vmem:[%s65 + $0x30] sm:$0xff]
        %v9887 = vld [vmem:[%s65 + $0x38] sm:$0xff]
        %v9888 = vld [vmem:[%s65 + $0x40] sm:$0xff]
        %v9889 = vld [vmem:[%s65 + $0x48] sm:$0xff]
        %v9890 = vld [vmem:[%s65 + $0x50] sm:$0xff]
        %v9891 = vld [vmem:[%s65 + $0x58] sm:$0xff]
        %v9892 = vld [vmem:[%s65 + $0x60] sm:$0xff]
        %v9893 = vld [vmem:[%s65 + $0x68] sm:$0xff]
        %v9894 = vld [vmem:[%s65 + $0x70] sm:$0xff]
        %v9895 = vld [vmem:[%s65 + $0x78] sm:$0xff]
        %9896 = vmatprep.subr.mxu0 0.0
        %9897 = vmatpush1.msra.mxu0 %v9895
        %9898 = vmatprep.subr.mxu0 0.0
        %9899 = vmatpush1.msra.mxu0 %v9894
        %9900 = vmatprep.subr.mxu0 0.0
        %9901 = vmatpush1.msra.mxu0 %v9893
        %9902 = vmatprep.subr.mxu0 0.0
        %9903 = vmatpush1.msra.mxu0 %v9892
        %9904 = vmatprep.subr.mxu0 0.0
        %9905 = vmatpush1.msra.mxu0 %v9891
        %9906 = vmatprep.subr.mxu0 0.0
        %9907 = vmatpush1.msra.mxu0 %v9890
        %9908 = vmatprep.subr.mxu0 0.0
        %9909 = vmatpush1.msra.mxu0 %v9889
        %9910 = vmatprep.subr.mxu0 0.0
        %9911 = vmatpush1.msra.mxu0 %v9888
        %9912 = vmatprep.subr.mxu0 0.0
        %9913 = vmatpush1.msra.mxu0 %v9887
        %9914 = vmatprep.subr.mxu0 0.0
        %9915 = vmatpush1.msra.mxu0 %v9886
        %9916 = vmatprep.subr.mxu0 0.0
        %9917 = vmatpush1.msra.mxu0 %v9885
        %9918 = vmatprep.subr.mxu0 0.0
        %9919 = vmatpush1.msra.mxu0 %v9884
        %9920 = vmatprep.subr.mxu0 0.0
        %9921 = vmatpush1.msra.mxu0 %v9883
        %9922 = vmatprep.subr.mxu0 0.0
        %9923 = vmatpush1.msra.mxu0 %v9882
        %9924 = vmatprep.subr.mxu0 0.0
        %9925 = vmatpush1.msra.mxu0 %v9881
        %9926 = vmatprep.subr.mxu0 0.0
        %9927 = vmatpush1.msra.mxu0 %v9880
        %9928 = vmatprep.subr.mxu0 0.0
        %9929 = vmatpush2.msra.mxu0 0.0
        %9930 = vmatprep.subr.mxu0 0.0
        %9931 = vmatpush2.msra.mxu0 0.0
        %9932 = vmatprep.subr.mxu0 0.0
        %9933 = vmatpush2.msra.mxu0 0.0
        %9934 = vmatprep.subr.mxu0 0.0
        %9935 = vmatpush2.msra.mxu0 0.0
        %9936 = vmatprep.subr.mxu0 0.0
        %9937 = vmatpush2.msra.mxu0 0.0
        %9938 = vmatprep.subr.mxu0 0.0
        %9939 = vmatpush2.msra.mxu0 0.0
        %9940 = vmatprep.subr.mxu0 0.0
        %9941 = vmatpush2.msra.mxu0 0.0
        %9942 = vmatprep.subr.mxu0 0.0
        %9943 = vmatpush2.msra.mxu0 0.0
        %9944 = vmatprep.subr.mxu0 0.0
        %9945 = vmatpush2.msra.mxu0 0.0
        %9946 = vmatprep.subr.mxu0 0.0
        %9947 = vmatpush2.msra.mxu0 0.0
        %9948 = vmatprep.subr.mxu0 0.0
        %9949 = vmatpush2.msra.mxu0 0.0
        %9950 = vmatprep.subr.mxu0 0.0
        %9951 = vmatpush2.msra.mxu0 0.0
        %9952 = vmatprep.subr.mxu0 0.0
        %9953 = vmatpush2.msra.mxu0 0.0
        %9954 = vmatprep.subr.mxu0 0.0
        %9955 = vmatpush2.msra.mxu0 0.0
        %9956 = vmatprep.subr.mxu0 0.0
        %9957 = vmatpush2.msra.mxu0 0.0
        %9958 = vmatprep.subr.mxu0 0.0
        %9959 = vmatpush2.msra.mxu0 0.0
        %9960 = vmatprep.mubr.f32.mxu0 0.0
        %9961 = vmatmul.mubr.f32.gmra.mxu0 %v9019
        %v9962 = vpop.f32.mrf.mxu0
        %v9963 = vadd.f32 0.0, %v9962
        %v9964 = vpop.f32.mrf.mxu0
        %9965 = vmatprep.mubr.f32.mxu0 0.0
        %9966 = vmatmul.mubr.f32.gmra.mxu0 %v9026
        %v9967 = vpop.f32.mrf.mxu0
        %v9968 = vadd.f32 0.0, %v9967
        %v9969 = vpop.f32.mrf.mxu0
        %9970 = vdwg.mxu0
        %v9971 = vadd.f32 %v9878, %v9963
        %v9972 = vadd.f32 %v9879, %v9968
        %v9973 = vmax.f32 %v9971, 0.0
        %v9974 = vmax.f32 %v9972, 0.0
        %v9977 = vcombine.high %v9973, %v9973
        %v9979 = vunpack.c.l.s4 1983009808
        %v9980 = vunpack.c.0.s8 %v9979
        %v9981 = vlaneseq
        %v9982 = vshrl.u32 %v9981, 7
        %v9983 = vsub.s32 %v9980, %v9982
        %v9984 = vrot.slane %v9973, %v9983
        %v9986 = vunpack.c.l.s4 1983009808
        %v9987 = vunpack.c.0.s8 %v9986
        %v9988 = vlaneseq
        %v9989 = vshrl.u32 %v9988, 7
        %v9990 = vsub.s32 %v9987, %v9989
        %v9991 = vrot.slane %v9977, %v9990
        %v9992 = vcombine.high %v9984, %v9984
        %v9993 = vcombine.high %v9991, %v9991
        %v9994 = vcombine.high %v9974, %v9974
        %v9996 = vunpack.c.l.s4 1983009808
        %v9997 = vunpack.c.0.s8 %v9996
        %v9998 = vlaneseq
        %v9999 = vshrl.u32 %v9998, 7
        %v10000 = vsub.s32 %v9997, %v9999
        %v10001 = vrot.slane %v9974, %v10000
        %v10003 = vunpack.c.l.s4 1983009808
        %v10004 = vunpack.c.0.s8 %v10003
        %v10005 = vlaneseq
        %v10006 = vshrl.u32 %v10005, 7
        %v10007 = vsub.s32 %v10004, %v10006
        %v10008 = vrot.slane %v9994, %v10007
        %v10009 = vcombine.high %v10001, %v10001
        %v10010 = vcombine.high %v10008, %v10008
        %v10019 = vrot.slane %v9984, 7
        %v10020 = vrot.slane %v10019, 2
        %v10021 = vrot.slane %v9992, 7
        %v10022 = vrot.slane %v10021, 2
        %v10023 = vrot.slane %v9991, 7
        %v10024 = vrot.slane %v10023, 2
        %v10025 = vrot.slane %v9993, 7
        %v10026 = vrot.slane %v10025, 2
        %v10027 = vrot.slane %v10001, 7
        %v10028 = vrot.slane %v10027, 2
        %v10029 = vrot.slane %v10009, 7
        %v10030 = vrot.slane %v10029, 2
        %v10031 = vrot.slane %v10008, 7
        %v10032 = vrot.slane %v10031, 2
        %v10033 = vrot.slane %v10010, 7
        %v10034 = vrot.slane %v10033, 2
        %v10043 = vmax.f32 %v9984, %v10020
        %v10044 = vmax.f32 %v9992, %v10022
        %v10045 = vmax.f32 %v9991, %v10024
        %v10046 = vmax.f32 %v9993, %v10026
        %v10047 = vmax.f32 %v10001, %v10028
        %v10048 = vmax.f32 %v10009, %v10030
        %v10049 = vmax.f32 %v10008, %v10032
        %v10050 = vmax.f32 %v10010, %v10034
        %v10051 = vmax.f32 %v10043, %v10045
        %v10052 = vmax.f32 %v10044, %v10046
        %v10053 = vmax.f32 %v10047, %v10049
        %v10054 = vmax.f32 %v10048, %v10050
        %v10055 = vadd.f32 %v10051, %v10052
        %v10056 = vadd.f32 %v10055, %v10053
        %v10057 = vadd.f32 %v10056, %v10054
        %v10058 = vmul.f32 %v10057, 0.25
        %v10059 = vld [vmem:[%s67] sm:$0xff]
        %v10060 = vld [vmem:[%s67 + $0x8] sm:$0xff]
        %v10061 = vld [vmem:[%s67 + $0x10] sm:$0xff]
        %v10062 = vld [vmem:[%s67 + $0x18] sm:$0xff]
        %v10063 = vld [vmem:[%s67 + $0x20] sm:$0xff]
        %v10064 = vld [vmem:[%s67 + $0x28] sm:$0xff]
        %v10065 = vld [vmem:[%s67 + $0x30] sm:$0xff]
        %v10066 = vld [vmem:[%s67 + $0x38] sm:$0xff]
        %v10068 = vsel %vm2883, %v10058, 0
        %10070 = vmatprep.subr.mxu0 0.0
        %10071 = vmatpush1.msra.mxu0 0.0
        %10072 = vmatprep.subr.mxu0 0.0
        %10073 = vmatpush1.msra.mxu0 0.0
        %10074 = vmatprep.subr.mxu0 0.0
        %10075 = vmatpush1.msra.mxu0 0.0
        %10076 = vmatprep.subr.mxu0 0.0
        %10077 = vmatpush1.msra.mxu0 0.0
        %10078 = vmatprep.subr.mxu0 0.0
        %10079 = vmatpush1.msra.mxu0 0.0
        %10080 = vmatprep.subr.mxu0 0.0
        %10081 = vmatpush1.msra.mxu0 0.0
        %10082 = vmatprep.subr.mxu0 0.0
        %10083 = vmatpush1.msra.mxu0 0.0
        %10084 = vmatprep.subr.mxu0 0.0
        %10085 = vmatpush1.msra.mxu0 0.0
        %10086 = vmatprep.subr.mxu0 0.0
        %10087 = vmatpush1.msra.mxu0 %v10066
        %10088 = vmatprep.subr.mxu0 0.0
        %10089 = vmatpush1.msra.mxu0 %v10065
        %10090 = vmatprep.subr.mxu0 0.0
        %10091 = vmatpush1.msra.mxu0 %v10064
        %10092 = vmatprep.subr.mxu0 0.0
        %10093 = vmatpush1.msra.mxu0 %v10063
        %10094 = vmatprep.subr.mxu0 0.0
        %10095 = vmatpush1.msra.mxu0 %v10062
        %10096 = vmatprep.subr.mxu0 0.0
        %10097 = vmatpush1.msra.mxu0 %v10061
        %10098 = vmatprep.subr.mxu0 0.0
        %10099 = vmatpush1.msra.mxu0 %v10060
        %10100 = vmatprep.subr.mxu0 0.0
        %10101 = vmatpush1.msra.mxu0 %v10059
        %10102 = vmatprep.subr.mxu0 0.0
        %10103 = vmatpush2.msra.mxu0 0.0
        %10104 = vmatprep.subr.mxu0 0.0
        %10105 = vmatpush2.msra.mxu0 0.0
        %10106 = vmatprep.subr.mxu0 0.0
        %10107 = vmatpush2.msra.mxu0 0.0
        %10108 = vmatprep.subr.mxu0 0.0
        %10109 = vmatpush2.msra.mxu0 0.0
        %10110 = vmatprep.subr.mxu0 0.0
        %10111 = vmatpush2.msra.mxu0 0.0
        %10112 = vmatprep.subr.mxu0 0.0
        %10113 = vmatpush2.msra.mxu0 0.0
        %10114 = vmatprep.subr.mxu0 0.0
        %10115 = vmatpush2.msra.mxu0 0.0
        %10116 = vmatprep.subr.mxu0 0.0
        %10117 = vmatpush2.msra.mxu0 0.0
        %10118 = vmatprep.subr.mxu0 0.0
        %10119 = vmatpush2.msra.mxu0 0.0
        %10120 = vmatprep.subr.mxu0 0.0
        %10121 = vmatpush2.msra.mxu0 0.0
        %10122 = vmatprep.subr.mxu0 0.0
        %10123 = vmatpush2.msra.mxu0 0.0
        %10124 = vmatprep.subr.mxu0 0.0
        %10125 = vmatpush2.msra.mxu0 0.0
        %10126 = vmatprep.subr.mxu0 0.0
        %10127 = vmatpush2.msra.mxu0 0.0
        %10128 = vmatprep.subr.mxu0 0.0
        %10129 = vmatpush2.msra.mxu0 0.0
        %10130 = vmatprep.subr.mxu0 0.0
        %10131 = vmatpush2.msra.mxu0 0.0
        %10132 = vmatprep.subr.mxu0 0.0
        %10133 = vmatpush2.msra.mxu0 0.0
        %10134 = vmatprep.mubr.f32.mxu0 0.0
        %10135 = vmatmul.mubr.f32.gmra.mxu0 %v10068
        %v10136 = vpop.f32.mrf.mxu0
        %v10137 = vadd.f32 0.0, %v10136
        %v10138 = vpop.f32.mrf.mxu0
        %10139 = vdwg.mxu0
        %v10140 = vld [vmem:[%s69] sm:$0x1]
        %v10141 = vmul.f32 %v10137, %v10140
        %v10142 = vld [vmem:[%s71] sm:$0x1]
        %v10143 = vadd.f32 %v10141, %v10142
        %v10144 = vmax.f32 %v10143, 0.0
        %v10145 = vld [vmem:[%s73] sm:$0xff]
        %v10146 = vld [vmem:[%s73 + $0x8] sm:$0xff]
        %v10147 = vld [vmem:[%s73 + $0x10] sm:$0xff]
        %v10148 = vld [vmem:[%s73 + $0x18] sm:$0xff]
        %v10149 = vld [vmem:[%s75] sm:$0x1]
        %vm10150 = vcmask 261120
        %v10152 = vsel %vm10150, %v10144, 0
        %10154 = vmatprep.subr.mxu0 0.0
        %10155 = vmatpush1.msra.mxu0 0.0
        %10156 = vmatprep.subr.mxu0 0.0
        %10157 = vmatpush1.msra.mxu0 0.0
        %10158 = vmatprep.subr.mxu0 0.0
        %10159 = vmatpush1.msra.mxu0 0.0
        %10160 = vmatprep.subr.mxu0 0.0
        %10161 = vmatpush1.msra.mxu0 0.0
        %10162 = vmatprep.subr.mxu0 0.0
        %10163 = vmatpush1.msra.mxu0 0.0
        %10164 = vmatprep.subr.mxu0 0.0
        %10165 = vmatpush1.msra.mxu0 0.0
        %10166 = vmatprep.subr.mxu0 0.0
        %10167 = vmatpush1.msra.mxu0 0.0
        %10168 = vmatprep.subr.mxu0 0.0
        %10169 = vmatpush1.msra.mxu0 0.0
        %10170 = vmatprep.subr.mxu0 0.0
        %10171 = vmatpush1.msra.mxu0 0.0
        %10172 = vmatprep.subr.mxu0 0.0
        %10173 = vmatpush1.msra.mxu0 0.0
        %10174 = vmatprep.subr.mxu0 0.0
        %10175 = vmatpush1.msra.mxu0 0.0
        %10176 = vmatprep.subr.mxu0 0.0
        %10177 = vmatpush1.msra.mxu0 0.0
        %10178 = vmatprep.subr.mxu0 0.0
        %10179 = vmatpush1.msra.mxu0 %v10148
        %10180 = vmatprep.subr.mxu0 0.0
        %10181 = vmatpush1.msra.mxu0 %v10147
        %10182 = vmatprep.subr.mxu0 0.0
        %10183 = vmatpush1.msra.mxu0 %v10146
        %10184 = vmatprep.subr.mxu0 0.0
        %10185 = vmatpush1.msra.mxu0 %v10145
        %10186 = vmatprep.subr.mxu0 0.0
        %10187 = vmatpush2.msra.mxu0 0.0
        %10188 = vmatprep.subr.mxu0 0.0
        %10189 = vmatpush2.msra.mxu0 0.0
        %10190 = vmatprep.subr.mxu0 0.0
        %10191 = vmatpush2.msra.mxu0 0.0
        %10192 = vmatprep.subr.mxu0 0.0
        %10193 = vmatpush2.msra.mxu0 0.0
        %10194 = vmatprep.subr.mxu0 0.0
        %10195 = vmatpush2.msra.mxu0 0.0
        %10196 = vmatprep.subr.mxu0 0.0
        %10197 = vmatpush2.msra.mxu0 0.0
        %10198 = vmatprep.subr.mxu0 0.0
        %10199 = vmatpush2.msra.mxu0 0.0
        %10200 = vmatprep.subr.mxu0 0.0
        %10201 = vmatpush2.msra.mxu0 0.0
        %10202 = vmatprep.subr.mxu0 0.0
        %10203 = vmatpush2.msra.mxu0 0.0
        %10204 = vmatprep.subr.mxu0 0.0
        %10205 = vmatpush2.msra.mxu0 0.0
        %10206 = vmatprep.subr.mxu0 0.0
        %10207 = vmatpush2.msra.mxu0 0.0
        %10208 = vmatprep.subr.mxu0 0.0
        %10209 = vmatpush2.msra.mxu0 0.0
        %10210 = vmatprep.subr.mxu0 0.0
        %10211 = vmatpush2.msra.mxu0 0.0
        %10212 = vmatprep.subr.mxu0 0.0
        %10213 = vmatpush2.msra.mxu0 0.0
        %10214 = vmatprep.subr.mxu0 0.0
        %10215 = vmatpush2.msra.mxu0 0.0
        %10216 = vmatprep.subr.mxu0 0.0
        %10217 = vmatpush2.msra.mxu0 0.0
        %10218 = vmatprep.mubr.f32.mxu0 0.0
        %10219 = vmatmul.mubr.f32.gmra.mxu0 %v10152
        %v10220 = vpop.f32.mrf.mxu0
        %v10221 = vadd.f32 %v10149, %v10220
        %v10222 = vpop.f32.mrf.mxu0
        %10223 = vdwg.mxu0
        %vm10224 = vcmask 73728
        %v10225 = vsel %vm10224, %v10221, -inf
        %10226 = vmax.xlane.f32.xlu0 %v10225
        %v10227 = vpop.xlane.xlu0 %10226
        %v10228 = vsub.f32 %v10221, %v10227
        %v10229 = vmul.f32 %v10228, 1.442695
        %v10230 = vpow.pop %v10229
        %v10231 = vsel %vm10224, %v10230, 0.0
        %10232 = vadd.xlane.f32.xlu0 %v10231
        %v10233 = vpop.xlane.xlu0 %10232
        %v10234 = vlog2.pop %v10233
        %v10235 = vmul.f32 %v10234, 0.6931472
        %v10236 = vsub.f32 %v10228, %v10235
        %10237 = vst.msk [vmem:[%s1146] sm:$0x1] %vm10224, %v10236
        %s10238 = sand.u32 %s902, 1
        %s10239 = scalar_lea.sflag [#allocation3], %s10238
        %s10240 = sand.u32 %s902, 1
        %s10241 = scalar_lea.vmem [#allocation2], %s10240
        // Predicated region
        $region173: #{_lambda_.1} parent=171 // pred_check
          %p10242 = pneg %p912
        $region174: #{_lambda_.1} parent=171 // pred_check_branch
          %10244 = sbr.rel (%p10242) target = $region176
        $region175: #{_lambda_.1} parent=171 // pred_region
          %s10246 = ssub.s32 16, 16
          %10247 = vsyncadd %s10239, %s10246
          %s10248 = smul.addr %s91, 16
          %s10249 = scalar_lea.hbm %s77, %s10248
          %s10251 = sshll.u32 %s10241, 4
          %s10252 = int_to_ptr.vmem [resolvable:$true] %s10251
          %10254 = dma.vmem_to_hbm [thread:$0]  %s10252, 16, %s10249, %s10239
        $region176: #{_lambda_.1} parent=171 // pred_fallthru
          _
      $region172: #{_lambda_.1} parent=5 // pred_fallthru
        _
      %p10255 = scmp.le.s32.totalorder 2, %s86
      // Predicated region
      $region177: #{_lambda_.1} parent=5 // pred_check
        %p10256 = pneg %p10255
      $region178: #{_lambda_.1} parent=5 // pred_check_branch
        %10258 = sbr.rel (%p10256) target = $region180
      $region179: #{_lambda_.1} parent=5 // pred_region
        %s10259 = ssub.s32 %s86, 2
        // Predicated region
        $region181: #{_lambda_.1} parent=179 // pred_check
          %p10260 = pneg %p918
        $region182: #{_lambda_.1} parent=179 // pred_check_branch
          %10262 = sbr.rel (%p10260) target = $region184
        $region183: #{_lambda_.1} parent=179 // pred_region
          %s10263 = sand.u32 %s903, 1
          %s10264 = scalar_lea.sflag [#allocation3], %s10263
          %s10265 = sand.u32 %s903, 1
          %s10266 = scalar_lea.vmem [#allocation2], %s10265
          %10267 = dma.done %s10264, 16
        $region184: #{_lambda_.1} parent=179 // pred_fallthru
          _
      $region180: #{_lambda_.1} parent=5 // pred_fallthru
        _
    $region6: #{_lambda_.1} parent=1 // loop_footer
      %s90 = sadd.s32 1, %s86
    $region7: #{_lambda_.1} parent=1 // loop_footer_branch
      %85 = sbr.rel target = $region3
    $region8: #{_lambda_.1} parent=1 // loop_exit
      _
    %10268 = vsyncpa [#allocation3], 1
    %s10269 = scalar_lea.sflag [#allocation3], 1
    %10270 = vsyncpa %s10269, 1

</llo_original>
